<compile_context>
chip_gen: v6e
topology: v6e:2x2x1
jax: 0.10.0
libtpu: 0.0.40
codegen_flags: <defaults>
</compile_context>

<pallas_src>
import functools
import math

import jax
import jax.numpy as jnp
from jax import lax
from jax.experimental import pallas as pl
from jax.experimental.pallas import tpu as pltpu


MXU_DTYPE = jnp.bfloat16        # matmul operand dtype (f32 accumulation)
ATTN_DTYPE = jnp.bfloat16       # returned attention-weight dtype (perf review)
RESIDUAL_DTYPE = jnp.bfloat16   # inter-layer residual stream dtype (f32 in-kernel)


def _vmem_limit_bytes():
    """~75% of physical VMEM: ~96 MiB on v5e/v6e (128 MiB), ~48 MiB on v7x (64 MiB)."""
    try:
        cap = pltpu.get_tpu_info().vmem_capacity_bytes
    except Exception:
        cap = 64 * 1024 * 1024
    return min(int(cap) * 3 // 4, 100 * 1024 * 1024)


def _pick_block_batch(B, T, target_rows=256):
    """Batch elements per grid step so Bt*T roughly fills the MXU M dimension."""
    bt = max(1, min(B, -(-target_rows // max(T, 1))))
    while bt > 1 and B % bt:
        bt -= 1
    # v7x megacore: prefer >= 2 grid steps when per-step rows stay large enough.
    if B // bt == 1 and B % 2 == 0 and (B // 2) * T >= target_rows:
        bt = B // 2
    return bt


# ------------------------------ kernel helpers -------------------------------

def _mm(a, w):
    """MXU matmul: bf16 operands, f32 accumulation."""
    return lax.dot_general(
        a.astype(MXU_DTYPE), w.astype(MXU_DTYPE),
        (((a.ndim - 1,), (0,)), ((), ())),
        preferred_element_type=jnp.float32)


def _ln(x, g, b, eps=1e-5):
    mu = jnp.mean(x, axis=-1, keepdims=True)
    var = jnp.mean(jnp.square(x - mu), axis=-1, keepdims=True)
    return (x - mu) * lax.rsqrt(var + eps) * g + b


def _softmax_rows(s):
    s = s - jnp.max(s, axis=-1, keepdims=True)
    e = jnp.exp(s)
    return e * pl.reciprocal(jnp.sum(e, axis=-1, keepdims=True), approx=True)


def _mha(q, k, v, bias, a_ref, o_scr, Bt, Tq, Tk, H, dh):
    """Multi-head attention on flattened activations.

    q: (Bt*Tq, H*dh), k/v: (Bt*Tk, H*dh) — q is pre-scaled (1/sqrt(dh) folded
    into the projection weights).  bias: (Bt, Tq, Tk), already multiplied by
    -1e9 on the host.  Per-head context vectors are written into lane slices
    of the o_scr VMEM scratch (no lane concat); all heads' probabilities are
    stored to a_ref with a single write.
    """
    probs = []
    for hh in range(H):
        sl = slice(hh * dh, (hh + 1) * dh)
        qh = q[:, sl].reshape(Bt, Tq, dh).astype(MXU_DTYPE)
        kh = k[:, sl].reshape(Bt, Tk, dh).astype(MXU_DTYPE)
        vh = v[:, sl].reshape(Bt, Tk, dh).astype(MXU_DTYPE)
        s = jnp.einsum('bqd,bkd->bqk', qh, kh,
                       preferred_element_type=jnp.float32) + bias
        p = _softmax_rows(s)
        probs.append(p)
        oh = jnp.einsum('bqk,bkd->bqd', p.astype(MXU_DTYPE), vh,
                        preferred_element_type=jnp.float32)
        o_scr[:, sl] = oh.reshape(Bt * Tq, dh)
    a_ref[...] = jnp.stack(probs, axis=1).astype(a_ref.dtype)   # one store / step
    return o_scr[...]


# --------------------------- fused decoder layer ------------------------------

def _layer_kernel(x_ref, enc_ref, tb_ref, eb_ref,
                  sa_g, sa_b, sa_wqkv, sa_bqkv, sa_wo, sa_bo,
                  ca_g, ca_b, ca_wq, ca_bq, ca_wkv, ca_bkv, ca_wo, ca_bo,
                  f_g, f_b, f_w1, f_b1, f_w2, f_b2,
                  y_ref, a1_ref, a2_ref, o_scr, *, num_heads, k1):
    Bt, T, D = x_ref.shape
    Tk = enc_ref.shape[1]
    F = f_w1.shape[2]
    dh = D // num_heads

    x = x_ref[...].astype(jnp.float32).reshape(Bt * T, D)

    # -------- self-attention (pre-LN, fused QKV projection) --------
    h = _ln(x, sa_g[...], sa_b[...])
    qkv = _mm(h, sa_wqkv[...]) + sa_bqkv[...]                      # (Bt*T, 3D)
    o = _mha(qkv[:, :D], qkv[:, D:2 * D], qkv[:, 2 * D:],
             tb_ref[:, 0].astype(jnp.float32), a1_ref, o_scr,
             Bt, T, T, num_heads, dh)
    x = x + _mm(o, sa_wo[...]) + sa_bo[...]

    # -------- cross-attention --------
    enc = enc_ref[...].astype(jnp.float32).reshape(Bt * Tk, D)
    h = _ln(x, ca_g[...], ca_b[...])
    q = _mm(h, ca_wq[...]) + ca_bq[...]                            # (Bt*T, D)
    kv = _mm(enc, ca_wkv[...]) + ca_bkv[...]                       # (Bt*Tk, 2D)
    o = _mha(q, kv[:, :D], kv[:, D:],
             eb_ref[:, 0].astype(jnp.float32), a2_ref, o_scr,
             Bt, T, Tk, num_heads, dh)
    x = x + _mm(o, ca_wo[...]) + ca_bo[...]

    # -------- conv-FFN: Conv1d(k=k1,'same') -> ReLU -> Conv1d(k=1) --------
    # K taps accumulated as (Bt*T,D)@(D,F) matmuls on roll-shifted activations
    # with boundary masking (handles both sequence edges and the Bt sequence
    # boundaries of the flattened layout).
    h = _ln(x, f_g[...], f_b[...])                                 # (Bt*T, D)
    rows = Bt * T
    pad = k1 // 2
    t_pos = lax.broadcasted_iota(jnp.int32, (rows, 1), 0) % T
    acc = jnp.zeros((rows, F), jnp.float32)
    for k in range(k1):
        d = k - pad
        if d == 0:
            tap = h
        else:
            rolled = pltpu.roll(h, shift=(-d) % rows, axis=0)      # XLU sublane roll
            valid = jnp.logical_and(t_pos + d >= 0, t_pos + d < T)
            tap = jnp.where(valid, rolled, 0.0)
        acc = acc + _mm(tap, f_w1[k])
    a = jnp.maximum(acc + f_b1[...], 0.0)
    y = _mm(a, f_w2[...]) + f_b2[...]
    y_ref[...] = (x + y).reshape(Bt, T, D).astype(y_ref.dtype)


def fused_decoder_layer(x, enc, tgt_bias, enc_bias, p, num_heads, k1, out_dtype):
    """One ResidualAttentionBlock as a single fused pallas_call."""
    B, T, D = x.shape
    Tk = enc.shape[1]
    sa, ca, fp = p["self_attn"], p["cross_attn"], p["ffn"]
    K1, _, F = fp["w1"].shape
    assert K1 == k1 and D % num_heads == 0

    Bt = _pick_block_batch(B, T)
    grid = (B // Bt,)
    kernel = functools.partial(_layer_kernel, num_heads=num_heads, k1=k1)

    def rep(*shape):  # replicated (weight/bias) operand: same block every step
        nd = len(shape)
        return pl.BlockSpec(shape, lambda b, nd=nd: (0,) * nd)

    # TODO(synk): at production sizes (D=512, F=2048, T=300) add an F-tiling
    # grid axis for the FFN weights and a KV tile for attention so resident
    # weights stay under v7x's 64 MiB VMEM.
    # TODO(synk): single-buffer the constant weight BlockSpecs
    # (pipeline_mode=pl.Buffered(1)) for extra VMEM headroom on v7x.
    in_specs = [
        pl.BlockSpec((Bt, T, D), lambda b: (b, 0, 0)),
        pl.BlockSpec((Bt, Tk, D), lambda b: (b, 0, 0)),
        pl.BlockSpec((Bt, 1, T, T), lambda b: (b, 0, 0, 0)),
        pl.BlockSpec((Bt, 1, T, Tk), lambda b: (b, 0, 0, 0)),
        # self-attention params
        rep(1, D), rep(1, D), rep(D, 3 * D), rep(1, 3 * D), rep(D, D), rep(1, D),
        # cross-attention params
        rep(1, D), rep(1, D), rep(D, D), rep(1, D), rep(D, 2 * D), rep(1, 2 * D),
        rep(D, D), rep(1, D),
        # conv-FFN params
        rep(1, D), rep(1, D), rep(K1, D, F), rep(1, F), rep(F, D), rep(1, D),
    ]
    out_specs = [
        pl.BlockSpec((Bt, T, D), lambda b: (b, 0, 0)),
        pl.BlockSpec((Bt, num_heads, T, T), lambda b: (b, 0, 0, 0)),
        pl.BlockSpec((Bt, num_heads, T, Tk), lambda b: (b, 0, 0, 0)),
    ]
    out_shape = [
        jax.ShapeDtypeStruct((B, T, D), out_dtype),
        jax.ShapeDtypeStruct((B, num_heads, T, T), ATTN_DTYPE),
        jax.ShapeDtypeStruct((B, num_heads, T, Tk), ATTN_DTYPE),
    ]
    return pl.pallas_call(
        kernel,
        grid=grid,
        in_specs=in_specs,
        out_specs=out_specs,
        out_shape=out_shape,
        scratch_shapes=[pltpu.VMEM((Bt * T, D), jnp.float32)],
        compiler_params=pltpu.CompilerParams(
            dimension_semantics=("parallel",),
            vmem_limit_bytes=_vmem_limit_bytes()),
    )(x, enc, tgt_bias, enc_bias,
      sa["ln_g"], sa["ln_b"], sa["wqkv"], sa["bqkv"], sa["wo"], sa["bo"],
      ca["ln_g"], ca["ln_b"], ca["wq"], ca["bq"], ca["wkv"], ca["bkv"],
      ca["wo"], ca["bo"],
      fp["ln_g"], fp["ln_b"], fp["w1"], fp["b1"], fp["w2"], fp["b2"])


# ------------------------------ model assembly -------------------------------

def decoder_forward(params, encoder_outs, decoder_targets,
                    dec_target_padding_mask, dec_padding_mask, num_heads, k1):
    # decoder_targets arrives pre-embedded: (B, T, D) (self.embed is unused in
    # the reference forward).
    B, T, D = decoder_targets.shape
    x = decoder_targets + params["pos_emb"][:T][None, :, :]
    # Pre-scale the additive masks once on the host (kernel does a single add).
    tgt_bias = dec_target_padding_mask.astype(jnp.float32) * (-1e9)
    enc_bias = dec_padding_mask.astype(jnp.float32) * (-1e9)

    n = len(params["blocks"])
    attention_weights = []
    attn2_all = []
    for i, p in enumerate(params["blocks"]):
        out_dtype = decoder_targets.dtype if i == n - 1 else RESIDUAL_DTYPE
        x, a1, a2 = fused_decoder_layer(
            x, encoder_outs, tgt_bias, enc_bias, p, num_heads, k1, out_dtype)
        attention_weights += [a1, a2]
        attn2_all.append(a2)
    # Reference quirk: `for j in range(0, i): att3 = sum(attn2[j], dim=1)` --
    # only j == num_layers-2 survives; compute just that one reduction.
    att3 = (jnp.sum(attn2_all[n - 2].astype(jnp.float32), axis=1)
            if n >= 2 else None)
    return x, attention_weights, att3


# ---------------------------------- params -----------------------------------

def init_params(key, num_layers, D, F, K1, maxlen, num_heads):
    # Softmax scale 1/sqrt(dh) is folded into the q-projection weights.
    scale = 1.0 / math.sqrt(D // num_heads)
    ks = jax.random.split(key, 1 + num_layers)
    params = {"pos_emb": 0.02 * jax.random.normal(ks[0], (maxlen, D), jnp.float32)}

    def _w(k, shape):
        return 0.02 * jax.random.normal(k, shape, jnp.float32)

    def self_attn_params(k):
        kk = jax.random.split(k, 4)
        wq = _w(kk[0], (D, D)) * scale
        return {
            "ln_g": jnp.ones((1, D), jnp.float32),
            "ln_b": jnp.zeros((1, D), jnp.float32),
            "wqkv": jnp.concatenate([wq, _w(kk[1], (D, D)), _w(kk[2], (D, D))],
                                    axis=1).astype(MXU_DTYPE),
            "bqkv": jnp.zeros((1, 3 * D), jnp.float32),  # q slice would be *scale too
            "wo": _w(kk[3], (D, D)).astype(MXU_DTYPE),
            "bo": jnp.zeros((1, D), jnp.float32),
        }

    def cross_attn_params(k):
        kk = jax.random.split(k, 4)
        return {
            "ln_g": jnp.ones((1, D), jnp.float32),
            "ln_b": jnp.zeros((1, D), jnp.float32),
            "wq": (_w(kk[0], (D, D)) * scale).astype(MXU_DTYPE),
            "bq": jnp.zeros((1, D), jnp.float32),
            "wkv": jnp.concatenate([_w(kk[1], (D, D)), _w(kk[2], (D, D))],
                                   axis=1).astype(MXU_DTYPE),
            "bkv": jnp.zeros((1, 2 * D), jnp.float32),
            "wo": _w(kk[3], (D, D)).astype(MXU_DTYPE),
            "bo": jnp.zeros((1, D), jnp.float32),
        }

    def ffn_params(k):
        kk = jax.random.split(k, 2)
        # Conv1d(k=K1) weight stored as (K1, D, F); porting a trained PyTorch
        # Conv1d weight (F, D, K1) requires w1 = torch_w.transpose(2, 1, 0).
        return {
            "ln_g": jnp.ones((1, D), jnp.float32),
            "ln_b": jnp.zeros((1, D), jnp.float32),
            "w1": _w(kk[0], (K1, D, F)).astype(MXU_DTYPE),
            "b1": jnp.zeros((1, F), jnp.float32),
            "w2": _w(kk[1], (F, D)).astype(MXU_DTYPE),
            "b2": jnp.zeros((1, D), jnp.float32),
        }

    blocks = []
    for i in range(num_layers):
        bk = jax.random.split(ks[1 + i], 3)
        blocks.append({
            "self_attn": self_attn_params(bk[0]),
            "cross_attn": cross_attn_params(bk[1]),
            "ffn": ffn_params(bk[2]),
        })
    params["blocks"] = blocks
    return params


# ----------------------------- pure-jnp reference -----------------------------

def _reference_forward(params, encoder_outs, decoder_targets,
                       dec_target_padding_mask, dec_padding_mask, num_heads, k1):
    """Pure f32 jnp reference with the same math/params (for tolerance testing)."""
    f32 = jnp.float32
    H = num_heads
    B, T, D = decoder_targets.shape
    dh = D // H
    x = decoder_targets.astype(f32) + params["pos_emb"][:T][None].astype(f32)
    tgt_bias = dec_target_padding_mask.astype(f32) * (-1e9)
    enc_bias = dec_padding_mask.astype(f32) * (-1e9)
    enc = encoder_outs.astype(f32)

    def ln(v, g, b, eps=1e-5):
        mu = jnp.mean(v, -1, keepdims=True)
        var = jnp.mean(jnp.square(v - mu), -1, keepdims=True)
        return (v - mu) / jnp.sqrt(var + eps) * g.astype(f32) + b.astype(f32)

    def mha(q, k, v, bias):
        Tq, Tkk = q.shape[1], k.shape[1]
        qh = q.reshape(B, Tq, H, dh).transpose(0, 2, 1, 3)
        kh = k.reshape(B, Tkk, H, dh).transpose(0, 2, 1, 3)
        vh = v.reshape(B, Tkk, H, dh).transpose(0, 2, 1, 3)
        s = jnp.einsum('bhqd,bhkd->bhqk', qh, kh) + bias
        p = jax.nn.softmax(s, axis=-1)
        o = jnp.einsum('bhqk,bhkd->bhqd', p, vh)
        return o.transpose(0, 2, 1, 3).reshape(B, Tq, D), p

    attn_ws, attn2s = [], []
    for p in params["blocks"]:
        sa, ca, fp = p["self_attn"], p["cross_attn"], p["ffn"]
        h = ln(x, sa["ln_g"], sa["ln_b"])
        qkv = h @ sa["wqkv"].astype(f32) + sa["bqkv"].astype(f32)
        o, a1 = mha(qkv[..., :D], qkv[..., D:2 * D], qkv[..., 2 * D:], tgt_bias)
        x = x + o @ sa["wo"].astype(f32) + sa["bo"].astype(f32)

        h = ln(x, ca["ln_g"], ca["ln_b"])
        q = h @ ca["wq"].astype(f32) + ca["bq"].astype(f32)
        kv = enc @ ca["wkv"].astype(f32) + ca["bkv"].astype(f32)
        o, a2 = mha(q, kv[..., :D], kv[..., D:], enc_bias)
        x = x + o @ ca["wo"].astype(f32) + ca["bo"].astype(f32)

        h = ln(x, fp["ln_g"], fp["ln_b"])
        pad = k1 // 2
        hp = jnp.pad(h, ((0, 0), (pad, pad), (0, 0)))
        w1 = fp["w1"].astype(f32)
        act = sum(jnp.einsum('btd,df->btf', hp[:, k:k + T], w1[k]) for k in range(k1))
        act = jnp.maximum(act + fp["b1"].astype(f32), 0.0)
        x = x + act @ fp["w2"].astype(f32) + fp["b2"].astype(f32)

        attn_ws += [a1, a2]
        attn2s.append(a2)
    n = len(params["blocks"])
    att3 = jnp.sum(attn2s[n - 2], axis=1) if n >= 2 else None
    return x, attn_ws, att3


# ----------------------------------- main -------------------------------------

if __name__ == "__main__":
    # small shapes consistent with the module defaults (scaled down)
    B, T_DEC, T_ENC = 2, 8, 16
    D, H, F, K1 = 32, 4, 64, 5
    NUM_LAYERS, MAXLEN = 2, 64

    key = jax.random.PRNGKey(0)
    k_par, k_enc, k_tgt = jax.random.split(key, 3)

    params = init_params(k_par, NUM_LAYERS, D, F, K1, MAXLEN, H)

    encoder_outs = jax.random.normal(k_enc, (B, T_ENC, D), jnp.float32)
    decoder_targets = jax.random.normal(k_tgt, (B, T_DEC, D), jnp.float32)  # pre-embedded

    # masks: 1 = masked (additive * -1e9), 0 = attend
    look_ahead = 1.0 - jnp.tril(jnp.ones((T_DEC, T_DEC), jnp.float32))
    tgt_pad = jnp.zeros((B, T_DEC), jnp.float32).at[:, -1].set(1.0)
    dec_target_padding_mask = jnp.maximum(
        look_ahead[None, None, :, :], tgt_pad[:, None, None, :])            # (B,1,Td,Td)
    enc_pad = jnp.zeros((B, T_ENC), jnp.float32).at[0, -2:].set(1.0)
    dec_padding_mask = jnp.broadcast_to(
        enc_pad[:, None, None, :], (B, 1, T_DEC, T_ENC))                    # (B,1,Td,Te)

    fwd = jax.jit(functools.partial(decoder_forward, num_heads=H, k1=K1))
    x, attention_weights, att3 = fwd(
        params, encoder_outs, decoder_targets,
        dec_target_padding_mask, dec_padding_mask)

    jax.block_until_ready(x)
    for a in attention_weights:
        jax.block_until_ready(a)
    if att3 is not None:
        jax.block_until_ready(att3)

    assert x.shape == (B, T_DEC, D)
    assert len(attention_weights) == 2 * NUM_LAYERS
    assert attention_weights[0].shape == (B, H, T_DEC, T_DEC)
    assert attention_weights[1].shape == (B, H, T_DEC, T_ENC)
    assert att3 is None or att3.shape == (B, T_DEC, T_ENC)

    # Tolerance test vs. a pure f32 jnp reference (bf16 matmuls / bf16 attn
    # weights / approx reciprocal are documented deviations).
    xr, awr, att3r = _reference_forward(
        params, encoder_outs, decoder_targets,
        dec_target_padding_mask, dec_padding_mask, H, K1)
    assert jnp.allclose(x.astype(jnp.float32), xr, rtol=5e-2, atol=5e-2)
    for a, ar in zip(attention_weights, awr):
        assert jnp.allclose(a.astype(jnp.float32), ar, rtol=5e-2, atol=2e-2)
    if att3 is not None:
        assert jnp.allclose(att3, att3r, rtol=5e-2, atol=5e-2)

    # TODO(synk): nn.Dropout (eval no-op), unused self.embed Embedding lookup,
    # and matplotlib save_att_matrix are not part of the kernel.
    print("KERNEL_OK")
</pallas_src>

<mosaic_0001>
module attributes {stable_mosaic.version = 11 : i64} {
  func.func @_layer_kernel(%arg0: i32, %arg1: memref<2x8x32xbf16, #tpu.memory_space<vmem>>, %arg2: memref<2x16x32xf32, #tpu.memory_space<vmem>>, %arg3: memref<2x1x8x8xf32, #tpu.memory_space<vmem>>, %arg4: memref<2x1x8x16xf32, #tpu.memory_space<vmem>>, %arg5: memref<1x32xf32, #tpu.memory_space<vmem>>, %arg6: memref<1x32xf32, #tpu.memory_space<vmem>>, %arg7: memref<32x96xbf16, #tpu.memory_space<vmem>>, %arg8: memref<1x96xf32, #tpu.memory_space<vmem>>, %arg9: memref<32x32xbf16, #tpu.memory_space<vmem>>, %arg10: memref<1x32xf32, #tpu.memory_space<vmem>>, %arg11: memref<1x32xf32, #tpu.memory_space<vmem>>, %arg12: memref<1x32xf32, #tpu.memory_space<vmem>>, %arg13: memref<32x32xbf16, #tpu.memory_space<vmem>>, %arg14: memref<1x32xf32, #tpu.memory_space<vmem>>, %arg15: memref<32x64xbf16, #tpu.memory_space<vmem>>, %arg16: memref<1x64xf32, #tpu.memory_space<vmem>>, %arg17: memref<32x32xbf16, #tpu.memory_space<vmem>>, %arg18: memref<1x32xf32, #tpu.memory_space<vmem>>, %arg19: memref<1x32xf32, #tpu.memory_space<vmem>>, %arg20: memref<1x32xf32, #tpu.memory_space<vmem>>, %arg21: memref<5x32x64xbf16, #tpu.memory_space<vmem>>, %arg22: memref<1x64xf32, #tpu.memory_space<vmem>>, %arg23: memref<64x32xbf16, #tpu.memory_space<vmem>>, %arg24: memref<1x32xf32, #tpu.memory_space<vmem>>, %arg25: memref<2x8x32xf32, #tpu.memory_space<vmem>>, %arg26: memref<2x4x8x8xbf16, #tpu.memory_space<vmem>>, %arg27: memref<2x4x8x16xbf16, #tpu.memory_space<vmem>>, %arg28: memref<16x32xf32, #tpu.memory_space<vmem>>) attributes {dimension_semantics = [#tpu.dimension_semantics<parallel>], iteration_bounds = array<i64: 1>, scalar_prefetch = 0 : i64, scratch_operands = 1 : i64, tpu.core_type = #tpu.core_type<tc>, window_params = [{transform_indices = @transform_0, window_bounds = array<i64: 2, 8, 32>}, {transform_indices = @transform_1, window_bounds = array<i64: 2, 16, 32>}, {transform_indices = @transform_2, window_bounds = array<i64: 2, 1, 8, 8>}, {transform_indices = @transform_3, window_bounds = array<i64: 2, 1, 8, 16>}, {pipeline_mode = #tpu.pipeline_mode<synchronous>, transform_indices = @transform_4, window_bounds = array<i64: 1, 32>}, {pipeline_mode = #tpu.pipeline_mode<synchronous>, transform_indices = @transform_5, window_bounds = array<i64: 1, 32>}, {pipeline_mode = #tpu.pipeline_mode<synchronous>, transform_indices = @transform_6, window_bounds = array<i64: 32, 96>}, {pipeline_mode = #tpu.pipeline_mode<synchronous>, transform_indices = @transform_7, window_bounds = array<i64: 1, 96>}, {pipeline_mode = #tpu.pipeline_mode<synchronous>, transform_indices = @transform_8, window_bounds = array<i64: 32, 32>}, {pipeline_mode = #tpu.pipeline_mode<synchronous>, transform_indices = @transform_9, window_bounds = array<i64: 1, 32>}, {pipeline_mode = #tpu.pipeline_mode<synchronous>, transform_indices = @transform_10, window_bounds = array<i64: 1, 32>}, {pipeline_mode = #tpu.pipeline_mode<synchronous>, transform_indices = @transform_11, window_bounds = array<i64: 1, 32>}, {pipeline_mode = #tpu.pipeline_mode<synchronous>, transform_indices = @transform_12, window_bounds = array<i64: 32, 32>}, {pipeline_mode = #tpu.pipeline_mode<synchronous>, transform_indices = @transform_13, window_bounds = array<i64: 1, 32>}, {pipeline_mode = #tpu.pipeline_mode<synchronous>, transform_indices = @transform_14, window_bounds = array<i64: 32, 64>}, {pipeline_mode = #tpu.pipeline_mode<synchronous>, transform_indices = @transform_15, window_bounds = array<i64: 1, 64>}, {pipeline_mode = #tpu.pipeline_mode<synchronous>, transform_indices = @transform_16, window_bounds = array<i64: 32, 32>}, {pipeline_mode = #tpu.pipeline_mode<synchronous>, transform_indices = @transform_17, window_bounds = array<i64: 1, 32>}, {pipeline_mode = #tpu.pipeline_mode<synchronous>, transform_indices = @transform_18, window_bounds = array<i64: 1, 32>}, {pipeline_mode = #tpu.pipeline_mode<synchronous>, transform_indices = @transform_19, window_bounds = array<i64: 1, 32>}, {pipeline_mode = #tpu.pipeline_mode<synchronous>, transform_indices = @transform_20, window_bounds = array<i64: 5, 32, 64>}, {pipeline_mode = #tpu.pipeline_mode<synchronous>, transform_indices = @transform_21, window_bounds = array<i64: 1, 64>}, {pipeline_mode = #tpu.pipeline_mode<synchronous>, transform_indices = @transform_22, window_bounds = array<i64: 64, 32>}, {pipeline_mode = #tpu.pipeline_mode<synchronous>, transform_indices = @transform_23, window_bounds = array<i64: 1, 32>}, {transform_indices = @transform_24, window_bounds = array<i64: 2, 8, 32>}, {transform_indices = @transform_25, window_bounds = array<i64: 2, 4, 8, 8>}, {transform_indices = @transform_26, window_bounds = array<i64: 2, 4, 8, 16>}]} {
    %c0 = arith.constant 0 : index
    %c0_0 = arith.constant 0 : index
    %c0_1 = arith.constant 0 : index
    %0 = vector.load %arg1[%c0, %c0_0, %c0_1] : memref<2x8x32xbf16, #tpu.memory_space<vmem>>, vector<2x8x32xbf16>
    %1 = arith.extf %0 : vector<2x8x32xbf16> to vector<2x8x32xf32>
    %2 = vector.shape_cast %1 : vector<2x8x32xf32> to vector<16x32xf32>
    %c0_2 = arith.constant 0 : index
    %c0_3 = arith.constant 0 : index
    %3 = vector.load %arg5[%c0_2, %c0_3] : memref<1x32xf32, #tpu.memory_space<vmem>>, vector<1x32xf32>
    %c0_4 = arith.constant 0 : index
    %c0_5 = arith.constant 0 : index
    %4 = vector.load %arg6[%c0_4, %c0_5] : memref<1x32xf32, #tpu.memory_space<vmem>>, vector<1x32xf32>
    %cst = arith.constant dense<0.000000e+00> : vector<16xf32>
    %5 = vector.multi_reduction <add>, %2, %cst [1] : vector<16x32xf32> to vector<16xf32>
    %6 = vector.shape_cast %5 : vector<16xf32> to vector<16x1xf32>
    %cst_6 = arith.constant 3.200000e+01 : f32
    %7 = vector.broadcast %cst_6 : f32 to vector<16x1xf32>
    %8 = arith.divf %6, %7 : vector<16x1xf32>
    %9 = vector.broadcast %8 : vector<16x1xf32> to vector<16x32xf32>
    %10 = arith.subf %2, %9 : vector<16x32xf32>
    %11 = arith.mulf %10, %10 : vector<16x32xf32>
    %cst_7 = arith.constant dense<0.000000e+00> : vector<16xf32>
    %12 = vector.multi_reduction <add>, %11, %cst_7 [1] : vector<16x32xf32> to vector<16xf32>
    %13 = vector.shape_cast %12 : vector<16xf32> to vector<16x1xf32>
    %cst_8 = arith.constant 3.200000e+01 : f32
    %14 = vector.broadcast %cst_8 : f32 to vector<16x1xf32>
    %15 = arith.divf %13, %14 : vector<16x1xf32>
    %16 = vector.broadcast %8 : vector<16x1xf32> to vector<16x32xf32>
    %17 = arith.subf %2, %16 : vector<16x32xf32>
    %cst_9 = arith.constant 9.99999974E-6 : f32
    %18 = vector.broadcast %cst_9 : f32 to vector<16x1xf32>
    %19 = arith.addf %15, %18 : vector<16x1xf32>
    %20 = math.rsqrt %19 : vector<16x1xf32>
    %21 = vector.broadcast %20 : vector<16x1xf32> to vector<16x32xf32>
    %22 = arith.mulf %17, %21 : vector<16x32xf32>
    %23 = vector.broadcast %3 : vector<1x32xf32> to vector<16x32xf32>
    %24 = arith.mulf %22, %23 : vector<16x32xf32>
    %25 = vector.broadcast %4 : vector<1x32xf32> to vector<16x32xf32>
    %26 = arith.addf %24, %25 : vector<16x32xf32>
    %c0_10 = arith.constant 0 : index
    %c0_11 = arith.constant 0 : index
    %27 = vector.load %arg7[%c0_10, %c0_11] : memref<32x96xbf16, #tpu.memory_space<vmem>>, vector<32x96xbf16>
    %28 = arith.truncf %26 : vector<16x32xf32> to vector<16x32xbf16>
    %cst_12 = arith.constant dense<0.000000e+00> : vector<16x96xf32>
    %29 = tpu.matmul %28, %27, %cst_12 {dimension_numbers = #tpu.dot_dimension_numbers<[1], [0], [0], [1], [0, 0, 1, 1], [], []>} : vector<16x32xbf16>, vector<32x96xbf16>, vector<16x96xf32> -> vector<16x96xf32>
    %c0_13 = arith.constant 0 : index
    %c0_14 = arith.constant 0 : index
    %30 = vector.load %arg8[%c0_13, %c0_14] : memref<1x96xf32, #tpu.memory_space<vmem>>, vector<1x96xf32>
    %31 = vector.broadcast %30 : vector<1x96xf32> to vector<16x96xf32>
    %32 = arith.addf %29, %31 : vector<16x96xf32>
    %33 = vector.extract_strided_slice %32 {offsets = [0, 0], sizes = [16, 32], strides = [1, 1]} : vector<16x96xf32> to vector<16x32xf32>
    %34 = vector.extract_strided_slice %32 {offsets = [0, 32], sizes = [16, 32], strides = [1, 1]} : vector<16x96xf32> to vector<16x32xf32>
    %35 = vector.extract_strided_slice %32 {offsets = [0, 64], sizes = [16, 32], strides = [1, 1]} : vector<16x96xf32> to vector<16x32xf32>
    %c0_15 = arith.constant 0 : index
    %c0_16 = arith.constant 0 : index
    %c0_17 = arith.constant 0 : index
    %c0_18 = arith.constant 0 : index
    %36 = vector.load %arg3[%c0_15, %c0_16, %c0_17, %c0_18] : memref<2x1x8x8xf32, #tpu.memory_space<vmem>>, vector<2x1x8x8xf32>
    %37 = vector.shape_cast %36 : vector<2x1x8x8xf32> to vector<2x8x8xf32>
    %38 = vector.extract_strided_slice %33 {offsets = [0, 0], sizes = [16, 8], strides = [1, 1]} : vector<16x32xf32> to vector<16x8xf32>
    %39 = vector.shape_cast %38 : vector<16x8xf32> to vector<2x8x8xf32>
    %40 = arith.truncf %39 : vector<2x8x8xf32> to vector<2x8x8xbf16>
    %41 = vector.extract_strided_slice %34 {offsets = [0, 0], sizes = [16, 8], strides = [1, 1]} : vector<16x32xf32> to vector<16x8xf32>
    %42 = vector.shape_cast %41 : vector<16x8xf32> to vector<2x8x8xf32>
    %43 = arith.truncf %42 : vector<2x8x8xf32> to vector<2x8x8xbf16>
    %44 = vector.extract_strided_slice %35 {offsets = [0, 0], sizes = [16, 8], strides = [1, 1]} : vector<16x32xf32> to vector<16x8xf32>
    %45 = vector.shape_cast %44 : vector<16x8xf32> to vector<2x8x8xf32>
    %46 = arith.truncf %45 : vector<2x8x8xf32> to vector<2x8x8xbf16>
    "tpu.trace_start"() <{level = 10 : i32, message = "bqd,bkd->bqk"}> : () -> ()
    %cst_19 = arith.constant dense<0.000000e+00> : vector<2x8x8xf32>
    %47 = tpu.matmul %40, %43, %cst_19 {dimension_numbers = #tpu.dot_dimension_numbers<[2], [2], [1], [1], [0, 0, 0, 1, 1, 1], [0], [0]>} : vector<2x8x8xbf16>, vector<2x8x8xbf16>, vector<2x8x8xf32> -> vector<2x8x8xf32>
    "tpu.trace_stop"() : () -> ()
    %48 = arith.addf %47, %37 : vector<2x8x8xf32>
    %cst_20 = arith.constant dense<0xFF800000> : vector<2x8xf32>
    %49 = vector.multi_reduction <maximumf>, %48, %cst_20 [2] : vector<2x8x8xf32> to vector<2x8xf32>
    %50 = vector.shape_cast %49 : vector<2x8xf32> to vector<2x8x1xf32>
    %51 = vector.broadcast %50 : vector<2x8x1xf32> to vector<2x8x8xf32>
    %52 = arith.subf %48, %51 : vector<2x8x8xf32>
    %53 = math.exp %52 : vector<2x8x8xf32>
    %cst_21 = arith.constant dense<0.000000e+00> : vector<2x8xf32>
    %54 = vector.multi_reduction <add>, %53, %cst_21 [2] : vector<2x8x8xf32> to vector<2x8xf32>
    %55 = vector.shape_cast %54 : vector<2x8xf32> to vector<2x8x1xf32>
    %56 = tpu.reciprocal %55 {approx = true} : vector<2x8x1xf32> -> vector<2x8x1xf32>
    %57 = vector.broadcast %56 : vector<2x8x1xf32> to vector<2x8x8xf32>
    %58 = arith.mulf %53, %57 : vector<2x8x8xf32>
    %59 = arith.truncf %58 : vector<2x8x8xf32> to vector<2x8x8xbf16>
    "tpu.trace_start"() <{level = 10 : i32, message = "bqk,bkd->bqd"}> : () -> ()
    %cst_22 = arith.constant dense<0.000000e+00> : vector<2x8x8xf32>
    %60 = tpu.matmul %59, %46, %cst_22 {dimension_numbers = #tpu.dot_dimension_numbers<[2], [1], [1], [2], [0, 0, 0, 1, 1, 2], [0], [0]>} : vector<2x8x8xbf16>, vector<2x8x8xbf16>, vector<2x8x8xf32> -> vector<2x8x8xf32>
    "tpu.trace_stop"() : () -> ()
    %61 = vector.shape_cast %60 : vector<2x8x8xf32> to vector<16x8xf32>
    %c0_23 = arith.constant 0 : index
    %c0_24 = arith.constant 0 : index
    %62 = vector.load %arg28[%c0_23, %c0_24] : memref<16x32xf32, #tpu.memory_space<vmem>>, vector<16x8xf32>
    tpu.vector_store %arg28[%c0_23, %c0_24], %61 {strides = array<i32>} : memref<16x32xf32, #tpu.memory_space<vmem>>, vector<16x8xf32>,
    %63 = vector.extract_strided_slice %33 {offsets = [0, 8], sizes = [16, 8], strides = [1, 1]} : vector<16x32xf32> to vector<16x8xf32>
    %64 = vector.shape_cast %63 : vector<16x8xf32> to vector<2x8x8xf32>
    %65 = arith.truncf %64 : vector<2x8x8xf32> to vector<2x8x8xbf16>
    %66 = vector.extract_strided_slice %34 {offsets = [0, 8], sizes = [16, 8], strides = [1, 1]} : vector<16x32xf32> to vector<16x8xf32>
    %67 = vector.shape_cast %66 : vector<16x8xf32> to vector<2x8x8xf32>
    %68 = arith.truncf %67 : vector<2x8x8xf32> to vector<2x8x8xbf16>
    %69 = vector.extract_strided_slice %35 {offsets = [0, 8], sizes = [16, 8], strides = [1, 1]} : vector<16x32xf32> to vector<16x8xf32>
    %70 = vector.shape_cast %69 : vector<16x8xf32> to vector<2x8x8xf32>
    %71 = arith.truncf %70 : vector<2x8x8xf32> to vector<2x8x8xbf16>
    "tpu.trace_start"() <{level = 10 : i32, message = "bqd,bkd->bqk"}> : () -> ()
    %cst_25 = arith.constant dense<0.000000e+00> : vector<2x8x8xf32>
    %72 = tpu.matmul %65, %68, %cst_25 {dimension_numbers = #tpu.dot_dimension_numbers<[2], [2], [1], [1], [0, 0, 0, 1, 1, 1], [0], [0]>} : vector<2x8x8xbf16>, vector<2x8x8xbf16>, vector<2x8x8xf32> -> vector<2x8x8xf32>
    "tpu.trace_stop"() : () -> ()
    %73 = arith.addf %72, %37 : vector<2x8x8xf32>
    %cst_26 = arith.constant dense<0xFF800000> : vector<2x8xf32>
    %74 = vector.multi_reduction <maximumf>, %73, %cst_26 [2] : vector<2x8x8xf32> to vector<2x8xf32>
    %75 = vector.shape_cast %74 : vector<2x8xf32> to vector<2x8x1xf32>
    %76 = vector.broadcast %75 : vector<2x8x1xf32> to vector<2x8x8xf32>
    %77 = arith.subf %73, %76 : vector<2x8x8xf32>
    %78 = math.exp %77 : vector<2x8x8xf32>
    %cst_27 = arith.constant dense<0.000000e+00> : vector<2x8xf32>
    %79 = vector.multi_reduction <add>, %78, %cst_27 [2] : vector<2x8x8xf32> to vector<2x8xf32>
    %80 = vector.shape_cast %79 : vector<2x8xf32> to vector<2x8x1xf32>
    %81 = tpu.reciprocal %80 {approx = true} : vector<2x8x1xf32> -> vector<2x8x1xf32>
    %82 = vector.broadcast %81 : vector<2x8x1xf32> to vector<2x8x8xf32>
    %83 = arith.mulf %78, %82 : vector<2x8x8xf32>
    %84 = arith.truncf %83 : vector<2x8x8xf32> to vector<2x8x8xbf16>
    "tpu.trace_start"() <{level = 10 : i32, message = "bqk,bkd->bqd"}> : () -> ()
    %cst_28 = arith.constant dense<0.000000e+00> : vector<2x8x8xf32>
    %85 = tpu.matmul %84, %71, %cst_28 {dimension_numbers = #tpu.dot_dimension_numbers<[2], [1], [1], [2], [0, 0, 0, 1, 1, 2], [0], [0]>} : vector<2x8x8xbf16>, vector<2x8x8xbf16>, vector<2x8x8xf32> -> vector<2x8x8xf32>
    "tpu.trace_stop"() : () -> ()
    %86 = vector.shape_cast %85 : vector<2x8x8xf32> to vector<16x8xf32>
    %c0_29 = arith.constant 0 : index
    %c8 = arith.constant 8 : index
    %87 = vector.load %arg28[%c0_29, %c8] : memref<16x32xf32, #tpu.memory_space<vmem>>, vector<16x8xf32>
    tpu.vector_store %arg28[%c0_29, %c8], %86 {strides = array<i32>} : memref<16x32xf32, #tpu.memory_space<vmem>>, vector<16x8xf32>,
    %88 = vector.extract_strided_slice %33 {offsets = [0, 16], sizes = [16, 8], strides = [1, 1]} : vector<16x32xf32> to vector<16x8xf32>
    %89 = vector.shape_cast %88 : vector<16x8xf32> to vector<2x8x8xf32>
    %90 = arith.truncf %89 : vector<2x8x8xf32> to vector<2x8x8xbf16>
    %91 = vector.extract_strided_slice %34 {offsets = [0, 16], sizes = [16, 8], strides = [1, 1]} : vector<16x32xf32> to vector<16x8xf32>
    %92 = vector.shape_cast %91 : vector<16x8xf32> to vector<2x8x8xf32>
    %93 = arith.truncf %92 : vector<2x8x8xf32> to vector<2x8x8xbf16>
    %94 = vector.extract_strided_slice %35 {offsets = [0, 16], sizes = [16, 8], strides = [1, 1]} : vector<16x32xf32> to vector<16x8xf32>
    %95 = vector.shape_cast %94 : vector<16x8xf32> to vector<2x8x8xf32>
    %96 = arith.truncf %95 : vector<2x8x8xf32> to vector<2x8x8xbf16>
    "tpu.trace_start"() <{level = 10 : i32, message = "bqd,bkd->bqk"}> : () -> ()
    %cst_30 = arith.constant dense<0.000000e+00> : vector<2x8x8xf32>
    %97 = tpu.matmul %90, %93, %cst_30 {dimension_numbers = #tpu.dot_dimension_numbers<[2], [2], [1], [1], [0, 0, 0, 1, 1, 1], [0], [0]>} : vector<2x8x8xbf16>, vector<2x8x8xbf16>, vector<2x8x8xf32> -> vector<2x8x8xf32>
    "tpu.trace_stop"() : () -> ()
    %98 = arith.addf %97, %37 : vector<2x8x8xf32>
    %cst_31 = arith.constant dense<0xFF800000> : vector<2x8xf32>
    %99 = vector.multi_reduction <maximumf>, %98, %cst_31 [2] : vector<2x8x8xf32> to vector<2x8xf32>
    %100 = vector.shape_cast %99 : vector<2x8xf32> to vector<2x8x1xf32>
    %101 = vector.broadcast %100 : vector<2x8x1xf32> to vector<2x8x8xf32>
    %102 = arith.subf %98, %101 : vector<2x8x8xf32>
    %103 = math.exp %102 : vector<2x8x8xf32>
    %cst_32 = arith.constant dense<0.000000e+00> : vector<2x8xf32>
    %104 = vector.multi_reduction <add>, %103, %cst_32 [2] : vector<2x8x8xf32> to vector<2x8xf32>
    %105 = vector.shape_cast %104 : vector<2x8xf32> to vector<2x8x1xf32>
    %106 = tpu.reciprocal %105 {approx = true} : vector<2x8x1xf32> -> vector<2x8x1xf32>
    %107 = vector.broadcast %106 : vector<2x8x1xf32> to vector<2x8x8xf32>
    %108 = arith.mulf %103, %107 : vector<2x8x8xf32>
    %109 = arith.truncf %108 : vector<2x8x8xf32> to vector<2x8x8xbf16>
    "tpu.trace_start"() <{level = 10 : i32, message = "bqk,bkd->bqd"}> : () -> ()
    %cst_33 = arith.constant dense<0.000000e+00> : vector<2x8x8xf32>
    %110 = tpu.matmul %109, %96, %cst_33 {dimension_numbers = #tpu.dot_dimension_numbers<[2], [1], [1], [2], [0, 0, 0, 1, 1, 2], [0], [0]>} : vector<2x8x8xbf16>, vector<2x8x8xbf16>, vector<2x8x8xf32> -> vector<2x8x8xf32>
    "tpu.trace_stop"() : () -> ()
    %111 = vector.shape_cast %110 : vector<2x8x8xf32> to vector<16x8xf32>
    %c0_34 = arith.constant 0 : index
    %c16 = arith.constant 16 : index
    %112 = vector.load %arg28[%c0_34, %c16] : memref<16x32xf32, #tpu.memory_space<vmem>>, vector<16x8xf32>
    tpu.vector_store %arg28[%c0_34, %c16], %111 {strides = array<i32>} : memref<16x32xf32, #tpu.memory_space<vmem>>, vector<16x8xf32>,
    %113 = vector.extract_strided_slice %33 {offsets = [0, 24], sizes = [16, 8], strides = [1, 1]} : vector<16x32xf32> to vector<16x8xf32>
    %114 = vector.shape_cast %113 : vector<16x8xf32> to vector<2x8x8xf32>
    %115 = arith.truncf %114 : vector<2x8x8xf32> to vector<2x8x8xbf16>
    %116 = vector.extract_strided_slice %34 {offsets = [0, 24], sizes = [16, 8], strides = [1, 1]} : vector<16x32xf32> to vector<16x8xf32>
    %117 = vector.shape_cast %116 : vector<16x8xf32> to vector<2x8x8xf32>
    %118 = arith.truncf %117 : vector<2x8x8xf32> to vector<2x8x8xbf16>
    %119 = vector.extract_strided_slice %35 {offsets = [0, 24], sizes = [16, 8], strides = [1, 1]} : vector<16x32xf32> to vector<16x8xf32>
    %120 = vector.shape_cast %119 : vector<16x8xf32> to vector<2x8x8xf32>
    %121 = arith.truncf %120 : vector<2x8x8xf32> to vector<2x8x8xbf16>
    "tpu.trace_start"() <{level = 10 : i32, message = "bqd,bkd->bqk"}> : () -> ()
    %cst_35 = arith.constant dense<0.000000e+00> : vector<2x8x8xf32>
    %122 = tpu.matmul %115, %118, %cst_35 {dimension_numbers = #tpu.dot_dimension_numbers<[2], [2], [1], [1], [0, 0, 0, 1, 1, 1], [0], [0]>} : vector<2x8x8xbf16>, vector<2x8x8xbf16>, vector<2x8x8xf32> -> vector<2x8x8xf32>
    "tpu.trace_stop"() : () -> ()
    %123 = arith.addf %122, %37 : vector<2x8x8xf32>
    %cst_36 = arith.constant dense<0xFF800000> : vector<2x8xf32>
    %124 = vector.multi_reduction <maximumf>, %123, %cst_36 [2] : vector<2x8x8xf32> to vector<2x8xf32>
    %125 = vector.shape_cast %124 : vector<2x8xf32> to vector<2x8x1xf32>
    %126 = vector.broadcast %125 : vector<2x8x1xf32> to vector<2x8x8xf32>
    %127 = arith.subf %123, %126 : vector<2x8x8xf32>
    %128 = math.exp %127 : vector<2x8x8xf32>
    %cst_37 = arith.constant dense<0.000000e+00> : vector<2x8xf32>
    %129 = vector.multi_reduction <add>, %128, %cst_37 [2] : vector<2x8x8xf32> to vector<2x8xf32>
    %130 = vector.shape_cast %129 : vector<2x8xf32> to vector<2x8x1xf32>
    %131 = tpu.reciprocal %130 {approx = true} : vector<2x8x1xf32> -> vector<2x8x1xf32>
    %132 = vector.broadcast %131 : vector<2x8x1xf32> to vector<2x8x8xf32>
    %133 = arith.mulf %128, %132 : vector<2x8x8xf32>
    %134 = arith.truncf %133 : vector<2x8x8xf32> to vector<2x8x8xbf16>
    "tpu.trace_start"() <{level = 10 : i32, message = "bqk,bkd->bqd"}> : () -> ()
    %cst_38 = arith.constant dense<0.000000e+00> : vector<2x8x8xf32>
    %135 = tpu.matmul %134, %121, %cst_38 {dimension_numbers = #tpu.dot_dimension_numbers<[2], [1], [1], [2], [0, 0, 0, 1, 1, 2], [0], [0]>} : vector<2x8x8xbf16>, vector<2x8x8xbf16>, vector<2x8x8xf32> -> vector<2x8x8xf32>
    "tpu.trace_stop"() : () -> ()
    %136 = vector.shape_cast %135 : vector<2x8x8xf32> to vector<16x8xf32>
    %c0_39 = arith.constant 0 : index
    %c24 = arith.constant 24 : index
    %137 = vector.load %arg28[%c0_39, %c24] : memref<16x32xf32, #tpu.memory_space<vmem>>, vector<16x8xf32>
    tpu.vector_store %arg28[%c0_39, %c24], %136 {strides = array<i32>} : memref<16x32xf32, #tpu.memory_space<vmem>>, vector<16x8xf32>,
    %138 = vector.shape_cast %58 : vector<2x8x8xf32> to vector<2x1x8x8xf32>
    %139 = vector.shape_cast %83 : vector<2x8x8xf32> to vector<2x1x8x8xf32>
    %140 = vector.shape_cast %108 : vector<2x8x8xf32> to vector<2x1x8x8xf32>
    %141 = vector.shape_cast %133 : vector<2x8x8xf32> to vector<2x1x8x8xf32>
    %142 = tpu.concatenate %138, %139, %140, %141 in 1 : vector<2x1x8x8xf32>, vector<2x1x8x8xf32>, vector<2x1x8x8xf32>, vector<2x1x8x8xf32> -> vector<2x4x8x8xf32>
    %143 = arith.truncf %142 : vector<2x4x8x8xf32> to vector<2x4x8x8xbf16>
    %c0_40 = arith.constant 0 : index
    %c0_41 = arith.constant 0 : index
    %c0_42 = arith.constant 0 : index
    %c0_43 = arith.constant 0 : index
    %144 = vector.load %arg26[%c0_40, %c0_41, %c0_42, %c0_43] : memref<2x4x8x8xbf16, #tpu.memory_space<vmem>>, vector<2x4x8x8xbf16>
    tpu.vector_store %arg26[%c0_40, %c0_41, %c0_42, %c0_43], %143 {strides = array<i32>} : memref<2x4x8x8xbf16, #tpu.memory_space<vmem>>, vector<2x4x8x8xbf16>,
    %c0_44 = arith.constant 0 : index
    %c0_45 = arith.constant 0 : index
    %145 = vector.load %arg28[%c0_44, %c0_45] : memref<16x32xf32, #tpu.memory_space<vmem>>, vector<16x32xf32>
    %c0_46 = arith.constant 0 : index
    %c0_47 = arith.constant 0 : index
    %146 = vector.load %arg9[%c0_46, %c0_47] : memref<32x32xbf16, #tpu.memory_space<vmem>>, vector<32x32xbf16>
    %147 = arith.truncf %145 : vector<16x32xf32> to vector<16x32xbf16>
    %cst_48 = arith.constant dense<0.000000e+00> : vector<16x32xf32>
    %148 = tpu.matmul %147, %146, %cst_48 {dimension_numbers = #tpu.dot_dimension_numbers<[1], [0], [0], [1], [0, 0, 1, 1], [], []>} : vector<16x32xbf16>, vector<32x32xbf16>, vector<16x32xf32> -> vector<16x32xf32>
    %149 = arith.addf %2, %148 : vector<16x32xf32>
    %c0_49 = arith.constant 0 : index
    %c0_50 = arith.constant 0 : index
    %150 = vector.load %arg10[%c0_49, %c0_50] : memref<1x32xf32, #tpu.memory_space<vmem>>, vector<1x32xf32>
    %151 = vector.broadcast %150 : vector<1x32xf32> to vector<16x32xf32>
    %152 = arith.addf %149, %151 : vector<16x32xf32>
    %c0_51 = arith.constant 0 : index
    %c0_52 = arith.constant 0 : index
    %c0_53 = arith.constant 0 : index
    %153 = vector.load %arg2[%c0_51, %c0_52, %c0_53] : memref<2x16x32xf32, #tpu.memory_space<vmem>>, vector<2x16x32xf32>
    %154 = vector.shape_cast %153 : vector<2x16x32xf32> to vector<32x32xf32>
    %c0_54 = arith.constant 0 : index
    %c0_55 = arith.constant 0 : index
    %155 = vector.load %arg11[%c0_54, %c0_55] : memref<1x32xf32, #tpu.memory_space<vmem>>, vector<1x32xf32>
    %c0_56 = arith.constant 0 : index
    %c0_57 = arith.constant 0 : index
    %156 = vector.load %arg12[%c0_56, %c0_57] : memref<1x32xf32, #tpu.memory_space<vmem>>, vector<1x32xf32>
    %cst_58 = arith.constant dense<0.000000e+00> : vector<16xf32>
    %157 = vector.multi_reduction <add>, %152, %cst_58 [1] : vector<16x32xf32> to vector<16xf32>
    %158 = vector.shape_cast %157 : vector<16xf32> to vector<16x1xf32>
    %cst_59 = arith.constant 3.200000e+01 : f32
    %159 = vector.broadcast %cst_59 : f32 to vector<16x1xf32>
    %160 = arith.divf %158, %159 : vector<16x1xf32>
    %161 = vector.broadcast %160 : vector<16x1xf32> to vector<16x32xf32>
    %162 = arith.subf %152, %161 : vector<16x32xf32>
    %163 = arith.mulf %162, %162 : vector<16x32xf32>
    %cst_60 = arith.constant dense<0.000000e+00> : vector<16xf32>
    %164 = vector.multi_reduction <add>, %163, %cst_60 [1] : vector<16x32xf32> to vector<16xf32>
    %165 = vector.shape_cast %164 : vector<16xf32> to vector<16x1xf32>
    %cst_61 = arith.constant 3.200000e+01 : f32
    %166 = vector.broadcast %cst_61 : f32 to vector<16x1xf32>
    %167 = arith.divf %165, %166 : vector<16x1xf32>
    %168 = vector.broadcast %160 : vector<16x1xf32> to vector<16x32xf32>
    %169 = arith.subf %152, %168 : vector<16x32xf32>
    %cst_62 = arith.constant 9.99999974E-6 : f32
    %170 = vector.broadcast %cst_62 : f32 to vector<16x1xf32>
    %171 = arith.addf %167, %170 : vector<16x1xf32>
    %172 = math.rsqrt %171 : vector<16x1xf32>
    %173 = vector.broadcast %172 : vector<16x1xf32> to vector<16x32xf32>
    %174 = arith.mulf %169, %173 : vector<16x32xf32>
    %175 = vector.broadcast %155 : vector<1x32xf32> to vector<16x32xf32>
    %176 = arith.mulf %174, %175 : vector<16x32xf32>
    %177 = vector.broadcast %156 : vector<1x32xf32> to vector<16x32xf32>
    %178 = arith.addf %176, %177 : vector<16x32xf32>
    %c0_63 = arith.constant 0 : index
    %c0_64 = arith.constant 0 : index
    %179 = vector.load %arg13[%c0_63, %c0_64] : memref<32x32xbf16, #tpu.memory_space<vmem>>, vector<32x32xbf16>
    %180 = arith.truncf %178 : vector<16x32xf32> to vector<16x32xbf16>
    %cst_65 = arith.constant dense<0.000000e+00> : vector<16x32xf32>
    %181 = tpu.matmul %180, %179, %cst_65 {dimension_numbers = #tpu.dot_dimension_numbers<[1], [0], [0], [1], [0, 0, 1, 1], [], []>} : vector<16x32xbf16>, vector<32x32xbf16>, vector<16x32xf32> -> vector<16x32xf32>
    %c0_66 = arith.constant 0 : index
    %c0_67 = arith.constant 0 : index
    %182 = vector.load %arg14[%c0_66, %c0_67] : memref<1x32xf32, #tpu.memory_space<vmem>>, vector<1x32xf32>
    %183 = vector.broadcast %182 : vector<1x32xf32> to vector<16x32xf32>
    %184 = arith.addf %181, %183 : vector<16x32xf32>
    %c0_68 = arith.constant 0 : index
    %c0_69 = arith.constant 0 : index
    %185 = vector.load %arg15[%c0_68, %c0_69] : memref<32x64xbf16, #tpu.memory_space<vmem>>, vector<32x64xbf16>
    %186 = arith.truncf %154 : vector<32x32xf32> to vector<32x32xbf16>
    %cst_70 = arith.constant dense<0.000000e+00> : vector<32x64xf32>
    %187 = tpu.matmul %186, %185, %cst_70 {dimension_numbers = #tpu.dot_dimension_numbers<[1], [0], [0], [1], [0, 0, 1, 1], [], []>} : vector<32x32xbf16>, vector<32x64xbf16>, vector<32x64xf32> -> vector<32x64xf32>
    %c0_71 = arith.constant 0 : index
    %c0_72 = arith.constant 0 : index
    %188 = vector.load %arg16[%c0_71, %c0_72] : memref<1x64xf32, #tpu.memory_space<vmem>>, vector<1x64xf32>
    %189 = vector.broadcast %188 : vector<1x64xf32> to vector<32x64xf32>
    %190 = arith.addf %187, %189 : vector<32x64xf32>
    %191 = vector.extract_strided_slice %190 {offsets = [0, 0], sizes = [32, 32], strides = [1, 1]} : vector<32x64xf32> to vector<32x32xf32>
    %192 = vector.extract_strided_slice %190 {offsets = [0, 32], sizes = [32, 32], strides = [1, 1]} : vector<32x64xf32> to vector<32x32xf32>
    %c0_73 = arith.constant 0 : index
    %c0_74 = arith.constant 0 : index
    %c0_75 = arith.constant 0 : index
    %c0_76 = arith.constant 0 : index
    %193 = vector.load %arg4[%c0_73, %c0_74, %c0_75, %c0_76] : memref<2x1x8x16xf32, #tpu.memory_space<vmem>>, vector<2x1x8x16xf32>
    %194 = vector.shape_cast %193 : vector<2x1x8x16xf32> to vector<2x8x16xf32>
    %195 = vector.extract_strided_slice %184 {offsets = [0, 0], sizes = [16, 8], strides = [1, 1]} : vector<16x32xf32> to vector<16x8xf32>
    %196 = vector.shape_cast %195 : vector<16x8xf32> to vector<2x8x8xf32>
    %197 = arith.truncf %196 : vector<2x8x8xf32> to vector<2x8x8xbf16>
    %198 = vector.extract_strided_slice %191 {offsets = [0, 0], sizes = [32, 8], strides = [1, 1]} : vector<32x32xf32> to vector<32x8xf32>
    %199 = vector.shape_cast %198 : vector<32x8xf32> to vector<2x16x8xf32>
    %200 = arith.truncf %199 : vector<2x16x8xf32> to vector<2x16x8xbf16>
    %201 = vector.extract_strided_slice %192 {offsets = [0, 0], sizes = [32, 8], strides = [1, 1]} : vector<32x32xf32> to vector<32x8xf32>
    %202 = vector.shape_cast %201 : vector<32x8xf32> to vector<2x16x8xf32>
    %203 = arith.truncf %202 : vector<2x16x8xf32> to vector<2x16x8xbf16>
    "tpu.trace_start"() <{level = 10 : i32, message = "bqd,bkd->bqk"}> : () -> ()
    %cst_77 = arith.constant dense<0.000000e+00> : vector<2x8x16xf32>
    %204 = tpu.matmul %197, %200, %cst_77 {dimension_numbers = #tpu.dot_dimension_numbers<[2], [2], [1], [1], [0, 0, 0, 1, 1, 1], [0], [0]>} : vector<2x8x8xbf16>, vector<2x16x8xbf16>, vector<2x8x16xf32> -> vector<2x8x16xf32>
    "tpu.trace_stop"() : () -> ()
    %205 = arith.addf %204, %194 : vector<2x8x16xf32>
    %cst_78 = arith.constant dense<0xFF800000> : vector<2x8xf32>
    %206 = vector.multi_reduction <maximumf>, %205, %cst_78 [2] : vector<2x8x16xf32> to vector<2x8xf32>
    %207 = vector.shape_cast %206 : vector<2x8xf32> to vector<2x8x1xf32>
    %208 = vector.broadcast %207 : vector<2x8x1xf32> to vector<2x8x16xf32>
    %209 = arith.subf %205, %208 : vector<2x8x16xf32>
    %210 = math.exp %209 : vector<2x8x16xf32>
    %cst_79 = arith.constant dense<0.000000e+00> : vector<2x8xf32>
    %211 = vector.multi_reduction <add>, %210, %cst_79 [2] : vector<2x8x16xf32> to vector<2x8xf32>
    %212 = vector.shape_cast %211 : vector<2x8xf32> to vector<2x8x1xf32>
    %213 = tpu.reciprocal %212 {approx = true} : vector<2x8x1xf32> -> vector<2x8x1xf32>
    %214 = vector.broadcast %213 : vector<2x8x1xf32> to vector<2x8x16xf32>
    %215 = arith.mulf %210, %214 : vector<2x8x16xf32>
    %216 = arith.truncf %215 : vector<2x8x16xf32> to vector<2x8x16xbf16>
    "tpu.trace_start"() <{level = 10 : i32, message = "bqk,bkd->bqd"}> : () -> ()
    %cst_80 = arith.constant dense<0.000000e+00> : vector<2x8x8xf32>
    %217 = tpu.matmul %216, %203, %cst_80 {dimension_numbers = #tpu.dot_dimension_numbers<[2], [1], [1], [2], [0, 0, 0, 1, 1, 2], [0], [0]>} : vector<2x8x16xbf16>, vector<2x16x8xbf16>, vector<2x8x8xf32> -> vector<2x8x8xf32>
    "tpu.trace_stop"() : () -> ()
    %218 = vector.shape_cast %217 : vector<2x8x8xf32> to vector<16x8xf32>
    %c0_81 = arith.constant 0 : index
    %c0_82 = arith.constant 0 : index
    %219 = vector.load %arg28[%c0_81, %c0_82] : memref<16x32xf32, #tpu.memory_space<vmem>>, vector<16x8xf32>
    tpu.vector_store %arg28[%c0_81, %c0_82], %218 {strides = array<i32>} : memref<16x32xf32, #tpu.memory_space<vmem>>, vector<16x8xf32>,
    %220 = vector.extract_strided_slice %184 {offsets = [0, 8], sizes = [16, 8], strides = [1, 1]} : vector<16x32xf32> to vector<16x8xf32>
    %221 = vector.shape_cast %220 : vector<16x8xf32> to vector<2x8x8xf32>
    %222 = arith.truncf %221 : vector<2x8x8xf32> to vector<2x8x8xbf16>
    %223 = vector.extract_strided_slice %191 {offsets = [0, 8], sizes = [32, 8], strides = [1, 1]} : vector<32x32xf32> to vector<32x8xf32>
    %224 = vector.shape_cast %223 : vector<32x8xf32> to vector<2x16x8xf32>
    %225 = arith.truncf %224 : vector<2x16x8xf32> to vector<2x16x8xbf16>
    %226 = vector.extract_strided_slice %192 {offsets = [0, 8], sizes = [32, 8], strides = [1, 1]} : vector<32x32xf32> to vector<32x8xf32>
    %227 = vector.shape_cast %226 : vector<32x8xf32> to vector<2x16x8xf32>
    %228 = arith.truncf %227 : vector<2x16x8xf32> to vector<2x16x8xbf16>
    "tpu.trace_start"() <{level = 10 : i32, message = "bqd,bkd->bqk"}> : () -> ()
    %cst_83 = arith.constant dense<0.000000e+00> : vector<2x8x16xf32>
    %229 = tpu.matmul %222, %225, %cst_83 {dimension_numbers = #tpu.dot_dimension_numbers<[2], [2], [1], [1], [0, 0, 0, 1, 1, 1], [0], [0]>} : vector<2x8x8xbf16>, vector<2x16x8xbf16>, vector<2x8x16xf32> -> vector<2x8x16xf32>
    "tpu.trace_stop"() : () -> ()
    %230 = arith.addf %229, %194 : vector<2x8x16xf32>
    %cst_84 = arith.constant dense<0xFF800000> : vector<2x8xf32>
    %231 = vector.multi_reduction <maximumf>, %230, %cst_84 [2] : vector<2x8x16xf32> to vector<2x8xf32>
    %232 = vector.shape_cast %231 : vector<2x8xf32> to vector<2x8x1xf32>
    %233 = vector.broadcast %232 : vector<2x8x1xf32> to vector<2x8x16xf32>
    %234 = arith.subf %230, %233 : vector<2x8x16xf32>
    %235 = math.exp %234 : vector<2x8x16xf32>
    %cst_85 = arith.constant dense<0.000000e+00> : vector<2x8xf32>
    %236 = vector.multi_reduction <add>, %235, %cst_85 [2] : vector<2x8x16xf32> to vector<2x8xf32>
    %237 = vector.shape_cast %236 : vector<2x8xf32> to vector<2x8x1xf32>
    %238 = tpu.reciprocal %237 {approx = true} : vector<2x8x1xf32> -> vector<2x8x1xf32>
    %239 = vector.broadcast %238 : vector<2x8x1xf32> to vector<2x8x16xf32>
    %240 = arith.mulf %235, %239 : vector<2x8x16xf32>
    %241 = arith.truncf %240 : vector<2x8x16xf32> to vector<2x8x16xbf16>
    "tpu.trace_start"() <{level = 10 : i32, message = "bqk,bkd->bqd"}> : () -> ()
    %cst_86 = arith.constant dense<0.000000e+00> : vector<2x8x8xf32>
    %242 = tpu.matmul %241, %228, %cst_86 {dimension_numbers = #tpu.dot_dimension_numbers<[2], [1], [1], [2], [0, 0, 0, 1, 1, 2], [0], [0]>} : vector<2x8x16xbf16>, vector<2x16x8xbf16>, vector<2x8x8xf32> -> vector<2x8x8xf32>
    "tpu.trace_stop"() : () -> ()
    %243 = vector.shape_cast %242 : vector<2x8x8xf32> to vector<16x8xf32>
    %c0_87 = arith.constant 0 : index
    %c8_88 = arith.constant 8 : index
    %244 = vector.load %arg28[%c0_87, %c8_88] : memref<16x32xf32, #tpu.memory_space<vmem>>, vector<16x8xf32>
    tpu.vector_store %arg28[%c0_87, %c8_88], %243 {strides = array<i32>} : memref<16x32xf32, #tpu.memory_space<vmem>>, vector<16x8xf32>,
    %245 = vector.extract_strided_slice %184 {offsets = [0, 16], sizes = [16, 8], strides = [1, 1]} : vector<16x32xf32> to vector<16x8xf32>
    %246 = vector.shape_cast %245 : vector<16x8xf32> to vector<2x8x8xf32>
    %247 = arith.truncf %246 : vector<2x8x8xf32> to vector<2x8x8xbf16>
    %248 = vector.extract_strided_slice %191 {offsets = [0, 16], sizes = [32, 8], strides = [1, 1]} : vector<32x32xf32> to vector<32x8xf32>
    %249 = vector.shape_cast %248 : vector<32x8xf32> to vector<2x16x8xf32>
    %250 = arith.truncf %249 : vector<2x16x8xf32> to vector<2x16x8xbf16>
    %251 = vector.extract_strided_slice %192 {offsets = [0, 16], sizes = [32, 8], strides = [1, 1]} : vector<32x32xf32> to vector<32x8xf32>
    %252 = vector.shape_cast %251 : vector<32x8xf32> to vector<2x16x8xf32>
    %253 = arith.truncf %252 : vector<2x16x8xf32> to vector<2x16x8xbf16>
    "tpu.trace_start"() <{level = 10 : i32, message = "bqd,bkd->bqk"}> : () -> ()
    %cst_89 = arith.constant dense<0.000000e+00> : vector<2x8x16xf32>
    %254 = tpu.matmul %247, %250, %cst_89 {dimension_numbers = #tpu.dot_dimension_numbers<[2], [2], [1], [1], [0, 0, 0, 1, 1, 1], [0], [0]>} : vector<2x8x8xbf16>, vector<2x16x8xbf16>, vector<2x8x16xf32> -> vector<2x8x16xf32>
    "tpu.trace_stop"() : () -> ()
    %255 = arith.addf %254, %194 : vector<2x8x16xf32>
    %cst_90 = arith.constant dense<0xFF800000> : vector<2x8xf32>
    %256 = vector.multi_reduction <maximumf>, %255, %cst_90 [2] : vector<2x8x16xf32> to vector<2x8xf32>
    %257 = vector.shape_cast %256 : vector<2x8xf32> to vector<2x8x1xf32>
    %258 = vector.broadcast %257 : vector<2x8x1xf32> to vector<2x8x16xf32>
    %259 = arith.subf %255, %258 : vector<2x8x16xf32>
    %260 = math.exp %259 : vector<2x8x16xf32>
    %cst_91 = arith.constant dense<0.000000e+00> : vector<2x8xf32>
    %261 = vector.multi_reduction <add>, %260, %cst_91 [2] : vector<2x8x16xf32> to vector<2x8xf32>
    %262 = vector.shape_cast %261 : vector<2x8xf32> to vector<2x8x1xf32>
    %263 = tpu.reciprocal %262 {approx = true} : vector<2x8x1xf32> -> vector<2x8x1xf32>
    %264 = vector.broadcast %263 : vector<2x8x1xf32> to vector<2x8x16xf32>
    %265 = arith.mulf %260, %264 : vector<2x8x16xf32>
    %266 = arith.truncf %265 : vector<2x8x16xf32> to vector<2x8x16xbf16>
    "tpu.trace_start"() <{level = 10 : i32, message = "bqk,bkd->bqd"}> : () -> ()
    %cst_92 = arith.constant dense<0.000000e+00> : vector<2x8x8xf32>
    %267 = tpu.matmul %266, %253, %cst_92 {dimension_numbers = #tpu.dot_dimension_numbers<[2], [1], [1], [2], [0, 0, 0, 1, 1, 2], [0], [0]>} : vector<2x8x16xbf16>, vector<2x16x8xbf16>, vector<2x8x8xf32> -> vector<2x8x8xf32>
    "tpu.trace_stop"() : () -> ()
    %268 = vector.shape_cast %267 : vector<2x8x8xf32> to vector<16x8xf32>
    %c0_93 = arith.constant 0 : index
    %c16_94 = arith.constant 16 : index
    %269 = vector.load %arg28[%c0_93, %c16_94] : memref<16x32xf32, #tpu.memory_space<vmem>>, vector<16x8xf32>
    tpu.vector_store %arg28[%c0_93, %c16_94], %268 {strides = array<i32>} : memref<16x32xf32, #tpu.memory_space<vmem>>, vector<16x8xf32>,
    %270 = vector.extract_strided_slice %184 {offsets = [0, 24], sizes = [16, 8], strides = [1, 1]} : vector<16x32xf32> to vector<16x8xf32>
    %271 = vector.shape_cast %270 : vector<16x8xf32> to vector<2x8x8xf32>
    %272 = arith.truncf %271 : vector<2x8x8xf32> to vector<2x8x8xbf16>
    %273 = vector.extract_strided_slice %191 {offsets = [0, 24], sizes = [32, 8], strides = [1, 1]} : vector<32x32xf32> to vector<32x8xf32>
    %274 = vector.shape_cast %273 : vector<32x8xf32> to vector<2x16x8xf32>
    %275 = arith.truncf %274 : vector<2x16x8xf32> to vector<2x16x8xbf16>
    %276 = vector.extract_strided_slice %192 {offsets = [0, 24], sizes = [32, 8], strides = [1, 1]} : vector<32x32xf32> to vector<32x8xf32>
    %277 = vector.shape_cast %276 : vector<32x8xf32> to vector<2x16x8xf32>
    %278 = arith.truncf %277 : vector<2x16x8xf32> to vector<2x16x8xbf16>
    "tpu.trace_start"() <{level = 10 : i32, message = "bqd,bkd->bqk"}> : () -> ()
    %cst_95 = arith.constant dense<0.000000e+00> : vector<2x8x16xf32>
    %279 = tpu.matmul %272, %275, %cst_95 {dimension_numbers = #tpu.dot_dimension_numbers<[2], [2], [1], [1], [0, 0, 0, 1, 1, 1], [0], [0]>} : vector<2x8x8xbf16>, vector<2x16x8xbf16>, vector<2x8x16xf32> -> vector<2x8x16xf32>
    "tpu.trace_stop"() : () -> ()
    %280 = arith.addf %279, %194 : vector<2x8x16xf32>
    %cst_96 = arith.constant dense<0xFF800000> : vector<2x8xf32>
    %281 = vector.multi_reduction <maximumf>, %280, %cst_96 [2] : vector<2x8x16xf32> to vector<2x8xf32>
    %282 = vector.shape_cast %281 : vector<2x8xf32> to vector<2x8x1xf32>
    %283 = vector.broadcast %282 : vector<2x8x1xf32> to vector<2x8x16xf32>
    %284 = arith.subf %280, %283 : vector<2x8x16xf32>
    %285 = math.exp %284 : vector<2x8x16xf32>
    %cst_97 = arith.constant dense<0.000000e+00> : vector<2x8xf32>
    %286 = vector.multi_reduction <add>, %285, %cst_97 [2] : vector<2x8x16xf32> to vector<2x8xf32>
    %287 = vector.shape_cast %286 : vector<2x8xf32> to vector<2x8x1xf32>
    %288 = tpu.reciprocal %287 {approx = true} : vector<2x8x1xf32> -> vector<2x8x1xf32>
    %289 = vector.broadcast %288 : vector<2x8x1xf32> to vector<2x8x16xf32>
    %290 = arith.mulf %285, %289 : vector<2x8x16xf32>
    %291 = arith.truncf %290 : vector<2x8x16xf32> to vector<2x8x16xbf16>
    "tpu.trace_start"() <{level = 10 : i32, message = "bqk,bkd->bqd"}> : () -> ()
    %cst_98 = arith.constant dense<0.000000e+00> : vector<2x8x8xf32>
    %292 = tpu.matmul %291, %278, %cst_98 {dimension_numbers = #tpu.dot_dimension_numbers<[2], [1], [1], [2], [0, 0, 0, 1, 1, 2], [0], [0]>} : vector<2x8x16xbf16>, vector<2x16x8xbf16>, vector<2x8x8xf32> -> vector<2x8x8xf32>
    "tpu.trace_stop"() : () -> ()
    %293 = vector.shape_cast %292 : vector<2x8x8xf32> to vector<16x8xf32>
    %c0_99 = arith.constant 0 : index
    %c24_100 = arith.constant 24 : index
    %294 = vector.load %arg28[%c0_99, %c24_100] : memref<16x32xf32, #tpu.memory_space<vmem>>, vector<16x8xf32>
    tpu.vector_store %arg28[%c0_99, %c24_100], %293 {strides = array<i32>} : memref<16x32xf32, #tpu.memory_space<vmem>>, vector<16x8xf32>,
    %295 = vector.shape_cast %215 : vector<2x8x16xf32> to vector<2x1x8x16xf32>
    %296 = vector.shape_cast %240 : vector<2x8x16xf32> to vector<2x1x8x16xf32>
    %297 = vector.shape_cast %265 : vector<2x8x16xf32> to vector<2x1x8x16xf32>
    %298 = vector.shape_cast %290 : vector<2x8x16xf32> to vector<2x1x8x16xf32>
    %299 = tpu.concatenate %295, %296, %297, %298 in 1 : vector<2x1x8x16xf32>, vector<2x1x8x16xf32>, vector<2x1x8x16xf32>, vector<2x1x8x16xf32> -> vector<2x4x8x16xf32>
    %300 = arith.truncf %299 : vector<2x4x8x16xf32> to vector<2x4x8x16xbf16>
    %c0_101 = arith.constant 0 : index
    %c0_102 = arith.constant 0 : index
    %c0_103 = arith.constant 0 : index
    %c0_104 = arith.constant 0 : index
    %301 = vector.load %arg27[%c0_101, %c0_102, %c0_103, %c0_104] : memref<2x4x8x16xbf16, #tpu.memory_space<vmem>>, vector<2x4x8x16xbf16>
    tpu.vector_store %arg27[%c0_101, %c0_102, %c0_103, %c0_104], %300 {strides = array<i32>} : memref<2x4x8x16xbf16, #tpu.memory_space<vmem>>, vector<2x4x8x16xbf16>,
    %c0_105 = arith.constant 0 : index
    %c0_106 = arith.constant 0 : index
    %302 = vector.load %arg28[%c0_105, %c0_106] : memref<16x32xf32, #tpu.memory_space<vmem>>, vector<16x32xf32>
    %c0_107 = arith.constant 0 : index
    %c0_108 = arith.constant 0 : index
    %303 = vector.load %arg17[%c0_107, %c0_108] : memref<32x32xbf16, #tpu.memory_space<vmem>>, vector<32x32xbf16>
    %304 = arith.truncf %302 : vector<16x32xf32> to vector<16x32xbf16>
    %cst_109 = arith.constant dense<0.000000e+00> : vector<16x32xf32>
    %305 = tpu.matmul %304, %303, %cst_109 {dimension_numbers = #tpu.dot_dimension_numbers<[1], [0], [0], [1], [0, 0, 1, 1], [], []>} : vector<16x32xbf16>, vector<32x32xbf16>, vector<16x32xf32> -> vector<16x32xf32>
    %306 = arith.addf %152, %305 : vector<16x32xf32>
    %c0_110 = arith.constant 0 : index
    %c0_111 = arith.constant 0 : index
    %307 = vector.load %arg18[%c0_110, %c0_111] : memref<1x32xf32, #tpu.memory_space<vmem>>, vector<1x32xf32>
    %308 = vector.broadcast %307 : vector<1x32xf32> to vector<16x32xf32>
    %309 = arith.addf %306, %308 : vector<16x32xf32>
    %c0_112 = arith.constant 0 : index
    %c0_113 = arith.constant 0 : index
    %310 = vector.load %arg19[%c0_112, %c0_113] : memref<1x32xf32, #tpu.memory_space<vmem>>, vector<1x32xf32>
    %c0_114 = arith.constant 0 : index
    %c0_115 = arith.constant 0 : index
    %311 = vector.load %arg20[%c0_114, %c0_115] : memref<1x32xf32, #tpu.memory_space<vmem>>, vector<1x32xf32>
    %cst_116 = arith.constant dense<0.000000e+00> : vector<16xf32>
    %312 = vector.multi_reduction <add>, %309, %cst_116 [1] : vector<16x32xf32> to vector<16xf32>
    %313 = vector.shape_cast %312 : vector<16xf32> to vector<16x1xf32>
    %cst_117 = arith.constant 3.200000e+01 : f32
    %314 = vector.broadcast %cst_117 : f32 to vector<16x1xf32>
    %315 = arith.divf %313, %314 : vector<16x1xf32>
    %316 = vector.broadcast %315 : vector<16x1xf32> to vector<16x32xf32>
    %317 = arith.subf %309, %316 : vector<16x32xf32>
    %318 = arith.mulf %317, %317 : vector<16x32xf32>
    %cst_118 = arith.constant dense<0.000000e+00> : vector<16xf32>
    %319 = vector.multi_reduction <add>, %318, %cst_118 [1] : vector<16x32xf32> to vector<16xf32>
    %320 = vector.shape_cast %319 : vector<16xf32> to vector<16x1xf32>
    %cst_119 = arith.constant 3.200000e+01 : f32
    %321 = vector.broadcast %cst_119 : f32 to vector<16x1xf32>
    %322 = arith.divf %320, %321 : vector<16x1xf32>
    %323 = vector.broadcast %315 : vector<16x1xf32> to vector<16x32xf32>
    %324 = arith.subf %309, %323 : vector<16x32xf32>
    %cst_120 = arith.constant 9.99999974E-6 : f32
    %325 = vector.broadcast %cst_120 : f32 to vector<16x1xf32>
    %326 = arith.addf %322, %325 : vector<16x1xf32>
    %327 = math.rsqrt %326 : vector<16x1xf32>
    %328 = vector.broadcast %327 : vector<16x1xf32> to vector<16x32xf32>
    %329 = arith.mulf %324, %328 : vector<16x32xf32>
    %330 = vector.broadcast %310 : vector<1x32xf32> to vector<16x32xf32>
    %331 = arith.mulf %329, %330 : vector<16x32xf32>
    %332 = vector.broadcast %311 : vector<1x32xf32> to vector<16x32xf32>
    %333 = arith.addf %331, %332 : vector<16x32xf32>
    %334 = tpu.iota {dimensions = array<i32: 0>} : vector<16x1xi32>
    %c8_i32 = arith.constant 8 : i32
    %c0_i32 = arith.constant 0 : i32
    %335 = arith.cmpi eq, %c8_i32, %c0_i32 : i32
    %c1_i32 = arith.constant 1 : i32
    %336 = arith.select %335, %c1_i32, %c8_i32 : i32
    %337 = vector.broadcast %336 : i32 to vector<16x1xi32>
    %338 = arith.remsi %334, %337 : vector<16x1xi32>
    %c0_i32_121 = arith.constant 0 : i32
    %339 = vector.broadcast %c0_i32_121 : i32 to vector<16x1xi32>
    %340 = arith.cmpi ne, %338, %339 : vector<16x1xi32>
    %c0_i32_122 = arith.constant 0 : i32
    %341 = vector.broadcast %c0_i32_122 : i32 to vector<16x1xi32>
    %342 = arith.cmpi slt, %338, %341 : vector<16x1xi32>
    %c0_i32_123 = arith.constant 0 : i32
    %343 = arith.cmpi slt, %336, %c0_i32_123 : i32
    %344 = vector.broadcast %343 : i1 to vector<16x1xi1>
    %345 = vector.broadcast %344 : vector<16x1xi1> to vector<16x1xi1>
    %346 = arith.xori %342, %345 : vector<16x1xi1>
    %347 = arith.andi %346, %340 : vector<16x1xi1>
    %348 = vector.broadcast %336 : i32 to vector<16x1xi32>
    %349 = arith.addi %338, %348 : vector<16x1xi32>
    %350 = arith.select %347, %349, %338 : vector<16x1xi1>, vector<16x1xi32>
    %cst_124 = arith.constant 0.000000e+00 : f32
    %351 = vector.broadcast %cst_124 : f32 to vector<16x64xf32>
    %c2_i32 = arith.constant 2 : i32
    %352 = tpu.dynamic_rotate %333 by %c2_i32 dim 0 : vector<16x32xf32>, i32 -> vector<16x32xf32>
    %c-2_i32 = arith.constant -2 : i32
    %353 = vector.broadcast %c-2_i32 : i32 to vector<16x1xi32>
    %354 = arith.addi %350, %353 : vector<16x1xi32>
    %c0_i32_125 = arith.constant 0 : i32
    %355 = vector.broadcast %c0_i32_125 : i32 to vector<16x1xi32>
    %356 = arith.cmpi sge, %354, %355 : vector<16x1xi32>
    %c-2_i32_126 = arith.constant -2 : i32
    %357 = vector.broadcast %c-2_i32_126 : i32 to vector<16x1xi32>
    %358 = arith.addi %350, %357 : vector<16x1xi32>
    %c8_i32_127 = arith.constant 8 : i32
    %359 = vector.broadcast %c8_i32_127 : i32 to vector<16x1xi32>
    %360 = arith.cmpi slt, %358, %359 : vector<16x1xi32>
    %361 = arith.andi %356, %360 : vector<16x1xi1>
    %cst_128 = arith.constant 0.000000e+00 : f32
    %362 = vector.shape_cast %361 : vector<16x1xi1> to vector<16x1xi1>
    %363 = vector.broadcast %362 : vector<16x1xi1> to vector<16x32xi1>
    %364 = vector.broadcast %cst_128 : f32 to vector<16x32xf32>
    %365 = arith.select %363, %352, %364 : vector<16x32xi1>, vector<16x32xf32>
    %c0_129 = arith.constant 0 : index
    %c0_130 = arith.constant 0 : index
    %c0_131 = arith.constant 0 : index
    %366 = vector.load %arg21[%c0_129, %c0_130, %c0_131] : memref<5x32x64xbf16, #tpu.memory_space<vmem>>, vector<1x32x64xbf16>
    %367 = vector.shape_cast %366 : vector<1x32x64xbf16> to vector<32x64xbf16>
    %368 = arith.truncf %365 : vector<16x32xf32> to vector<16x32xbf16>
    %cst_132 = arith.constant dense<0.000000e+00> : vector<16x64xf32>
    %369 = tpu.matmul %368, %367, %cst_132 {dimension_numbers = #tpu.dot_dimension_numbers<[1], [0], [0], [1], [0, 0, 1, 1], [], []>} : vector<16x32xbf16>, vector<32x64xbf16>, vector<16x64xf32> -> vector<16x64xf32>
    %370 = arith.addf %351, %369 : vector<16x64xf32>
    %c1_i32_133 = arith.constant 1 : i32
    %371 = tpu.dynamic_rotate %333 by %c1_i32_133 dim 0 : vector<16x32xf32>, i32 -> vector<16x32xf32>
    %c-1_i32 = arith.constant -1 : i32
    %372 = vector.broadcast %c-1_i32 : i32 to vector<16x1xi32>
    %373 = arith.addi %350, %372 : vector<16x1xi32>
    %c0_i32_134 = arith.constant 0 : i32
    %374 = vector.broadcast %c0_i32_134 : i32 to vector<16x1xi32>
    %375 = arith.cmpi sge, %373, %374 : vector<16x1xi32>
    %c-1_i32_135 = arith.constant -1 : i32
    %376 = vector.broadcast %c-1_i32_135 : i32 to vector<16x1xi32>
    %377 = arith.addi %350, %376 : vector<16x1xi32>
    %c8_i32_136 = arith.constant 8 : i32
    %378 = vector.broadcast %c8_i32_136 : i32 to vector<16x1xi32>
    %379 = arith.cmpi slt, %377, %378 : vector<16x1xi32>
    %380 = arith.andi %375, %379 : vector<16x1xi1>
    %cst_137 = arith.constant 0.000000e+00 : f32
    %381 = vector.shape_cast %380 : vector<16x1xi1> to vector<16x1xi1>
    %382 = vector.broadcast %381 : vector<16x1xi1> to vector<16x32xi1>
    %383 = vector.broadcast %cst_137 : f32 to vector<16x32xf32>
    %384 = arith.select %382, %371, %383 : vector<16x32xi1>, vector<16x32xf32>
    %c1 = arith.constant 1 : index
    %c0_138 = arith.constant 0 : index
    %c0_139 = arith.constant 0 : index
    %385 = vector.load %arg21[%c1, %c0_138, %c0_139] : memref<5x32x64xbf16, #tpu.memory_space<vmem>>, vector<1x32x64xbf16>
    %386 = vector.shape_cast %385 : vector<1x32x64xbf16> to vector<32x64xbf16>
    %387 = arith.truncf %384 : vector<16x32xf32> to vector<16x32xbf16>
    %cst_140 = arith.constant dense<0.000000e+00> : vector<16x64xf32>
    %388 = tpu.matmul %387, %386, %cst_140 {dimension_numbers = #tpu.dot_dimension_numbers<[1], [0], [0], [1], [0, 0, 1, 1], [], []>} : vector<16x32xbf16>, vector<32x64xbf16>, vector<16x64xf32> -> vector<16x64xf32>
    %389 = arith.addf %370, %388 : vector<16x64xf32>
    %c2 = arith.constant 2 : index
    %c0_141 = arith.constant 0 : index
    %c0_142 = arith.constant 0 : index
    %390 = vector.load %arg21[%c2, %c0_141, %c0_142] : memref<5x32x64xbf16, #tpu.memory_space<vmem>>, vector<1x32x64xbf16>
    %391 = vector.shape_cast %390 : vector<1x32x64xbf16> to vector<32x64xbf16>
    %392 = arith.truncf %333 : vector<16x32xf32> to vector<16x32xbf16>
    %cst_143 = arith.constant dense<0.000000e+00> : vector<16x64xf32>
    %393 = tpu.matmul %392, %391, %cst_143 {dimension_numbers = #tpu.dot_dimension_numbers<[1], [0], [0], [1], [0, 0, 1, 1], [], []>} : vector<16x32xbf16>, vector<32x64xbf16>, vector<16x64xf32> -> vector<16x64xf32>
    %394 = arith.addf %389, %393 : vector<16x64xf32>
    %c15_i32 = arith.constant 15 : i32
    %395 = tpu.dynamic_rotate %333 by %c15_i32 dim 0 : vector<16x32xf32>, i32 -> vector<16x32xf32>
    %c1_i32_144 = arith.constant 1 : i32
    %396 = vector.broadcast %c1_i32_144 : i32 to vector<16x1xi32>
    %397 = arith.addi %350, %396 : vector<16x1xi32>
    %c0_i32_145 = arith.constant 0 : i32
    %398 = vector.broadcast %c0_i32_145 : i32 to vector<16x1xi32>
    %399 = arith.cmpi sge, %397, %398 : vector<16x1xi32>
    %c1_i32_146 = arith.constant 1 : i32
    %400 = vector.broadcast %c1_i32_146 : i32 to vector<16x1xi32>
    %401 = arith.addi %350, %400 : vector<16x1xi32>
    %c8_i32_147 = arith.constant 8 : i32
    %402 = vector.broadcast %c8_i32_147 : i32 to vector<16x1xi32>
    %403 = arith.cmpi slt, %401, %402 : vector<16x1xi32>
    %404 = arith.andi %399, %403 : vector<16x1xi1>
    %cst_148 = arith.constant 0.000000e+00 : f32
    %405 = vector.shape_cast %404 : vector<16x1xi1> to vector<16x1xi1>
    %406 = vector.broadcast %405 : vector<16x1xi1> to vector<16x32xi1>
    %407 = vector.broadcast %cst_148 : f32 to vector<16x32xf32>
    %408 = arith.select %406, %395, %407 : vector<16x32xi1>, vector<16x32xf32>
    %c3 = arith.constant 3 : index
    %c0_149 = arith.constant 0 : index
    %c0_150 = arith.constant 0 : index
    %409 = vector.load %arg21[%c3, %c0_149, %c0_150] : memref<5x32x64xbf16, #tpu.memory_space<vmem>>, vector<1x32x64xbf16>
    %410 = vector.shape_cast %409 : vector<1x32x64xbf16> to vector<32x64xbf16>
    %411 = arith.truncf %408 : vector<16x32xf32> to vector<16x32xbf16>
    %cst_151 = arith.constant dense<0.000000e+00> : vector<16x64xf32>
    %412 = tpu.matmul %411, %410, %cst_151 {dimension_numbers = #tpu.dot_dimension_numbers<[1], [0], [0], [1], [0, 0, 1, 1], [], []>} : vector<16x32xbf16>, vector<32x64xbf16>, vector<16x64xf32> -> vector<16x64xf32>
    %413 = arith.addf %394, %412 : vector<16x64xf32>
    %c14_i32 = arith.constant 14 : i32
    %414 = tpu.dynamic_rotate %333 by %c14_i32 dim 0 : vector<16x32xf32>, i32 -> vector<16x32xf32>
    %c2_i32_152 = arith.constant 2 : i32
    %415 = vector.broadcast %c2_i32_152 : i32 to vector<16x1xi32>
    %416 = arith.addi %350, %415 : vector<16x1xi32>
    %c0_i32_153 = arith.constant 0 : i32
    %417 = vector.broadcast %c0_i32_153 : i32 to vector<16x1xi32>
    %418 = arith.cmpi sge, %416, %417 : vector<16x1xi32>
    %c2_i32_154 = arith.constant 2 : i32
    %419 = vector.broadcast %c2_i32_154 : i32 to vector<16x1xi32>
    %420 = arith.addi %350, %419 : vector<16x1xi32>
    %c8_i32_155 = arith.constant 8 : i32
    %421 = vector.broadcast %c8_i32_155 : i32 to vector<16x1xi32>
    %422 = arith.cmpi slt, %420, %421 : vector<16x1xi32>
    %423 = arith.andi %418, %422 : vector<16x1xi1>
    %cst_156 = arith.constant 0.000000e+00 : f32
    %424 = vector.shape_cast %423 : vector<16x1xi1> to vector<16x1xi1>
    %425 = vector.broadcast %424 : vector<16x1xi1> to vector<16x32xi1>
    %426 = vector.broadcast %cst_156 : f32 to vector<16x32xf32>
    %427 = arith.select %425, %414, %426 : vector<16x32xi1>, vector<16x32xf32>
    %c4 = arith.constant 4 : index
    %c0_157 = arith.constant 0 : index
    %c0_158 = arith.constant 0 : index
    %428 = vector.load %arg21[%c4, %c0_157, %c0_158] : memref<5x32x64xbf16, #tpu.memory_space<vmem>>, vector<1x32x64xbf16>
    %429 = vector.shape_cast %428 : vector<1x32x64xbf16> to vector<32x64xbf16>
    %430 = arith.truncf %427 : vector<16x32xf32> to vector<16x32xbf16>
    %cst_159 = arith.constant dense<0.000000e+00> : vector<16x64xf32>
    %431 = tpu.matmul %430, %429, %cst_159 {dimension_numbers = #tpu.dot_dimension_numbers<[1], [0], [0], [1], [0, 0, 1, 1], [], []>} : vector<16x32xbf16>, vector<32x64xbf16>, vector<16x64xf32> -> vector<16x64xf32>
    %432 = arith.addf %413, %431 : vector<16x64xf32>
    %c0_160 = arith.constant 0 : index
    %c0_161 = arith.constant 0 : index
    %433 = vector.load %arg22[%c0_160, %c0_161] : memref<1x64xf32, #tpu.memory_space<vmem>>, vector<1x64xf32>
    %434 = vector.broadcast %433 : vector<1x64xf32> to vector<16x64xf32>
    %435 = arith.addf %432, %434 : vector<16x64xf32>
    %cst_162 = arith.constant 0.000000e+00 : f32
    %436 = vector.broadcast %cst_162 : f32 to vector<16x64xf32>
    %437 = arith.maximumf %435, %436 : vector<16x64xf32>
    %c0_163 = arith.constant 0 : index
    %c0_164 = arith.constant 0 : index
    %438 = vector.load %arg23[%c0_163, %c0_164] : memref<64x32xbf16, #tpu.memory_space<vmem>>, vector<64x32xbf16>
    %439 = arith.truncf %437 : vector<16x64xf32> to vector<16x64xbf16>
    %cst_165 = arith.constant dense<0.000000e+00> : vector<16x32xf32>
    %440 = tpu.matmul %439, %438, %cst_165 {dimension_numbers = #tpu.dot_dimension_numbers<[1], [0], [0], [1], [0, 0, 1, 1], [], []>} : vector<16x64xbf16>, vector<64x32xbf16>, vector<16x32xf32> -> vector<16x32xf32>
    %c0_166 = arith.constant 0 : index
    %c0_167 = arith.constant 0 : index
    %441 = vector.load %arg24[%c0_166, %c0_167] : memref<1x32xf32, #tpu.memory_space<vmem>>, vector<1x32xf32>
    %442 = vector.broadcast %441 : vector<1x32xf32> to vector<16x32xf32>
    %443 = arith.addf %440, %442 : vector<16x32xf32>
    %444 = arith.addf %309, %443 : vector<16x32xf32>
    %445 = vector.shape_cast %444 : vector<16x32xf32> to vector<2x8x32xf32>
    %c0_168 = arith.constant 0 : index
    %c0_169 = arith.constant 0 : index
    %c0_170 = arith.constant 0 : index
    %446 = vector.load %arg25[%c0_168, %c0_169, %c0_170] : memref<2x8x32xf32, #tpu.memory_space<vmem>>, vector<2x8x32xf32>
    tpu.vector_store %arg25[%c0_168, %c0_169, %c0_170], %445 {strides = array<i32>} : memref<2x8x32xf32, #tpu.memory_space<vmem>>, vector<2x8x32xf32>,
    return
  }
  func.func @transform_0(%arg0: i32) -> (i32, i32, i32) {
    %c0_i32 = arith.constant 0 : i32
    %c0_i32_0 = arith.constant 0 : i32
    %c0_i32_1 = arith.constant 0 : i32
    return %arg0, %c0_i32, %c0_i32_0 : i32, i32, i32
  }
  func.func @transform_1(%arg0: i32) -> (i32, i32, i32) {
    %c0_i32 = arith.constant 0 : i32
    %c0_i32_0 = arith.constant 0 : i32
    %c0_i32_1 = arith.constant 0 : i32
    return %arg0, %c0_i32, %c0_i32_0 : i32, i32, i32
  }
  func.func @transform_2(%arg0: i32) -> (i32, i32, i32, i32) {
    %c0_i32 = arith.constant 0 : i32
    %c0_i32_0 = arith.constant 0 : i32
    %c0_i32_1 = arith.constant 0 : i32
    %c0_i32_2 = arith.constant 0 : i32
    return %arg0, %c0_i32, %c0_i32_0, %c0_i32_1 : i32, i32, i32, i32
  }
  func.func @transform_3(%arg0: i32) -> (i32, i32, i32, i32) {
    %c0_i32 = arith.constant 0 : i32
    %c0_i32_0 = arith.constant 0 : i32
    %c0_i32_1 = arith.constant 0 : i32
    %c0_i32_2 = arith.constant 0 : i32
    return %arg0, %c0_i32, %c0_i32_0, %c0_i32_1 : i32, i32, i32, i32
  }
  func.func @transform_4(%arg0: i32) -> (i32, i32) {
    %c0_i32 = arith.constant 0 : i32
    %c0_i32_0 = arith.constant 0 : i32
    %c0_i32_1 = arith.constant 0 : i32
    return %c0_i32, %c0_i32_0 : i32, i32
  }
  func.func @transform_5(%arg0: i32) -> (i32, i32) {
    %c0_i32 = arith.constant 0 : i32
    %c0_i32_0 = arith.constant 0 : i32
    %c0_i32_1 = arith.constant 0 : i32
    return %c0_i32, %c0_i32_0 : i32, i32
  }
  func.func @transform_6(%arg0: i32) -> (i32, i32) {
    %c0_i32 = arith.constant 0 : i32
    %c0_i32_0 = arith.constant 0 : i32
    %c0_i32_1 = arith.constant 0 : i32
    return %c0_i32, %c0_i32_0 : i32, i32
  }
  func.func @transform_7(%arg0: i32) -> (i32, i32) {
    %c0_i32 = arith.constant 0 : i32
    %c0_i32_0 = arith.constant 0 : i32
    %c0_i32_1 = arith.constant 0 : i32
    return %c0_i32, %c0_i32_0 : i32, i32
  }
  func.func @transform_8(%arg0: i32) -> (i32, i32) {
    %c0_i32 = arith.constant 0 : i32
    %c0_i32_0 = arith.constant 0 : i32
    %c0_i32_1 = arith.constant 0 : i32
    return %c0_i32, %c0_i32_0 : i32, i32
  }
  func.func @transform_9(%arg0: i32) -> (i32, i32) {
    %c0_i32 = arith.constant 0 : i32
    %c0_i32_0 = arith.constant 0 : i32
    %c0_i32_1 = arith.constant 0 : i32
    return %c0_i32, %c0_i32_0 : i32, i32
  }
  func.func @transform_10(%arg0: i32) -> (i32, i32) {
    %c0_i32 = arith.constant 0 : i32
    %c0_i32_0 = arith.constant 0 : i32
    %c0_i32_1 = arith.constant 0 : i32
    return %c0_i32, %c0_i32_0 : i32, i32
  }
  func.func @transform_11(%arg0: i32) -> (i32, i32) {
    %c0_i32 = arith.constant 0 : i32
    %c0_i32_0 = arith.constant 0 : i32
    %c0_i32_1 = arith.constant 0 : i32
    return %c0_i32, %c0_i32_0 : i32, i32
  }
  func.func @transform_12(%arg0: i32) -> (i32, i32) {
    %c0_i32 = arith.constant 0 : i32
    %c0_i32_0 = arith.constant 0 : i32
    %c0_i32_1 = arith.constant 0 : i32
    return %c0_i32, %c0_i32_0 : i32, i32
  }
  func.func @transform_13(%arg0: i32) -> (i32, i32) {
    %c0_i32 = arith.constant 0 : i32
    %c0_i32_0 = arith.constant 0 : i32
    %c0_i32_1 = arith.constant 0 : i32
    return %c0_i32, %c0_i32_0 : i32, i32
  }
  func.func @transform_14(%arg0: i32) -> (i32, i32) {
    %c0_i32 = arith.constant 0 : i32
    %c0_i32_0 = arith.constant 0 : i32
    %c0_i32_1 = arith.constant 0 : i32
    return %c0_i32, %c0_i32_0 : i32, i32
  }
  func.func @transform_15(%arg0: i32) -> (i32, i32) {
    %c0_i32 = arith.constant 0 : i32
    %c0_i32_0 = arith.constant 0 : i32
    %c0_i32_1 = arith.constant 0 : i32
    return %c0_i32, %c0_i32_0 : i32, i32
  }
  func.func @transform_16(%arg0: i32) -> (i32, i32) {
    %c0_i32 = arith.constant 0 : i32
    %c0_i32_0 = arith.constant 0 : i32
    %c0_i32_1 = arith.constant 0 : i32
    return %c0_i32, %c0_i32_0 : i32, i32
  }
  func.func @transform_17(%arg0: i32) -> (i32, i32) {
    %c0_i32 = arith.constant 0 : i32
    %c0_i32_0 = arith.constant 0 : i32
    %c0_i32_1 = arith.constant 0 : i32
    return %c0_i32, %c0_i32_0 : i32, i32
  }
  func.func @transform_18(%arg0: i32) -> (i32, i32) {
    %c0_i32 = arith.constant 0 : i32
    %c0_i32_0 = arith.constant 0 : i32
    %c0_i32_1 = arith.constant 0 : i32
    return %c0_i32, %c0_i32_0 : i32, i32
  }
  func.func @transform_19(%arg0: i32) -> (i32, i32) {
    %c0_i32 = arith.constant 0 : i32
    %c0_i32_0 = arith.constant 0 : i32
    %c0_i32_1 = arith.constant 0 : i32
    return %c0_i32, %c0_i32_0 : i32, i32
  }
  func.func @transform_20(%arg0: i32) -> (i32, i32, i32) {
    %c0_i32 = arith.constant 0 : i32
    %c0_i32_0 = arith.constant 0 : i32
    %c0_i32_1 = arith.constant 0 : i32
    %c0_i32_2 = arith.constant 0 : i32
    return %c0_i32, %c0_i32_0, %c0_i32_1 : i32, i32, i32
  }
  func.func @transform_21(%arg0: i32) -> (i32, i32) {
    %c0_i32 = arith.constant 0 : i32
    %c0_i32_0 = arith.constant 0 : i32
    %c0_i32_1 = arith.constant 0 : i32
    return %c0_i32, %c0_i32_0 : i32, i32
  }
  func.func @transform_22(%arg0: i32) -> (i32, i32) {
    %c0_i32 = arith.constant 0 : i32
    %c0_i32_0 = arith.constant 0 : i32
    %c0_i32_1 = arith.constant 0 : i32
    return %c0_i32, %c0_i32_0 : i32, i32
  }
  func.func @transform_23(%arg0: i32) -> (i32, i32) {
    %c0_i32 = arith.constant 0 : i32
    %c0_i32_0 = arith.constant 0 : i32
    %c0_i32_1 = arith.constant 0 : i32
    return %c0_i32, %c0_i32_0 : i32, i32
  }
  func.func @transform_24(%arg0: i32) -> (i32, i32, i32) {
    %c0_i32 = arith.constant 0 : i32
    %c0_i32_0 = arith.constant 0 : i32
    %c0_i32_1 = arith.constant 0 : i32
    return %arg0, %c0_i32, %c0_i32_0 : i32, i32, i32
  }
  func.func @transform_25(%arg0: i32) -> (i32, i32, i32, i32) {
    %c0_i32 = arith.constant 0 : i32
    %c0_i32_0 = arith.constant 0 : i32
    %c0_i32_1 = arith.constant 0 : i32
    %c0_i32_2 = arith.constant 0 : i32
    return %arg0, %c0_i32, %c0_i32_0, %c0_i32_1 : i32, i32, i32, i32
  }
  func.func @transform_26(%arg0: i32) -> (i32, i32, i32, i32) {
    %c0_i32 = arith.constant 0 : i32
    %c0_i32_0 = arith.constant 0 : i32
    %c0_i32_1 = arith.constant 0 : i32
    %c0_i32_2 = arith.constant 0 : i32
    return %arg0, %c0_i32, %c0_i32_0, %c0_i32_1 : i32, i32, i32, i32
  }
}

module attributes {stable_mosaic.version = 11 : i64} {
  func.func @_layer_kernel(%arg0: i32, %arg1: memref<2x8x32xf32, #tpu.memory_space<vmem>>, %arg2: memref<2x16x32xf32, #tpu.memory_space<vmem>>, %arg3: memref<2x1x8x8xf32, #tpu.memory_space<vmem>>, %arg4: memref<2x1x8x16xf32, #tpu.memory_space<vmem>>, %arg5: memref<1x32xf32, #tpu.memory_space<vmem>>, %arg6: memref<1x32xf32, #tpu.memory_space<vmem>>, %arg7: memref<32x96xbf16, #tpu.memory_space<vmem>>, %arg8: memref<1x96xf32, #tpu.memory_space<vmem>>, %arg9: memref<32x32xbf16, #tpu.memory_space<vmem>>, %arg10: memref<1x32xf32, #tpu.memory_space<vmem>>, %arg11: memref<1x32xf32, #tpu.memory_space<vmem>>, %arg12: memref<1x32xf32, #tpu.memory_space<vmem>>, %arg13: memref<32x32xbf16, #tpu.memory_space<vmem>>, %arg14: memref<1x32xf32, #tpu.memory_space<vmem>>, %arg15: memref<32x64xbf16, #tpu.memory_space<vmem>>, %arg16: memref<1x64xf32, #tpu.memory_space<vmem>>, %arg17: memref<32x32xbf16, #tpu.memory_space<vmem>>, %arg18: memref<1x32xf32, #tpu.memory_space<vmem>>, %arg19: memref<1x32xf32, #tpu.memory_space<vmem>>, %arg20: memref<1x32xf32, #tpu.memory_space<vmem>>, %arg21: memref<5x32x64xbf16, #tpu.memory_space<vmem>>, %arg22: memref<1x64xf32, #tpu.memory_space<vmem>>, %arg23: memref<64x32xbf16, #tpu.memory_space<vmem>>, %arg24: memref<1x32xf32, #tpu.memory_space<vmem>>, %arg25: memref<2x8x32xbf16, #tpu.memory_space<vmem>>, %arg26: memref<2x4x8x8xbf16, #tpu.memory_space<vmem>>, %arg27: memref<2x4x8x16xbf16, #tpu.memory_space<vmem>>, %arg28: memref<16x32xf32, #tpu.memory_space<vmem>>) attributes {dimension_semantics = [#tpu.dimension_semantics<parallel>], iteration_bounds = array<i64: 1>, scalar_prefetch = 0 : i64, scratch_operands = 1 : i64, tpu.core_type = #tpu.core_type<tc>, window_params = [{transform_indices = @transform_0, window_bounds = array<i64: 2, 8, 32>}, {transform_indices = @transform_1, window_bounds = array<i64: 2, 16, 32>}, {transform_indices = @transform_2, window_bounds = array<i64: 2, 1, 8, 8>}, {transform_indices = @transform_3, window_bounds = array<i64: 2, 1, 8, 16>}, {pipeline_mode = #tpu.pipeline_mode<synchronous>, transform_indices = @transform_4, window_bounds = array<i64: 1, 32>}, {pipeline_mode = #tpu.pipeline_mode<synchronous>, transform_indices = @transform_5, window_bounds = array<i64: 1, 32>}, {pipeline_mode = #tpu.pipeline_mode<synchronous>, transform_indices = @transform_6, window_bounds = array<i64: 32, 96>}, {pipeline_mode = #tpu.pipeline_mode<synchronous>, transform_indices = @transform_7, window_bounds = array<i64: 1, 96>}, {pipeline_mode = #tpu.pipeline_mode<synchronous>, transform_indices = @transform_8, window_bounds = array<i64: 32, 32>}, {pipeline_mode = #tpu.pipeline_mode<synchronous>, transform_indices = @transform_9, window_bounds = array<i64: 1, 32>}, {pipeline_mode = #tpu.pipeline_mode<synchronous>, transform_indices = @transform_10, window_bounds = array<i64: 1, 32>}, {pipeline_mode = #tpu.pipeline_mode<synchronous>, transform_indices = @transform_11, window_bounds = array<i64: 1, 32>}, {pipeline_mode = #tpu.pipeline_mode<synchronous>, transform_indices = @transform_12, window_bounds = array<i64: 32, 32>}, {pipeline_mode = #tpu.pipeline_mode<synchronous>, transform_indices = @transform_13, window_bounds = array<i64: 1, 32>}, {pipeline_mode = #tpu.pipeline_mode<synchronous>, transform_indices = @transform_14, window_bounds = array<i64: 32, 64>}, {pipeline_mode = #tpu.pipeline_mode<synchronous>, transform_indices = @transform_15, window_bounds = array<i64: 1, 64>}, {pipeline_mode = #tpu.pipeline_mode<synchronous>, transform_indices = @transform_16, window_bounds = array<i64: 32, 32>}, {pipeline_mode = #tpu.pipeline_mode<synchronous>, transform_indices = @transform_17, window_bounds = array<i64: 1, 32>}, {pipeline_mode = #tpu.pipeline_mode<synchronous>, transform_indices = @transform_18, window_bounds = array<i64: 1, 32>}, {pipeline_mode = #tpu.pipeline_mode<synchronous>, transform_indices = @transform_19, window_bounds = array<i64: 1, 32>}, {pipeline_mode = #tpu.pipeline_mode<synchronous>, transform_indices = @transform_20, window_bounds = array<i64: 5, 32, 64>}, {pipeline_mode = #tpu.pipeline_mode<synchronous>, transform_indices = @transform_21, window_bounds = array<i64: 1, 64>}, {pipeline_mode = #tpu.pipeline_mode<synchronous>, transform_indices = @transform_22, window_bounds = array<i64: 64, 32>}, {pipeline_mode = #tpu.pipeline_mode<synchronous>, transform_indices = @transform_23, window_bounds = array<i64: 1, 32>}, {transform_indices = @transform_24, window_bounds = array<i64: 2, 8, 32>}, {transform_indices = @transform_25, window_bounds = array<i64: 2, 4, 8, 8>}, {transform_indices = @transform_26, window_bounds = array<i64: 2, 4, 8, 16>}]} {
    %c0 = arith.constant 0 : index
    %c0_0 = arith.constant 0 : index
    %c0_1 = arith.constant 0 : index
    %0 = vector.load %arg1[%c0, %c0_0, %c0_1] : memref<2x8x32xf32, #tpu.memory_space<vmem>>, vector<2x8x32xf32>
    %1 = vector.shape_cast %0 : vector<2x8x32xf32> to vector<16x32xf32>
    %c0_2 = arith.constant 0 : index
    %c0_3 = arith.constant 0 : index
    %2 = vector.load %arg5[%c0_2, %c0_3] : memref<1x32xf32, #tpu.memory_space<vmem>>, vector<1x32xf32>
    %c0_4 = arith.constant 0 : index
    %c0_5 = arith.constant 0 : index
    %3 = vector.load %arg6[%c0_4, %c0_5] : memref<1x32xf32, #tpu.memory_space<vmem>>, vector<1x32xf32>
    %cst = arith.constant dense<0.000000e+00> : vector<16xf32>
    %4 = vector.multi_reduction <add>, %1, %cst [1] : vector<16x32xf32> to vector<16xf32>
    %5 = vector.shape_cast %4 : vector<16xf32> to vector<16x1xf32>
    %cst_6 = arith.constant 3.200000e+01 : f32
    %6 = vector.broadcast %cst_6 : f32 to vector<16x1xf32>
    %7 = arith.divf %5, %6 : vector<16x1xf32>
    %8 = vector.broadcast %7 : vector<16x1xf32> to vector<16x32xf32>
    %9 = arith.subf %1, %8 : vector<16x32xf32>
    %10 = arith.mulf %9, %9 : vector<16x32xf32>
    %cst_7 = arith.constant dense<0.000000e+00> : vector<16xf32>
    %11 = vector.multi_reduction <add>, %10, %cst_7 [1] : vector<16x32xf32> to vector<16xf32>
    %12 = vector.shape_cast %11 : vector<16xf32> to vector<16x1xf32>
    %cst_8 = arith.constant 3.200000e+01 : f32
    %13 = vector.broadcast %cst_8 : f32 to vector<16x1xf32>
    %14 = arith.divf %12, %13 : vector<16x1xf32>
    %15 = vector.broadcast %7 : vector<16x1xf32> to vector<16x32xf32>
    %16 = arith.subf %1, %15 : vector<16x32xf32>
    %cst_9 = arith.constant 9.99999974E-6 : f32
    %17 = vector.broadcast %cst_9 : f32 to vector<16x1xf32>
    %18 = arith.addf %14, %17 : vector<16x1xf32>
    %19 = math.rsqrt %18 : vector<16x1xf32>
    %20 = vector.broadcast %19 : vector<16x1xf32> to vector<16x32xf32>
    %21 = arith.mulf %16, %20 : vector<16x32xf32>
    %22 = vector.broadcast %2 : vector<1x32xf32> to vector<16x32xf32>
    %23 = arith.mulf %21, %22 : vector<16x32xf32>
    %24 = vector.broadcast %3 : vector<1x32xf32> to vector<16x32xf32>
    %25 = arith.addf %23, %24 : vector<16x32xf32>
    %c0_10 = arith.constant 0 : index
    %c0_11 = arith.constant 0 : index
    %26 = vector.load %arg7[%c0_10, %c0_11] : memref<32x96xbf16, #tpu.memory_space<vmem>>, vector<32x96xbf16>
    %27 = arith.truncf %25 : vector<16x32xf32> to vector<16x32xbf16>
    %cst_12 = arith.constant dense<0.000000e+00> : vector<16x96xf32>
    %28 = tpu.matmul %27, %26, %cst_12 {dimension_numbers = #tpu.dot_dimension_numbers<[1], [0], [0], [1], [0, 0, 1, 1], [], []>} : vector<16x32xbf16>, vector<32x96xbf16>, vector<16x96xf32> -> vector<16x96xf32>
    %c0_13 = arith.constant 0 : index
    %c0_14 = arith.constant 0 : index
    %29 = vector.load %arg8[%c0_13, %c0_14] : memref<1x96xf32, #tpu.memory_space<vmem>>, vector<1x96xf32>
    %30 = vector.broadcast %29 : vector<1x96xf32> to vector<16x96xf32>
    %31 = arith.addf %28, %30 : vector<16x96xf32>
    %32 = vector.extract_strided_slice %31 {offsets = [0, 0], sizes = [16, 32], strides = [1, 1]} : vector<16x96xf32> to vector<16x32xf32>
    %33 = vector.extract_strided_slice %31 {offsets = [0, 32], sizes = [16, 32], strides = [1, 1]} : vector<16x96xf32> to vector<16x32xf32>
    %34 = vector.extract_strided_slice %31 {offsets = [0, 64], sizes = [16, 32], strides = [1, 1]} : vector<16x96xf32> to vector<16x32xf32>
    %c0_15 = arith.constant 0 : index
    %c0_16 = arith.constant 0 : index
    %c0_17 = arith.constant 0 : index
    %c0_18 = arith.constant 0 : index
    %35 = vector.load %arg3[%c0_15, %c0_16, %c0_17, %c0_18] : memref<2x1x8x8xf32, #tpu.memory_space<vmem>>, vector<2x1x8x8xf32>
    %36 = vector.shape_cast %35 : vector<2x1x8x8xf32> to vector<2x8x8xf32>
    %37 = vector.extract_strided_slice %32 {offsets = [0, 0], sizes = [16, 8], strides = [1, 1]} : vector<16x32xf32> to vector<16x8xf32>
    %38 = vector.shape_cast %37 : vector<16x8xf32> to vector<2x8x8xf32>
    %39 = arith.truncf %38 : vector<2x8x8xf32> to vector<2x8x8xbf16>
    %40 = vector.extract_strided_slice %33 {offsets = [0, 0], sizes = [16, 8], strides = [1, 1]} : vector<16x32xf32> to vector<16x8xf32>
    %41 = vector.shape_cast %40 : vector<16x8xf32> to vector<2x8x8xf32>
    %42 = arith.truncf %41 : vector<2x8x8xf32> to vector<2x8x8xbf16>
    %43 = vector.extract_strided_slice %34 {offsets = [0, 0], sizes = [16, 8], strides = [1, 1]} : vector<16x32xf32> to vector<16x8xf32>
    %44 = vector.shape_cast %43 : vector<16x8xf32> to vector<2x8x8xf32>
    %45 = arith.truncf %44 : vector<2x8x8xf32> to vector<2x8x8xbf16>
    "tpu.trace_start"() <{level = 10 : i32, message = "bqd,bkd->bqk"}> : () -> ()
    %cst_19 = arith.constant dense<0.000000e+00> : vector<2x8x8xf32>
    %46 = tpu.matmul %39, %42, %cst_19 {dimension_numbers = #tpu.dot_dimension_numbers<[2], [2], [1], [1], [0, 0, 0, 1, 1, 1], [0], [0]>} : vector<2x8x8xbf16>, vector<2x8x8xbf16>, vector<2x8x8xf32> -> vector<2x8x8xf32>
    "tpu.trace_stop"() : () -> ()
    %47 = arith.addf %46, %36 : vector<2x8x8xf32>
    %cst_20 = arith.constant dense<0xFF800000> : vector<2x8xf32>
    %48 = vector.multi_reduction <maximumf>, %47, %cst_20 [2] : vector<2x8x8xf32> to vector<2x8xf32>
    %49 = vector.shape_cast %48 : vector<2x8xf32> to vector<2x8x1xf32>
    %50 = vector.broadcast %49 : vector<2x8x1xf32> to vector<2x8x8xf32>
    %51 = arith.subf %47, %50 : vector<2x8x8xf32>
    %52 = math.exp %51 : vector<2x8x8xf32>
    %cst_21 = arith.constant dense<0.000000e+00> : vector<2x8xf32>
    %53 = vector.multi_reduction <add>, %52, %cst_21 [2] : vector<2x8x8xf32> to vector<2x8xf32>
    %54 = vector.shape_cast %53 : vector<2x8xf32> to vector<2x8x1xf32>
    %55 = tpu.reciprocal %54 {approx = true} : vector<2x8x1xf32> -> vector<2x8x1xf32>
    %56 = vector.broadcast %55 : vector<2x8x1xf32> to vector<2x8x8xf32>
    %57 = arith.mulf %52, %56 : vector<2x8x8xf32>
    %58 = arith.truncf %57 : vector<2x8x8xf32> to vector<2x8x8xbf16>
    "tpu.trace_start"() <{level = 10 : i32, message = "bqk,bkd->bqd"}> : () -> ()
    %cst_22 = arith.constant dense<0.000000e+00> : vector<2x8x8xf32>
    %59 = tpu.matmul %58, %45, %cst_22 {dimension_numbers = #tpu.dot_dimension_numbers<[2], [1], [1], [2], [0, 0, 0, 1, 1, 2], [0], [0]>} : vector<2x8x8xbf16>, vector<2x8x8xbf16>, vector<2x8x8xf32> -> vector<2x8x8xf32>
    "tpu.trace_stop"() : () -> ()
    %60 = vector.shape_cast %59 : vector<2x8x8xf32> to vector<16x8xf32>
    %c0_23 = arith.constant 0 : index
    %c0_24 = arith.constant 0 : index
    %61 = vector.load %arg28[%c0_23, %c0_24] : memref<16x32xf32, #tpu.memory_space<vmem>>, vector<16x8xf32>
    tpu.vector_store %arg28[%c0_23, %c0_24], %60 {strides = array<i32>} : memref<16x32xf32, #tpu.memory_space<vmem>>, vector<16x8xf32>,
    %62 = vector.extract_strided_slice %32 {offsets = [0, 8], sizes = [16, 8], strides = [1, 1]} : vector<16x32xf32> to vector<16x8xf32>
    %63 = vector.shape_cast %62 : vector<16x8xf32> to vector<2x8x8xf32>
    %64 = arith.truncf %63 : vector<2x8x8xf32> to vector<2x8x8xbf16>
    %65 = vector.extract_strided_slice %33 {offsets = [0, 8], sizes = [16, 8], strides = [1, 1]} : vector<16x32xf32> to vector<16x8xf32>
    %66 = vector.shape_cast %65 : vector<16x8xf32> to vector<2x8x8xf32>
    %67 = arith.truncf %66 : vector<2x8x8xf32> to vector<2x8x8xbf16>
    %68 = vector.extract_strided_slice %34 {offsets = [0, 8], sizes = [16, 8], strides = [1, 1]} : vector<16x32xf32> to vector<16x8xf32>
    %69 = vector.shape_cast %68 : vector<16x8xf32> to vector<2x8x8xf32>
    %70 = arith.truncf %69 : vector<2x8x8xf32> to vector<2x8x8xbf16>
    "tpu.trace_start"() <{level = 10 : i32, message = "bqd,bkd->bqk"}> : () -> ()
    %cst_25 = arith.constant dense<0.000000e+00> : vector<2x8x8xf32>
    %71 = tpu.matmul %64, %67, %cst_25 {dimension_numbers = #tpu.dot_dimension_numbers<[2], [2], [1], [1], [0, 0, 0, 1, 1, 1], [0], [0]>} : vector<2x8x8xbf16>, vector<2x8x8xbf16>, vector<2x8x8xf32> -> vector<2x8x8xf32>
    "tpu.trace_stop"() : () -> ()
    %72 = arith.addf %71, %36 : vector<2x8x8xf32>
    %cst_26 = arith.constant dense<0xFF800000> : vector<2x8xf32>
    %73 = vector.multi_reduction <maximumf>, %72, %cst_26 [2] : vector<2x8x8xf32> to vector<2x8xf32>
    %74 = vector.shape_cast %73 : vector<2x8xf32> to vector<2x8x1xf32>
    %75 = vector.broadcast %74 : vector<2x8x1xf32> to vector<2x8x8xf32>
    %76 = arith.subf %72, %75 : vector<2x8x8xf32>
    %77 = math.exp %76 : vector<2x8x8xf32>
    %cst_27 = arith.constant dense<0.000000e+00> : vector<2x8xf32>
    %78 = vector.multi_reduction <add>, %77, %cst_27 [2] : vector<2x8x8xf32> to vector<2x8xf32>
    %79 = vector.shape_cast %78 : vector<2x8xf32> to vector<2x8x1xf32>
    %80 = tpu.reciprocal %79 {approx = true} : vector<2x8x1xf32> -> vector<2x8x1xf32>
    %81 = vector.broadcast %80 : vector<2x8x1xf32> to vector<2x8x8xf32>
    %82 = arith.mulf %77, %81 : vector<2x8x8xf32>
    %83 = arith.truncf %82 : vector<2x8x8xf32> to vector<2x8x8xbf16>
    "tpu.trace_start"() <{level = 10 : i32, message = "bqk,bkd->bqd"}> : () -> ()
    %cst_28 = arith.constant dense<0.000000e+00> : vector<2x8x8xf32>
    %84 = tpu.matmul %83, %70, %cst_28 {dimension_numbers = #tpu.dot_dimension_numbers<[2], [1], [1], [2], [0, 0, 0, 1, 1, 2], [0], [0]>} : vector<2x8x8xbf16>, vector<2x8x8xbf16>, vector<2x8x8xf32> -> vector<2x8x8xf32>
    "tpu.trace_stop"() : () -> ()
    %85 = vector.shape_cast %84 : vector<2x8x8xf32> to vector<16x8xf32>
    %c0_29 = arith.constant 0 : index
    %c8 = arith.constant 8 : index
    %86 = vector.load %arg28[%c0_29, %c8] : memref<16x32xf32, #tpu.memory_space<vmem>>, vector<16x8xf32>
    tpu.vector_store %arg28[%c0_29, %c8], %85 {strides = array<i32>} : memref<16x32xf32, #tpu.memory_space<vmem>>, vector<16x8xf32>,
    %87 = vector.extract_strided_slice %32 {offsets = [0, 16], sizes = [16, 8], strides = [1, 1]} : vector<16x32xf32> to vector<16x8xf32>
    %88 = vector.shape_cast %87 : vector<16x8xf32> to vector<2x8x8xf32>
    %89 = arith.truncf %88 : vector<2x8x8xf32> to vector<2x8x8xbf16>
    %90 = vector.extract_strided_slice %33 {offsets = [0, 16], sizes = [16, 8], strides = [1, 1]} : vector<16x32xf32> to vector<16x8xf32>
    %91 = vector.shape_cast %90 : vector<16x8xf32> to vector<2x8x8xf32>
    %92 = arith.truncf %91 : vector<2x8x8xf32> to vector<2x8x8xbf16>
    %93 = vector.extract_strided_slice %34 {offsets = [0, 16], sizes = [16, 8], strides = [1, 1]} : vector<16x32xf32> to vector<16x8xf32>
    %94 = vector.shape_cast %93 : vector<16x8xf32> to vector<2x8x8xf32>
    %95 = arith.truncf %94 : vector<2x8x8xf32> to vector<2x8x8xbf16>
    "tpu.trace_start"() <{level = 10 : i32, message = "bqd,bkd->bqk"}> : () -> ()
    %cst_30 = arith.constant dense<0.000000e+00> : vector<2x8x8xf32>
    %96 = tpu.matmul %89, %92, %cst_30 {dimension_numbers = #tpu.dot_dimension_numbers<[2], [2], [1], [1], [0, 0, 0, 1, 1, 1], [0], [0]>} : vector<2x8x8xbf16>, vector<2x8x8xbf16>, vector<2x8x8xf32> -> vector<2x8x8xf32>
    "tpu.trace_stop"() : () -> ()
    %97 = arith.addf %96, %36 : vector<2x8x8xf32>
    %cst_31 = arith.constant dense<0xFF800000> : vector<2x8xf32>
    %98 = vector.multi_reduction <maximumf>, %97, %cst_31 [2] : vector<2x8x8xf32> to vector<2x8xf32>
    %99 = vector.shape_cast %98 : vector<2x8xf32> to vector<2x8x1xf32>
    %100 = vector.broadcast %99 : vector<2x8x1xf32> to vector<2x8x8xf32>
    %101 = arith.subf %97, %100 : vector<2x8x8xf32>
    %102 = math.exp %101 : vector<2x8x8xf32>
    %cst_32 = arith.constant dense<0.000000e+00> : vector<2x8xf32>
    %103 = vector.multi_reduction <add>, %102, %cst_32 [2] : vector<2x8x8xf32> to vector<2x8xf32>
    %104 = vector.shape_cast %103 : vector<2x8xf32> to vector<2x8x1xf32>
    %105 = tpu.reciprocal %104 {approx = true} : vector<2x8x1xf32> -> vector<2x8x1xf32>
    %106 = vector.broadcast %105 : vector<2x8x1xf32> to vector<2x8x8xf32>
    %107 = arith.mulf %102, %106 : vector<2x8x8xf32>
    %108 = arith.truncf %107 : vector<2x8x8xf32> to vector<2x8x8xbf16>
    "tpu.trace_start"() <{level = 10 : i32, message = "bqk,bkd->bqd"}> : () -> ()
    %cst_33 = arith.constant dense<0.000000e+00> : vector<2x8x8xf32>
    %109 = tpu.matmul %108, %95, %cst_33 {dimension_numbers = #tpu.dot_dimension_numbers<[2], [1], [1], [2], [0, 0, 0, 1, 1, 2], [0], [0]>} : vector<2x8x8xbf16>, vector<2x8x8xbf16>, vector<2x8x8xf32> -> vector<2x8x8xf32>
    "tpu.trace_stop"() : () -> ()
    %110 = vector.shape_cast %109 : vector<2x8x8xf32> to vector<16x8xf32>
    %c0_34 = arith.constant 0 : index
    %c16 = arith.constant 16 : index
    %111 = vector.load %arg28[%c0_34, %c16] : memref<16x32xf32, #tpu.memory_space<vmem>>, vector<16x8xf32>
    tpu.vector_store %arg28[%c0_34, %c16], %110 {strides = array<i32>} : memref<16x32xf32, #tpu.memory_space<vmem>>, vector<16x8xf32>,
    %112 = vector.extract_strided_slice %32 {offsets = [0, 24], sizes = [16, 8], strides = [1, 1]} : vector<16x32xf32> to vector<16x8xf32>
    %113 = vector.shape_cast %112 : vector<16x8xf32> to vector<2x8x8xf32>
    %114 = arith.truncf %113 : vector<2x8x8xf32> to vector<2x8x8xbf16>
    %115 = vector.extract_strided_slice %33 {offsets = [0, 24], sizes = [16, 8], strides = [1, 1]} : vector<16x32xf32> to vector<16x8xf32>
    %116 = vector.shape_cast %115 : vector<16x8xf32> to vector<2x8x8xf32>
    %117 = arith.truncf %116 : vector<2x8x8xf32> to vector<2x8x8xbf16>
    %118 = vector.extract_strided_slice %34 {offsets = [0, 24], sizes = [16, 8], strides = [1, 1]} : vector<16x32xf32> to vector<16x8xf32>
    %119 = vector.shape_cast %118 : vector<16x8xf32> to vector<2x8x8xf32>
    %120 = arith.truncf %119 : vector<2x8x8xf32> to vector<2x8x8xbf16>
    "tpu.trace_start"() <{level = 10 : i32, message = "bqd,bkd->bqk"}> : () -> ()
    %cst_35 = arith.constant dense<0.000000e+00> : vector<2x8x8xf32>
    %121 = tpu.matmul %114, %117, %cst_35 {dimension_numbers = #tpu.dot_dimension_numbers<[2], [2], [1], [1], [0, 0, 0, 1, 1, 1], [0], [0]>} : vector<2x8x8xbf16>, vector<2x8x8xbf16>, vector<2x8x8xf32> -> vector<2x8x8xf32>
    "tpu.trace_stop"() : () -> ()
    %122 = arith.addf %121, %36 : vector<2x8x8xf32>
    %cst_36 = arith.constant dense<0xFF800000> : vector<2x8xf32>
    %123 = vector.multi_reduction <maximumf>, %122, %cst_36 [2] : vector<2x8x8xf32> to vector<2x8xf32>
    %124 = vector.shape_cast %123 : vector<2x8xf32> to vector<2x8x1xf32>
    %125 = vector.broadcast %124 : vector<2x8x1xf32> to vector<2x8x8xf32>
    %126 = arith.subf %122, %125 : vector<2x8x8xf32>
    %127 = math.exp %126 : vector<2x8x8xf32>
    %cst_37 = arith.constant dense<0.000000e+00> : vector<2x8xf32>
    %128 = vector.multi_reduction <add>, %127, %cst_37 [2] : vector<2x8x8xf32> to vector<2x8xf32>
    %129 = vector.shape_cast %128 : vector<2x8xf32> to vector<2x8x1xf32>
    %130 = tpu.reciprocal %129 {approx = true} : vector<2x8x1xf32> -> vector<2x8x1xf32>
    %131 = vector.broadcast %130 : vector<2x8x1xf32> to vector<2x8x8xf32>
    %132 = arith.mulf %127, %131 : vector<2x8x8xf32>
    %133 = arith.truncf %132 : vector<2x8x8xf32> to vector<2x8x8xbf16>
    "tpu.trace_start"() <{level = 10 : i32, message = "bqk,bkd->bqd"}> : () -> ()
    %cst_38 = arith.constant dense<0.000000e+00> : vector<2x8x8xf32>
    %134 = tpu.matmul %133, %120, %cst_38 {dimension_numbers = #tpu.dot_dimension_numbers<[2], [1], [1], [2], [0, 0, 0, 1, 1, 2], [0], [0]>} : vector<2x8x8xbf16>, vector<2x8x8xbf16>, vector<2x8x8xf32> -> vector<2x8x8xf32>
    "tpu.trace_stop"() : () -> ()
    %135 = vector.shape_cast %134 : vector<2x8x8xf32> to vector<16x8xf32>
    %c0_39 = arith.constant 0 : index
    %c24 = arith.constant 24 : index
    %136 = vector.load %arg28[%c0_39, %c24] : memref<16x32xf32, #tpu.memory_space<vmem>>, vector<16x8xf32>
    tpu.vector_store %arg28[%c0_39, %c24], %135 {strides = array<i32>} : memref<16x32xf32, #tpu.memory_space<vmem>>, vector<16x8xf32>,
    %137 = vector.shape_cast %57 : vector<2x8x8xf32> to vector<2x1x8x8xf32>
    %138 = vector.shape_cast %82 : vector<2x8x8xf32> to vector<2x1x8x8xf32>
    %139 = vector.shape_cast %107 : vector<2x8x8xf32> to vector<2x1x8x8xf32>
    %140 = vector.shape_cast %132 : vector<2x8x8xf32> to vector<2x1x8x8xf32>
    %141 = tpu.concatenate %137, %138, %139, %140 in 1 : vector<2x1x8x8xf32>, vector<2x1x8x8xf32>, vector<2x1x8x8xf32>, vector<2x1x8x8xf32> -> vector<2x4x8x8xf32>
    %142 = arith.truncf %141 : vector<2x4x8x8xf32> to vector<2x4x8x8xbf16>
    %c0_40 = arith.constant 0 : index
    %c0_41 = arith.constant 0 : index
    %c0_42 = arith.constant 0 : index
    %c0_43 = arith.constant 0 : index
    %143 = vector.load %arg26[%c0_40, %c0_41, %c0_42, %c0_43] : memref<2x4x8x8xbf16, #tpu.memory_space<vmem>>, vector<2x4x8x8xbf16>
    tpu.vector_store %arg26[%c0_40, %c0_41, %c0_42, %c0_43], %142 {strides = array<i32>} : memref<2x4x8x8xbf16, #tpu.memory_space<vmem>>, vector<2x4x8x8xbf16>,
    %c0_44 = arith.constant 0 : index
    %c0_45 = arith.constant 0 : index
    %144 = vector.load %arg28[%c0_44, %c0_45] : memref<16x32xf32, #tpu.memory_space<vmem>>, vector<16x32xf32>
    %c0_46 = arith.constant 0 : index
    %c0_47 = arith.constant 0 : index
    %145 = vector.load %arg9[%c0_46, %c0_47] : memref<32x32xbf16, #tpu.memory_space<vmem>>, vector<32x32xbf16>
    %146 = arith.truncf %144 : vector<16x32xf32> to vector<16x32xbf16>
    %cst_48 = arith.constant dense<0.000000e+00> : vector<16x32xf32>
    %147 = tpu.matmul %146, %145, %cst_48 {dimension_numbers = #tpu.dot_dimension_numbers<[1], [0], [0], [1], [0, 0, 1, 1], [], []>} : vector<16x32xbf16>, vector<32x32xbf16>, vector<16x32xf32> -> vector<16x32xf32>
    %148 = arith.addf %1, %147 : vector<16x32xf32>
    %c0_49 = arith.constant 0 : index
    %c0_50 = arith.constant 0 : index
    %149 = vector.load %arg10[%c0_49, %c0_50] : memref<1x32xf32, #tpu.memory_space<vmem>>, vector<1x32xf32>
    %150 = vector.broadcast %149 : vector<1x32xf32> to vector<16x32xf32>
    %151 = arith.addf %148, %150 : vector<16x32xf32>
    %c0_51 = arith.constant 0 : index
    %c0_52 = arith.constant 0 : index
    %c0_53 = arith.constant 0 : index
    %152 = vector.load %arg2[%c0_51, %c0_52, %c0_53] : memref<2x16x32xf32, #tpu.memory_space<vmem>>, vector<2x16x32xf32>
    %153 = vector.shape_cast %152 : vector<2x16x32xf32> to vector<32x32xf32>
    %c0_54 = arith.constant 0 : index
    %c0_55 = arith.constant 0 : index
    %154 = vector.load %arg11[%c0_54, %c0_55] : memref<1x32xf32, #tpu.memory_space<vmem>>, vector<1x32xf32>
    %c0_56 = arith.constant 0 : index
    %c0_57 = arith.constant 0 : index
    %155 = vector.load %arg12[%c0_56, %c0_57] : memref<1x32xf32, #tpu.memory_space<vmem>>, vector<1x32xf32>
    %cst_58 = arith.constant dense<0.000000e+00> : vector<16xf32>
    %156 = vector.multi_reduction <add>, %151, %cst_58 [1] : vector<16x32xf32> to vector<16xf32>
    %157 = vector.shape_cast %156 : vector<16xf32> to vector<16x1xf32>
    %cst_59 = arith.constant 3.200000e+01 : f32
    %158 = vector.broadcast %cst_59 : f32 to vector<16x1xf32>
    %159 = arith.divf %157, %158 : vector<16x1xf32>
    %160 = vector.broadcast %159 : vector<16x1xf32> to vector<16x32xf32>
    %161 = arith.subf %151, %160 : vector<16x32xf32>
    %162 = arith.mulf %161, %161 : vector<16x32xf32>
    %cst_60 = arith.constant dense<0.000000e+00> : vector<16xf32>
    %163 = vector.multi_reduction <add>, %162, %cst_60 [1] : vector<16x32xf32> to vector<16xf32>
    %164 = vector.shape_cast %163 : vector<16xf32> to vector<16x1xf32>
    %cst_61 = arith.constant 3.200000e+01 : f32
    %165 = vector.broadcast %cst_61 : f32 to vector<16x1xf32>
    %166 = arith.divf %164, %165 : vector<16x1xf32>
    %167 = vector.broadcast %159 : vector<16x1xf32> to vector<16x32xf32>
    %168 = arith.subf %151, %167 : vector<16x32xf32>
    %cst_62 = arith.constant 9.99999974E-6 : f32
    %169 = vector.broadcast %cst_62 : f32 to vector<16x1xf32>
    %170 = arith.addf %166, %169 : vector<16x1xf32>
    %171 = math.rsqrt %170 : vector<16x1xf32>
    %172 = vector.broadcast %171 : vector<16x1xf32> to vector<16x32xf32>
    %173 = arith.mulf %168, %172 : vector<16x32xf32>
    %174 = vector.broadcast %154 : vector<1x32xf32> to vector<16x32xf32>
    %175 = arith.mulf %173, %174 : vector<16x32xf32>
    %176 = vector.broadcast %155 : vector<1x32xf32> to vector<16x32xf32>
    %177 = arith.addf %175, %176 : vector<16x32xf32>
    %c0_63 = arith.constant 0 : index
    %c0_64 = arith.constant 0 : index
    %178 = vector.load %arg13[%c0_63, %c0_64] : memref<32x32xbf16, #tpu.memory_space<vmem>>, vector<32x32xbf16>
    %179 = arith.truncf %177 : vector<16x32xf32> to vector<16x32xbf16>
    %cst_65 = arith.constant dense<0.000000e+00> : vector<16x32xf32>
    %180 = tpu.matmul %179, %178, %cst_65 {dimension_numbers = #tpu.dot_dimension_numbers<[1], [0], [0], [1], [0, 0, 1, 1], [], []>} : vector<16x32xbf16>, vector<32x32xbf16>, vector<16x32xf32> -> vector<16x32xf32>
    %c0_66 = arith.constant 0 : index
    %c0_67 = arith.constant 0 : index
    %181 = vector.load %arg14[%c0_66, %c0_67] : memref<1x32xf32, #tpu.memory_space<vmem>>, vector<1x32xf32>
    %182 = vector.broadcast %181 : vector<1x32xf32> to vector<16x32xf32>
    %183 = arith.addf %180, %182 : vector<16x32xf32>
    %c0_68 = arith.constant 0 : index
    %c0_69 = arith.constant 0 : index
    %184 = vector.load %arg15[%c0_68, %c0_69] : memref<32x64xbf16, #tpu.memory_space<vmem>>, vector<32x64xbf16>
    %185 = arith.truncf %153 : vector<32x32xf32> to vector<32x32xbf16>
    %cst_70 = arith.constant dense<0.000000e+00> : vector<32x64xf32>
    %186 = tpu.matmul %185, %184, %cst_70 {dimension_numbers = #tpu.dot_dimension_numbers<[1], [0], [0], [1], [0, 0, 1, 1], [], []>} : vector<32x32xbf16>, vector<32x64xbf16>, vector<32x64xf32> -> vector<32x64xf32>
    %c0_71 = arith.constant 0 : index
    %c0_72 = arith.constant 0 : index
    %187 = vector.load %arg16[%c0_71, %c0_72] : memref<1x64xf32, #tpu.memory_space<vmem>>, vector<1x64xf32>
    %188 = vector.broadcast %187 : vector<1x64xf32> to vector<32x64xf32>
    %189 = arith.addf %186, %188 : vector<32x64xf32>
    %190 = vector.extract_strided_slice %189 {offsets = [0, 0], sizes = [32, 32], strides = [1, 1]} : vector<32x64xf32> to vector<32x32xf32>
    %191 = vector.extract_strided_slice %189 {offsets = [0, 32], sizes = [32, 32], strides = [1, 1]} : vector<32x64xf32> to vector<32x32xf32>
    %c0_73 = arith.constant 0 : index
    %c0_74 = arith.constant 0 : index
    %c0_75 = arith.constant 0 : index
    %c0_76 = arith.constant 0 : index
    %192 = vector.load %arg4[%c0_73, %c0_74, %c0_75, %c0_76] : memref<2x1x8x16xf32, #tpu.memory_space<vmem>>, vector<2x1x8x16xf32>
    %193 = vector.shape_cast %192 : vector<2x1x8x16xf32> to vector<2x8x16xf32>
    %194 = vector.extract_strided_slice %183 {offsets = [0, 0], sizes = [16, 8], strides = [1, 1]} : vector<16x32xf32> to vector<16x8xf32>
    %195 = vector.shape_cast %194 : vector<16x8xf32> to vector<2x8x8xf32>
    %196 = arith.truncf %195 : vector<2x8x8xf32> to vector<2x8x8xbf16>
    %197 = vector.extract_strided_slice %190 {offsets = [0, 0], sizes = [32, 8], strides = [1, 1]} : vector<32x32xf32> to vector<32x8xf32>
    %198 = vector.shape_cast %197 : vector<32x8xf32> to vector<2x16x8xf32>
    %199 = arith.truncf %198 : vector<2x16x8xf32> to vector<2x16x8xbf16>
    %200 = vector.extract_strided_slice %191 {offsets = [0, 0], sizes = [32, 8], strides = [1, 1]} : vector<32x32xf32> to vector<32x8xf32>
    %201 = vector.shape_cast %200 : vector<32x8xf32> to vector<2x16x8xf32>
    %202 = arith.truncf %201 : vector<2x16x8xf32> to vector<2x16x8xbf16>
    "tpu.trace_start"() <{level = 10 : i32, message = "bqd,bkd->bqk"}> : () -> ()
    %cst_77 = arith.constant dense<0.000000e+00> : vector<2x8x16xf32>
    %203 = tpu.matmul %196, %199, %cst_77 {dimension_numbers = #tpu.dot_dimension_numbers<[2], [2], [1], [1], [0, 0, 0, 1, 1, 1], [0], [0]>} : vector<2x8x8xbf16>, vector<2x16x8xbf16>, vector<2x8x16xf32> -> vector<2x8x16xf32>
    "tpu.trace_stop"() : () -> ()
    %204 = arith.addf %203, %193 : vector<2x8x16xf32>
    %cst_78 = arith.constant dense<0xFF800000> : vector<2x8xf32>
    %205 = vector.multi_reduction <maximumf>, %204, %cst_78 [2] : vector<2x8x16xf32> to vector<2x8xf32>
    %206 = vector.shape_cast %205 : vector<2x8xf32> to vector<2x8x1xf32>
    %207 = vector.broadcast %206 : vector<2x8x1xf32> to vector<2x8x16xf32>
    %208 = arith.subf %204, %207 : vector<2x8x16xf32>
    %209 = math.exp %208 : vector<2x8x16xf32>
    %cst_79 = arith.constant dense<0.000000e+00> : vector<2x8xf32>
    %210 = vector.multi_reduction <add>, %209, %cst_79 [2] : vector<2x8x16xf32> to vector<2x8xf32>
    %211 = vector.shape_cast %210 : vector<2x8xf32> to vector<2x8x1xf32>
    %212 = tpu.reciprocal %211 {approx = true} : vector<2x8x1xf32> -> vector<2x8x1xf32>
    %213 = vector.broadcast %212 : vector<2x8x1xf32> to vector<2x8x16xf32>
    %214 = arith.mulf %209, %213 : vector<2x8x16xf32>
    %215 = arith.truncf %214 : vector<2x8x16xf32> to vector<2x8x16xbf16>
    "tpu.trace_start"() <{level = 10 : i32, message = "bqk,bkd->bqd"}> : () -> ()
    %cst_80 = arith.constant dense<0.000000e+00> : vector<2x8x8xf32>
    %216 = tpu.matmul %215, %202, %cst_80 {dimension_numbers = #tpu.dot_dimension_numbers<[2], [1], [1], [2], [0, 0, 0, 1, 1, 2], [0], [0]>} : vector<2x8x16xbf16>, vector<2x16x8xbf16>, vector<2x8x8xf32> -> vector<2x8x8xf32>
    "tpu.trace_stop"() : () -> ()
    %217 = vector.shape_cast %216 : vector<2x8x8xf32> to vector<16x8xf32>
    %c0_81 = arith.constant 0 : index
    %c0_82 = arith.constant 0 : index
    %218 = vector.load %arg28[%c0_81, %c0_82] : memref<16x32xf32, #tpu.memory_space<vmem>>, vector<16x8xf32>
    tpu.vector_store %arg28[%c0_81, %c0_82], %217 {strides = array<i32>} : memref<16x32xf32, #tpu.memory_space<vmem>>, vector<16x8xf32>,
    %219 = vector.extract_strided_slice %183 {offsets = [0, 8], sizes = [16, 8], strides = [1, 1]} : vector<16x32xf32> to vector<16x8xf32>
    %220 = vector.shape_cast %219 : vector<16x8xf32> to vector<2x8x8xf32>
    %221 = arith.truncf %220 : vector<2x8x8xf32> to vector<2x8x8xbf16>
    %222 = vector.extract_strided_slice %190 {offsets = [0, 8], sizes = [32, 8], strides = [1, 1]} : vector<32x32xf32> to vector<32x8xf32>
    %223 = vector.shape_cast %222 : vector<32x8xf32> to vector<2x16x8xf32>
    %224 = arith.truncf %223 : vector<2x16x8xf32> to vector<2x16x8xbf16>
    %225 = vector.extract_strided_slice %191 {offsets = [0, 8], sizes = [32, 8], strides = [1, 1]} : vector<32x32xf32> to vector<32x8xf32>
    %226 = vector.shape_cast %225 : vector<32x8xf32> to vector<2x16x8xf32>
    %227 = arith.truncf %226 : vector<2x16x8xf32> to vector<2x16x8xbf16>
    "tpu.trace_start"() <{level = 10 : i32, message = "bqd,bkd->bqk"}> : () -> ()
    %cst_83 = arith.constant dense<0.000000e+00> : vector<2x8x16xf32>
    %228 = tpu.matmul %221, %224, %cst_83 {dimension_numbers = #tpu.dot_dimension_numbers<[2], [2], [1], [1], [0, 0, 0, 1, 1, 1], [0], [0]>} : vector<2x8x8xbf16>, vector<2x16x8xbf16>, vector<2x8x16xf32> -> vector<2x8x16xf32>
    "tpu.trace_stop"() : () -> ()
    %229 = arith.addf %228, %193 : vector<2x8x16xf32>
    %cst_84 = arith.constant dense<0xFF800000> : vector<2x8xf32>
    %230 = vector.multi_reduction <maximumf>, %229, %cst_84 [2] : vector<2x8x16xf32> to vector<2x8xf32>
    %231 = vector.shape_cast %230 : vector<2x8xf32> to vector<2x8x1xf32>
    %232 = vector.broadcast %231 : vector<2x8x1xf32> to vector<2x8x16xf32>
    %233 = arith.subf %229, %232 : vector<2x8x16xf32>
    %234 = math.exp %233 : vector<2x8x16xf32>
    %cst_85 = arith.constant dense<0.000000e+00> : vector<2x8xf32>
    %235 = vector.multi_reduction <add>, %234, %cst_85 [2] : vector<2x8x16xf32> to vector<2x8xf32>
    %236 = vector.shape_cast %235 : vector<2x8xf32> to vector<2x8x1xf32>
    %237 = tpu.reciprocal %236 {approx = true} : vector<2x8x1xf32> -> vector<2x8x1xf32>
    %238 = vector.broadcast %237 : vector<2x8x1xf32> to vector<2x8x16xf32>
    %239 = arith.mulf %234, %238 : vector<2x8x16xf32>
    %240 = arith.truncf %239 : vector<2x8x16xf32> to vector<2x8x16xbf16>
    "tpu.trace_start"() <{level = 10 : i32, message = "bqk,bkd->bqd"}> : () -> ()
    %cst_86 = arith.constant dense<0.000000e+00> : vector<2x8x8xf32>
    %241 = tpu.matmul %240, %227, %cst_86 {dimension_numbers = #tpu.dot_dimension_numbers<[2], [1], [1], [2], [0, 0, 0, 1, 1, 2], [0], [0]>} : vector<2x8x16xbf16>, vector<2x16x8xbf16>, vector<2x8x8xf32> -> vector<2x8x8xf32>
    "tpu.trace_stop"() : () -> ()
    %242 = vector.shape_cast %241 : vector<2x8x8xf32> to vector<16x8xf32>
    %c0_87 = arith.constant 0 : index
    %c8_88 = arith.constant 8 : index
    %243 = vector.load %arg28[%c0_87, %c8_88] : memref<16x32xf32, #tpu.memory_space<vmem>>, vector<16x8xf32>
    tpu.vector_store %arg28[%c0_87, %c8_88], %242 {strides = array<i32>} : memref<16x32xf32, #tpu.memory_space<vmem>>, vector<16x8xf32>,
    %244 = vector.extract_strided_slice %183 {offsets = [0, 16], sizes = [16, 8], strides = [1, 1]} : vector<16x32xf32> to vector<16x8xf32>
    %245 = vector.shape_cast %244 : vector<16x8xf32> to vector<2x8x8xf32>
    %246 = arith.truncf %245 : vector<2x8x8xf32> to vector<2x8x8xbf16>
    %247 = vector.extract_strided_slice %190 {offsets = [0, 16], sizes = [32, 8], strides = [1, 1]} : vector<32x32xf32> to vector<32x8xf32>
    %248 = vector.shape_cast %247 : vector<32x8xf32> to vector<2x16x8xf32>
    %249 = arith.truncf %248 : vector<2x16x8xf32> to vector<2x16x8xbf16>
    %250 = vector.extract_strided_slice %191 {offsets = [0, 16], sizes = [32, 8], strides = [1, 1]} : vector<32x32xf32> to vector<32x8xf32>
    %251 = vector.shape_cast %250 : vector<32x8xf32> to vector<2x16x8xf32>
    %252 = arith.truncf %251 : vector<2x16x8xf32> to vector<2x16x8xbf16>
    "tpu.trace_start"() <{level = 10 : i32, message = "bqd,bkd->bqk"}> : () -> ()
    %cst_89 = arith.constant dense<0.000000e+00> : vector<2x8x16xf32>
    %253 = tpu.matmul %246, %249, %cst_89 {dimension_numbers = #tpu.dot_dimension_numbers<[2], [2], [1], [1], [0, 0, 0, 1, 1, 1], [0], [0]>} : vector<2x8x8xbf16>, vector<2x16x8xbf16>, vector<2x8x16xf32> -> vector<2x8x16xf32>
    "tpu.trace_stop"() : () -> ()
    %254 = arith.addf %253, %193 : vector<2x8x16xf32>
    %cst_90 = arith.constant dense<0xFF800000> : vector<2x8xf32>
    %255 = vector.multi_reduction <maximumf>, %254, %cst_90 [2] : vector<2x8x16xf32> to vector<2x8xf32>
    %256 = vector.shape_cast %255 : vector<2x8xf32> to vector<2x8x1xf32>
    %257 = vector.broadcast %256 : vector<2x8x1xf32> to vector<2x8x16xf32>
    %258 = arith.subf %254, %257 : vector<2x8x16xf32>
    %259 = math.exp %258 : vector<2x8x16xf32>
    %cst_91 = arith.constant dense<0.000000e+00> : vector<2x8xf32>
    %260 = vector.multi_reduction <add>, %259, %cst_91 [2] : vector<2x8x16xf32> to vector<2x8xf32>
    %261 = vector.shape_cast %260 : vector<2x8xf32> to vector<2x8x1xf32>
    %262 = tpu.reciprocal %261 {approx = true} : vector<2x8x1xf32> -> vector<2x8x1xf32>
    %263 = vector.broadcast %262 : vector<2x8x1xf32> to vector<2x8x16xf32>
    %264 = arith.mulf %259, %263 : vector<2x8x16xf32>
    %265 = arith.truncf %264 : vector<2x8x16xf32> to vector<2x8x16xbf16>
    "tpu.trace_start"() <{level = 10 : i32, message = "bqk,bkd->bqd"}> : () -> ()
    %cst_92 = arith.constant dense<0.000000e+00> : vector<2x8x8xf32>
    %266 = tpu.matmul %265, %252, %cst_92 {dimension_numbers = #tpu.dot_dimension_numbers<[2], [1], [1], [2], [0, 0, 0, 1, 1, 2], [0], [0]>} : vector<2x8x16xbf16>, vector<2x16x8xbf16>, vector<2x8x8xf32> -> vector<2x8x8xf32>
    "tpu.trace_stop"() : () -> ()
    %267 = vector.shape_cast %266 : vector<2x8x8xf32> to vector<16x8xf32>
    %c0_93 = arith.constant 0 : index
    %c16_94 = arith.constant 16 : index
    %268 = vector.load %arg28[%c0_93, %c16_94] : memref<16x32xf32, #tpu.memory_space<vmem>>, vector<16x8xf32>
    tpu.vector_store %arg28[%c0_93, %c16_94], %267 {strides = array<i32>} : memref<16x32xf32, #tpu.memory_space<vmem>>, vector<16x8xf32>,
    %269 = vector.extract_strided_slice %183 {offsets = [0, 24], sizes = [16, 8], strides = [1, 1]} : vector<16x32xf32> to vector<16x8xf32>
    %270 = vector.shape_cast %269 : vector<16x8xf32> to vector<2x8x8xf32>
    %271 = arith.truncf %270 : vector<2x8x8xf32> to vector<2x8x8xbf16>
    %272 = vector.extract_strided_slice %190 {offsets = [0, 24], sizes = [32, 8], strides = [1, 1]} : vector<32x32xf32> to vector<32x8xf32>
    %273 = vector.shape_cast %272 : vector<32x8xf32> to vector<2x16x8xf32>
    %274 = arith.truncf %273 : vector<2x16x8xf32> to vector<2x16x8xbf16>
    %275 = vector.extract_strided_slice %191 {offsets = [0, 24], sizes = [32, 8], strides = [1, 1]} : vector<32x32xf32> to vector<32x8xf32>
    %276 = vector.shape_cast %275 : vector<32x8xf32> to vector<2x16x8xf32>
    %277 = arith.truncf %276 : vector<2x16x8xf32> to vector<2x16x8xbf16>
    "tpu.trace_start"() <{level = 10 : i32, message = "bqd,bkd->bqk"}> : () -> ()
    %cst_95 = arith.constant dense<0.000000e+00> : vector<2x8x16xf32>
    %278 = tpu.matmul %271, %274, %cst_95 {dimension_numbers = #tpu.dot_dimension_numbers<[2], [2], [1], [1], [0, 0, 0, 1, 1, 1], [0], [0]>} : vector<2x8x8xbf16>, vector<2x16x8xbf16>, vector<2x8x16xf32> -> vector<2x8x16xf32>
    "tpu.trace_stop"() : () -> ()
    %279 = arith.addf %278, %193 : vector<2x8x16xf32>
    %cst_96 = arith.constant dense<0xFF800000> : vector<2x8xf32>
    %280 = vector.multi_reduction <maximumf>, %279, %cst_96 [2] : vector<2x8x16xf32> to vector<2x8xf32>
    %281 = vector.shape_cast %280 : vector<2x8xf32> to vector<2x8x1xf32>
    %282 = vector.broadcast %281 : vector<2x8x1xf32> to vector<2x8x16xf32>
    %283 = arith.subf %279, %282 : vector<2x8x16xf32>
    %284 = math.exp %283 : vector<2x8x16xf32>
    %cst_97 = arith.constant dense<0.000000e+00> : vector<2x8xf32>
    %285 = vector.multi_reduction <add>, %284, %cst_97 [2] : vector<2x8x16xf32> to vector<2x8xf32>
    %286 = vector.shape_cast %285 : vector<2x8xf32> to vector<2x8x1xf32>
    %287 = tpu.reciprocal %286 {approx = true} : vector<2x8x1xf32> -> vector<2x8x1xf32>
    %288 = vector.broadcast %287 : vector<2x8x1xf32> to vector<2x8x16xf32>
    %289 = arith.mulf %284, %288 : vector<2x8x16xf32>
    %290 = arith.truncf %289 : vector<2x8x16xf32> to vector<2x8x16xbf16>
    "tpu.trace_start"() <{level = 10 : i32, message = "bqk,bkd->bqd"}> : () -> ()
    %cst_98 = arith.constant dense<0.000000e+00> : vector<2x8x8xf32>
    %291 = tpu.matmul %290, %277, %cst_98 {dimension_numbers = #tpu.dot_dimension_numbers<[2], [1], [1], [2], [0, 0, 0, 1, 1, 2], [0], [0]>} : vector<2x8x16xbf16>, vector<2x16x8xbf16>, vector<2x8x8xf32> -> vector<2x8x8xf32>
    "tpu.trace_stop"() : () -> ()
    %292 = vector.shape_cast %291 : vector<2x8x8xf32> to vector<16x8xf32>
    %c0_99 = arith.constant 0 : index
    %c24_100 = arith.constant 24 : index
    %293 = vector.load %arg28[%c0_99, %c24_100] : memref<16x32xf32, #tpu.memory_space<vmem>>, vector<16x8xf32>
    tpu.vector_store %arg28[%c0_99, %c24_100], %292 {strides = array<i32>} : memref<16x32xf32, #tpu.memory_space<vmem>>, vector<16x8xf32>,
    %294 = vector.shape_cast %214 : vector<2x8x16xf32> to vector<2x1x8x16xf32>
    %295 = vector.shape_cast %239 : vector<2x8x16xf32> to vector<2x1x8x16xf32>
    %296 = vector.shape_cast %264 : vector<2x8x16xf32> to vector<2x1x8x16xf32>
    %297 = vector.shape_cast %289 : vector<2x8x16xf32> to vector<2x1x8x16xf32>
    %298 = tpu.concatenate %294, %295, %296, %297 in 1 : vector<2x1x8x16xf32>, vector<2x1x8x16xf32>, vector<2x1x8x16xf32>, vector<2x1x8x16xf32> -> vector<2x4x8x16xf32>
    %299 = arith.truncf %298 : vector<2x4x8x16xf32> to vector<2x4x8x16xbf16>
    %c0_101 = arith.constant 0 : index
    %c0_102 = arith.constant 0 : index
    %c0_103 = arith.constant 0 : index
    %c0_104 = arith.constant 0 : index
    %300 = vector.load %arg27[%c0_101, %c0_102, %c0_103, %c0_104] : memref<2x4x8x16xbf16, #tpu.memory_space<vmem>>, vector<2x4x8x16xbf16>
    tpu.vector_store %arg27[%c0_101, %c0_102, %c0_103, %c0_104], %299 {strides = array<i32>} : memref<2x4x8x16xbf16, #tpu.memory_space<vmem>>, vector<2x4x8x16xbf16>,
    %c0_105 = arith.constant 0 : index
    %c0_106 = arith.constant 0 : index
    %301 = vector.load %arg28[%c0_105, %c0_106] : memref<16x32xf32, #tpu.memory_space<vmem>>, vector<16x32xf32>
    %c0_107 = arith.constant 0 : index
    %c0_108 = arith.constant 0 : index
    %302 = vector.load %arg17[%c0_107, %c0_108] : memref<32x32xbf16, #tpu.memory_space<vmem>>, vector<32x32xbf16>
    %303 = arith.truncf %301 : vector<16x32xf32> to vector<16x32xbf16>
    %cst_109 = arith.constant dense<0.000000e+00> : vector<16x32xf32>
    %304 = tpu.matmul %303, %302, %cst_109 {dimension_numbers = #tpu.dot_dimension_numbers<[1], [0], [0], [1], [0, 0, 1, 1], [], []>} : vector<16x32xbf16>, vector<32x32xbf16>, vector<16x32xf32> -> vector<16x32xf32>
    %305 = arith.addf %151, %304 : vector<16x32xf32>
    %c0_110 = arith.constant 0 : index
    %c0_111 = arith.constant 0 : index
    %306 = vector.load %arg18[%c0_110, %c0_111] : memref<1x32xf32, #tpu.memory_space<vmem>>, vector<1x32xf32>
    %307 = vector.broadcast %306 : vector<1x32xf32> to vector<16x32xf32>
    %308 = arith.addf %305, %307 : vector<16x32xf32>
    %c0_112 = arith.constant 0 : index
    %c0_113 = arith.constant 0 : index
    %309 = vector.load %arg19[%c0_112, %c0_113] : memref<1x32xf32, #tpu.memory_space<vmem>>, vector<1x32xf32>
    %c0_114 = arith.constant 0 : index
    %c0_115 = arith.constant 0 : index
    %310 = vector.load %arg20[%c0_114, %c0_115] : memref<1x32xf32, #tpu.memory_space<vmem>>, vector<1x32xf32>
    %cst_116 = arith.constant dense<0.000000e+00> : vector<16xf32>
    %311 = vector.multi_reduction <add>, %308, %cst_116 [1] : vector<16x32xf32> to vector<16xf32>
    %312 = vector.shape_cast %311 : vector<16xf32> to vector<16x1xf32>
    %cst_117 = arith.constant 3.200000e+01 : f32
    %313 = vector.broadcast %cst_117 : f32 to vector<16x1xf32>
    %314 = arith.divf %312, %313 : vector<16x1xf32>
    %315 = vector.broadcast %314 : vector<16x1xf32> to vector<16x32xf32>
    %316 = arith.subf %308, %315 : vector<16x32xf32>
    %317 = arith.mulf %316, %316 : vector<16x32xf32>
    %cst_118 = arith.constant dense<0.000000e+00> : vector<16xf32>
    %318 = vector.multi_reduction <add>, %317, %cst_118 [1] : vector<16x32xf32> to vector<16xf32>
    %319 = vector.shape_cast %318 : vector<16xf32> to vector<16x1xf32>
    %cst_119 = arith.constant 3.200000e+01 : f32
    %320 = vector.broadcast %cst_119 : f32 to vector<16x1xf32>
    %321 = arith.divf %319, %320 : vector<16x1xf32>
    %322 = vector.broadcast %314 : vector<16x1xf32> to vector<16x32xf32>
    %323 = arith.subf %308, %322 : vector<16x32xf32>
    %cst_120 = arith.constant 9.99999974E-6 : f32
    %324 = vector.broadcast %cst_120 : f32 to vector<16x1xf32>
    %325 = arith.addf %321, %324 : vector<16x1xf32>
    %326 = math.rsqrt %325 : vector<16x1xf32>
    %327 = vector.broadcast %326 : vector<16x1xf32> to vector<16x32xf32>
    %328 = arith.mulf %323, %327 : vector<16x32xf32>
    %329 = vector.broadcast %309 : vector<1x32xf32> to vector<16x32xf32>
    %330 = arith.mulf %328, %329 : vector<16x32xf32>
    %331 = vector.broadcast %310 : vector<1x32xf32> to vector<16x32xf32>
    %332 = arith.addf %330, %331 : vector<16x32xf32>
    %333 = tpu.iota {dimensions = array<i32: 0>} : vector<16x1xi32>
    %c8_i32 = arith.constant 8 : i32
    %c0_i32 = arith.constant 0 : i32
    %334 = arith.cmpi eq, %c8_i32, %c0_i32 : i32
    %c1_i32 = arith.constant 1 : i32
    %335 = arith.select %334, %c1_i32, %c8_i32 : i32
    %336 = vector.broadcast %335 : i32 to vector<16x1xi32>
    %337 = arith.remsi %333, %336 : vector<16x1xi32>
    %c0_i32_121 = arith.constant 0 : i32
    %338 = vector.broadcast %c0_i32_121 : i32 to vector<16x1xi32>
    %339 = arith.cmpi ne, %337, %338 : vector<16x1xi32>
    %c0_i32_122 = arith.constant 0 : i32
    %340 = vector.broadcast %c0_i32_122 : i32 to vector<16x1xi32>
    %341 = arith.cmpi slt, %337, %340 : vector<16x1xi32>
    %c0_i32_123 = arith.constant 0 : i32
    %342 = arith.cmpi slt, %335, %c0_i32_123 : i32
    %343 = vector.broadcast %342 : i1 to vector<16x1xi1>
    %344 = vector.broadcast %343 : vector<16x1xi1> to vector<16x1xi1>
    %345 = arith.xori %341, %344 : vector<16x1xi1>
    %346 = arith.andi %345, %339 : vector<16x1xi1>
    %347 = vector.broadcast %335 : i32 to vector<16x1xi32>
    %348 = arith.addi %337, %347 : vector<16x1xi32>
    %349 = arith.select %346, %348, %337 : vector<16x1xi1>, vector<16x1xi32>
    %cst_124 = arith.constant 0.000000e+00 : f32
    %350 = vector.broadcast %cst_124 : f32 to vector<16x64xf32>
    %c2_i32 = arith.constant 2 : i32
    %351 = tpu.dynamic_rotate %332 by %c2_i32 dim 0 : vector<16x32xf32>, i32 -> vector<16x32xf32>
    %c-2_i32 = arith.constant -2 : i32
    %352 = vector.broadcast %c-2_i32 : i32 to vector<16x1xi32>
    %353 = arith.addi %349, %352 : vector<16x1xi32>
    %c0_i32_125 = arith.constant 0 : i32
    %354 = vector.broadcast %c0_i32_125 : i32 to vector<16x1xi32>
    %355 = arith.cmpi sge, %353, %354 : vector<16x1xi32>
    %c-2_i32_126 = arith.constant -2 : i32
    %356 = vector.broadcast %c-2_i32_126 : i32 to vector<16x1xi32>
    %357 = arith.addi %349, %356 : vector<16x1xi32>
    %c8_i32_127 = arith.constant 8 : i32
    %358 = vector.broadcast %c8_i32_127 : i32 to vector<16x1xi32>
    %359 = arith.cmpi slt, %357, %358 : vector<16x1xi32>
    %360 = arith.andi %355, %359 : vector<16x1xi1>
    %cst_128 = arith.constant 0.000000e+00 : f32
    %361 = vector.shape_cast %360 : vector<16x1xi1> to vector<16x1xi1>
    %362 = vector.broadcast %361 : vector<16x1xi1> to vector<16x32xi1>
    %363 = vector.broadcast %cst_128 : f32 to vector<16x32xf32>
    %364 = arith.select %362, %351, %363 : vector<16x32xi1>, vector<16x32xf32>
    %c0_129 = arith.constant 0 : index
    %c0_130 = arith.constant 0 : index
    %c0_131 = arith.constant 0 : index
    %365 = vector.load %arg21[%c0_129, %c0_130, %c0_131] : memref<5x32x64xbf16, #tpu.memory_space<vmem>>, vector<1x32x64xbf16>
    %366 = vector.shape_cast %365 : vector<1x32x64xbf16> to vector<32x64xbf16>
    %367 = arith.truncf %364 : vector<16x32xf32> to vector<16x32xbf16>
    %cst_132 = arith.constant dense<0.000000e+00> : vector<16x64xf32>
    %368 = tpu.matmul %367, %366, %cst_132 {dimension_numbers = #tpu.dot_dimension_numbers<[1], [0], [0], [1], [0, 0, 1, 1], [], []>} : vector<16x32xbf16>, vector<32x64xbf16>, vector<16x64xf32> -> vector<16x64xf32>
    %369 = arith.addf %350, %368 : vector<16x64xf32>
    %c1_i32_133 = arith.constant 1 : i32
    %370 = tpu.dynamic_rotate %332 by %c1_i32_133 dim 0 : vector<16x32xf32>, i32 -> vector<16x32xf32>
    %c-1_i32 = arith.constant -1 : i32
    %371 = vector.broadcast %c-1_i32 : i32 to vector<16x1xi32>
    %372 = arith.addi %349, %371 : vector<16x1xi32>
    %c0_i32_134 = arith.constant 0 : i32
    %373 = vector.broadcast %c0_i32_134 : i32 to vector<16x1xi32>
    %374 = arith.cmpi sge, %372, %373 : vector<16x1xi32>
    %c-1_i32_135 = arith.constant -1 : i32
    %375 = vector.broadcast %c-1_i32_135 : i32 to vector<16x1xi32>
    %376 = arith.addi %349, %375 : vector<16x1xi32>
    %c8_i32_136 = arith.constant 8 : i32
    %377 = vector.broadcast %c8_i32_136 : i32 to vector<16x1xi32>
    %378 = arith.cmpi slt, %376, %377 : vector<16x1xi32>
    %379 = arith.andi %374, %378 : vector<16x1xi1>
    %cst_137 = arith.constant 0.000000e+00 : f32
    %380 = vector.shape_cast %379 : vector<16x1xi1> to vector<16x1xi1>
    %381 = vector.broadcast %380 : vector<16x1xi1> to vector<16x32xi1>
    %382 = vector.broadcast %cst_137 : f32 to vector<16x32xf32>
    %383 = arith.select %381, %370, %382 : vector<16x32xi1>, vector<16x32xf32>
    %c1 = arith.constant 1 : index
    %c0_138 = arith.constant 0 : index
    %c0_139 = arith.constant 0 : index
    %384 = vector.load %arg21[%c1, %c0_138, %c0_139] : memref<5x32x64xbf16, #tpu.memory_space<vmem>>, vector<1x32x64xbf16>
    %385 = vector.shape_cast %384 : vector<1x32x64xbf16> to vector<32x64xbf16>
    %386 = arith.truncf %383 : vector<16x32xf32> to vector<16x32xbf16>
    %cst_140 = arith.constant dense<0.000000e+00> : vector<16x64xf32>
    %387 = tpu.matmul %386, %385, %cst_140 {dimension_numbers = #tpu.dot_dimension_numbers<[1], [0], [0], [1], [0, 0, 1, 1], [], []>} : vector<16x32xbf16>, vector<32x64xbf16>, vector<16x64xf32> -> vector<16x64xf32>
    %388 = arith.addf %369, %387 : vector<16x64xf32>
    %c2 = arith.constant 2 : index
    %c0_141 = arith.constant 0 : index
    %c0_142 = arith.constant 0 : index
    %389 = vector.load %arg21[%c2, %c0_141, %c0_142] : memref<5x32x64xbf16, #tpu.memory_space<vmem>>, vector<1x32x64xbf16>
    %390 = vector.shape_cast %389 : vector<1x32x64xbf16> to vector<32x64xbf16>
    %391 = arith.truncf %332 : vector<16x32xf32> to vector<16x32xbf16>
    %cst_143 = arith.constant dense<0.000000e+00> : vector<16x64xf32>
    %392 = tpu.matmul %391, %390, %cst_143 {dimension_numbers = #tpu.dot_dimension_numbers<[1], [0], [0], [1], [0, 0, 1, 1], [], []>} : vector<16x32xbf16>, vector<32x64xbf16>, vector<16x64xf32> -> vector<16x64xf32>
    %393 = arith.addf %388, %392 : vector<16x64xf32>
    %c15_i32 = arith.constant 15 : i32
    %394 = tpu.dynamic_rotate %332 by %c15_i32 dim 0 : vector<16x32xf32>, i32 -> vector<16x32xf32>
    %c1_i32_144 = arith.constant 1 : i32
    %395 = vector.broadcast %c1_i32_144 : i32 to vector<16x1xi32>
    %396 = arith.addi %349, %395 : vector<16x1xi32>
    %c0_i32_145 = arith.constant 0 : i32
    %397 = vector.broadcast %c0_i32_145 : i32 to vector<16x1xi32>
    %398 = arith.cmpi sge, %396, %397 : vector<16x1xi32>
    %c1_i32_146 = arith.constant 1 : i32
    %399 = vector.broadcast %c1_i32_146 : i32 to vector<16x1xi32>
    %400 = arith.addi %349, %399 : vector<16x1xi32>
    %c8_i32_147 = arith.constant 8 : i32
    %401 = vector.broadcast %c8_i32_147 : i32 to vector<16x1xi32>
    %402 = arith.cmpi slt, %400, %401 : vector<16x1xi32>
    %403 = arith.andi %398, %402 : vector<16x1xi1>
    %cst_148 = arith.constant 0.000000e+00 : f32
    %404 = vector.shape_cast %403 : vector<16x1xi1> to vector<16x1xi1>
    %405 = vector.broadcast %404 : vector<16x1xi1> to vector<16x32xi1>
    %406 = vector.broadcast %cst_148 : f32 to vector<16x32xf32>
    %407 = arith.select %405, %394, %406 : vector<16x32xi1>, vector<16x32xf32>
    %c3 = arith.constant 3 : index
    %c0_149 = arith.constant 0 : index
    %c0_150 = arith.constant 0 : index
    %408 = vector.load %arg21[%c3, %c0_149, %c0_150] : memref<5x32x64xbf16, #tpu.memory_space<vmem>>, vector<1x32x64xbf16>
    %409 = vector.shape_cast %408 : vector<1x32x64xbf16> to vector<32x64xbf16>
    %410 = arith.truncf %407 : vector<16x32xf32> to vector<16x32xbf16>
    %cst_151 = arith.constant dense<0.000000e+00> : vector<16x64xf32>
    %411 = tpu.matmul %410, %409, %cst_151 {dimension_numbers = #tpu.dot_dimension_numbers<[1], [0], [0], [1], [0, 0, 1, 1], [], []>} : vector<16x32xbf16>, vector<32x64xbf16>, vector<16x64xf32> -> vector<16x64xf32>
    %412 = arith.addf %393, %411 : vector<16x64xf32>
    %c14_i32 = arith.constant 14 : i32
    %413 = tpu.dynamic_rotate %332 by %c14_i32 dim 0 : vector<16x32xf32>, i32 -> vector<16x32xf32>
    %c2_i32_152 = arith.constant 2 : i32
    %414 = vector.broadcast %c2_i32_152 : i32 to vector<16x1xi32>
    %415 = arith.addi %349, %414 : vector<16x1xi32>
    %c0_i32_153 = arith.constant 0 : i32
    %416 = vector.broadcast %c0_i32_153 : i32 to vector<16x1xi32>
    %417 = arith.cmpi sge, %415, %416 : vector<16x1xi32>
    %c2_i32_154 = arith.constant 2 : i32
    %418 = vector.broadcast %c2_i32_154 : i32 to vector<16x1xi32>
    %419 = arith.addi %349, %418 : vector<16x1xi32>
    %c8_i32_155 = arith.constant 8 : i32
    %420 = vector.broadcast %c8_i32_155 : i32 to vector<16x1xi32>
    %421 = arith.cmpi slt, %419, %420 : vector<16x1xi32>
    %422 = arith.andi %417, %421 : vector<16x1xi1>
    %cst_156 = arith.constant 0.000000e+00 : f32
    %423 = vector.shape_cast %422 : vector<16x1xi1> to vector<16x1xi1>
    %424 = vector.broadcast %423 : vector<16x1xi1> to vector<16x32xi1>
    %425 = vector.broadcast %cst_156 : f32 to vector<16x32xf32>
    %426 = arith.select %424, %413, %425 : vector<16x32xi1>, vector<16x32xf32>
    %c4 = arith.constant 4 : index
    %c0_157 = arith.constant 0 : index
    %c0_158 = arith.constant 0 : index
    %427 = vector.load %arg21[%c4, %c0_157, %c0_158] : memref<5x32x64xbf16, #tpu.memory_space<vmem>>, vector<1x32x64xbf16>
    %428 = vector.shape_cast %427 : vector<1x32x64xbf16> to vector<32x64xbf16>
    %429 = arith.truncf %426 : vector<16x32xf32> to vector<16x32xbf16>
    %cst_159 = arith.constant dense<0.000000e+00> : vector<16x64xf32>
    %430 = tpu.matmul %429, %428, %cst_159 {dimension_numbers = #tpu.dot_dimension_numbers<[1], [0], [0], [1], [0, 0, 1, 1], [], []>} : vector<16x32xbf16>, vector<32x64xbf16>, vector<16x64xf32> -> vector<16x64xf32>
    %431 = arith.addf %412, %430 : vector<16x64xf32>
    %c0_160 = arith.constant 0 : index
    %c0_161 = arith.constant 0 : index
    %432 = vector.load %arg22[%c0_160, %c0_161] : memref<1x64xf32, #tpu.memory_space<vmem>>, vector<1x64xf32>
    %433 = vector.broadcast %432 : vector<1x64xf32> to vector<16x64xf32>
    %434 = arith.addf %431, %433 : vector<16x64xf32>
    %cst_162 = arith.constant 0.000000e+00 : f32
    %435 = vector.broadcast %cst_162 : f32 to vector<16x64xf32>
    %436 = arith.maximumf %434, %435 : vector<16x64xf32>
    %c0_163 = arith.constant 0 : index
    %c0_164 = arith.constant 0 : index
    %437 = vector.load %arg23[%c0_163, %c0_164] : memref<64x32xbf16, #tpu.memory_space<vmem>>, vector<64x32xbf16>
    %438 = arith.truncf %436 : vector<16x64xf32> to vector<16x64xbf16>
    %cst_165 = arith.constant dense<0.000000e+00> : vector<16x32xf32>
    %439 = tpu.matmul %438, %437, %cst_165 {dimension_numbers = #tpu.dot_dimension_numbers<[1], [0], [0], [1], [0, 0, 1, 1], [], []>} : vector<16x64xbf16>, vector<64x32xbf16>, vector<16x32xf32> -> vector<16x32xf32>
    %c0_166 = arith.constant 0 : index
    %c0_167 = arith.constant 0 : index
    %440 = vector.load %arg24[%c0_166, %c0_167] : memref<1x32xf32, #tpu.memory_space<vmem>>, vector<1x32xf32>
    %441 = vector.broadcast %440 : vector<1x32xf32> to vector<16x32xf32>
    %442 = arith.addf %439, %441 : vector<16x32xf32>
    %443 = arith.addf %308, %442 : vector<16x32xf32>
    %444 = vector.shape_cast %443 : vector<16x32xf32> to vector<2x8x32xf32>
    %445 = arith.truncf %444 : vector<2x8x32xf32> to vector<2x8x32xbf16>
    %c0_168 = arith.constant 0 : index
    %c0_169 = arith.constant 0 : index
    %c0_170 = arith.constant 0 : index
    %446 = vector.load %arg25[%c0_168, %c0_169, %c0_170] : memref<2x8x32xbf16, #tpu.memory_space<vmem>>, vector<2x8x32xbf16>
    tpu.vector_store %arg25[%c0_168, %c0_169, %c0_170], %445 {strides = array<i32>} : memref<2x8x32xbf16, #tpu.memory_space<vmem>>, vector<2x8x32xbf16>,
    return
  }
  func.func @transform_0(%arg0: i32) -> (i32, i32, i32) {
    %c0_i32 = arith.constant 0 : i32
    %c0_i32_0 = arith.constant 0 : i32
    %c0_i32_1 = arith.constant 0 : i32
    return %arg0, %c0_i32, %c0_i32_0 : i32, i32, i32
  }
  func.func @transform_1(%arg0: i32) -> (i32, i32, i32) {
    %c0_i32 = arith.constant 0 : i32
    %c0_i32_0 = arith.constant 0 : i32
    %c0_i32_1 = arith.constant 0 : i32
    return %arg0, %c0_i32, %c0_i32_0 : i32, i32, i32
  }
  func.func @transform_2(%arg0: i32) -> (i32, i32, i32, i32) {
    %c0_i32 = arith.constant 0 : i32
    %c0_i32_0 = arith.constant 0 : i32
    %c0_i32_1 = arith.constant 0 : i32
    %c0_i32_2 = arith.constant 0 : i32
    return %arg0, %c0_i32, %c0_i32_0, %c0_i32_1 : i32, i32, i32, i32
  }
  func.func @transform_3(%arg0: i32) -> (i32, i32, i32, i32) {
    %c0_i32 = arith.constant 0 : i32
    %c0_i32_0 = arith.constant 0 : i32
    %c0_i32_1 = arith.constant 0 : i32
    %c0_i32_2 = arith.constant 0 : i32
    return %arg0, %c0_i32, %c0_i32_0, %c0_i32_1 : i32, i32, i32, i32
  }
  func.func @transform_4(%arg0: i32) -> (i32, i32) {
    %c0_i32 = arith.constant 0 : i32
    %c0_i32_0 = arith.constant 0 : i32
    %c0_i32_1 = arith.constant 0 : i32
    return %c0_i32, %c0_i32_0 : i32, i32
  }
  func.func @transform_5(%arg0: i32) -> (i32, i32) {
    %c0_i32 = arith.constant 0 : i32
    %c0_i32_0 = arith.constant 0 : i32
    %c0_i32_1 = arith.constant 0 : i32
    return %c0_i32, %c0_i32_0 : i32, i32
  }
  func.func @transform_6(%arg0: i32) -> (i32, i32) {
    %c0_i32 = arith.constant 0 : i32
    %c0_i32_0 = arith.constant 0 : i32
    %c0_i32_1 = arith.constant 0 : i32
    return %c0_i32, %c0_i32_0 : i32, i32
  }
  func.func @transform_7(%arg0: i32) -> (i32, i32) {
    %c0_i32 = arith.constant 0 : i32
    %c0_i32_0 = arith.constant 0 : i32
    %c0_i32_1 = arith.constant 0 : i32
    return %c0_i32, %c0_i32_0 : i32, i32
  }
  func.func @transform_8(%arg0: i32) -> (i32, i32) {
    %c0_i32 = arith.constant 0 : i32
    %c0_i32_0 = arith.constant 0 : i32
    %c0_i32_1 = arith.constant 0 : i32
    return %c0_i32, %c0_i32_0 : i32, i32
  }
  func.func @transform_9(%arg0: i32) -> (i32, i32) {
    %c0_i32 = arith.constant 0 : i32
    %c0_i32_0 = arith.constant 0 : i32
    %c0_i32_1 = arith.constant 0 : i32
    return %c0_i32, %c0_i32_0 : i32, i32
  }
  func.func @transform_10(%arg0: i32) -> (i32, i32) {
    %c0_i32 = arith.constant 0 : i32
    %c0_i32_0 = arith.constant 0 : i32
    %c0_i32_1 = arith.constant 0 : i32
    return %c0_i32, %c0_i32_0 : i32, i32
  }
  func.func @transform_11(%arg0: i32) -> (i32, i32) {
    %c0_i32 = arith.constant 0 : i32
    %c0_i32_0 = arith.constant 0 : i32
    %c0_i32_1 = arith.constant 0 : i32
    return %c0_i32, %c0_i32_0 : i32, i32
  }
  func.func @transform_12(%arg0: i32) -> (i32, i32) {
    %c0_i32 = arith.constant 0 : i32
    %c0_i32_0 = arith.constant 0 : i32
    %c0_i32_1 = arith.constant 0 : i32
    return %c0_i32, %c0_i32_0 : i32, i32
  }
  func.func @transform_13(%arg0: i32) -> (i32, i32) {
    %c0_i32 = arith.constant 0 : i32
    %c0_i32_0 = arith.constant 0 : i32
    %c0_i32_1 = arith.constant 0 : i32
    return %c0_i32, %c0_i32_0 : i32, i32
  }
  func.func @transform_14(%arg0: i32) -> (i32, i32) {
    %c0_i32 = arith.constant 0 : i32
    %c0_i32_0 = arith.constant 0 : i32
    %c0_i32_1 = arith.constant 0 : i32
    return %c0_i32, %c0_i32_0 : i32, i32
  }
  func.func @transform_15(%arg0: i32) -> (i32, i32) {
    %c0_i32 = arith.constant 0 : i32
    %c0_i32_0 = arith.constant 0 : i32
    %c0_i32_1 = arith.constant 0 : i32
    return %c0_i32, %c0_i32_0 : i32, i32
  }
  func.func @transform_16(%arg0: i32) -> (i32, i32) {
    %c0_i32 = arith.constant 0 : i32
    %c0_i32_0 = arith.constant 0 : i32
    %c0_i32_1 = arith.constant 0 : i32
    return %c0_i32, %c0_i32_0 : i32, i32
  }
  func.func @transform_17(%arg0: i32) -> (i32, i32) {
    %c0_i32 = arith.constant 0 : i32
    %c0_i32_0 = arith.constant 0 : i32
    %c0_i32_1 = arith.constant 0 : i32
    return %c0_i32, %c0_i32_0 : i32, i32
  }
  func.func @transform_18(%arg0: i32) -> (i32, i32) {
    %c0_i32 = arith.constant 0 : i32
    %c0_i32_0 = arith.constant 0 : i32
    %c0_i32_1 = arith.constant 0 : i32
    return %c0_i32, %c0_i32_0 : i32, i32
  }
  func.func @transform_19(%arg0: i32) -> (i32, i32) {
    %c0_i32 = arith.constant 0 : i32
    %c0_i32_0 = arith.constant 0 : i32
    %c0_i32_1 = arith.constant 0 : i32
    return %c0_i32, %c0_i32_0 : i32, i32
  }
  func.func @transform_20(%arg0: i32) -> (i32, i32, i32) {
    %c0_i32 = arith.constant 0 : i32
    %c0_i32_0 = arith.constant 0 : i32
    %c0_i32_1 = arith.constant 0 : i32
    %c0_i32_2 = arith.constant 0 : i32
    return %c0_i32, %c0_i32_0, %c0_i32_1 : i32, i32, i32
  }
  func.func @transform_21(%arg0: i32) -> (i32, i32) {
    %c0_i32 = arith.constant 0 : i32
    %c0_i32_0 = arith.constant 0 : i32
    %c0_i32_1 = arith.constant 0 : i32
    return %c0_i32, %c0_i32_0 : i32, i32
  }
  func.func @transform_22(%arg0: i32) -> (i32, i32) {
    %c0_i32 = arith.constant 0 : i32
    %c0_i32_0 = arith.constant 0 : i32
    %c0_i32_1 = arith.constant 0 : i32
    return %c0_i32, %c0_i32_0 : i32, i32
  }
  func.func @transform_23(%arg0: i32) -> (i32, i32) {
    %c0_i32 = arith.constant 0 : i32
    %c0_i32_0 = arith.constant 0 : i32
    %c0_i32_1 = arith.constant 0 : i32
    return %c0_i32, %c0_i32_0 : i32, i32
  }
  func.func @transform_24(%arg0: i32) -> (i32, i32, i32) {
    %c0_i32 = arith.constant 0 : i32
    %c0_i32_0 = arith.constant 0 : i32
    %c0_i32_1 = arith.constant 0 : i32
    return %arg0, %c0_i32, %c0_i32_0 : i32, i32, i32
  }
  func.func @transform_25(%arg0: i32) -> (i32, i32, i32, i32) {
    %c0_i32 = arith.constant 0 : i32
    %c0_i32_0 = arith.constant 0 : i32
    %c0_i32_1 = arith.constant 0 : i32
    %c0_i32_2 = arith.constant 0 : i32
    return %arg0, %c0_i32, %c0_i32_0, %c0_i32_1 : i32, i32, i32, i32
  }
  func.func @transform_26(%arg0: i32) -> (i32, i32, i32, i32) {
    %c0_i32 = arith.constant 0 : i32
    %c0_i32_0 = arith.constant 0 : i32
    %c0_i32_1 = arith.constant 0 : i32
    %c0_i32_2 = arith.constant 0 : i32
    return %arg0, %c0_i32, %c0_i32_0, %c0_i32_1 : i32, i32, i32, i32
  }
}

</mosaic_0001>

<llo_original>
// kernel: decoder_forward.2
$region0: #{decoder_forward.2}
  #allocation0 [shape = 'u32[]', space=smem, size = 0x4, offset = 0x4, fixed_abs, tag = 'smem constant byte address 0x4 - core index']
  #allocation1 [shape = 'u32[144,128]{1,0:T(1,128)}', space=vmem, size = 0x12000, scoped, tag = 'internal scratch']
  #allocation2 [shape = 'f32[16,32]{1,0:T(8,128)}', space=vmem, size = 0x2000, scoped, tag = 'scratch operand']
  %s0 = inlined_call_operand.vmem [shape: f32[2,8,32], index: 0, kind: input, shape index: {}]
  %s1 = inlined_call_operand.vmem [shape: f32[2,16,32], index: 1, kind: input, shape index: {}]
  %s2 = inlined_call_operand.vmem [shape: f32[2,1,8,8], index: 2, kind: input, shape index: {}]
  %s3 = inlined_call_operand.vmem [shape: f32[2,1,8,16], index: 3, kind: input, shape index: {}]
  %s4 = inlined_call_operand.vmem [shape: f32[1,32], index: 4, kind: input, shape index: {}]
  %s5 = inlined_call_operand.vmem [shape: f32[1,32], index: 5, kind: input, shape index: {}]
  %s6 = inlined_call_operand.hbm [shape: bf16[32,96], index: 6, kind: input, shape index: {}]
  %s7 = inlined_call_operand.vmem [shape: f32[1,96], index: 7, kind: input, shape index: {}]
  %s8 = inlined_call_operand.hbm [shape: bf16[32,32], index: 8, kind: input, shape index: {}]
  %s9 = inlined_call_operand.vmem [shape: f32[1,32], index: 9, kind: input, shape index: {}]
  %s10 = inlined_call_operand.vmem [shape: f32[1,32], index: 10, kind: input, shape index: {}]
  %s11 = inlined_call_operand.vmem [shape: f32[1,32], index: 11, kind: input, shape index: {}]
  %s12 = inlined_call_operand.vmem [shape: bf16[32,32], index: 12, kind: input, shape index: {}]
  %s13 = inlined_call_operand.vmem [shape: f32[1,32], index: 13, kind: input, shape index: {}]
  %s14 = inlined_call_operand.vmem [shape: bf16[32,64], index: 14, kind: input, shape index: {}]
  %s15 = inlined_call_operand.vmem [shape: f32[1,64], index: 15, kind: input, shape index: {}]
  %s16 = inlined_call_operand.hbm [shape: bf16[32,32], index: 16, kind: input, shape index: {}]
  %s17 = inlined_call_operand.vmem [shape: f32[1,32], index: 17, kind: input, shape index: {}]
  %s18 = inlined_call_operand.hbm [shape: f32[1,32], index: 18, kind: input, shape index: {}]
  %s19 = inlined_call_operand.hbm [shape: f32[1,32], index: 19, kind: input, shape index: {}]
  %s20 = inlined_call_operand.vmem [shape: bf16[5,32,64], index: 20, kind: input, shape index: {}]
  %s21 = inlined_call_operand.hbm [shape: f32[1,64], index: 21, kind: input, shape index: {}]
  %s22 = inlined_call_operand.vmem [shape: bf16[64,32], index: 22, kind: input, shape index: {}]
  %s23 = inlined_call_operand.hbm [shape: f32[1,32], index: 23, kind: input, shape index: {}]
  %s24 = inlined_call_operand.vmem [shape: bf16[2,8,32], index: 24, kind: output, shape index: {0}]
  %s25 = inlined_call_operand.hbm [shape: bf16[2,4,8,8], index: 25, kind: output, shape index: {1}]
  %s26 = inlined_call_operand.vmem [shape: bf16[2,4,8,16], index: 26, kind: output, shape index: {2}]
  %27 = xla_tuple %s24, %s25, %s26
  %s28 = sld [smem:[#allocation0]]
  $region150: #{decoder_forward.2} parent=0
    _
  %s30 = ssub.s32 1, %s28
  %s31 = scalar_select 0, %s30, %s28
  $region1: #{decoder_forward.2} parent=0
    #allocation3 [shape = 'u8[8192]{0}', space=vmem, size = 0x2000, scoped, tag = 'input window, operand 6, single buffered']
    #allocation4 [shape = 's32[1]{0}', space=sflag, size = 0x4, scoped, tag = 'scoped memory for decoder_forward.2']
    #allocation5 [shape = 's32[1]{0}', space=sflag, size = 0x4, scoped, tag = 'scoped memory for decoder_forward.2']
    #allocation6 [shape = 'u8[8192]{0}', space=vmem, size = 0x2000, scoped, tag = 'input window, operand 8, single buffered']
    #allocation7 [shape = 's32[1]{0}', space=sflag, size = 0x4, scoped, tag = 'scoped memory for decoder_forward.2']
    #allocation8 [shape = 'u8[8192]{0}', space=vmem, size = 0x2000, scoped, tag = 'input window, operand 16, single buffered']
    #allocation9 [shape = 'u8[512]{0}', space=vmem, size = 0x400, scoped, tag = 'input window, operand 18, single buffered']
    #allocation10 [shape = 's32[1]{0}', space=sflag, size = 0x4, scoped, tag = 'scoped memory for decoder_forward.2']
    #allocation11 [shape = 'u8[512]{0}', space=vmem, size = 0x400, scoped, tag = 'input window, operand 19, single buffered']
    #allocation12 [shape = 'u8[512]{0}', space=vmem, size = 0x400, scoped, tag = 'input window, operand 21, single buffered']
    #allocation13 [shape = 's32[1]{0}', space=sflag, size = 0x4, scoped, tag = 'scoped memory for decoder_forward.2']
    #allocation14 [shape = 'u8[512]{0}', space=vmem, size = 0x400, scoped, tag = 'input window, operand 23, single buffered']
    #allocation15 [shape = 'u8[16384]{0}', space=vmem, size = 0x4000, scoped, tag = 'output window, operand 1, single buffered']
    %32 = vsyncpa [#allocation4], 0
    %33 = vsyncpa [#allocation7], 0
    %34 = vsyncpa [#allocation10], 0
    %35 = vsyncpa [#allocation13], 0
    %36 = vsyncpa [#allocation5], 0
    // Predicated region
    $region2: #{decoder_forward.2} parent=1 // pred_check
      _
    $region3: #{decoder_forward.2} parent=1 // pred_check_branch
      %38 = sbr.rel (0) target = $region5
    $region4: #{decoder_forward.2} parent=1 // pred_region
      _
    $region5: #{decoder_forward.2} parent=1 // pred_fallthru
      _
    // Predicated region
    $region6: #{decoder_forward.2} parent=1 // pred_check
      _
    $region7: #{decoder_forward.2} parent=1 // pred_check_branch
      %40 = sbr.rel (0) target = $region9
    $region8: #{decoder_forward.2} parent=1 // pred_region
      _
    $region9: #{decoder_forward.2} parent=1 // pred_fallthru
      _
    // Predicated region
    $region10: #{decoder_forward.2} parent=1 // pred_check
      _
    $region11: #{decoder_forward.2} parent=1 // pred_check_branch
      %42 = sbr.rel (0) target = $region13
    $region12: #{decoder_forward.2} parent=1 // pred_region
      _
    $region13: #{decoder_forward.2} parent=1 // pred_fallthru
      _
    // Predicated region
    $region14: #{decoder_forward.2} parent=1 // pred_check
      _
    $region15: #{decoder_forward.2} parent=1 // pred_check_branch
      %44 = sbr.rel (0) target = $region17
    $region16: #{decoder_forward.2} parent=1 // pred_region
      _
    $region17: #{decoder_forward.2} parent=1 // pred_fallthru
      _
    // Predicated region
    $region18: #{decoder_forward.2} parent=1 // pred_check
      _
    $region19: #{decoder_forward.2} parent=1 // pred_check_branch
      %46 = sbr.rel (0) target = $region21
    $region20: #{decoder_forward.2} parent=1 // pred_region
      _
    $region21: #{decoder_forward.2} parent=1 // pred_fallthru
      _
    // Predicated region
    $region22: #{decoder_forward.2} parent=1 // pred_check
      _
    $region23: #{decoder_forward.2} parent=1 // pred_check_branch
      %48 = sbr.rel (0) target = $region25
    $region24: #{decoder_forward.2} parent=1 // pred_region
      _
    $region25: #{decoder_forward.2} parent=1 // pred_fallthru
      _
    // Predicated region
    $region26: #{decoder_forward.2} parent=1 // pred_check
      _
    $region27: #{decoder_forward.2} parent=1 // pred_check_branch
      %50 = sbr.rel (0) target = $region29
    $region28: #{decoder_forward.2} parent=1 // pred_region
      %s52 = ssub.s32 256, 256
      %53 = vsyncadd [#allocation4], %s52
      %s54 = sshll.u32 [#allocation3], 4
      %s55 = int_to_ptr.vmem [resolvable:$true] %s54
      %60 = dma.hbm_to_vmem [thread:$0]  %s6, 256, %s55, [#allocation4], 64, 64, 4
    $region29: #{decoder_forward.2} parent=1 // pred_fallthru
      _
    // Predicated region
    $region30: #{decoder_forward.2} parent=1 // pred_check
      _
    $region31: #{decoder_forward.2} parent=1 // pred_check_branch
      %62 = sbr.rel (0) target = $region33
    $region32: #{decoder_forward.2} parent=1 // pred_region
      _
    $region33: #{decoder_forward.2} parent=1 // pred_fallthru
      _
    // Predicated region
    $region34: #{decoder_forward.2} parent=1 // pred_check
      _
    $region35: #{decoder_forward.2} parent=1 // pred_check_branch
      %64 = sbr.rel (0) target = $region37
    $region36: #{decoder_forward.2} parent=1 // pred_region
      %s66 = ssub.s32 256, 256
      %67 = vsyncadd [#allocation7], %s66
      %s68 = sshll.u32 [#allocation6], 4
      %s69 = int_to_ptr.vmem [resolvable:$true] %s68
      %74 = dma.hbm_to_vmem [thread:$0]  %s8, 256, %s69, [#allocation7], 64, 64, 4
    $region37: #{decoder_forward.2} parent=1 // pred_fallthru
      _
    // Predicated region
    $region38: #{decoder_forward.2} parent=1 // pred_check
      _
    $region39: #{decoder_forward.2} parent=1 // pred_check_branch
      %76 = sbr.rel (0) target = $region41
    $region40: #{decoder_forward.2} parent=1 // pred_region
      _
    $region41: #{decoder_forward.2} parent=1 // pred_fallthru
      _
    // Predicated region
    $region42: #{decoder_forward.2} parent=1 // pred_check
      _
    $region43: #{decoder_forward.2} parent=1 // pred_check_branch
      %78 = sbr.rel (0) target = $region45
    $region44: #{decoder_forward.2} parent=1 // pred_region
      _
    $region45: #{decoder_forward.2} parent=1 // pred_fallthru
      _
    // Predicated region
    $region46: #{decoder_forward.2} parent=1 // pred_check
      _
    $region47: #{decoder_forward.2} parent=1 // pred_check_branch
      %80 = sbr.rel (0) target = $region49
    $region48: #{decoder_forward.2} parent=1 // pred_region
      _
    $region49: #{decoder_forward.2} parent=1 // pred_fallthru
      _
    // Predicated region
    $region50: #{decoder_forward.2} parent=1 // pred_check
      _
    $region51: #{decoder_forward.2} parent=1 // pred_check_branch
      %82 = sbr.rel (0) target = $region53
    $region52: #{decoder_forward.2} parent=1 // pred_region
      _
    $region53: #{decoder_forward.2} parent=1 // pred_fallthru
      _
    // Predicated region
    $region54: #{decoder_forward.2} parent=1 // pred_check
      _
    $region55: #{decoder_forward.2} parent=1 // pred_check_branch
      %84 = sbr.rel (0) target = $region57
    $region56: #{decoder_forward.2} parent=1 // pred_region
      _
    $region57: #{decoder_forward.2} parent=1 // pred_fallthru
      _
    // Predicated region
    $region58: #{decoder_forward.2} parent=1 // pred_check
      _
    $region59: #{decoder_forward.2} parent=1 // pred_check_branch
      %86 = sbr.rel (0) target = $region61
    $region60: #{decoder_forward.2} parent=1 // pred_region
      _
    $region61: #{decoder_forward.2} parent=1 // pred_fallthru
      _
    // Predicated region
    $region62: #{decoder_forward.2} parent=1 // pred_check
      _
    $region63: #{decoder_forward.2} parent=1 // pred_check_branch
      %88 = sbr.rel (0) target = $region65
    $region64: #{decoder_forward.2} parent=1 // pred_region
      _
    $region65: #{decoder_forward.2} parent=1 // pred_fallthru
      _
    // Predicated region
    $region66: #{decoder_forward.2} parent=1 // pred_check
      _
    $region67: #{decoder_forward.2} parent=1 // pred_check_branch
      %90 = sbr.rel (0) target = $region69
    $region68: #{decoder_forward.2} parent=1 // pred_region
      %s92 = ssub.s32 256, 256
      %93 = vsyncadd [#allocation7], %s92
      %s94 = sshll.u32 [#allocation8], 4
      %s95 = int_to_ptr.vmem [resolvable:$true] %s94
      %100 = dma.hbm_to_vmem [thread:$0]  %s16, 256, %s95, [#allocation7], 64, 64, 4
    $region69: #{decoder_forward.2} parent=1 // pred_fallthru
      _
    // Predicated region
    $region70: #{decoder_forward.2} parent=1 // pred_check
      _
    $region71: #{decoder_forward.2} parent=1 // pred_check_branch
      %102 = sbr.rel (0) target = $region73
    $region72: #{decoder_forward.2} parent=1 // pred_region
      _
    $region73: #{decoder_forward.2} parent=1 // pred_fallthru
      _
    // Predicated region
    $region74: #{decoder_forward.2} parent=1 // pred_check
      _
    $region75: #{decoder_forward.2} parent=1 // pred_check_branch
      %104 = sbr.rel (0) target = $region77
    $region76: #{decoder_forward.2} parent=1 // pred_region
      %s106 = ssub.s32 16, 16
      %107 = vsyncadd [#allocation10], %s106
      %s109 = sshll.u32 [#allocation9], 4
      %s110 = int_to_ptr.vmem [resolvable:$true] %s109
      %112 = dma.hbm_to_vmem [thread:$0]  %s18, 16, %s110, [#allocation10]
    $region77: #{decoder_forward.2} parent=1 // pred_fallthru
      _
    // Predicated region
    $region78: #{decoder_forward.2} parent=1 // pred_check
      _
    $region79: #{decoder_forward.2} parent=1 // pred_check_branch
      %114 = sbr.rel (0) target = $region81
    $region80: #{decoder_forward.2} parent=1 // pred_region
      %s116 = ssub.s32 16, 16
      %117 = vsyncadd [#allocation10], %s116
      %s119 = sshll.u32 [#allocation11], 4
      %s120 = int_to_ptr.vmem [resolvable:$true] %s119
      %122 = dma.hbm_to_vmem [thread:$0]  %s19, 16, %s120, [#allocation10]
    $region81: #{decoder_forward.2} parent=1 // pred_fallthru
      _
    // Predicated region
    $region82: #{decoder_forward.2} parent=1 // pred_check
      _
    $region83: #{decoder_forward.2} parent=1 // pred_check_branch
      %124 = sbr.rel (0) target = $region85
    $region84: #{decoder_forward.2} parent=1 // pred_region
      _
    $region85: #{decoder_forward.2} parent=1 // pred_fallthru
      _
    // Predicated region
    $region86: #{decoder_forward.2} parent=1 // pred_check
      _
    $region87: #{decoder_forward.2} parent=1 // pred_check_branch
      %126 = sbr.rel (0) target = $region89
    $region88: #{decoder_forward.2} parent=1 // pred_region
      %s128 = ssub.s32 16, 16
      %129 = vsyncadd [#allocation13], %s128
      %s131 = sshll.u32 [#allocation12], 4
      %s132 = int_to_ptr.vmem [resolvable:$true] %s131
      %134 = dma.hbm_to_vmem [thread:$0]  %s21, 16, %s132, [#allocation13]
    $region89: #{decoder_forward.2} parent=1 // pred_fallthru
      _
    // Predicated region
    $region90: #{decoder_forward.2} parent=1 // pred_check
      _
    $region91: #{decoder_forward.2} parent=1 // pred_check_branch
      %136 = sbr.rel (0) target = $region93
    $region92: #{decoder_forward.2} parent=1 // pred_region
      _
    $region93: #{decoder_forward.2} parent=1 // pred_fallthru
      _
    // Predicated region
    $region94: #{decoder_forward.2} parent=1 // pred_check
      _
    $region95: #{decoder_forward.2} parent=1 // pred_check_branch
      %138 = sbr.rel (0) target = $region97
    $region96: #{decoder_forward.2} parent=1 // pred_region
      %s140 = ssub.s32 16, 16
      %141 = vsyncadd [#allocation13], %s140
      %s143 = sshll.u32 [#allocation14], 4
      %s144 = int_to_ptr.vmem [resolvable:$true] %s143
      %146 = dma.hbm_to_vmem [thread:$0]  %s23, 16, %s144, [#allocation13]
    $region97: #{decoder_forward.2} parent=1 // pred_fallthru
      _
    // Predicated region
    $region98: #{decoder_forward.2} parent=1 // pred_check
      _
    $region99: #{decoder_forward.2} parent=1 // pred_check_branch
      %148 = sbr.rel (0) target = $region101
    $region100: #{decoder_forward.2} parent=1 // pred_region
      %149 = dma.done [#allocation4], 256
    $region101: #{decoder_forward.2} parent=1 // pred_fallthru
      _
    // Predicated region
    $region102: #{decoder_forward.2} parent=1 // pred_check
      _
    $region103: #{decoder_forward.2} parent=1 // pred_check_branch
      %151 = sbr.rel (0) target = $region105
    $region104: #{decoder_forward.2} parent=1 // pred_region
      %152 = dma.done [#allocation7], 256
    $region105: #{decoder_forward.2} parent=1 // pred_fallthru
      _
    // Predicated region
    $region106: #{decoder_forward.2} parent=1 // pred_check
      _
    $region107: #{decoder_forward.2} parent=1 // pred_check_branch
      %154 = sbr.rel (0) target = $region109
    $region108: #{decoder_forward.2} parent=1 // pred_region
      %155 = dma.done [#allocation7], 256
    $region109: #{decoder_forward.2} parent=1 // pred_fallthru
      _
    // Predicated region
    $region110: #{decoder_forward.2} parent=1 // pred_check
      _
    $region111: #{decoder_forward.2} parent=1 // pred_check_branch
      %157 = sbr.rel (0) target = $region113
    $region112: #{decoder_forward.2} parent=1 // pred_region
      %158 = dma.done [#allocation10], 16
    $region113: #{decoder_forward.2} parent=1 // pred_fallthru
      _
    // Predicated region
    $region114: #{decoder_forward.2} parent=1 // pred_check
      _
    $region115: #{decoder_forward.2} parent=1 // pred_check_branch
      %160 = sbr.rel (0) target = $region117
    $region116: #{decoder_forward.2} parent=1 // pred_region
      %161 = dma.done [#allocation10], 16
    $region117: #{decoder_forward.2} parent=1 // pred_fallthru
      _
    // Predicated region
    $region118: #{decoder_forward.2} parent=1 // pred_check
      _
    $region119: #{decoder_forward.2} parent=1 // pred_check_branch
      %163 = sbr.rel (0) target = $region121
    $region120: #{decoder_forward.2} parent=1 // pred_region
      %164 = dma.done [#allocation13], 16
    $region121: #{decoder_forward.2} parent=1 // pred_fallthru
      _
    // Predicated region
    $region122: #{decoder_forward.2} parent=1 // pred_check
      _
    $region123: #{decoder_forward.2} parent=1 // pred_check_branch
      %166 = sbr.rel (0) target = $region125
    $region124: #{decoder_forward.2} parent=1 // pred_region
      %167 = dma.done [#allocation13], 16
    $region125: #{decoder_forward.2} parent=1 // pred_fallthru
      _
    %v169 = vld [vmem:[%s0] sm:$0xff]
    %v170 = vld [vmem:[%s0 + $0x8] sm:$0xff]
    %v171 = vld [vmem:[%s4] sm:$0x1]
    %v172 = vld [vmem:[%s5] sm:$0x1]
    %vm173 = vcmask 261120
    %v174 = vsel %vm173, %v169, 0.0
    %175 = vadd.xlane.f32.xlu0 %v174
    %v176 = vpop.xlane.xlu0 %175
    %v177 = vsel %vm173, %v170, 0.0
    %178 = vadd.xlane.f32.xlu0 %v177
    %v179 = vpop.xlane.xlu0 %178
    %v180 = vrcp.pop 32.0
    %v181 = vmul.f32 %v176, %v180
    %v182 = vmul.f32 %v179, %v180
    %v183 = vsub.f32 %v169, %v181
    %v184 = vsub.f32 %v170, %v182
    %v185 = vmul.f32 %v183, %v183
    %v186 = vmul.f32 %v184, %v184
    %v187 = vsel %vm173, %v185, 0.0
    %188 = vadd.xlane.f32.xlu0 %v187
    %v189 = vpop.xlane.xlu0 %188
    %v190 = vsel %vm173, %v186, 0.0
    %191 = vadd.xlane.f32.xlu0 %v190
    %v192 = vpop.xlane.xlu0 %191
    %v193 = vmul.f32 %v189, %v180
    %v194 = vmul.f32 %v192, %v180
    %v195 = vadd.f32 %v193, 1e-05
    %v196 = vadd.f32 %v194, 1e-05
    %v197 = vrsqrt.pop %v195
    %v198 = vrsqrt.pop %v196
    %v199 = vmul.f32 %v183, %v197
    %v200 = vmul.f32 %v184, %v198
    %v202 = vlaneseq
    %v203 = vshrl.u32 %v202, 7
    %v204 = vsub.s32 0, %v203
    %v205 = vrot.slane %v171, %v204
    %v207 = vmul.f32 %v199, %v205
    %v208 = vmul.f32 %v200, %v205
    %v210 = vlaneseq
    %v211 = vshrl.u32 %v210, 7
    %v212 = vsub.s32 0, %v211
    %v213 = vrot.slane %v172, %v212
    %v215 = vadd.f32 %v207, %v213
    %v216 = vadd.f32 %v208, %v213
    %v217 = vld [vmem:[#allocation3] sm:$0xf]
    %v218 = vld [vmem:[#allocation3 + $0x4] sm:$0xf]
    %v219 = vld [vmem:[#allocation3 + $0x8] sm:$0xf]
    %v220 = vld [vmem:[#allocation3 + $0xc] sm:$0xf]
    %v221 = vpack.c.bf16 %v216, %v215
    %v222 = vld [vmem:[%s7] sm:$0x1]
    %v224 = vlaneseq
    %v225 = vshrl.u32 %v224, 7
    %v226 = vsub.s32 0, %v225
    %v227 = vrot.slane %v222, %v226
    %v233 = vunpack.c.l.b16 %v217
    %v234 = vunpack.c.l.b16 %v218
    %v235 = vunpack.c.l.b16 %v219
    %v236 = vunpack.c.l.b16 %v220
    %v237 = vpack.c.b16 %v234, %v233
    %v238 = vpack.c.b16 %v236, %v235
    %v242 = vsel %vm173, %v221, 0
    %244 = vmatprep.subr.bf16.mxu0 0
    %245 = vmatpush1.bf16.msra.mxu0 0
    %246 = vmatprep.subr.bf16.mxu0 0
    %247 = vmatpush1.bf16.msra.mxu0 0
    %248 = vmatprep.subr.bf16.mxu0 0
    %249 = vmatpush1.bf16.msra.mxu0 0
    %250 = vmatprep.subr.bf16.mxu0 0
    %251 = vmatpush1.bf16.msra.mxu0 0
    %252 = vmatprep.subr.bf16.mxu0 0
    %253 = vmatpush1.bf16.msra.mxu0 0
    %254 = vmatprep.subr.bf16.mxu0 0
    %255 = vmatpush1.bf16.msra.mxu0 0
    %256 = vmatprep.subr.bf16.mxu0 0
    %257 = vmatpush1.bf16.msra.mxu0 %v238
    %258 = vmatprep.subr.bf16.mxu0 0
    %259 = vmatpush1.bf16.msra.mxu0 %v237
    %260 = vmatprep.subr.bf16.mxu0 0
    %261 = vmatpush2.bf16.msra.mxu0 0
    %262 = vmatprep.subr.bf16.mxu0 0
    %263 = vmatpush2.bf16.msra.mxu0 0
    %264 = vmatprep.subr.bf16.mxu0 0
    %265 = vmatpush2.bf16.msra.mxu0 0
    %266 = vmatprep.subr.bf16.mxu0 0
    %267 = vmatpush2.bf16.msra.mxu0 0
    %268 = vmatprep.subr.bf16.mxu0 0
    %269 = vmatpush2.bf16.msra.mxu0 0
    %270 = vmatprep.subr.bf16.mxu0 0
    %271 = vmatpush2.bf16.msra.mxu0 0
    %272 = vmatprep.subr.bf16.mxu0 0
    %273 = vmatpush2.bf16.msra.mxu0 0
    %274 = vmatprep.subr.bf16.mxu0 0
    %275 = vmatpush2.bf16.msra.mxu0 0
    %276 = vmatprep.mubr.bf16.mxu0 0
    %277 = vmatmul.mubr.bf16.gmra.mxu0 %v242
    %v278 = vpop.f32.mrf.mxu0
    %v279 = vadd.f32 %v227, %v278
    %v280 = vpop.f32.mrf.mxu0
    %v281 = vpop.f32.mrf.mxu0
    %v282 = vadd.f32 %v227, %v281
    %v283 = vpop.f32.mrf.mxu0
    %284 = vdwg.mxu0
    %v285 = vld [vmem:[%s2] sm:$0xff]
    %v286 = vld [vmem:[%s2 + $0x8] sm:$0xff]
    %v287 = vpack.c.bf16 %v279, %v279
    %v288 = vpack.c.bf16 %v282, %v282
    %290 = vrot.lane.b32.xlu0 %v287, 96
    %v291 = vpop.permute.xlu0 %290
    %vm292 = vcmask 64512
    %v294 = vsel %vm292, %v287, 0
    %v297 = vsel %vm292, %v291, 0
    %299 = vmatprep.subr.bf16.mxu0 0
    %300 = vmatpush1.bf16.xpose.msra.mxu0 0
    %301 = vmatprep.subr.bf16.mxu0 0
    %302 = vmatpush1.bf16.xpose.msra.mxu0 0
    %303 = vmatprep.subr.bf16.mxu0 0
    %304 = vmatpush1.bf16.xpose.msra.mxu0 0
    %305 = vmatprep.subr.bf16.mxu0 0
    %306 = vmatpush1.bf16.xpose.msra.mxu0 0
    %307 = vmatprep.subr.bf16.mxu0 0
    %308 = vmatpush1.bf16.xpose.msra.mxu0 0
    %309 = vmatprep.subr.bf16.mxu0 0
    %310 = vmatpush1.bf16.xpose.msra.mxu0 0
    %311 = vmatprep.subr.bf16.mxu0 0
    %312 = vmatpush1.bf16.xpose.msra.mxu0 0
    %313 = vmatprep.subr.bf16.mxu0 0
    %314 = vmatpush1.bf16.xpose.msra.mxu0 %v297
    %315 = vmatprep.subr.bf16.mxu0 0
    %316 = vmatpush2.bf16.xpose.msra.mxu0 0
    %317 = vmatprep.subr.bf16.mxu0 0
    %318 = vmatpush2.bf16.xpose.msra.mxu0 0
    %319 = vmatprep.subr.bf16.mxu0 0
    %320 = vmatpush2.bf16.xpose.msra.mxu0 0
    %321 = vmatprep.subr.bf16.mxu0 0
    %322 = vmatpush2.bf16.xpose.msra.mxu0 0
    %323 = vmatprep.subr.bf16.mxu0 0
    %324 = vmatpush2.bf16.xpose.msra.mxu0 0
    %325 = vmatprep.subr.bf16.mxu0 0
    %326 = vmatpush2.bf16.xpose.msra.mxu0 0
    %327 = vmatprep.subr.bf16.mxu0 0
    %328 = vmatpush2.bf16.xpose.msra.mxu0 0
    %329 = vmatprep.subr.bf16.mxu0 0
    %330 = vmatpush2.bf16.xpose.msra.mxu0 0
    %331 = vmatprep.mubr.bf16.mxu0 0
    %332 = vmatmul.mubr.bf16.gmra.mxu0 %v294
    %v333 = vpop.f32.mrf.mxu0
    %v334 = vadd.f32 %v285, %v333
    %v335 = vpop.f32.mrf.mxu0
    %v336 = vpop.f32.mrf.mxu0
    %v337 = vpop.f32.mrf.mxu0
    %338 = vdwg.mxu0
    %340 = vrot.lane.b32.xlu0 %v288, 96
    %v341 = vpop.permute.xlu0 %340
    %v343 = vsel %vm292, %v288, 0
    %v346 = vsel %vm292, %v341, 0
    %348 = vmatprep.subr.bf16.mxu0 0
    %349 = vmatpush1.bf16.xpose.msra.mxu0 0
    %350 = vmatprep.subr.bf16.mxu0 0
    %351 = vmatpush1.bf16.xpose.msra.mxu0 0
    %352 = vmatprep.subr.bf16.mxu0 0
    %353 = vmatpush1.bf16.xpose.msra.mxu0 0
    %354 = vmatprep.subr.bf16.mxu0 0
    %355 = vmatpush1.bf16.xpose.msra.mxu0 0
    %356 = vmatprep.subr.bf16.mxu0 0
    %357 = vmatpush1.bf16.xpose.msra.mxu0 0
    %358 = vmatprep.subr.bf16.mxu0 0
    %359 = vmatpush1.bf16.xpose.msra.mxu0 0
    %360 = vmatprep.subr.bf16.mxu0 0
    %361 = vmatpush1.bf16.xpose.msra.mxu0 0
    %362 = vmatprep.subr.bf16.mxu0 0
    %363 = vmatpush1.bf16.xpose.msra.mxu0 %v346
    %364 = vmatprep.subr.bf16.mxu0 0
    %365 = vmatpush2.bf16.xpose.msra.mxu0 0
    %366 = vmatprep.subr.bf16.mxu0 0
    %367 = vmatpush2.bf16.xpose.msra.mxu0 0
    %368 = vmatprep.subr.bf16.mxu0 0
    %369 = vmatpush2.bf16.xpose.msra.mxu0 0
    %370 = vmatprep.subr.bf16.mxu0 0
    %371 = vmatpush2.bf16.xpose.msra.mxu0 0
    %372 = vmatprep.subr.bf16.mxu0 0
    %373 = vmatpush2.bf16.xpose.msra.mxu0 0
    %374 = vmatprep.subr.bf16.mxu0 0
    %375 = vmatpush2.bf16.xpose.msra.mxu0 0
    %376 = vmatprep.subr.bf16.mxu0 0
    %377 = vmatpush2.bf16.xpose.msra.mxu0 0
    %378 = vmatprep.subr.bf16.mxu0 0
    %379 = vmatpush2.bf16.xpose.msra.mxu0 0
    %380 = vmatprep.mubr.bf16.mxu0 0
    %381 = vmatmul.mubr.bf16.gmra.mxu0 %v343
    %v382 = vpop.f32.mrf.mxu0
    %v383 = vadd.f32 %v286, %v382
    %v384 = vpop.f32.mrf.mxu0
    %v385 = vpop.f32.mrf.mxu0
    %v386 = vpop.f32.mrf.mxu0
    %387 = vdwg.mxu0
    %v388 = vsel %vm292, %v334, -inf
    %389 = vmax.xlane.f32.xlu0 %v388
    %v390 = vpop.xlane.xlu0 %389
    %v391 = vsel %vm292, %v383, -inf
    %392 = vmax.xlane.f32.xlu0 %v391
    %v393 = vpop.xlane.xlu0 %392
    %v394 = vsub.f32 %v334, %v390
    %v395 = vsub.f32 %v383, %v393
    %v396 = vmul.f32 %v394, 1.442695
    %v397 = vpow.pop %v396
    %v398 = vmul.f32 %v395, 1.442695
    %v399 = vpow.pop %v398
    %v400 = vsel %vm292, %v397, 0.0
    %401 = vadd.xlane.f32.xlu0 %v400
    %v402 = vpop.xlane.xlu0 %401
    %v403 = vsel %vm292, %v399, 0.0
    %404 = vadd.xlane.f32.xlu0 %v403
    %v405 = vpop.xlane.xlu0 %404
    %v406 = vrcp.pop %v402
    %v407 = vrcp.pop %v405
    %v408 = vmul.f32 %v397, %v406
    %v409 = vmul.f32 %v399, %v407
    %v410 = vpack.c.bf16 %v408, %v408
    %v411 = vpack.c.bf16 %v409, %v409
    %412 = vrot.lane.b32.xlu0 %v287, 64
    %v413 = vpop.permute.xlu0 %412
    %v415 = vsel %vm292, %v410, 0
    %vm417 = vcmask 1043456
    %v419 = vsel %vm417, %v413, 0
    %421 = vmatprep.subr.bf16.mxu0 0
    %422 = vmatpush1.bf16.msra.mxu0 0
    %423 = vmatprep.subr.bf16.mxu0 0
    %424 = vmatpush1.bf16.msra.mxu0 0
    %425 = vmatprep.subr.bf16.mxu0 0
    %426 = vmatpush1.bf16.msra.mxu0 0
    %427 = vmatprep.subr.bf16.mxu0 0
    %428 = vmatpush1.bf16.msra.mxu0 0
    %429 = vmatprep.subr.bf16.mxu0 0
    %430 = vmatpush1.bf16.msra.mxu0 0
    %431 = vmatprep.subr.bf16.mxu0 0
    %432 = vmatpush1.bf16.msra.mxu0 0
    %433 = vmatprep.subr.bf16.mxu0 0
    %434 = vmatpush1.bf16.msra.mxu0 0
    %435 = vmatprep.subr.bf16.mxu0 0
    %436 = vmatpush1.bf16.msra.mxu0 %v419
    %437 = vmatprep.subr.bf16.mxu0 0
    %438 = vmatpush2.bf16.msra.mxu0 0
    %439 = vmatprep.subr.bf16.mxu0 0
    %440 = vmatpush2.bf16.msra.mxu0 0
    %441 = vmatprep.subr.bf16.mxu0 0
    %442 = vmatpush2.bf16.msra.mxu0 0
    %443 = vmatprep.subr.bf16.mxu0 0
    %444 = vmatpush2.bf16.msra.mxu0 0
    %445 = vmatprep.subr.bf16.mxu0 0
    %446 = vmatpush2.bf16.msra.mxu0 0
    %447 = vmatprep.subr.bf16.mxu0 0
    %448 = vmatpush2.bf16.msra.mxu0 0
    %449 = vmatprep.subr.bf16.mxu0 0
    %450 = vmatpush2.bf16.msra.mxu0 0
    %451 = vmatprep.subr.bf16.mxu0 0
    %452 = vmatpush2.bf16.msra.mxu0 0
    %453 = vmatprep.mubr.bf16.mxu0 0
    %454 = vmatmul.mubr.bf16.gmra.mxu0 %v415
    %v455 = vpop.f32.mrf.mxu0
    %v456 = vadd.f32 0.0, %v455
    %v457 = vpop.f32.mrf.mxu0
    %v458 = vpop.f32.mrf.mxu0
    %v459 = vpop.f32.mrf.mxu0
    %460 = vdwg.mxu0
    %461 = vrot.lane.b32.xlu0 %v288, 64
    %v462 = vpop.permute.xlu0 %461
    %v464 = vsel %vm292, %v411, 0
    %v467 = vsel %vm417, %v462, 0
    %469 = vmatprep.subr.bf16.mxu0 0
    %470 = vmatpush1.bf16.msra.mxu0 0
    %471 = vmatprep.subr.bf16.mxu0 0
    %472 = vmatpush1.bf16.msra.mxu0 0
    %473 = vmatprep.subr.bf16.mxu0 0
    %474 = vmatpush1.bf16.msra.mxu0 0
    %475 = vmatprep.subr.bf16.mxu0 0
    %476 = vmatpush1.bf16.msra.mxu0 0
    %477 = vmatprep.subr.bf16.mxu0 0
    %478 = vmatpush1.bf16.msra.mxu0 0
    %479 = vmatprep.subr.bf16.mxu0 0
    %480 = vmatpush1.bf16.msra.mxu0 0
    %481 = vmatprep.subr.bf16.mxu0 0
    %482 = vmatpush1.bf16.msra.mxu0 0
    %483 = vmatprep.subr.bf16.mxu0 0
    %484 = vmatpush1.bf16.msra.mxu0 %v467
    %485 = vmatprep.subr.bf16.mxu0 0
    %486 = vmatpush2.bf16.msra.mxu0 0
    %487 = vmatprep.subr.bf16.mxu0 0
    %488 = vmatpush2.bf16.msra.mxu0 0
    %489 = vmatprep.subr.bf16.mxu0 0
    %490 = vmatpush2.bf16.msra.mxu0 0
    %491 = vmatprep.subr.bf16.mxu0 0
    %492 = vmatpush2.bf16.msra.mxu0 0
    %493 = vmatprep.subr.bf16.mxu0 0
    %494 = vmatpush2.bf16.msra.mxu0 0
    %495 = vmatprep.subr.bf16.mxu0 0
    %496 = vmatpush2.bf16.msra.mxu0 0
    %497 = vmatprep.subr.bf16.mxu0 0
    %498 = vmatpush2.bf16.msra.mxu0 0
    %499 = vmatprep.subr.bf16.mxu0 0
    %500 = vmatpush2.bf16.msra.mxu0 0
    %501 = vmatprep.mubr.bf16.mxu0 0
    %502 = vmatmul.mubr.bf16.gmra.mxu0 %v464
    %v503 = vpop.f32.mrf.mxu0
    %v504 = vadd.f32 0.0, %v503
    %v505 = vpop.f32.mrf.mxu0
    %v506 = vpop.f32.mrf.mxu0
    %v507 = vpop.f32.mrf.mxu0
    %508 = vdwg.mxu0
    %509 = vst.msk [vmem:[#allocation2] sm:$0xff] %vm292, %v456
    %510 = vst.msk [vmem:[#allocation2 + $0x8] sm:$0xff] %vm292, %v504
    %511 = vrot.lane.b32.xlu0 %v287, 120
    %v512 = vpop.permute.xlu0 %511
    %513 = vrot.lane.b32.xlu0 %v287, 88
    %v514 = vpop.permute.xlu0 %513
    %v516 = vsel %vm292, %v512, 0
    %v519 = vsel %vm292, %v514, 0
    %521 = vmatprep.subr.bf16.mxu0 0
    %522 = vmatpush1.bf16.xpose.msra.mxu0 0
    %523 = vmatprep.subr.bf16.mxu0 0
    %524 = vmatpush1.bf16.xpose.msra.mxu0 0
    %525 = vmatprep.subr.bf16.mxu0 0
    %526 = vmatpush1.bf16.xpose.msra.mxu0 0
    %527 = vmatprep.subr.bf16.mxu0 0
    %528 = vmatpush1.bf16.xpose.msra.mxu0 0
    %529 = vmatprep.subr.bf16.mxu0 0
    %530 = vmatpush1.bf16.xpose.msra.mxu0 0
    %531 = vmatprep.subr.bf16.mxu0 0
    %532 = vmatpush1.bf16.xpose.msra.mxu0 0
    %533 = vmatprep.subr.bf16.mxu0 0
    %534 = vmatpush1.bf16.xpose.msra.mxu0 0
    %535 = vmatprep.subr.bf16.mxu0 0
    %536 = vmatpush1.bf16.xpose.msra.mxu0 %v519
    %537 = vmatprep.subr.bf16.mxu0 0
    %538 = vmatpush2.bf16.xpose.msra.mxu0 0
    %539 = vmatprep.subr.bf16.mxu0 0
    %540 = vmatpush2.bf16.xpose.msra.mxu0 0
    %541 = vmatprep.subr.bf16.mxu0 0
    %542 = vmatpush2.bf16.xpose.msra.mxu0 0
    %543 = vmatprep.subr.bf16.mxu0 0
    %544 = vmatpush2.bf16.xpose.msra.mxu0 0
    %545 = vmatprep.subr.bf16.mxu0 0
    %546 = vmatpush2.bf16.xpose.msra.mxu0 0
    %547 = vmatprep.subr.bf16.mxu0 0
    %548 = vmatpush2.bf16.xpose.msra.mxu0 0
    %549 = vmatprep.subr.bf16.mxu0 0
    %550 = vmatpush2.bf16.xpose.msra.mxu0 0
    %551 = vmatprep.subr.bf16.mxu0 0
    %552 = vmatpush2.bf16.xpose.msra.mxu0 0
    %553 = vmatprep.mubr.bf16.mxu0 0
    %554 = vmatmul.mubr.bf16.gmra.mxu0 %v516
    %v555 = vpop.f32.mrf.mxu0
    %v556 = vadd.f32 %v285, %v555
    %v557 = vpop.f32.mrf.mxu0
    %v558 = vpop.f32.mrf.mxu0
    %v559 = vpop.f32.mrf.mxu0
    %560 = vdwg.mxu0
    %561 = vrot.lane.b32.xlu0 %v288, 120
    %v562 = vpop.permute.xlu0 %561
    %563 = vrot.lane.b32.xlu0 %v288, 88
    %v564 = vpop.permute.xlu0 %563
    %v566 = vsel %vm292, %v562, 0
    %v569 = vsel %vm292, %v564, 0
    %571 = vmatprep.subr.bf16.mxu0 0
    %572 = vmatpush1.bf16.xpose.msra.mxu0 0
    %573 = vmatprep.subr.bf16.mxu0 0
    %574 = vmatpush1.bf16.xpose.msra.mxu0 0
    %575 = vmatprep.subr.bf16.mxu0 0
    %576 = vmatpush1.bf16.xpose.msra.mxu0 0
    %577 = vmatprep.subr.bf16.mxu0 0
    %578 = vmatpush1.bf16.xpose.msra.mxu0 0
    %579 = vmatprep.subr.bf16.mxu0 0
    %580 = vmatpush1.bf16.xpose.msra.mxu0 0
    %581 = vmatprep.subr.bf16.mxu0 0
    %582 = vmatpush1.bf16.xpose.msra.mxu0 0
    %583 = vmatprep.subr.bf16.mxu0 0
    %584 = vmatpush1.bf16.xpose.msra.mxu0 0
    %585 = vmatprep.subr.bf16.mxu0 0
    %586 = vmatpush1.bf16.xpose.msra.mxu0 %v569
    %587 = vmatprep.subr.bf16.mxu0 0
    %588 = vmatpush2.bf16.xpose.msra.mxu0 0
    %589 = vmatprep.subr.bf16.mxu0 0
    %590 = vmatpush2.bf16.xpose.msra.mxu0 0
    %591 = vmatprep.subr.bf16.mxu0 0
    %592 = vmatpush2.bf16.xpose.msra.mxu0 0
    %593 = vmatprep.subr.bf16.mxu0 0
    %594 = vmatpush2.bf16.xpose.msra.mxu0 0
    %595 = vmatprep.subr.bf16.mxu0 0
    %596 = vmatpush2.bf16.xpose.msra.mxu0 0
    %597 = vmatprep.subr.bf16.mxu0 0
    %598 = vmatpush2.bf16.xpose.msra.mxu0 0
    %599 = vmatprep.subr.bf16.mxu0 0
    %600 = vmatpush2.bf16.xpose.msra.mxu0 0
    %601 = vmatprep.subr.bf16.mxu0 0
    %602 = vmatpush2.bf16.xpose.msra.mxu0 0
    %603 = vmatprep.mubr.bf16.mxu0 0
    %604 = vmatmul.mubr.bf16.gmra.mxu0 %v566
    %v605 = vpop.f32.mrf.mxu0
    %v606 = vadd.f32 %v286, %v605
    %v607 = vpop.f32.mrf.mxu0
    %v608 = vpop.f32.mrf.mxu0
    %v609 = vpop.f32.mrf.mxu0
    %610 = vdwg.mxu0
    %v611 = vsel %vm292, %v556, -inf
    %612 = vmax.xlane.f32.xlu0 %v611
    %v613 = vpop.xlane.xlu0 %612
    %v614 = vsel %vm292, %v606, -inf
    %615 = vmax.xlane.f32.xlu0 %v614
    %v616 = vpop.xlane.xlu0 %615
    %v617 = vsub.f32 %v556, %v613
    %v618 = vsub.f32 %v606, %v616
    %v619 = vmul.f32 %v617, 1.442695
    %v620 = vpow.pop %v619
    %v621 = vmul.f32 %v618, 1.442695
    %v622 = vpow.pop %v621
    %v623 = vsel %vm292, %v620, 0.0
    %624 = vadd.xlane.f32.xlu0 %v623
    %v625 = vpop.xlane.xlu0 %624
    %v626 = vsel %vm292, %v622, 0.0
    %627 = vadd.xlane.f32.xlu0 %v626
    %v628 = vpop.xlane.xlu0 %627
    %v629 = vrcp.pop %v625
    %v630 = vrcp.pop %v628
    %v631 = vmul.f32 %v620, %v629
    %v632 = vmul.f32 %v622, %v630
    %v633 = vpack.c.bf16 %v631, %v631
    %v634 = vpack.c.bf16 %v632, %v632
    %635 = vrot.lane.b32.xlu0 %v287, 56
    %v636 = vpop.permute.xlu0 %635
    %v638 = vsel %vm292, %v633, 0
    %v641 = vsel %vm417, %v636, 0
    %643 = vmatprep.subr.bf16.mxu0 0
    %644 = vmatpush1.bf16.msra.mxu0 0
    %645 = vmatprep.subr.bf16.mxu0 0
    %646 = vmatpush1.bf16.msra.mxu0 0
    %647 = vmatprep.subr.bf16.mxu0 0
    %648 = vmatpush1.bf16.msra.mxu0 0
    %649 = vmatprep.subr.bf16.mxu0 0
    %650 = vmatpush1.bf16.msra.mxu0 0
    %651 = vmatprep.subr.bf16.mxu0 0
    %652 = vmatpush1.bf16.msra.mxu0 0
    %653 = vmatprep.subr.bf16.mxu0 0
    %654 = vmatpush1.bf16.msra.mxu0 0
    %655 = vmatprep.subr.bf16.mxu0 0
    %656 = vmatpush1.bf16.msra.mxu0 0
    %657 = vmatprep.subr.bf16.mxu0 0
    %658 = vmatpush1.bf16.msra.mxu0 %v641
    %659 = vmatprep.subr.bf16.mxu0 0
    %660 = vmatpush2.bf16.msra.mxu0 0
    %661 = vmatprep.subr.bf16.mxu0 0
    %662 = vmatpush2.bf16.msra.mxu0 0
    %663 = vmatprep.subr.bf16.mxu0 0
    %664 = vmatpush2.bf16.msra.mxu0 0
    %665 = vmatprep.subr.bf16.mxu0 0
    %666 = vmatpush2.bf16.msra.mxu0 0
    %667 = vmatprep.subr.bf16.mxu0 0
    %668 = vmatpush2.bf16.msra.mxu0 0
    %669 = vmatprep.subr.bf16.mxu0 0
    %670 = vmatpush2.bf16.msra.mxu0 0
    %671 = vmatprep.subr.bf16.mxu0 0
    %672 = vmatpush2.bf16.msra.mxu0 0
    %673 = vmatprep.subr.bf16.mxu0 0
    %674 = vmatpush2.bf16.msra.mxu0 0
    %675 = vmatprep.mubr.bf16.mxu0 0
    %676 = vmatmul.mubr.bf16.gmra.mxu0 %v638
    %v677 = vpop.f32.mrf.mxu0
    %v678 = vadd.f32 0.0, %v677
    %v679 = vpop.f32.mrf.mxu0
    %v680 = vpop.f32.mrf.mxu0
    %v681 = vpop.f32.mrf.mxu0
    %682 = vdwg.mxu0
    %683 = vrot.lane.b32.xlu0 %v288, 56
    %v684 = vpop.permute.xlu0 %683
    %v686 = vsel %vm292, %v634, 0
    %v689 = vsel %vm417, %v684, 0
    %691 = vmatprep.subr.bf16.mxu0 0
    %692 = vmatpush1.bf16.msra.mxu0 0
    %693 = vmatprep.subr.bf16.mxu0 0
    %694 = vmatpush1.bf16.msra.mxu0 0
    %695 = vmatprep.subr.bf16.mxu0 0
    %696 = vmatpush1.bf16.msra.mxu0 0
    %697 = vmatprep.subr.bf16.mxu0 0
    %698 = vmatpush1.bf16.msra.mxu0 0
    %699 = vmatprep.subr.bf16.mxu0 0
    %700 = vmatpush1.bf16.msra.mxu0 0
    %701 = vmatprep.subr.bf16.mxu0 0
    %702 = vmatpush1.bf16.msra.mxu0 0
    %703 = vmatprep.subr.bf16.mxu0 0
    %704 = vmatpush1.bf16.msra.mxu0 0
    %705 = vmatprep.subr.bf16.mxu0 0
    %706 = vmatpush1.bf16.msra.mxu0 %v689
    %707 = vmatprep.subr.bf16.mxu0 0
    %708 = vmatpush2.bf16.msra.mxu0 0
    %709 = vmatprep.subr.bf16.mxu0 0
    %710 = vmatpush2.bf16.msra.mxu0 0
    %711 = vmatprep.subr.bf16.mxu0 0
    %712 = vmatpush2.bf16.msra.mxu0 0
    %713 = vmatprep.subr.bf16.mxu0 0
    %714 = vmatpush2.bf16.msra.mxu0 0
    %715 = vmatprep.subr.bf16.mxu0 0
    %716 = vmatpush2.bf16.msra.mxu0 0
    %717 = vmatprep.subr.bf16.mxu0 0
    %718 = vmatpush2.bf16.msra.mxu0 0
    %719 = vmatprep.subr.bf16.mxu0 0
    %720 = vmatpush2.bf16.msra.mxu0 0
    %721 = vmatprep.subr.bf16.mxu0 0
    %722 = vmatpush2.bf16.msra.mxu0 0
    %723 = vmatprep.mubr.bf16.mxu0 0
    %724 = vmatmul.mubr.bf16.gmra.mxu0 %v686
    %v725 = vpop.f32.mrf.mxu0
    %v726 = vadd.f32 0.0, %v725
    %v727 = vpop.f32.mrf.mxu0
    %v728 = vpop.f32.mrf.mxu0
    %v729 = vpop.f32.mrf.mxu0
    %730 = vdwg.mxu0
    %733 = vrot.lane.b32.xlu0 %v678, 8
    %v734 = vpop.permute.xlu0 %733
    %735 = vrot.lane.b32.xlu0 %v726, 8
    %v736 = vpop.permute.xlu0 %735
    %vm739 = vcmask 130112
    %740 = vst.msk [vmem:[#allocation2] sm:$0xff] %vm739, %v734
    %741 = vst.msk [vmem:[#allocation2 + $0x8] sm:$0xff] %vm739, %v736
    %742 = vrot.lane.b32.xlu0 %v287, 112
    %v743 = vpop.permute.xlu0 %742
    %744 = vrot.lane.b32.xlu0 %v287, 80
    %v745 = vpop.permute.xlu0 %744
    %v747 = vsel %vm292, %v743, 0
    %v750 = vsel %vm292, %v745, 0
    %752 = vmatprep.subr.bf16.mxu0 0
    %753 = vmatpush1.bf16.xpose.msra.mxu0 0
    %754 = vmatprep.subr.bf16.mxu0 0
    %755 = vmatpush1.bf16.xpose.msra.mxu0 0
    %756 = vmatprep.subr.bf16.mxu0 0
    %757 = vmatpush1.bf16.xpose.msra.mxu0 0
    %758 = vmatprep.subr.bf16.mxu0 0
    %759 = vmatpush1.bf16.xpose.msra.mxu0 0
    %760 = vmatprep.subr.bf16.mxu0 0
    %761 = vmatpush1.bf16.xpose.msra.mxu0 0
    %762 = vmatprep.subr.bf16.mxu0 0
    %763 = vmatpush1.bf16.xpose.msra.mxu0 0
    %764 = vmatprep.subr.bf16.mxu0 0
    %765 = vmatpush1.bf16.xpose.msra.mxu0 0
    %766 = vmatprep.subr.bf16.mxu0 0
    %767 = vmatpush1.bf16.xpose.msra.mxu0 %v750
    %768 = vmatprep.subr.bf16.mxu0 0
    %769 = vmatpush2.bf16.xpose.msra.mxu0 0
    %770 = vmatprep.subr.bf16.mxu0 0
    %771 = vmatpush2.bf16.xpose.msra.mxu0 0
    %772 = vmatprep.subr.bf16.mxu0 0
    %773 = vmatpush2.bf16.xpose.msra.mxu0 0
    %774 = vmatprep.subr.bf16.mxu0 0
    %775 = vmatpush2.bf16.xpose.msra.mxu0 0
    %776 = vmatprep.subr.bf16.mxu0 0
    %777 = vmatpush2.bf16.xpose.msra.mxu0 0
    %778 = vmatprep.subr.bf16.mxu0 0
    %779 = vmatpush2.bf16.xpose.msra.mxu0 0
    %780 = vmatprep.subr.bf16.mxu0 0
    %781 = vmatpush2.bf16.xpose.msra.mxu0 0
    %782 = vmatprep.subr.bf16.mxu0 0
    %783 = vmatpush2.bf16.xpose.msra.mxu0 0
    %784 = vmatprep.mubr.bf16.mxu0 0
    %785 = vmatmul.mubr.bf16.gmra.mxu0 %v747
    %v786 = vpop.f32.mrf.mxu0
    %v787 = vadd.f32 %v285, %v786
    %v788 = vpop.f32.mrf.mxu0
    %v789 = vpop.f32.mrf.mxu0
    %v790 = vpop.f32.mrf.mxu0
    %791 = vdwg.mxu0
    %792 = vrot.lane.b32.xlu0 %v288, 112
    %v793 = vpop.permute.xlu0 %792
    %794 = vrot.lane.b32.xlu0 %v288, 80
    %v795 = vpop.permute.xlu0 %794
    %v797 = vsel %vm292, %v793, 0
    %v800 = vsel %vm292, %v795, 0
    %802 = vmatprep.subr.bf16.mxu0 0
    %803 = vmatpush1.bf16.xpose.msra.mxu0 0
    %804 = vmatprep.subr.bf16.mxu0 0
    %805 = vmatpush1.bf16.xpose.msra.mxu0 0
    %806 = vmatprep.subr.bf16.mxu0 0
    %807 = vmatpush1.bf16.xpose.msra.mxu0 0
    %808 = vmatprep.subr.bf16.mxu0 0
    %809 = vmatpush1.bf16.xpose.msra.mxu0 0
    %810 = vmatprep.subr.bf16.mxu0 0
    %811 = vmatpush1.bf16.xpose.msra.mxu0 0
    %812 = vmatprep.subr.bf16.mxu0 0
    %813 = vmatpush1.bf16.xpose.msra.mxu0 0
    %814 = vmatprep.subr.bf16.mxu0 0
    %815 = vmatpush1.bf16.xpose.msra.mxu0 0
    %816 = vmatprep.subr.bf16.mxu0 0
    %817 = vmatpush1.bf16.xpose.msra.mxu0 %v800
    %818 = vmatprep.subr.bf16.mxu0 0
    %819 = vmatpush2.bf16.xpose.msra.mxu0 0
    %820 = vmatprep.subr.bf16.mxu0 0
    %821 = vmatpush2.bf16.xpose.msra.mxu0 0
    %822 = vmatprep.subr.bf16.mxu0 0
    %823 = vmatpush2.bf16.xpose.msra.mxu0 0
    %824 = vmatprep.subr.bf16.mxu0 0
    %825 = vmatpush2.bf16.xpose.msra.mxu0 0
    %826 = vmatprep.subr.bf16.mxu0 0
    %827 = vmatpush2.bf16.xpose.msra.mxu0 0
    %828 = vmatprep.subr.bf16.mxu0 0
    %829 = vmatpush2.bf16.xpose.msra.mxu0 0
    %830 = vmatprep.subr.bf16.mxu0 0
    %831 = vmatpush2.bf16.xpose.msra.mxu0 0
    %832 = vmatprep.subr.bf16.mxu0 0
    %833 = vmatpush2.bf16.xpose.msra.mxu0 0
    %834 = vmatprep.mubr.bf16.mxu0 0
    %835 = vmatmul.mubr.bf16.gmra.mxu0 %v797
    %v836 = vpop.f32.mrf.mxu0
    %v837 = vadd.f32 %v286, %v836
    %v838 = vpop.f32.mrf.mxu0
    %v839 = vpop.f32.mrf.mxu0
    %v840 = vpop.f32.mrf.mxu0
    %841 = vdwg.mxu0
    %v842 = vsel %vm292, %v787, -inf
    %843 = vmax.xlane.f32.xlu0 %v842
    %v844 = vpop.xlane.xlu0 %843
    %v845 = vsel %vm292, %v837, -inf
    %846 = vmax.xlane.f32.xlu0 %v845
    %v847 = vpop.xlane.xlu0 %846
    %v848 = vsub.f32 %v787, %v844
    %v849 = vsub.f32 %v837, %v847
    %v850 = vmul.f32 %v848, 1.442695
    %v851 = vpow.pop %v850
    %v852 = vmul.f32 %v849, 1.442695
    %v853 = vpow.pop %v852
    %v854 = vsel %vm292, %v851, 0.0
    %855 = vadd.xlane.f32.xlu0 %v854
    %v856 = vpop.xlane.xlu0 %855
    %v857 = vsel %vm292, %v853, 0.0
    %858 = vadd.xlane.f32.xlu0 %v857
    %v859 = vpop.xlane.xlu0 %858
    %v860 = vrcp.pop %v856
    %v861 = vrcp.pop %v859
    %v862 = vmul.f32 %v851, %v860
    %v863 = vmul.f32 %v853, %v861
    %v864 = vpack.c.bf16 %v862, %v862
    %v865 = vpack.c.bf16 %v863, %v863
    %866 = vrot.lane.b32.xlu0 %v287, 48
    %v867 = vpop.permute.xlu0 %866
    %v869 = vsel %vm292, %v864, 0
    %v872 = vsel %vm417, %v867, 0
    %874 = vmatprep.subr.bf16.mxu0 0
    %875 = vmatpush1.bf16.msra.mxu0 0
    %876 = vmatprep.subr.bf16.mxu0 0
    %877 = vmatpush1.bf16.msra.mxu0 0
    %878 = vmatprep.subr.bf16.mxu0 0
    %879 = vmatpush1.bf16.msra.mxu0 0
    %880 = vmatprep.subr.bf16.mxu0 0
    %881 = vmatpush1.bf16.msra.mxu0 0
    %882 = vmatprep.subr.bf16.mxu0 0
    %883 = vmatpush1.bf16.msra.mxu0 0
    %884 = vmatprep.subr.bf16.mxu0 0
    %885 = vmatpush1.bf16.msra.mxu0 0
    %886 = vmatprep.subr.bf16.mxu0 0
    %887 = vmatpush1.bf16.msra.mxu0 0
    %888 = vmatprep.subr.bf16.mxu0 0
    %889 = vmatpush1.bf16.msra.mxu0 %v872
    %890 = vmatprep.subr.bf16.mxu0 0
    %891 = vmatpush2.bf16.msra.mxu0 0
    %892 = vmatprep.subr.bf16.mxu0 0
    %893 = vmatpush2.bf16.msra.mxu0 0
    %894 = vmatprep.subr.bf16.mxu0 0
    %895 = vmatpush2.bf16.msra.mxu0 0
    %896 = vmatprep.subr.bf16.mxu0 0
    %897 = vmatpush2.bf16.msra.mxu0 0
    %898 = vmatprep.subr.bf16.mxu0 0
    %899 = vmatpush2.bf16.msra.mxu0 0
    %900 = vmatprep.subr.bf16.mxu0 0
    %901 = vmatpush2.bf16.msra.mxu0 0
    %902 = vmatprep.subr.bf16.mxu0 0
    %903 = vmatpush2.bf16.msra.mxu0 0
    %904 = vmatprep.subr.bf16.mxu0 0
    %905 = vmatpush2.bf16.msra.mxu0 0
    %906 = vmatprep.mubr.bf16.mxu0 0
    %907 = vmatmul.mubr.bf16.gmra.mxu0 %v869
    %v908 = vpop.f32.mrf.mxu0
    %v909 = vadd.f32 0.0, %v908
    %v910 = vpop.f32.mrf.mxu0
    %v911 = vpop.f32.mrf.mxu0
    %v912 = vpop.f32.mrf.mxu0
    %913 = vdwg.mxu0
    %914 = vrot.lane.b32.xlu0 %v288, 48
    %v915 = vpop.permute.xlu0 %914
    %v917 = vsel %vm292, %v865, 0
    %v920 = vsel %vm417, %v915, 0
    %922 = vmatprep.subr.bf16.mxu0 0
    %923 = vmatpush1.bf16.msra.mxu0 0
    %924 = vmatprep.subr.bf16.mxu0 0
    %925 = vmatpush1.bf16.msra.mxu0 0
    %926 = vmatprep.subr.bf16.mxu0 0
    %927 = vmatpush1.bf16.msra.mxu0 0
    %928 = vmatprep.subr.bf16.mxu0 0
    %929 = vmatpush1.bf16.msra.mxu0 0
    %930 = vmatprep.subr.bf16.mxu0 0
    %931 = vmatpush1.bf16.msra.mxu0 0
    %932 = vmatprep.subr.bf16.mxu0 0
    %933 = vmatpush1.bf16.msra.mxu0 0
    %934 = vmatprep.subr.bf16.mxu0 0
    %935 = vmatpush1.bf16.msra.mxu0 0
    %936 = vmatprep.subr.bf16.mxu0 0
    %937 = vmatpush1.bf16.msra.mxu0 %v920
    %938 = vmatprep.subr.bf16.mxu0 0
    %939 = vmatpush2.bf16.msra.mxu0 0
    %940 = vmatprep.subr.bf16.mxu0 0
    %941 = vmatpush2.bf16.msra.mxu0 0
    %942 = vmatprep.subr.bf16.mxu0 0
    %943 = vmatpush2.bf16.msra.mxu0 0
    %944 = vmatprep.subr.bf16.mxu0 0
    %945 = vmatpush2.bf16.msra.mxu0 0
    %946 = vmatprep.subr.bf16.mxu0 0
    %947 = vmatpush2.bf16.msra.mxu0 0
    %948 = vmatprep.subr.bf16.mxu0 0
    %949 = vmatpush2.bf16.msra.mxu0 0
    %950 = vmatprep.subr.bf16.mxu0 0
    %951 = vmatpush2.bf16.msra.mxu0 0
    %952 = vmatprep.subr.bf16.mxu0 0
    %953 = vmatpush2.bf16.msra.mxu0 0
    %954 = vmatprep.mubr.bf16.mxu0 0
    %955 = vmatmul.mubr.bf16.gmra.mxu0 %v917
    %v956 = vpop.f32.mrf.mxu0
    %v957 = vadd.f32 0.0, %v956
    %v958 = vpop.f32.mrf.mxu0
    %v959 = vpop.f32.mrf.mxu0
    %v960 = vpop.f32.mrf.mxu0
    %961 = vdwg.mxu0
    %964 = vrot.lane.b32.xlu0 %v909, 16
    %v965 = vpop.permute.xlu0 %964
    %966 = vrot.lane.b32.xlu0 %v957, 16
    %v967 = vpop.permute.xlu0 %966
    %vm970 = vcmask 195712
    %971 = vst.msk [vmem:[#allocation2] sm:$0xff] %vm970, %v965
    %972 = vst.msk [vmem:[#allocation2 + $0x8] sm:$0xff] %vm970, %v967
    %973 = vrot.lane.b32.xlu0 %v287, 104
    %v974 = vpop.permute.xlu0 %973
    %975 = vrot.lane.b32.xlu0 %v287, 72
    %v976 = vpop.permute.xlu0 %975
    %v978 = vsel %vm292, %v974, 0
    %v981 = vsel %vm292, %v976, 0
    %983 = vmatprep.subr.bf16.mxu0 0
    %984 = vmatpush1.bf16.xpose.msra.mxu0 0
    %985 = vmatprep.subr.bf16.mxu0 0
    %986 = vmatpush1.bf16.xpose.msra.mxu0 0
    %987 = vmatprep.subr.bf16.mxu0 0
    %988 = vmatpush1.bf16.xpose.msra.mxu0 0
    %989 = vmatprep.subr.bf16.mxu0 0
    %990 = vmatpush1.bf16.xpose.msra.mxu0 0
    %991 = vmatprep.subr.bf16.mxu0 0
    %992 = vmatpush1.bf16.xpose.msra.mxu0 0
    %993 = vmatprep.subr.bf16.mxu0 0
    %994 = vmatpush1.bf16.xpose.msra.mxu0 0
    %995 = vmatprep.subr.bf16.mxu0 0
    %996 = vmatpush1.bf16.xpose.msra.mxu0 0
    %997 = vmatprep.subr.bf16.mxu0 0
    %998 = vmatpush1.bf16.xpose.msra.mxu0 %v981
    %999 = vmatprep.subr.bf16.mxu0 0
    %1000 = vmatpush2.bf16.xpose.msra.mxu0 0
    %1001 = vmatprep.subr.bf16.mxu0 0
    %1002 = vmatpush2.bf16.xpose.msra.mxu0 0
    %1003 = vmatprep.subr.bf16.mxu0 0
    %1004 = vmatpush2.bf16.xpose.msra.mxu0 0
    %1005 = vmatprep.subr.bf16.mxu0 0
    %1006 = vmatpush2.bf16.xpose.msra.mxu0 0
    %1007 = vmatprep.subr.bf16.mxu0 0
    %1008 = vmatpush2.bf16.xpose.msra.mxu0 0
    %1009 = vmatprep.subr.bf16.mxu0 0
    %1010 = vmatpush2.bf16.xpose.msra.mxu0 0
    %1011 = vmatprep.subr.bf16.mxu0 0
    %1012 = vmatpush2.bf16.xpose.msra.mxu0 0
    %1013 = vmatprep.subr.bf16.mxu0 0
    %1014 = vmatpush2.bf16.xpose.msra.mxu0 0
    %1015 = vmatprep.mubr.bf16.mxu0 0
    %1016 = vmatmul.mubr.bf16.gmra.mxu0 %v978
    %v1017 = vpop.f32.mrf.mxu0
    %v1018 = vadd.f32 %v285, %v1017
    %v1019 = vpop.f32.mrf.mxu0
    %v1020 = vpop.f32.mrf.mxu0
    %v1021 = vpop.f32.mrf.mxu0
    %1022 = vdwg.mxu0
    %1023 = vrot.lane.b32.xlu0 %v288, 104
    %v1024 = vpop.permute.xlu0 %1023
    %1025 = vrot.lane.b32.xlu0 %v288, 72
    %v1026 = vpop.permute.xlu0 %1025
    %v1028 = vsel %vm292, %v1024, 0
    %v1031 = vsel %vm292, %v1026, 0
    %1033 = vmatprep.subr.bf16.mxu0 0
    %1034 = vmatpush1.bf16.xpose.msra.mxu0 0
    %1035 = vmatprep.subr.bf16.mxu0 0
    %1036 = vmatpush1.bf16.xpose.msra.mxu0 0
    %1037 = vmatprep.subr.bf16.mxu0 0
    %1038 = vmatpush1.bf16.xpose.msra.mxu0 0
    %1039 = vmatprep.subr.bf16.mxu0 0
    %1040 = vmatpush1.bf16.xpose.msra.mxu0 0
    %1041 = vmatprep.subr.bf16.mxu0 0
    %1042 = vmatpush1.bf16.xpose.msra.mxu0 0
    %1043 = vmatprep.subr.bf16.mxu0 0
    %1044 = vmatpush1.bf16.xpose.msra.mxu0 0
    %1045 = vmatprep.subr.bf16.mxu0 0
    %1046 = vmatpush1.bf16.xpose.msra.mxu0 0
    %1047 = vmatprep.subr.bf16.mxu0 0
    %1048 = vmatpush1.bf16.xpose.msra.mxu0 %v1031
    %1049 = vmatprep.subr.bf16.mxu0 0
    %1050 = vmatpush2.bf16.xpose.msra.mxu0 0
    %1051 = vmatprep.subr.bf16.mxu0 0
    %1052 = vmatpush2.bf16.xpose.msra.mxu0 0
    %1053 = vmatprep.subr.bf16.mxu0 0
    %1054 = vmatpush2.bf16.xpose.msra.mxu0 0
    %1055 = vmatprep.subr.bf16.mxu0 0
    %1056 = vmatpush2.bf16.xpose.msra.mxu0 0
    %1057 = vmatprep.subr.bf16.mxu0 0
    %1058 = vmatpush2.bf16.xpose.msra.mxu0 0
    %1059 = vmatprep.subr.bf16.mxu0 0
    %1060 = vmatpush2.bf16.xpose.msra.mxu0 0
    %1061 = vmatprep.subr.bf16.mxu0 0
    %1062 = vmatpush2.bf16.xpose.msra.mxu0 0
    %1063 = vmatprep.subr.bf16.mxu0 0
    %1064 = vmatpush2.bf16.xpose.msra.mxu0 0
    %1065 = vmatprep.mubr.bf16.mxu0 0
    %1066 = vmatmul.mubr.bf16.gmra.mxu0 %v1028
    %v1067 = vpop.f32.mrf.mxu0
    %v1068 = vadd.f32 %v286, %v1067
    %v1069 = vpop.f32.mrf.mxu0
    %v1070 = vpop.f32.mrf.mxu0
    %v1071 = vpop.f32.mrf.mxu0
    %1072 = vdwg.mxu0
    %v1073 = vsel %vm292, %v1018, -inf
    %1074 = vmax.xlane.f32.xlu0 %v1073
    %v1075 = vpop.xlane.xlu0 %1074
    %v1076 = vsel %vm292, %v1068, -inf
    %1077 = vmax.xlane.f32.xlu0 %v1076
    %v1078 = vpop.xlane.xlu0 %1077
    %v1079 = vsub.f32 %v1018, %v1075
    %v1080 = vsub.f32 %v1068, %v1078
    %v1081 = vmul.f32 %v1079, 1.442695
    %v1082 = vpow.pop %v1081
    %v1083 = vmul.f32 %v1080, 1.442695
    %v1084 = vpow.pop %v1083
    %v1085 = vsel %vm292, %v1082, 0.0
    %1086 = vadd.xlane.f32.xlu0 %v1085
    %v1087 = vpop.xlane.xlu0 %1086
    %v1088 = vsel %vm292, %v1084, 0.0
    %1089 = vadd.xlane.f32.xlu0 %v1088
    %v1090 = vpop.xlane.xlu0 %1089
    %v1091 = vrcp.pop %v1087
    %v1092 = vrcp.pop %v1090
    %v1093 = vmul.f32 %v1082, %v1091
    %v1094 = vmul.f32 %v1084, %v1092
    %v1095 = vpack.c.bf16 %v1093, %v1093
    %v1096 = vpack.c.bf16 %v1094, %v1094
    %1097 = vrot.lane.b32.xlu0 %v287, 40
    %v1098 = vpop.permute.xlu0 %1097
    %v1100 = vsel %vm292, %v1095, 0
    %v1103 = vsel %vm417, %v1098, 0
    %1105 = vmatprep.subr.bf16.mxu0 0
    %1106 = vmatpush1.bf16.msra.mxu0 0
    %1107 = vmatprep.subr.bf16.mxu0 0
    %1108 = vmatpush1.bf16.msra.mxu0 0
    %1109 = vmatprep.subr.bf16.mxu0 0
    %1110 = vmatpush1.bf16.msra.mxu0 0
    %1111 = vmatprep.subr.bf16.mxu0 0
    %1112 = vmatpush1.bf16.msra.mxu0 0
    %1113 = vmatprep.subr.bf16.mxu0 0
    %1114 = vmatpush1.bf16.msra.mxu0 0
    %1115 = vmatprep.subr.bf16.mxu0 0
    %1116 = vmatpush1.bf16.msra.mxu0 0
    %1117 = vmatprep.subr.bf16.mxu0 0
    %1118 = vmatpush1.bf16.msra.mxu0 0
    %1119 = vmatprep.subr.bf16.mxu0 0
    %1120 = vmatpush1.bf16.msra.mxu0 %v1103
    %1121 = vmatprep.subr.bf16.mxu0 0
    %1122 = vmatpush2.bf16.msra.mxu0 0
    %1123 = vmatprep.subr.bf16.mxu0 0
    %1124 = vmatpush2.bf16.msra.mxu0 0
    %1125 = vmatprep.subr.bf16.mxu0 0
    %1126 = vmatpush2.bf16.msra.mxu0 0
    %1127 = vmatprep.subr.bf16.mxu0 0
    %1128 = vmatpush2.bf16.msra.mxu0 0
    %1129 = vmatprep.subr.bf16.mxu0 0
    %1130 = vmatpush2.bf16.msra.mxu0 0
    %1131 = vmatprep.subr.bf16.mxu0 0
    %1132 = vmatpush2.bf16.msra.mxu0 0
    %1133 = vmatprep.subr.bf16.mxu0 0
    %1134 = vmatpush2.bf16.msra.mxu0 0
    %1135 = vmatprep.subr.bf16.mxu0 0
    %1136 = vmatpush2.bf16.msra.mxu0 0
    %1137 = vmatprep.mubr.bf16.mxu0 0
    %1138 = vmatmul.mubr.bf16.gmra.mxu0 %v1100
    %v1139 = vpop.f32.mrf.mxu0
    %v1140 = vadd.f32 0.0, %v1139
    %v1141 = vpop.f32.mrf.mxu0
    %v1142 = vpop.f32.mrf.mxu0
    %v1143 = vpop.f32.mrf.mxu0
    %1144 = vdwg.mxu0
    %1145 = vrot.lane.b32.xlu0 %v288, 40
    %v1146 = vpop.permute.xlu0 %1145
    %v1148 = vsel %vm292, %v1096, 0
    %v1151 = vsel %vm417, %v1146, 0
    %1153 = vmatprep.subr.bf16.mxu0 0
    %1154 = vmatpush1.bf16.msra.mxu0 0
    %1155 = vmatprep.subr.bf16.mxu0 0
    %1156 = vmatpush1.bf16.msra.mxu0 0
    %1157 = vmatprep.subr.bf16.mxu0 0
    %1158 = vmatpush1.bf16.msra.mxu0 0
    %1159 = vmatprep.subr.bf16.mxu0 0
    %1160 = vmatpush1.bf16.msra.mxu0 0
    %1161 = vmatprep.subr.bf16.mxu0 0
    %1162 = vmatpush1.bf16.msra.mxu0 0
    %1163 = vmatprep.subr.bf16.mxu0 0
    %1164 = vmatpush1.bf16.msra.mxu0 0
    %1165 = vmatprep.subr.bf16.mxu0 0
    %1166 = vmatpush1.bf16.msra.mxu0 0
    %1167 = vmatprep.subr.bf16.mxu0 0
    %1168 = vmatpush1.bf16.msra.mxu0 %v1151
    %1169 = vmatprep.subr.bf16.mxu0 0
    %1170 = vmatpush2.bf16.msra.mxu0 0
    %1171 = vmatprep.subr.bf16.mxu0 0
    %1172 = vmatpush2.bf16.msra.mxu0 0
    %1173 = vmatprep.subr.bf16.mxu0 0
    %1174 = vmatpush2.bf16.msra.mxu0 0
    %1175 = vmatprep.subr.bf16.mxu0 0
    %1176 = vmatpush2.bf16.msra.mxu0 0
    %1177 = vmatprep.subr.bf16.mxu0 0
    %1178 = vmatpush2.bf16.msra.mxu0 0
    %1179 = vmatprep.subr.bf16.mxu0 0
    %1180 = vmatpush2.bf16.msra.mxu0 0
    %1181 = vmatprep.subr.bf16.mxu0 0
    %1182 = vmatpush2.bf16.msra.mxu0 0
    %1183 = vmatprep.subr.bf16.mxu0 0
    %1184 = vmatpush2.bf16.msra.mxu0 0
    %1185 = vmatprep.mubr.bf16.mxu0 0
    %1186 = vmatmul.mubr.bf16.gmra.mxu0 %v1148
    %v1187 = vpop.f32.mrf.mxu0
    %v1188 = vadd.f32 0.0, %v1187
    %v1189 = vpop.f32.mrf.mxu0
    %v1190 = vpop.f32.mrf.mxu0
    %v1191 = vpop.f32.mrf.mxu0
    %1192 = vdwg.mxu0
    %1195 = vrot.lane.b32.xlu0 %v1140, 24
    %v1196 = vpop.permute.xlu0 %1195
    %1197 = vrot.lane.b32.xlu0 %v1188, 24
    %v1198 = vpop.permute.xlu0 %1197
    %vm1201 = vcmask 261312
    %1202 = vst.msk [vmem:[#allocation2] sm:$0xff] %vm1201, %v1196
    %1203 = vst.msk [vmem:[#allocation2 + $0x8] sm:$0xff] %vm1201, %v1198
    %vm1204 = vcmask 60416
    %1205 = vst.msk [vmem:[#allocation15] sm:$0xf] %vm1204, %v410
    %1206 = vst.msk [vmem:[#allocation15 + $0x4] sm:$0xf] %vm1204, %v633
    %1207 = vst.msk [vmem:[#allocation15 + $0x8] sm:$0xf] %vm1204, %v864
    %1208 = vst.msk [vmem:[#allocation15 + $0xc] sm:$0xf] %vm1204, %v1095
    %1209 = vst.msk [vmem:[#allocation15 + $0x10] sm:$0xf] %vm1204, %v411
    %1210 = vst.msk [vmem:[#allocation15 + $0x14] sm:$0xf] %vm1204, %v634
    %1211 = vst.msk [vmem:[#allocation15 + $0x18] sm:$0xf] %vm1204, %v865
    %1212 = vst.msk [vmem:[#allocation15 + $0x1c] sm:$0xf] %vm1204, %v1096
    %v1213 = vld [vmem:[#allocation2] sm:$0xff]
    %v1214 = vld [vmem:[#allocation2 + $0x8] sm:$0xff]
    %v1215 = vld [vmem:[#allocation6] sm:$0xf]
    %v1216 = vld [vmem:[#allocation6 + $0x4] sm:$0xf]
    %v1217 = vld [vmem:[#allocation6 + $0x8] sm:$0xf]
    %v1218 = vld [vmem:[#allocation6 + $0xc] sm:$0xf]
    %v1219 = vpack.c.bf16 %v1214, %v1213
    %v1224 = vunpack.c.l.b16 %v1215
    %v1225 = vunpack.c.l.b16 %v1216
    %v1226 = vunpack.c.l.b16 %v1217
    %v1227 = vunpack.c.l.b16 %v1218
    %v1228 = vpack.c.b16 %v1225, %v1224
    %v1229 = vpack.c.b16 %v1227, %v1226
    %v1233 = vsel %vm173, %v1219, 0
    %1235 = vmatprep.subr.bf16.mxu0 0
    %1236 = vmatpush1.bf16.msra.mxu0 0
    %1237 = vmatprep.subr.bf16.mxu0 0
    %1238 = vmatpush1.bf16.msra.mxu0 0
    %1239 = vmatprep.subr.bf16.mxu0 0
    %1240 = vmatpush1.bf16.msra.mxu0 0
    %1241 = vmatprep.subr.bf16.mxu0 0
    %1242 = vmatpush1.bf16.msra.mxu0 0
    %1243 = vmatprep.subr.bf16.mxu0 0
    %1244 = vmatpush1.bf16.msra.mxu0 0
    %1245 = vmatprep.subr.bf16.mxu0 0
    %1246 = vmatpush1.bf16.msra.mxu0 0
    %1247 = vmatprep.subr.bf16.mxu0 0
    %1248 = vmatpush1.bf16.msra.mxu0 %v1229
    %1249 = vmatprep.subr.bf16.mxu0 0
    %1250 = vmatpush1.bf16.msra.mxu0 %v1228
    %1251 = vmatprep.subr.bf16.mxu0 0
    %1252 = vmatpush2.bf16.msra.mxu0 0
    %1253 = vmatprep.subr.bf16.mxu0 0
    %1254 = vmatpush2.bf16.msra.mxu0 0
    %1255 = vmatprep.subr.bf16.mxu0 0
    %1256 = vmatpush2.bf16.msra.mxu0 0
    %1257 = vmatprep.subr.bf16.mxu0 0
    %1258 = vmatpush2.bf16.msra.mxu0 0
    %1259 = vmatprep.subr.bf16.mxu0 0
    %1260 = vmatpush2.bf16.msra.mxu0 0
    %1261 = vmatprep.subr.bf16.mxu0 0
    %1262 = vmatpush2.bf16.msra.mxu0 0
    %1263 = vmatprep.subr.bf16.mxu0 0
    %1264 = vmatpush2.bf16.msra.mxu0 0
    %1265 = vmatprep.subr.bf16.mxu0 0
    %1266 = vmatpush2.bf16.msra.mxu0 0
    %1267 = vmatprep.mubr.bf16.mxu0 0
    %1268 = vmatmul.mubr.bf16.gmra.mxu0 %v1233
    %v1269 = vpop.f32.mrf.mxu0
    %v1270 = vadd.f32 0.0, %v1269
    %v1271 = vpop.f32.mrf.mxu0
    %v1272 = vpop.f32.mrf.mxu0
    %v1273 = vadd.f32 0.0, %v1272
    %v1274 = vpop.f32.mrf.mxu0
    %1275 = vdwg.mxu0
    %v1276 = vadd.f32 %v169, %v1270
    %v1277 = vadd.f32 %v170, %v1273
    %v1278 = vld [vmem:[%s9] sm:$0x1]
    %v1280 = vlaneseq
    %v1281 = vshrl.u32 %v1280, 7
    %v1282 = vsub.s32 0, %v1281
    %v1283 = vrot.slane %v1278, %v1282
    %v1285 = vadd.f32 %v1276, %v1283
    %v1286 = vadd.f32 %v1277, %v1283
    %v1287 = vld [vmem:[%s1] sm:$0xff]
    %v1288 = vld [vmem:[%s1 + $0x8] sm:$0xff]
    %v1289 = vld [vmem:[%s1 + $0x10] sm:$0xff]
    %v1290 = vld [vmem:[%s1 + $0x18] sm:$0xff]
    %v1291 = vld [vmem:[%s10] sm:$0x1]
    %v1292 = vld [vmem:[%s11] sm:$0x1]
    %v1293 = vsel %vm173, %v1285, 0.0
    %1294 = vadd.xlane.f32.xlu0 %v1293
    %v1295 = vpop.xlane.xlu0 %1294
    %v1296 = vsel %vm173, %v1286, 0.0
    %1297 = vadd.xlane.f32.xlu0 %v1296
    %v1298 = vpop.xlane.xlu0 %1297
    %v1299 = vmul.f32 %v1295, %v180
    %v1300 = vmul.f32 %v1298, %v180
    %v1301 = vsub.f32 %v1285, %v1299
    %v1302 = vsub.f32 %v1286, %v1300
    %v1303 = vmul.f32 %v1301, %v1301
    %v1304 = vmul.f32 %v1302, %v1302
    %v1305 = vsel %vm173, %v1303, 0.0
    %1306 = vadd.xlane.f32.xlu0 %v1305
    %v1307 = vpop.xlane.xlu0 %1306
    %v1308 = vsel %vm173, %v1304, 0.0
    %1309 = vadd.xlane.f32.xlu0 %v1308
    %v1310 = vpop.xlane.xlu0 %1309
    %v1311 = vmul.f32 %v1307, %v180
    %v1312 = vmul.f32 %v1310, %v180
    %v1313 = vadd.f32 %v1311, 1e-05
    %v1314 = vadd.f32 %v1312, 1e-05
    %v1315 = vrsqrt.pop %v1313
    %v1316 = vrsqrt.pop %v1314
    %v1317 = vmul.f32 %v1301, %v1315
    %v1318 = vmul.f32 %v1302, %v1316
    %v1320 = vlaneseq
    %v1321 = vshrl.u32 %v1320, 7
    %v1322 = vsub.s32 0, %v1321
    %v1323 = vrot.slane %v1291, %v1322
    %v1325 = vmul.f32 %v1317, %v1323
    %v1326 = vmul.f32 %v1318, %v1323
    %v1328 = vlaneseq
    %v1329 = vshrl.u32 %v1328, 7
    %v1330 = vsub.s32 0, %v1329
    %v1331 = vrot.slane %v1292, %v1330
    %v1333 = vadd.f32 %v1325, %v1331
    %v1334 = vadd.f32 %v1326, %v1331
    %v1335 = vld [vmem:[%s12] sm:$0xf]
    %v1336 = vld [vmem:[%s12 + $0x4] sm:$0xf]
    %v1337 = vld [vmem:[%s12 + $0x8] sm:$0xf]
    %v1338 = vld [vmem:[%s12 + $0xc] sm:$0xf]
    %v1339 = vpack.c.bf16 %v1334, %v1333
    %v1340 = vld [vmem:[%s13] sm:$0x1]
    %v1342 = vlaneseq
    %v1343 = vshrl.u32 %v1342, 7
    %v1344 = vsub.s32 0, %v1343
    %v1345 = vrot.slane %v1340, %v1344
    %v1351 = vunpack.c.l.b16 %v1335
    %v1352 = vunpack.c.l.b16 %v1336
    %v1353 = vunpack.c.l.b16 %v1337
    %v1354 = vunpack.c.l.b16 %v1338
    %v1355 = vpack.c.b16 %v1352, %v1351
    %v1356 = vpack.c.b16 %v1354, %v1353
    %v1360 = vsel %vm173, %v1339, 0
    %1362 = vmatprep.subr.bf16.mxu0 0
    %1363 = vmatpush1.bf16.msra.mxu0 0
    %1364 = vmatprep.subr.bf16.mxu0 0
    %1365 = vmatpush1.bf16.msra.mxu0 0
    %1366 = vmatprep.subr.bf16.mxu0 0
    %1367 = vmatpush1.bf16.msra.mxu0 0
    %1368 = vmatprep.subr.bf16.mxu0 0
    %1369 = vmatpush1.bf16.msra.mxu0 0
    %1370 = vmatprep.subr.bf16.mxu0 0
    %1371 = vmatpush1.bf16.msra.mxu0 0
    %1372 = vmatprep.subr.bf16.mxu0 0
    %1373 = vmatpush1.bf16.msra.mxu0 0
    %1374 = vmatprep.subr.bf16.mxu0 0
    %1375 = vmatpush1.bf16.msra.mxu0 %v1356
    %1376 = vmatprep.subr.bf16.mxu0 0
    %1377 = vmatpush1.bf16.msra.mxu0 %v1355
    %1378 = vmatprep.subr.bf16.mxu0 0
    %1379 = vmatpush2.bf16.msra.mxu0 0
    %1380 = vmatprep.subr.bf16.mxu0 0
    %1381 = vmatpush2.bf16.msra.mxu0 0
    %1382 = vmatprep.subr.bf16.mxu0 0
    %1383 = vmatpush2.bf16.msra.mxu0 0
    %1384 = vmatprep.subr.bf16.mxu0 0
    %1385 = vmatpush2.bf16.msra.mxu0 0
    %1386 = vmatprep.subr.bf16.mxu0 0
    %1387 = vmatpush2.bf16.msra.mxu0 0
    %1388 = vmatprep.subr.bf16.mxu0 0
    %1389 = vmatpush2.bf16.msra.mxu0 0
    %1390 = vmatprep.subr.bf16.mxu0 0
    %1391 = vmatpush2.bf16.msra.mxu0 0
    %1392 = vmatprep.subr.bf16.mxu0 0
    %1393 = vmatpush2.bf16.msra.mxu0 0
    %1394 = vmatprep.mubr.bf16.mxu0 0
    %1395 = vmatmul.mubr.bf16.gmra.mxu0 %v1360
    %v1396 = vpop.f32.mrf.mxu0
    %v1397 = vadd.f32 %v1345, %v1396
    %v1398 = vpop.f32.mrf.mxu0
    %v1399 = vpop.f32.mrf.mxu0
    %v1400 = vadd.f32 %v1345, %v1399
    %v1401 = vpop.f32.mrf.mxu0
    %1402 = vdwg.mxu0
    %v1403 = vld [vmem:[%s14] sm:$0xf]
    %v1404 = vld [vmem:[%s14 + $0x4] sm:$0xf]
    %v1405 = vld [vmem:[%s14 + $0x8] sm:$0xf]
    %v1406 = vld [vmem:[%s14 + $0xc] sm:$0xf]
    %v1407 = vpack.c.bf16 %v1288, %v1287
    %v1408 = vpack.c.bf16 %v1290, %v1289
    %v1409 = vld [vmem:[%s15] sm:$0x1]
    %v1411 = vlaneseq
    %v1412 = vshrl.u32 %v1411, 7
    %v1413 = vsub.s32 0, %v1412
    %v1414 = vrot.slane %v1409, %v1413
    %v1420 = vunpack.c.l.b16 %v1403
    %v1421 = vunpack.c.l.b16 %v1404
    %v1422 = vunpack.c.l.b16 %v1405
    %v1423 = vunpack.c.l.b16 %v1406
    %v1424 = vpack.c.b16 %v1421, %v1420
    %v1425 = vpack.c.b16 %v1423, %v1422
    %v1429 = vsel %vm173, %v1407, 0
    %v1432 = vsel %vm173, %v1408, 0
    %1434 = vmatprep.subr.bf16.mxu0 0
    %1435 = vmatpush1.bf16.msra.mxu0 0
    %1436 = vmatprep.subr.bf16.mxu0 0
    %1437 = vmatpush1.bf16.msra.mxu0 0
    %1438 = vmatprep.subr.bf16.mxu0 0
    %1439 = vmatpush1.bf16.msra.mxu0 0
    %1440 = vmatprep.subr.bf16.mxu0 0
    %1441 = vmatpush1.bf16.msra.mxu0 0
    %1442 = vmatprep.subr.bf16.mxu0 0
    %1443 = vmatpush1.bf16.msra.mxu0 0
    %1444 = vmatprep.subr.bf16.mxu0 0
    %1445 = vmatpush1.bf16.msra.mxu0 0
    %1446 = vmatprep.subr.bf16.mxu0 0
    %1447 = vmatpush1.bf16.msra.mxu0 %v1425
    %1448 = vmatprep.subr.bf16.mxu0 0
    %1449 = vmatpush1.bf16.msra.mxu0 %v1424
    %1450 = vmatprep.subr.bf16.mxu0 0
    %1451 = vmatpush2.bf16.msra.mxu0 0
    %1452 = vmatprep.subr.bf16.mxu0 0
    %1453 = vmatpush2.bf16.msra.mxu0 0
    %1454 = vmatprep.subr.bf16.mxu0 0
    %1455 = vmatpush2.bf16.msra.mxu0 0
    %1456 = vmatprep.subr.bf16.mxu0 0
    %1457 = vmatpush2.bf16.msra.mxu0 0
    %1458 = vmatprep.subr.bf16.mxu0 0
    %1459 = vmatpush2.bf16.msra.mxu0 0
    %1460 = vmatprep.subr.bf16.mxu0 0
    %1461 = vmatpush2.bf16.msra.mxu0 0
    %1462 = vmatprep.subr.bf16.mxu0 0
    %1463 = vmatpush2.bf16.msra.mxu0 0
    %1464 = vmatprep.subr.bf16.mxu0 0
    %1465 = vmatpush2.bf16.msra.mxu0 0
    %1466 = vmatprep.mubr.bf16.mxu0 0
    %1467 = vmatmul.mubr.bf16.gmra.mxu0 %v1429
    %v1468 = vpop.f32.mrf.mxu0
    %v1469 = vadd.f32 %v1414, %v1468
    %v1470 = vpop.f32.mrf.mxu0
    %v1471 = vpop.f32.mrf.mxu0
    %v1472 = vadd.f32 %v1414, %v1471
    %v1473 = vpop.f32.mrf.mxu0
    %1474 = vmatprep.mubr.bf16.mxu0 0
    %1475 = vmatmul.mubr.bf16.gmra.mxu0 %v1432
    %v1476 = vpop.f32.mrf.mxu0
    %v1477 = vadd.f32 %v1414, %v1476
    %v1478 = vpop.f32.mrf.mxu0
    %v1479 = vpop.f32.mrf.mxu0
    %v1480 = vadd.f32 %v1414, %v1479
    %v1481 = vpop.f32.mrf.mxu0
    %1482 = vdwg.mxu0
    %v1483 = vld [vmem:[%s3] sm:$0xff]
    %v1484 = vld [vmem:[%s3 + $0x8] sm:$0xff]
    %v1485 = vpack.c.bf16 %v1397, %v1397
    %v1486 = vpack.c.bf16 %v1400, %v1400
    %v1487 = vpack.c.bf16 %v1472, %v1469
    %v1488 = vpack.c.bf16 %v1480, %v1477
    %v1490 = vsel %vm292, %v1485, 0
    %v1493 = vsel %vm292, %v1487, 0
    %1495 = vmatprep.subr.bf16.mxu0 0
    %1496 = vmatpush1.bf16.xpose.msra.mxu0 0
    %1497 = vmatprep.subr.bf16.mxu0 0
    %1498 = vmatpush1.bf16.xpose.msra.mxu0 0
    %1499 = vmatprep.subr.bf16.mxu0 0
    %1500 = vmatpush1.bf16.xpose.msra.mxu0 0
    %1501 = vmatprep.subr.bf16.mxu0 0
    %1502 = vmatpush1.bf16.xpose.msra.mxu0 0
    %1503 = vmatprep.subr.bf16.mxu0 0
    %1504 = vmatpush1.bf16.xpose.msra.mxu0 0
    %1505 = vmatprep.subr.bf16.mxu0 0
    %1506 = vmatpush1.bf16.xpose.msra.mxu0 0
    %1507 = vmatprep.subr.bf16.mxu0 0
    %1508 = vmatpush1.bf16.xpose.msra.mxu0 0
    %1509 = vmatprep.subr.bf16.mxu0 0
    %1510 = vmatpush1.bf16.xpose.msra.mxu0 %v1493
    %1511 = vmatprep.subr.bf16.mxu0 0
    %1512 = vmatpush2.bf16.xpose.msra.mxu0 0
    %1513 = vmatprep.subr.bf16.mxu0 0
    %1514 = vmatpush2.bf16.xpose.msra.mxu0 0
    %1515 = vmatprep.subr.bf16.mxu0 0
    %1516 = vmatpush2.bf16.xpose.msra.mxu0 0
    %1517 = vmatprep.subr.bf16.mxu0 0
    %1518 = vmatpush2.bf16.xpose.msra.mxu0 0
    %1519 = vmatprep.subr.bf16.mxu0 0
    %1520 = vmatpush2.bf16.xpose.msra.mxu0 0
    %1521 = vmatprep.subr.bf16.mxu0 0
    %1522 = vmatpush2.bf16.xpose.msra.mxu0 0
    %1523 = vmatprep.subr.bf16.mxu0 0
    %1524 = vmatpush2.bf16.xpose.msra.mxu0 0
    %1525 = vmatprep.subr.bf16.mxu0 0
    %1526 = vmatpush2.bf16.xpose.msra.mxu0 0
    %1527 = vmatprep.mubr.bf16.mxu0 0
    %1528 = vmatmul.mubr.bf16.gmra.mxu0 %v1490
    %v1529 = vpop.f32.mrf.mxu0
    %v1530 = vadd.f32 %v1483, %v1529
    %v1531 = vpop.f32.mrf.mxu0
    %v1532 = vpop.f32.mrf.mxu0
    %v1533 = vpop.f32.mrf.mxu0
    %1534 = vdwg.mxu0
    %v1536 = vsel %vm292, %v1486, 0
    %v1539 = vsel %vm292, %v1488, 0
    %1541 = vmatprep.subr.bf16.mxu0 0
    %1542 = vmatpush1.bf16.xpose.msra.mxu0 0
    %1543 = vmatprep.subr.bf16.mxu0 0
    %1544 = vmatpush1.bf16.xpose.msra.mxu0 0
    %1545 = vmatprep.subr.bf16.mxu0 0
    %1546 = vmatpush1.bf16.xpose.msra.mxu0 0
    %1547 = vmatprep.subr.bf16.mxu0 0
    %1548 = vmatpush1.bf16.xpose.msra.mxu0 0
    %1549 = vmatprep.subr.bf16.mxu0 0
    %1550 = vmatpush1.bf16.xpose.msra.mxu0 0
    %1551 = vmatprep.subr.bf16.mxu0 0
    %1552 = vmatpush1.bf16.xpose.msra.mxu0 0
    %1553 = vmatprep.subr.bf16.mxu0 0
    %1554 = vmatpush1.bf16.xpose.msra.mxu0 0
    %1555 = vmatprep.subr.bf16.mxu0 0
    %1556 = vmatpush1.bf16.xpose.msra.mxu0 %v1539
    %1557 = vmatprep.subr.bf16.mxu0 0
    %1558 = vmatpush2.bf16.xpose.msra.mxu0 0
    %1559 = vmatprep.subr.bf16.mxu0 0
    %1560 = vmatpush2.bf16.xpose.msra.mxu0 0
    %1561 = vmatprep.subr.bf16.mxu0 0
    %1562 = vmatpush2.bf16.xpose.msra.mxu0 0
    %1563 = vmatprep.subr.bf16.mxu0 0
    %1564 = vmatpush2.bf16.xpose.msra.mxu0 0
    %1565 = vmatprep.subr.bf16.mxu0 0
    %1566 = vmatpush2.bf16.xpose.msra.mxu0 0
    %1567 = vmatprep.subr.bf16.mxu0 0
    %1568 = vmatpush2.bf16.xpose.msra.mxu0 0
    %1569 = vmatprep.subr.bf16.mxu0 0
    %1570 = vmatpush2.bf16.xpose.msra.mxu0 0
    %1571 = vmatprep.subr.bf16.mxu0 0
    %1572 = vmatpush2.bf16.xpose.msra.mxu0 0
    %1573 = vmatprep.mubr.bf16.mxu0 0
    %1574 = vmatmul.mubr.bf16.gmra.mxu0 %v1536
    %v1575 = vpop.f32.mrf.mxu0
    %v1576 = vadd.f32 %v1484, %v1575
    %v1577 = vpop.f32.mrf.mxu0
    %v1578 = vpop.f32.mrf.mxu0
    %v1579 = vpop.f32.mrf.mxu0
    %1580 = vdwg.mxu0
    %vm1581 = vcmask 130048
    %v1582 = vsel %vm1581, %v1530, -inf
    %1583 = vmax.xlane.f32.xlu0 %v1582
    %v1584 = vpop.xlane.xlu0 %1583
    %v1585 = vsel %vm1581, %v1576, -inf
    %1586 = vmax.xlane.f32.xlu0 %v1585
    %v1587 = vpop.xlane.xlu0 %1586
    %v1588 = vsub.f32 %v1530, %v1584
    %v1589 = vsub.f32 %v1576, %v1587
    %v1590 = vmul.f32 %v1588, 1.442695
    %v1591 = vpow.pop %v1590
    %v1592 = vmul.f32 %v1589, 1.442695
    %v1593 = vpow.pop %v1592
    %v1594 = vsel %vm1581, %v1591, 0.0
    %1595 = vadd.xlane.f32.xlu0 %v1594
    %v1596 = vpop.xlane.xlu0 %1595
    %v1597 = vsel %vm1581, %v1593, 0.0
    %1598 = vadd.xlane.f32.xlu0 %v1597
    %v1599 = vpop.xlane.xlu0 %1598
    %v1600 = vrcp.pop %v1596
    %v1601 = vrcp.pop %v1599
    %v1602 = vmul.f32 %v1591, %v1600
    %v1603 = vmul.f32 %v1593, %v1601
    %v1604 = vpack.c.bf16 %v1602, %v1602
    %v1605 = vpack.c.bf16 %v1603, %v1603
    %1607 = vrot.lane.b32.xlu0 %v1487, 96
    %v1608 = vpop.permute.xlu0 %1607
    %v1611 = vsel %vm1581, %v1604, 0
    %1613 = vmatprep.subr.bf16.mxu0 0
    %1614 = vmatpush1.bf16.msra.mxu0 0
    %1615 = vmatprep.subr.bf16.mxu0 0
    %1616 = vmatpush1.bf16.msra.mxu0 0
    %1617 = vmatprep.subr.bf16.mxu0 0
    %1618 = vmatpush1.bf16.msra.mxu0 0
    %1619 = vmatprep.subr.bf16.mxu0 0
    %1620 = vmatpush1.bf16.msra.mxu0 0
    %1621 = vmatprep.subr.bf16.mxu0 0
    %1622 = vmatpush1.bf16.msra.mxu0 0
    %1623 = vmatprep.subr.bf16.mxu0 0
    %1624 = vmatpush1.bf16.msra.mxu0 0
    %1625 = vmatprep.subr.bf16.mxu0 0
    %1626 = vmatpush1.bf16.msra.mxu0 0
    %1627 = vmatprep.subr.bf16.mxu0 0
    %1628 = vmatpush1.bf16.msra.mxu0 %v1608
    %1629 = vmatprep.subr.bf16.mxu0 0
    %1630 = vmatpush2.bf16.msra.mxu0 0
    %1631 = vmatprep.subr.bf16.mxu0 0
    %1632 = vmatpush2.bf16.msra.mxu0 0
    %1633 = vmatprep.subr.bf16.mxu0 0
    %1634 = vmatpush2.bf16.msra.mxu0 0
    %1635 = vmatprep.subr.bf16.mxu0 0
    %1636 = vmatpush2.bf16.msra.mxu0 0
    %1637 = vmatprep.subr.bf16.mxu0 0
    %1638 = vmatpush2.bf16.msra.mxu0 0
    %1639 = vmatprep.subr.bf16.mxu0 0
    %1640 = vmatpush2.bf16.msra.mxu0 0
    %1641 = vmatprep.subr.bf16.mxu0 0
    %1642 = vmatpush2.bf16.msra.mxu0 0
    %1643 = vmatprep.subr.bf16.mxu0 0
    %1644 = vmatpush2.bf16.msra.mxu0 0
    %1645 = vmatprep.mubr.bf16.mxu0 0
    %1646 = vmatmul.mubr.bf16.gmra.mxu0 %v1611
    %v1647 = vpop.f32.mrf.mxu0
    %v1648 = vadd.f32 0.0, %v1647
    %v1649 = vpop.f32.mrf.mxu0
    %v1650 = vpop.f32.mrf.mxu0
    %v1651 = vpop.f32.mrf.mxu0
    %1652 = vdwg.mxu0
    %1654 = vrot.lane.b32.xlu0 %v1488, 96
    %v1655 = vpop.permute.xlu0 %1654
    %v1658 = vsel %vm1581, %v1605, 0
    %1660 = vmatprep.subr.bf16.mxu0 0
    %1661 = vmatpush1.bf16.msra.mxu0 0
    %1662 = vmatprep.subr.bf16.mxu0 0
    %1663 = vmatpush1.bf16.msra.mxu0 0
    %1664 = vmatprep.subr.bf16.mxu0 0
    %1665 = vmatpush1.bf16.msra.mxu0 0
    %1666 = vmatprep.subr.bf16.mxu0 0
    %1667 = vmatpush1.bf16.msra.mxu0 0
    %1668 = vmatprep.subr.bf16.mxu0 0
    %1669 = vmatpush1.bf16.msra.mxu0 0
    %1670 = vmatprep.subr.bf16.mxu0 0
    %1671 = vmatpush1.bf16.msra.mxu0 0
    %1672 = vmatprep.subr.bf16.mxu0 0
    %1673 = vmatpush1.bf16.msra.mxu0 0
    %1674 = vmatprep.subr.bf16.mxu0 0
    %1675 = vmatpush1.bf16.msra.mxu0 %v1655
    %1676 = vmatprep.subr.bf16.mxu0 0
    %1677 = vmatpush2.bf16.msra.mxu0 0
    %1678 = vmatprep.subr.bf16.mxu0 0
    %1679 = vmatpush2.bf16.msra.mxu0 0
    %1680 = vmatprep.subr.bf16.mxu0 0
    %1681 = vmatpush2.bf16.msra.mxu0 0
    %1682 = vmatprep.subr.bf16.mxu0 0
    %1683 = vmatpush2.bf16.msra.mxu0 0
    %1684 = vmatprep.subr.bf16.mxu0 0
    %1685 = vmatpush2.bf16.msra.mxu0 0
    %1686 = vmatprep.subr.bf16.mxu0 0
    %1687 = vmatpush2.bf16.msra.mxu0 0
    %1688 = vmatprep.subr.bf16.mxu0 0
    %1689 = vmatpush2.bf16.msra.mxu0 0
    %1690 = vmatprep.subr.bf16.mxu0 0
    %1691 = vmatpush2.bf16.msra.mxu0 0
    %1692 = vmatprep.mubr.bf16.mxu0 0
    %1693 = vmatmul.mubr.bf16.gmra.mxu0 %v1658
    %v1694 = vpop.f32.mrf.mxu0
    %v1695 = vadd.f32 0.0, %v1694
    %v1696 = vpop.f32.mrf.mxu0
    %v1697 = vpop.f32.mrf.mxu0
    %v1698 = vpop.f32.mrf.mxu0
    %1699 = vdwg.mxu0
    %1700 = vst.msk [vmem:[#allocation2] sm:$0xff] %vm292, %v1648
    %1701 = vst.msk [vmem:[#allocation2 + $0x8] sm:$0xff] %vm292, %v1695
    %1703 = vrot.lane.b32.xlu0 %v1485, 120
    %v1704 = vpop.permute.xlu0 %1703
    %1705 = vrot.lane.b32.xlu0 %v1487, 120
    %v1706 = vpop.permute.xlu0 %1705
    %v1708 = vsel %vm292, %v1704, 0
    %v1711 = vsel %vm292, %v1706, 0
    %1713 = vmatprep.subr.bf16.mxu0 0
    %1714 = vmatpush1.bf16.xpose.msra.mxu0 0
    %1715 = vmatprep.subr.bf16.mxu0 0
    %1716 = vmatpush1.bf16.xpose.msra.mxu0 0
    %1717 = vmatprep.subr.bf16.mxu0 0
    %1718 = vmatpush1.bf16.xpose.msra.mxu0 0
    %1719 = vmatprep.subr.bf16.mxu0 0
    %1720 = vmatpush1.bf16.xpose.msra.mxu0 0
    %1721 = vmatprep.subr.bf16.mxu0 0
    %1722 = vmatpush1.bf16.xpose.msra.mxu0 0
    %1723 = vmatprep.subr.bf16.mxu0 0
    %1724 = vmatpush1.bf16.xpose.msra.mxu0 0
    %1725 = vmatprep.subr.bf16.mxu0 0
    %1726 = vmatpush1.bf16.xpose.msra.mxu0 0
    %1727 = vmatprep.subr.bf16.mxu0 0
    %1728 = vmatpush1.bf16.xpose.msra.mxu0 %v1711
    %1729 = vmatprep.subr.bf16.mxu0 0
    %1730 = vmatpush2.bf16.xpose.msra.mxu0 0
    %1731 = vmatprep.subr.bf16.mxu0 0
    %1732 = vmatpush2.bf16.xpose.msra.mxu0 0
    %1733 = vmatprep.subr.bf16.mxu0 0
    %1734 = vmatpush2.bf16.xpose.msra.mxu0 0
    %1735 = vmatprep.subr.bf16.mxu0 0
    %1736 = vmatpush2.bf16.xpose.msra.mxu0 0
    %1737 = vmatprep.subr.bf16.mxu0 0
    %1738 = vmatpush2.bf16.xpose.msra.mxu0 0
    %1739 = vmatprep.subr.bf16.mxu0 0
    %1740 = vmatpush2.bf16.xpose.msra.mxu0 0
    %1741 = vmatprep.subr.bf16.mxu0 0
    %1742 = vmatpush2.bf16.xpose.msra.mxu0 0
    %1743 = vmatprep.subr.bf16.mxu0 0
    %1744 = vmatpush2.bf16.xpose.msra.mxu0 0
    %1745 = vmatprep.mubr.bf16.mxu0 0
    %1746 = vmatmul.mubr.bf16.gmra.mxu0 %v1708
    %v1747 = vpop.f32.mrf.mxu0
    %v1748 = vadd.f32 %v1483, %v1747
    %v1749 = vpop.f32.mrf.mxu0
    %v1750 = vpop.f32.mrf.mxu0
    %v1751 = vpop.f32.mrf.mxu0
    %1752 = vdwg.mxu0
    %1754 = vrot.lane.b32.xlu0 %v1486, 120
    %v1755 = vpop.permute.xlu0 %1754
    %1756 = vrot.lane.b32.xlu0 %v1488, 120
    %v1757 = vpop.permute.xlu0 %1756
    %v1759 = vsel %vm292, %v1755, 0
    %v1762 = vsel %vm292, %v1757, 0
    %1764 = vmatprep.subr.bf16.mxu0 0
    %1765 = vmatpush1.bf16.xpose.msra.mxu0 0
    %1766 = vmatprep.subr.bf16.mxu0 0
    %1767 = vmatpush1.bf16.xpose.msra.mxu0 0
    %1768 = vmatprep.subr.bf16.mxu0 0
    %1769 = vmatpush1.bf16.xpose.msra.mxu0 0
    %1770 = vmatprep.subr.bf16.mxu0 0
    %1771 = vmatpush1.bf16.xpose.msra.mxu0 0
    %1772 = vmatprep.subr.bf16.mxu0 0
    %1773 = vmatpush1.bf16.xpose.msra.mxu0 0
    %1774 = vmatprep.subr.bf16.mxu0 0
    %1775 = vmatpush1.bf16.xpose.msra.mxu0 0
    %1776 = vmatprep.subr.bf16.mxu0 0
    %1777 = vmatpush1.bf16.xpose.msra.mxu0 0
    %1778 = vmatprep.subr.bf16.mxu0 0
    %1779 = vmatpush1.bf16.xpose.msra.mxu0 %v1762
    %1780 = vmatprep.subr.bf16.mxu0 0
    %1781 = vmatpush2.bf16.xpose.msra.mxu0 0
    %1782 = vmatprep.subr.bf16.mxu0 0
    %1783 = vmatpush2.bf16.xpose.msra.mxu0 0
    %1784 = vmatprep.subr.bf16.mxu0 0
    %1785 = vmatpush2.bf16.xpose.msra.mxu0 0
    %1786 = vmatprep.subr.bf16.mxu0 0
    %1787 = vmatpush2.bf16.xpose.msra.mxu0 0
    %1788 = vmatprep.subr.bf16.mxu0 0
    %1789 = vmatpush2.bf16.xpose.msra.mxu0 0
    %1790 = vmatprep.subr.bf16.mxu0 0
    %1791 = vmatpush2.bf16.xpose.msra.mxu0 0
    %1792 = vmatprep.subr.bf16.mxu0 0
    %1793 = vmatpush2.bf16.xpose.msra.mxu0 0
    %1794 = vmatprep.subr.bf16.mxu0 0
    %1795 = vmatpush2.bf16.xpose.msra.mxu0 0
    %1796 = vmatprep.mubr.bf16.mxu0 0
    %1797 = vmatmul.mubr.bf16.gmra.mxu0 %v1759
    %v1798 = vpop.f32.mrf.mxu0
    %v1799 = vadd.f32 %v1484, %v1798
    %v1800 = vpop.f32.mrf.mxu0
    %v1801 = vpop.f32.mrf.mxu0
    %v1802 = vpop.f32.mrf.mxu0
    %1803 = vdwg.mxu0
    %v1804 = vsel %vm1581, %v1748, -inf
    %1805 = vmax.xlane.f32.xlu0 %v1804
    %v1806 = vpop.xlane.xlu0 %1805
    %v1807 = vsel %vm1581, %v1799, -inf
    %1808 = vmax.xlane.f32.xlu0 %v1807
    %v1809 = vpop.xlane.xlu0 %1808
    %v1810 = vsub.f32 %v1748, %v1806
    %v1811 = vsub.f32 %v1799, %v1809
    %v1812 = vmul.f32 %v1810, 1.442695
    %v1813 = vpow.pop %v1812
    %v1814 = vmul.f32 %v1811, 1.442695
    %v1815 = vpow.pop %v1814
    %v1816 = vsel %vm1581, %v1813, 0.0
    %1817 = vadd.xlane.f32.xlu0 %v1816
    %v1818 = vpop.xlane.xlu0 %1817
    %v1819 = vsel %vm1581, %v1815, 0.0
    %1820 = vadd.xlane.f32.xlu0 %v1819
    %v1821 = vpop.xlane.xlu0 %1820
    %v1822 = vrcp.pop %v1818
    %v1823 = vrcp.pop %v1821
    %v1824 = vmul.f32 %v1813, %v1822
    %v1825 = vmul.f32 %v1815, %v1823
    %v1826 = vpack.c.bf16 %v1824, %v1824
    %v1827 = vpack.c.bf16 %v1825, %v1825
    %1828 = vrot.lane.b32.xlu0 %v1487, 88
    %v1829 = vpop.permute.xlu0 %1828
    %v1832 = vsel %vm1581, %v1826, 0
    %1834 = vmatprep.subr.bf16.mxu0 0
    %1835 = vmatpush1.bf16.msra.mxu0 0
    %1836 = vmatprep.subr.bf16.mxu0 0
    %1837 = vmatpush1.bf16.msra.mxu0 0
    %1838 = vmatprep.subr.bf16.mxu0 0
    %1839 = vmatpush1.bf16.msra.mxu0 0
    %1840 = vmatprep.subr.bf16.mxu0 0
    %1841 = vmatpush1.bf16.msra.mxu0 0
    %1842 = vmatprep.subr.bf16.mxu0 0
    %1843 = vmatpush1.bf16.msra.mxu0 0
    %1844 = vmatprep.subr.bf16.mxu0 0
    %1845 = vmatpush1.bf16.msra.mxu0 0
    %1846 = vmatprep.subr.bf16.mxu0 0
    %1847 = vmatpush1.bf16.msra.mxu0 0
    %1848 = vmatprep.subr.bf16.mxu0 0
    %1849 = vmatpush1.bf16.msra.mxu0 %v1829
    %1850 = vmatprep.subr.bf16.mxu0 0
    %1851 = vmatpush2.bf16.msra.mxu0 0
    %1852 = vmatprep.subr.bf16.mxu0 0
    %1853 = vmatpush2.bf16.msra.mxu0 0
    %1854 = vmatprep.subr.bf16.mxu0 0
    %1855 = vmatpush2.bf16.msra.mxu0 0
    %1856 = vmatprep.subr.bf16.mxu0 0
    %1857 = vmatpush2.bf16.msra.mxu0 0
    %1858 = vmatprep.subr.bf16.mxu0 0
    %1859 = vmatpush2.bf16.msra.mxu0 0
    %1860 = vmatprep.subr.bf16.mxu0 0
    %1861 = vmatpush2.bf16.msra.mxu0 0
    %1862 = vmatprep.subr.bf16.mxu0 0
    %1863 = vmatpush2.bf16.msra.mxu0 0
    %1864 = vmatprep.subr.bf16.mxu0 0
    %1865 = vmatpush2.bf16.msra.mxu0 0
    %1866 = vmatprep.mubr.bf16.mxu0 0
    %1867 = vmatmul.mubr.bf16.gmra.mxu0 %v1832
    %v1868 = vpop.f32.mrf.mxu0
    %v1869 = vadd.f32 0.0, %v1868
    %v1870 = vpop.f32.mrf.mxu0
    %v1871 = vpop.f32.mrf.mxu0
    %v1872 = vpop.f32.mrf.mxu0
    %1873 = vdwg.mxu0
    %1874 = vrot.lane.b32.xlu0 %v1488, 88
    %v1875 = vpop.permute.xlu0 %1874
    %v1878 = vsel %vm1581, %v1827, 0
    %1880 = vmatprep.subr.bf16.mxu0 0
    %1881 = vmatpush1.bf16.msra.mxu0 0
    %1882 = vmatprep.subr.bf16.mxu0 0
    %1883 = vmatpush1.bf16.msra.mxu0 0
    %1884 = vmatprep.subr.bf16.mxu0 0
    %1885 = vmatpush1.bf16.msra.mxu0 0
    %1886 = vmatprep.subr.bf16.mxu0 0
    %1887 = vmatpush1.bf16.msra.mxu0 0
    %1888 = vmatprep.subr.bf16.mxu0 0
    %1889 = vmatpush1.bf16.msra.mxu0 0
    %1890 = vmatprep.subr.bf16.mxu0 0
    %1891 = vmatpush1.bf16.msra.mxu0 0
    %1892 = vmatprep.subr.bf16.mxu0 0
    %1893 = vmatpush1.bf16.msra.mxu0 0
    %1894 = vmatprep.subr.bf16.mxu0 0
    %1895 = vmatpush1.bf16.msra.mxu0 %v1875
    %1896 = vmatprep.subr.bf16.mxu0 0
    %1897 = vmatpush2.bf16.msra.mxu0 0
    %1898 = vmatprep.subr.bf16.mxu0 0
    %1899 = vmatpush2.bf16.msra.mxu0 0
    %1900 = vmatprep.subr.bf16.mxu0 0
    %1901 = vmatpush2.bf16.msra.mxu0 0
    %1902 = vmatprep.subr.bf16.mxu0 0
    %1903 = vmatpush2.bf16.msra.mxu0 0
    %1904 = vmatprep.subr.bf16.mxu0 0
    %1905 = vmatpush2.bf16.msra.mxu0 0
    %1906 = vmatprep.subr.bf16.mxu0 0
    %1907 = vmatpush2.bf16.msra.mxu0 0
    %1908 = vmatprep.subr.bf16.mxu0 0
    %1909 = vmatpush2.bf16.msra.mxu0 0
    %1910 = vmatprep.subr.bf16.mxu0 0
    %1911 = vmatpush2.bf16.msra.mxu0 0
    %1912 = vmatprep.mubr.bf16.mxu0 0
    %1913 = vmatmul.mubr.bf16.gmra.mxu0 %v1878
    %v1914 = vpop.f32.mrf.mxu0
    %v1915 = vadd.f32 0.0, %v1914
    %v1916 = vpop.f32.mrf.mxu0
    %v1917 = vpop.f32.mrf.mxu0
    %v1918 = vpop.f32.mrf.mxu0
    %1919 = vdwg.mxu0
    %1922 = vrot.lane.b32.xlu0 %v1869, 8
    %v1923 = vpop.permute.xlu0 %1922
    %1924 = vrot.lane.b32.xlu0 %v1915, 8
    %v1925 = vpop.permute.xlu0 %1924
    %1928 = vst.msk [vmem:[#allocation2] sm:$0xff] %vm739, %v1923
    %1929 = vst.msk [vmem:[#allocation2 + $0x8] sm:$0xff] %vm739, %v1925
    %1930 = vrot.lane.b32.xlu0 %v1485, 112
    %v1931 = vpop.permute.xlu0 %1930
    %1932 = vrot.lane.b32.xlu0 %v1487, 112
    %v1933 = vpop.permute.xlu0 %1932
    %v1935 = vsel %vm292, %v1931, 0
    %v1938 = vsel %vm292, %v1933, 0
    %1940 = vmatprep.subr.bf16.mxu0 0
    %1941 = vmatpush1.bf16.xpose.msra.mxu0 0
    %1942 = vmatprep.subr.bf16.mxu0 0
    %1943 = vmatpush1.bf16.xpose.msra.mxu0 0
    %1944 = vmatprep.subr.bf16.mxu0 0
    %1945 = vmatpush1.bf16.xpose.msra.mxu0 0
    %1946 = vmatprep.subr.bf16.mxu0 0
    %1947 = vmatpush1.bf16.xpose.msra.mxu0 0
    %1948 = vmatprep.subr.bf16.mxu0 0
    %1949 = vmatpush1.bf16.xpose.msra.mxu0 0
    %1950 = vmatprep.subr.bf16.mxu0 0
    %1951 = vmatpush1.bf16.xpose.msra.mxu0 0
    %1952 = vmatprep.subr.bf16.mxu0 0
    %1953 = vmatpush1.bf16.xpose.msra.mxu0 0
    %1954 = vmatprep.subr.bf16.mxu0 0
    %1955 = vmatpush1.bf16.xpose.msra.mxu0 %v1938
    %1956 = vmatprep.subr.bf16.mxu0 0
    %1957 = vmatpush2.bf16.xpose.msra.mxu0 0
    %1958 = vmatprep.subr.bf16.mxu0 0
    %1959 = vmatpush2.bf16.xpose.msra.mxu0 0
    %1960 = vmatprep.subr.bf16.mxu0 0
    %1961 = vmatpush2.bf16.xpose.msra.mxu0 0
    %1962 = vmatprep.subr.bf16.mxu0 0
    %1963 = vmatpush2.bf16.xpose.msra.mxu0 0
    %1964 = vmatprep.subr.bf16.mxu0 0
    %1965 = vmatpush2.bf16.xpose.msra.mxu0 0
    %1966 = vmatprep.subr.bf16.mxu0 0
    %1967 = vmatpush2.bf16.xpose.msra.mxu0 0
    %1968 = vmatprep.subr.bf16.mxu0 0
    %1969 = vmatpush2.bf16.xpose.msra.mxu0 0
    %1970 = vmatprep.subr.bf16.mxu0 0
    %1971 = vmatpush2.bf16.xpose.msra.mxu0 0
    %1972 = vmatprep.mubr.bf16.mxu0 0
    %1973 = vmatmul.mubr.bf16.gmra.mxu0 %v1935
    %v1974 = vpop.f32.mrf.mxu0
    %v1975 = vadd.f32 %v1483, %v1974
    %v1976 = vpop.f32.mrf.mxu0
    %v1977 = vpop.f32.mrf.mxu0
    %v1978 = vpop.f32.mrf.mxu0
    %1979 = vdwg.mxu0
    %1980 = vrot.lane.b32.xlu0 %v1486, 112
    %v1981 = vpop.permute.xlu0 %1980
    %1982 = vrot.lane.b32.xlu0 %v1488, 112
    %v1983 = vpop.permute.xlu0 %1982
    %v1985 = vsel %vm292, %v1981, 0
    %v1988 = vsel %vm292, %v1983, 0
    %1990 = vmatprep.subr.bf16.mxu0 0
    %1991 = vmatpush1.bf16.xpose.msra.mxu0 0
    %1992 = vmatprep.subr.bf16.mxu0 0
    %1993 = vmatpush1.bf16.xpose.msra.mxu0 0
    %1994 = vmatprep.subr.bf16.mxu0 0
    %1995 = vmatpush1.bf16.xpose.msra.mxu0 0
    %1996 = vmatprep.subr.bf16.mxu0 0
    %1997 = vmatpush1.bf16.xpose.msra.mxu0 0
    %1998 = vmatprep.subr.bf16.mxu0 0
    %1999 = vmatpush1.bf16.xpose.msra.mxu0 0
    %2000 = vmatprep.subr.bf16.mxu0 0
    %2001 = vmatpush1.bf16.xpose.msra.mxu0 0
    %2002 = vmatprep.subr.bf16.mxu0 0
    %2003 = vmatpush1.bf16.xpose.msra.mxu0 0
    %2004 = vmatprep.subr.bf16.mxu0 0
    %2005 = vmatpush1.bf16.xpose.msra.mxu0 %v1988
    %2006 = vmatprep.subr.bf16.mxu0 0
    %2007 = vmatpush2.bf16.xpose.msra.mxu0 0
    %2008 = vmatprep.subr.bf16.mxu0 0
    %2009 = vmatpush2.bf16.xpose.msra.mxu0 0
    %2010 = vmatprep.subr.bf16.mxu0 0
    %2011 = vmatpush2.bf16.xpose.msra.mxu0 0
    %2012 = vmatprep.subr.bf16.mxu0 0
    %2013 = vmatpush2.bf16.xpose.msra.mxu0 0
    %2014 = vmatprep.subr.bf16.mxu0 0
    %2015 = vmatpush2.bf16.xpose.msra.mxu0 0
    %2016 = vmatprep.subr.bf16.mxu0 0
    %2017 = vmatpush2.bf16.xpose.msra.mxu0 0
    %2018 = vmatprep.subr.bf16.mxu0 0
    %2019 = vmatpush2.bf16.xpose.msra.mxu0 0
    %2020 = vmatprep.subr.bf16.mxu0 0
    %2021 = vmatpush2.bf16.xpose.msra.mxu0 0
    %2022 = vmatprep.mubr.bf16.mxu0 0
    %2023 = vmatmul.mubr.bf16.gmra.mxu0 %v1985
    %v2024 = vpop.f32.mrf.mxu0
    %v2025 = vadd.f32 %v1484, %v2024
    %v2026 = vpop.f32.mrf.mxu0
    %v2027 = vpop.f32.mrf.mxu0
    %v2028 = vpop.f32.mrf.mxu0
    %2029 = vdwg.mxu0
    %v2030 = vsel %vm1581, %v1975, -inf
    %2031 = vmax.xlane.f32.xlu0 %v2030
    %v2032 = vpop.xlane.xlu0 %2031
    %v2033 = vsel %vm1581, %v2025, -inf
    %2034 = vmax.xlane.f32.xlu0 %v2033
    %v2035 = vpop.xlane.xlu0 %2034
    %v2036 = vsub.f32 %v1975, %v2032
    %v2037 = vsub.f32 %v2025, %v2035
    %v2038 = vmul.f32 %v2036, 1.442695
    %v2039 = vpow.pop %v2038
    %v2040 = vmul.f32 %v2037, 1.442695
    %v2041 = vpow.pop %v2040
    %v2042 = vsel %vm1581, %v2039, 0.0
    %2043 = vadd.xlane.f32.xlu0 %v2042
    %v2044 = vpop.xlane.xlu0 %2043
    %v2045 = vsel %vm1581, %v2041, 0.0
    %2046 = vadd.xlane.f32.xlu0 %v2045
    %v2047 = vpop.xlane.xlu0 %2046
    %v2048 = vrcp.pop %v2044
    %v2049 = vrcp.pop %v2047
    %v2050 = vmul.f32 %v2039, %v2048
    %v2051 = vmul.f32 %v2041, %v2049
    %v2052 = vpack.c.bf16 %v2050, %v2050
    %v2053 = vpack.c.bf16 %v2051, %v2051
    %2054 = vrot.lane.b32.xlu0 %v1487, 80
    %v2055 = vpop.permute.xlu0 %2054
    %v2058 = vsel %vm1581, %v2052, 0
    %2060 = vmatprep.subr.bf16.mxu0 0
    %2061 = vmatpush1.bf16.msra.mxu0 0
    %2062 = vmatprep.subr.bf16.mxu0 0
    %2063 = vmatpush1.bf16.msra.mxu0 0
    %2064 = vmatprep.subr.bf16.mxu0 0
    %2065 = vmatpush1.bf16.msra.mxu0 0
    %2066 = vmatprep.subr.bf16.mxu0 0
    %2067 = vmatpush1.bf16.msra.mxu0 0
    %2068 = vmatprep.subr.bf16.mxu0 0
    %2069 = vmatpush1.bf16.msra.mxu0 0
    %2070 = vmatprep.subr.bf16.mxu0 0
    %2071 = vmatpush1.bf16.msra.mxu0 0
    %2072 = vmatprep.subr.bf16.mxu0 0
    %2073 = vmatpush1.bf16.msra.mxu0 0
    %2074 = vmatprep.subr.bf16.mxu0 0
    %2075 = vmatpush1.bf16.msra.mxu0 %v2055
    %2076 = vmatprep.subr.bf16.mxu0 0
    %2077 = vmatpush2.bf16.msra.mxu0 0
    %2078 = vmatprep.subr.bf16.mxu0 0
    %2079 = vmatpush2.bf16.msra.mxu0 0
    %2080 = vmatprep.subr.bf16.mxu0 0
    %2081 = vmatpush2.bf16.msra.mxu0 0
    %2082 = vmatprep.subr.bf16.mxu0 0
    %2083 = vmatpush2.bf16.msra.mxu0 0
    %2084 = vmatprep.subr.bf16.mxu0 0
    %2085 = vmatpush2.bf16.msra.mxu0 0
    %2086 = vmatprep.subr.bf16.mxu0 0
    %2087 = vmatpush2.bf16.msra.mxu0 0
    %2088 = vmatprep.subr.bf16.mxu0 0
    %2089 = vmatpush2.bf16.msra.mxu0 0
    %2090 = vmatprep.subr.bf16.mxu0 0
    %2091 = vmatpush2.bf16.msra.mxu0 0
    %2092 = vmatprep.mubr.bf16.mxu0 0
    %2093 = vmatmul.mubr.bf16.gmra.mxu0 %v2058
    %v2094 = vpop.f32.mrf.mxu0
    %v2095 = vadd.f32 0.0, %v2094
    %v2096 = vpop.f32.mrf.mxu0
    %v2097 = vpop.f32.mrf.mxu0
    %v2098 = vpop.f32.mrf.mxu0
    %2099 = vdwg.mxu0
    %2100 = vrot.lane.b32.xlu0 %v1488, 80
    %v2101 = vpop.permute.xlu0 %2100
    %v2104 = vsel %vm1581, %v2053, 0
    %2106 = vmatprep.subr.bf16.mxu0 0
    %2107 = vmatpush1.bf16.msra.mxu0 0
    %2108 = vmatprep.subr.bf16.mxu0 0
    %2109 = vmatpush1.bf16.msra.mxu0 0
    %2110 = vmatprep.subr.bf16.mxu0 0
    %2111 = vmatpush1.bf16.msra.mxu0 0
    %2112 = vmatprep.subr.bf16.mxu0 0
    %2113 = vmatpush1.bf16.msra.mxu0 0
    %2114 = vmatprep.subr.bf16.mxu0 0
    %2115 = vmatpush1.bf16.msra.mxu0 0
    %2116 = vmatprep.subr.bf16.mxu0 0
    %2117 = vmatpush1.bf16.msra.mxu0 0
    %2118 = vmatprep.subr.bf16.mxu0 0
    %2119 = vmatpush1.bf16.msra.mxu0 0
    %2120 = vmatprep.subr.bf16.mxu0 0
    %2121 = vmatpush1.bf16.msra.mxu0 %v2101
    %2122 = vmatprep.subr.bf16.mxu0 0
    %2123 = vmatpush2.bf16.msra.mxu0 0
    %2124 = vmatprep.subr.bf16.mxu0 0
    %2125 = vmatpush2.bf16.msra.mxu0 0
    %2126 = vmatprep.subr.bf16.mxu0 0
    %2127 = vmatpush2.bf16.msra.mxu0 0
    %2128 = vmatprep.subr.bf16.mxu0 0
    %2129 = vmatpush2.bf16.msra.mxu0 0
    %2130 = vmatprep.subr.bf16.mxu0 0
    %2131 = vmatpush2.bf16.msra.mxu0 0
    %2132 = vmatprep.subr.bf16.mxu0 0
    %2133 = vmatpush2.bf16.msra.mxu0 0
    %2134 = vmatprep.subr.bf16.mxu0 0
    %2135 = vmatpush2.bf16.msra.mxu0 0
    %2136 = vmatprep.subr.bf16.mxu0 0
    %2137 = vmatpush2.bf16.msra.mxu0 0
    %2138 = vmatprep.mubr.bf16.mxu0 0
    %2139 = vmatmul.mubr.bf16.gmra.mxu0 %v2104
    %v2140 = vpop.f32.mrf.mxu0
    %v2141 = vadd.f32 0.0, %v2140
    %v2142 = vpop.f32.mrf.mxu0
    %v2143 = vpop.f32.mrf.mxu0
    %v2144 = vpop.f32.mrf.mxu0
    %2145 = vdwg.mxu0
    %2148 = vrot.lane.b32.xlu0 %v2095, 16
    %v2149 = vpop.permute.xlu0 %2148
    %2150 = vrot.lane.b32.xlu0 %v2141, 16
    %v2151 = vpop.permute.xlu0 %2150
    %2154 = vst.msk [vmem:[#allocation2] sm:$0xff] %vm970, %v2149
    %2155 = vst.msk [vmem:[#allocation2 + $0x8] sm:$0xff] %vm970, %v2151
    %2156 = vrot.lane.b32.xlu0 %v1485, 104
    %v2157 = vpop.permute.xlu0 %2156
    %2158 = vrot.lane.b32.xlu0 %v1487, 104
    %v2159 = vpop.permute.xlu0 %2158
    %v2161 = vsel %vm292, %v2157, 0
    %v2164 = vsel %vm292, %v2159, 0
    %2166 = vmatprep.subr.bf16.mxu0 0
    %2167 = vmatpush1.bf16.xpose.msra.mxu0 0
    %2168 = vmatprep.subr.bf16.mxu0 0
    %2169 = vmatpush1.bf16.xpose.msra.mxu0 0
    %2170 = vmatprep.subr.bf16.mxu0 0
    %2171 = vmatpush1.bf16.xpose.msra.mxu0 0
    %2172 = vmatprep.subr.bf16.mxu0 0
    %2173 = vmatpush1.bf16.xpose.msra.mxu0 0
    %2174 = vmatprep.subr.bf16.mxu0 0
    %2175 = vmatpush1.bf16.xpose.msra.mxu0 0
    %2176 = vmatprep.subr.bf16.mxu0 0
    %2177 = vmatpush1.bf16.xpose.msra.mxu0 0
    %2178 = vmatprep.subr.bf16.mxu0 0
    %2179 = vmatpush1.bf16.xpose.msra.mxu0 0
    %2180 = vmatprep.subr.bf16.mxu0 0
    %2181 = vmatpush1.bf16.xpose.msra.mxu0 %v2164
    %2182 = vmatprep.subr.bf16.mxu0 0
    %2183 = vmatpush2.bf16.xpose.msra.mxu0 0
    %2184 = vmatprep.subr.bf16.mxu0 0
    %2185 = vmatpush2.bf16.xpose.msra.mxu0 0
    %2186 = vmatprep.subr.bf16.mxu0 0
    %2187 = vmatpush2.bf16.xpose.msra.mxu0 0
    %2188 = vmatprep.subr.bf16.mxu0 0
    %2189 = vmatpush2.bf16.xpose.msra.mxu0 0
    %2190 = vmatprep.subr.bf16.mxu0 0
    %2191 = vmatpush2.bf16.xpose.msra.mxu0 0
    %2192 = vmatprep.subr.bf16.mxu0 0
    %2193 = vmatpush2.bf16.xpose.msra.mxu0 0
    %2194 = vmatprep.subr.bf16.mxu0 0
    %2195 = vmatpush2.bf16.xpose.msra.mxu0 0
    %2196 = vmatprep.subr.bf16.mxu0 0
    %2197 = vmatpush2.bf16.xpose.msra.mxu0 0
    %2198 = vmatprep.mubr.bf16.mxu0 0
    %2199 = vmatmul.mubr.bf16.gmra.mxu0 %v2161
    %v2200 = vpop.f32.mrf.mxu0
    %v2201 = vadd.f32 %v1483, %v2200
    %v2202 = vpop.f32.mrf.mxu0
    %v2203 = vpop.f32.mrf.mxu0
    %v2204 = vpop.f32.mrf.mxu0
    %2205 = vdwg.mxu0
    %2206 = vrot.lane.b32.xlu0 %v1486, 104
    %v2207 = vpop.permute.xlu0 %2206
    %2208 = vrot.lane.b32.xlu0 %v1488, 104
    %v2209 = vpop.permute.xlu0 %2208
    %v2211 = vsel %vm292, %v2207, 0
    %v2214 = vsel %vm292, %v2209, 0
    %2216 = vmatprep.subr.bf16.mxu0 0
    %2217 = vmatpush1.bf16.xpose.msra.mxu0 0
    %2218 = vmatprep.subr.bf16.mxu0 0
    %2219 = vmatpush1.bf16.xpose.msra.mxu0 0
    %2220 = vmatprep.subr.bf16.mxu0 0
    %2221 = vmatpush1.bf16.xpose.msra.mxu0 0
    %2222 = vmatprep.subr.bf16.mxu0 0
    %2223 = vmatpush1.bf16.xpose.msra.mxu0 0
    %2224 = vmatprep.subr.bf16.mxu0 0
    %2225 = vmatpush1.bf16.xpose.msra.mxu0 0
    %2226 = vmatprep.subr.bf16.mxu0 0
    %2227 = vmatpush1.bf16.xpose.msra.mxu0 0
    %2228 = vmatprep.subr.bf16.mxu0 0
    %2229 = vmatpush1.bf16.xpose.msra.mxu0 0
    %2230 = vmatprep.subr.bf16.mxu0 0
    %2231 = vmatpush1.bf16.xpose.msra.mxu0 %v2214
    %2232 = vmatprep.subr.bf16.mxu0 0
    %2233 = vmatpush2.bf16.xpose.msra.mxu0 0
    %2234 = vmatprep.subr.bf16.mxu0 0
    %2235 = vmatpush2.bf16.xpose.msra.mxu0 0
    %2236 = vmatprep.subr.bf16.mxu0 0
    %2237 = vmatpush2.bf16.xpose.msra.mxu0 0
    %2238 = vmatprep.subr.bf16.mxu0 0
    %2239 = vmatpush2.bf16.xpose.msra.mxu0 0
    %2240 = vmatprep.subr.bf16.mxu0 0
    %2241 = vmatpush2.bf16.xpose.msra.mxu0 0
    %2242 = vmatprep.subr.bf16.mxu0 0
    %2243 = vmatpush2.bf16.xpose.msra.mxu0 0
    %2244 = vmatprep.subr.bf16.mxu0 0
    %2245 = vmatpush2.bf16.xpose.msra.mxu0 0
    %2246 = vmatprep.subr.bf16.mxu0 0
    %2247 = vmatpush2.bf16.xpose.msra.mxu0 0
    %2248 = vmatprep.mubr.bf16.mxu0 0
    %2249 = vmatmul.mubr.bf16.gmra.mxu0 %v2211
    %v2250 = vpop.f32.mrf.mxu0
    %v2251 = vadd.f32 %v1484, %v2250
    %v2252 = vpop.f32.mrf.mxu0
    %v2253 = vpop.f32.mrf.mxu0
    %v2254 = vpop.f32.mrf.mxu0
    %2255 = vdwg.mxu0
    %v2256 = vsel %vm1581, %v2201, -inf
    %2257 = vmax.xlane.f32.xlu0 %v2256
    %v2258 = vpop.xlane.xlu0 %2257
    %v2259 = vsel %vm1581, %v2251, -inf
    %2260 = vmax.xlane.f32.xlu0 %v2259
    %v2261 = vpop.xlane.xlu0 %2260
    %v2262 = vsub.f32 %v2201, %v2258
    %v2263 = vsub.f32 %v2251, %v2261
    %v2264 = vmul.f32 %v2262, 1.442695
    %v2265 = vpow.pop %v2264
    %v2266 = vmul.f32 %v2263, 1.442695
    %v2267 = vpow.pop %v2266
    %v2268 = vsel %vm1581, %v2265, 0.0
    %2269 = vadd.xlane.f32.xlu0 %v2268
    %v2270 = vpop.xlane.xlu0 %2269
    %v2271 = vsel %vm1581, %v2267, 0.0
    %2272 = vadd.xlane.f32.xlu0 %v2271
    %v2273 = vpop.xlane.xlu0 %2272
    %v2274 = vrcp.pop %v2270
    %v2275 = vrcp.pop %v2273
    %v2276 = vmul.f32 %v2265, %v2274
    %v2277 = vmul.f32 %v2267, %v2275
    %v2278 = vpack.c.bf16 %v2276, %v2276
    %v2279 = vpack.c.bf16 %v2277, %v2277
    %2280 = vrot.lane.b32.xlu0 %v1487, 72
    %v2281 = vpop.permute.xlu0 %2280
    %v2284 = vsel %vm1581, %v2278, 0
    %2286 = vmatprep.subr.bf16.mxu0 0
    %2287 = vmatpush1.bf16.msra.mxu0 0
    %2288 = vmatprep.subr.bf16.mxu0 0
    %2289 = vmatpush1.bf16.msra.mxu0 0
    %2290 = vmatprep.subr.bf16.mxu0 0
    %2291 = vmatpush1.bf16.msra.mxu0 0
    %2292 = vmatprep.subr.bf16.mxu0 0
    %2293 = vmatpush1.bf16.msra.mxu0 0
    %2294 = vmatprep.subr.bf16.mxu0 0
    %2295 = vmatpush1.bf16.msra.mxu0 0
    %2296 = vmatprep.subr.bf16.mxu0 0
    %2297 = vmatpush1.bf16.msra.mxu0 0
    %2298 = vmatprep.subr.bf16.mxu0 0
    %2299 = vmatpush1.bf16.msra.mxu0 0
    %2300 = vmatprep.subr.bf16.mxu0 0
    %2301 = vmatpush1.bf16.msra.mxu0 %v2281
    %2302 = vmatprep.subr.bf16.mxu0 0
    %2303 = vmatpush2.bf16.msra.mxu0 0
    %2304 = vmatprep.subr.bf16.mxu0 0
    %2305 = vmatpush2.bf16.msra.mxu0 0
    %2306 = vmatprep.subr.bf16.mxu0 0
    %2307 = vmatpush2.bf16.msra.mxu0 0
    %2308 = vmatprep.subr.bf16.mxu0 0
    %2309 = vmatpush2.bf16.msra.mxu0 0
    %2310 = vmatprep.subr.bf16.mxu0 0
    %2311 = vmatpush2.bf16.msra.mxu0 0
    %2312 = vmatprep.subr.bf16.mxu0 0
    %2313 = vmatpush2.bf16.msra.mxu0 0
    %2314 = vmatprep.subr.bf16.mxu0 0
    %2315 = vmatpush2.bf16.msra.mxu0 0
    %2316 = vmatprep.subr.bf16.mxu0 0
    %2317 = vmatpush2.bf16.msra.mxu0 0
    %2318 = vmatprep.mubr.bf16.mxu0 0
    %2319 = vmatmul.mubr.bf16.gmra.mxu0 %v2284
    %v2320 = vpop.f32.mrf.mxu0
    %v2321 = vadd.f32 0.0, %v2320
    %v2322 = vpop.f32.mrf.mxu0
    %v2323 = vpop.f32.mrf.mxu0
    %v2324 = vpop.f32.mrf.mxu0
    %2325 = vdwg.mxu0
    %2326 = vrot.lane.b32.xlu0 %v1488, 72
    %v2327 = vpop.permute.xlu0 %2326
    %v2330 = vsel %vm1581, %v2279, 0
    %2332 = vmatprep.subr.bf16.mxu0 0
    %2333 = vmatpush1.bf16.msra.mxu0 0
    %2334 = vmatprep.subr.bf16.mxu0 0
    %2335 = vmatpush1.bf16.msra.mxu0 0
    %2336 = vmatprep.subr.bf16.mxu0 0
    %2337 = vmatpush1.bf16.msra.mxu0 0
    %2338 = vmatprep.subr.bf16.mxu0 0
    %2339 = vmatpush1.bf16.msra.mxu0 0
    %2340 = vmatprep.subr.bf16.mxu0 0
    %2341 = vmatpush1.bf16.msra.mxu0 0
    %2342 = vmatprep.subr.bf16.mxu0 0
    %2343 = vmatpush1.bf16.msra.mxu0 0
    %2344 = vmatprep.subr.bf16.mxu0 0
    %2345 = vmatpush1.bf16.msra.mxu0 0
    %2346 = vmatprep.subr.bf16.mxu0 0
    %2347 = vmatpush1.bf16.msra.mxu0 %v2327
    %2348 = vmatprep.subr.bf16.mxu0 0
    %2349 = vmatpush2.bf16.msra.mxu0 0
    %2350 = vmatprep.subr.bf16.mxu0 0
    %2351 = vmatpush2.bf16.msra.mxu0 0
    %2352 = vmatprep.subr.bf16.mxu0 0
    %2353 = vmatpush2.bf16.msra.mxu0 0
    %2354 = vmatprep.subr.bf16.mxu0 0
    %2355 = vmatpush2.bf16.msra.mxu0 0
    %2356 = vmatprep.subr.bf16.mxu0 0
    %2357 = vmatpush2.bf16.msra.mxu0 0
    %2358 = vmatprep.subr.bf16.mxu0 0
    %2359 = vmatpush2.bf16.msra.mxu0 0
    %2360 = vmatprep.subr.bf16.mxu0 0
    %2361 = vmatpush2.bf16.msra.mxu0 0
    %2362 = vmatprep.subr.bf16.mxu0 0
    %2363 = vmatpush2.bf16.msra.mxu0 0
    %2364 = vmatprep.mubr.bf16.mxu0 0
    %2365 = vmatmul.mubr.bf16.gmra.mxu0 %v2330
    %v2366 = vpop.f32.mrf.mxu0
    %v2367 = vadd.f32 0.0, %v2366
    %v2368 = vpop.f32.mrf.mxu0
    %v2369 = vpop.f32.mrf.mxu0
    %v2370 = vpop.f32.mrf.mxu0
    %2371 = vdwg.mxu0
    %2374 = vrot.lane.b32.xlu0 %v2321, 24
    %v2375 = vpop.permute.xlu0 %2374
    %2376 = vrot.lane.b32.xlu0 %v2367, 24
    %v2377 = vpop.permute.xlu0 %2376
    %2380 = vst.msk [vmem:[#allocation2] sm:$0xff] %vm1201, %v2375
    %2381 = vst.msk [vmem:[#allocation2 + $0x8] sm:$0xff] %vm1201, %v2377
    %vm2382 = vcmask 125952
    %2383 = vst.msk [vmem:[%s26] sm:$0xf] %vm2382, %v1604
    %2384 = vst.msk [vmem:[%s26 + $0x4] sm:$0xf] %vm2382, %v1826
    %2385 = vst.msk [vmem:[%s26 + $0x8] sm:$0xf] %vm2382, %v2052
    %2386 = vst.msk [vmem:[%s26 + $0xc] sm:$0xf] %vm2382, %v2278
    %2387 = vst.msk [vmem:[%s26 + $0x10] sm:$0xf] %vm2382, %v1605
    %2388 = vst.msk [vmem:[%s26 + $0x14] sm:$0xf] %vm2382, %v1827
    %2389 = vst.msk [vmem:[%s26 + $0x18] sm:$0xf] %vm2382, %v2053
    %2390 = vst.msk [vmem:[%s26 + $0x1c] sm:$0xf] %vm2382, %v2279
    %v2391 = vld [vmem:[#allocation2] sm:$0xff]
    %v2392 = vld [vmem:[#allocation2 + $0x8] sm:$0xff]
    %v2393 = vld [vmem:[#allocation8] sm:$0xf]
    %v2394 = vld [vmem:[#allocation8 + $0x4] sm:$0xf]
    %v2395 = vld [vmem:[#allocation8 + $0x8] sm:$0xf]
    %v2396 = vld [vmem:[#allocation8 + $0xc] sm:$0xf]
    %v2397 = vpack.c.bf16 %v2392, %v2391
    %v2402 = vunpack.c.l.b16 %v2393
    %v2403 = vunpack.c.l.b16 %v2394
    %v2404 = vunpack.c.l.b16 %v2395
    %v2405 = vunpack.c.l.b16 %v2396
    %v2406 = vpack.c.b16 %v2403, %v2402
    %v2407 = vpack.c.b16 %v2405, %v2404
    %v2411 = vsel %vm173, %v2397, 0
    %2413 = vmatprep.subr.bf16.mxu0 0
    %2414 = vmatpush1.bf16.msra.mxu0 0
    %2415 = vmatprep.subr.bf16.mxu0 0
    %2416 = vmatpush1.bf16.msra.mxu0 0
    %2417 = vmatprep.subr.bf16.mxu0 0
    %2418 = vmatpush1.bf16.msra.mxu0 0
    %2419 = vmatprep.subr.bf16.mxu0 0
    %2420 = vmatpush1.bf16.msra.mxu0 0
    %2421 = vmatprep.subr.bf16.mxu0 0
    %2422 = vmatpush1.bf16.msra.mxu0 0
    %2423 = vmatprep.subr.bf16.mxu0 0
    %2424 = vmatpush1.bf16.msra.mxu0 0
    %2425 = vmatprep.subr.bf16.mxu0 0
    %2426 = vmatpush1.bf16.msra.mxu0 %v2407
    %2427 = vmatprep.subr.bf16.mxu0 0
    %2428 = vmatpush1.bf16.msra.mxu0 %v2406
    %2429 = vmatprep.subr.bf16.mxu0 0
    %2430 = vmatpush2.bf16.msra.mxu0 0
    %2431 = vmatprep.subr.bf16.mxu0 0
    %2432 = vmatpush2.bf16.msra.mxu0 0
    %2433 = vmatprep.subr.bf16.mxu0 0
    %2434 = vmatpush2.bf16.msra.mxu0 0
    %2435 = vmatprep.subr.bf16.mxu0 0
    %2436 = vmatpush2.bf16.msra.mxu0 0
    %2437 = vmatprep.subr.bf16.mxu0 0
    %2438 = vmatpush2.bf16.msra.mxu0 0
    %2439 = vmatprep.subr.bf16.mxu0 0
    %2440 = vmatpush2.bf16.msra.mxu0 0
    %2441 = vmatprep.subr.bf16.mxu0 0
    %2442 = vmatpush2.bf16.msra.mxu0 0
    %2443 = vmatprep.subr.bf16.mxu0 0
    %2444 = vmatpush2.bf16.msra.mxu0 0
    %2445 = vmatprep.mubr.bf16.mxu0 0
    %2446 = vmatmul.mubr.bf16.gmra.mxu0 %v2411
    %v2447 = vpop.f32.mrf.mxu0
    %v2448 = vadd.f32 0.0, %v2447
    %v2449 = vpop.f32.mrf.mxu0
    %v2450 = vpop.f32.mrf.mxu0
    %v2451 = vadd.f32 0.0, %v2450
    %v2452 = vpop.f32.mrf.mxu0
    %2453 = vdwg.mxu0
    %v2454 = vadd.f32 %v1285, %v2448
    %v2455 = vadd.f32 %v1286, %v2451
    %v2456 = vld [vmem:[%s17] sm:$0x1]
    %v2458 = vlaneseq
    %v2459 = vshrl.u32 %v2458, 7
    %v2460 = vsub.s32 0, %v2459
    %v2461 = vrot.slane %v2456, %v2460
    %v2463 = vadd.f32 %v2454, %v2461
    %v2464 = vadd.f32 %v2455, %v2461
    %v2465 = vld [vmem:[#allocation9] sm:$0x1]
    %v2466 = vld [vmem:[#allocation11] sm:$0x1]
    %v2467 = vsel %vm173, %v2463, 0.0
    %2468 = vadd.xlane.f32.xlu0 %v2467
    %v2469 = vpop.xlane.xlu0 %2468
    %v2470 = vsel %vm173, %v2464, 0.0
    %2471 = vadd.xlane.f32.xlu0 %v2470
    %v2472 = vpop.xlane.xlu0 %2471
    %v2473 = vmul.f32 %v2469, %v180
    %v2474 = vmul.f32 %v2472, %v180
    %v2475 = vsub.f32 %v2463, %v2473
    %v2476 = vsub.f32 %v2464, %v2474
    %v2477 = vmul.f32 %v2475, %v2475
    %v2478 = vmul.f32 %v2476, %v2476
    %v2479 = vsel %vm173, %v2477, 0.0
    %2480 = vadd.xlane.f32.xlu0 %v2479
    %v2481 = vpop.xlane.xlu0 %2480
    %v2482 = vsel %vm173, %v2478, 0.0
    %2483 = vadd.xlane.f32.xlu0 %v2482
    %v2484 = vpop.xlane.xlu0 %2483
    %v2485 = vmul.f32 %v2481, %v180
    %v2486 = vmul.f32 %v2484, %v180
    %v2487 = vadd.f32 %v2485, 1e-05
    %v2488 = vadd.f32 %v2486, 1e-05
    %v2489 = vrsqrt.pop %v2487
    %v2490 = vrsqrt.pop %v2488
    %v2491 = vmul.f32 %v2475, %v2489
    %v2492 = vmul.f32 %v2476, %v2490
    %v2494 = vlaneseq
    %v2495 = vshrl.u32 %v2494, 7
    %v2496 = vsub.s32 0, %v2495
    %v2497 = vrot.slane %v2465, %v2496
    %v2499 = vmul.f32 %v2491, %v2497
    %v2500 = vmul.f32 %v2492, %v2497
    %v2502 = vlaneseq
    %v2503 = vshrl.u32 %v2502, 7
    %v2504 = vsub.s32 0, %v2503
    %v2505 = vrot.slane %v2466, %v2504
    %v2507 = vadd.f32 %v2499, %v2505
    %v2508 = vadd.f32 %v2500, %v2505
    %v2509 = vlaneseq
    %v2510 = vshrl.u32 %v2509, 7
    %v2511 = vadd.s32 %v2510, 8
    %vm2512 = vcmp.lt.s32.totalorder %v2510, 0
    %v2513 = vsub.s32 0, %v2510
    %v2514 = vsel %vm2512, %v2513, %v2510
    %v2515 = vshrl.u32 %v2514, 3
    %v2516 = vand.u32 %v2514, 7
    %v2517 = vsub.s32 0, %v2516
    %v2518 = vsel %vm2512, %v2517, %v2516
    %vm2519 = vcmp.lt.s32.totalorder %v2511, 0
    %v2520 = vsub.s32 0, %v2511
    %v2521 = vsel %vm2519, %v2520, %v2511
    %v2522 = vshrl.u32 %v2521, 3
    %v2523 = vand.u32 %v2521, 7
    %v2524 = vsub.s32 0, %v2523
    %v2525 = vsel %vm2519, %v2524, %v2523
    %vm2526 = vcmp.ne.s32.totalorder %v2518, 0
    %vm2527 = vcmp.ne.s32.totalorder %v2525, 0
    %vm2528 = vcmp.lt.s32.totalorder %v2518, 0
    %vm2529 = vcmp.lt.s32.totalorder %v2525, 0
    %vm2530 = vmand %vm2528, %vm2526
    %vm2531 = vmand %vm2529, %vm2527
    %v2532 = vadd.s32 %v2518, 8
    %v2533 = vadd.s32 %v2525, 8
    %v2534 = vsel %vm2530, %v2532, %v2518
    %v2535 = vsel %vm2531, %v2533, %v2525
    %v2536 = vrot.slane %v2507, 6
    %v2537 = vrot.slane %v2508, 6
    %vm2538 = vcmp.lt.s32.totalorder %v2510, 2
    %v2539 = vsel %vm2538, %v2536, %v2537
    %v2540 = vsel %vm2538, %v2537, %v2536
    %v2541 = vadd.s32 %v2534, 4294967294
    %v2542 = vadd.s32 %v2535, 4294967294
    %vm2543 = vcmp.ge.s32.totalorder %v2541, 0
    %vm2544 = vcmp.ge.s32.totalorder %v2542, 0
    %vm2545 = vcmp.lt.s32.totalorder %v2541, 8
    %vm2546 = vcmp.lt.s32.totalorder %v2542, 8
    %vm2547 = vmand %vm2543, %vm2545
    %vm2548 = vmand %vm2544, %vm2546
    %v2549 = vsel %vm2547, 1, 0
    %v2550 = vsel %vm2548, 1, 0
    %vm2551 = vcmp.eq.s32.totalorder %v2549, 1
    %vm2552 = vcmp.eq.s32.totalorder %v2550, 1
    %v2553 = vsel %vm2551, %v2540, 0.0
    %v2554 = vsel %vm2552, %v2539, 0.0
    %v2555 = vld [vmem:[%s20] sm:$0xf]
    %v2556 = vld [vmem:[%s20 + $0x4] sm:$0xf]
    %v2557 = vld [vmem:[%s20 + $0x8] sm:$0xf]
    %v2558 = vld [vmem:[%s20 + $0xc] sm:$0xf]
    %v2559 = vpack.c.bf16 %v2554, %v2553
    %v2560 = vrot.slane %v2507, 7
    %v2561 = vrot.slane %v2508, 7
    %vm2562 = vcmp.lt.s32.totalorder %v2510, 1
    %v2563 = vsel %vm2562, %v2560, %v2561
    %v2564 = vsel %vm2562, %v2561, %v2560
    %v2565 = vadd.s32 %v2534, 4294967295
    %v2566 = vadd.s32 %v2535, 4294967295
    %vm2567 = vcmp.ge.s32.totalorder %v2565, 0
    %vm2568 = vcmp.ge.s32.totalorder %v2566, 0
    %vm2569 = vcmp.lt.s32.totalorder %v2565, 8
    %vm2570 = vcmp.lt.s32.totalorder %v2566, 8
    %vm2571 = vmand %vm2567, %vm2569
    %vm2572 = vmand %vm2568, %vm2570
    %v2573 = vsel %vm2571, 1, 0
    %v2574 = vsel %vm2572, 1, 0
    %vm2575 = vcmp.eq.s32.totalorder %v2573, 1
    %vm2576 = vcmp.eq.s32.totalorder %v2574, 1
    %v2577 = vsel %vm2575, %v2564, 0.0
    %v2578 = vsel %vm2576, %v2563, 0.0
    %s2579 = scalar_lea.vmem %s20, 16
    %v2580 = vld [vmem:[%s2579] sm:$0xf]
    %v2581 = vld [vmem:[%s2579 + $0x4] sm:$0xf]
    %v2582 = vld [vmem:[%s2579 + $0x8] sm:$0xf]
    %v2583 = vld [vmem:[%s2579 + $0xc] sm:$0xf]
    %v2584 = vpack.c.bf16 %v2578, %v2577
    %v2589 = vunpack.c.l.b16 %v2580
    %v2590 = vunpack.c.l.b16 %v2581
    %v2591 = vunpack.c.l.b16 %v2582
    %v2592 = vunpack.c.l.b16 %v2583
    %v2593 = vpack.c.b16 %v2590, %v2589
    %v2594 = vpack.c.b16 %v2592, %v2591
    %v2598 = vsel %vm173, %v2584, 0
    %2600 = vmatprep.subr.bf16.mxu0 0
    %2601 = vmatpush1.bf16.msra.mxu0 0
    %2602 = vmatprep.subr.bf16.mxu0 0
    %2603 = vmatpush1.bf16.msra.mxu0 0
    %2604 = vmatprep.subr.bf16.mxu0 0
    %2605 = vmatpush1.bf16.msra.mxu0 0
    %2606 = vmatprep.subr.bf16.mxu0 0
    %2607 = vmatpush1.bf16.msra.mxu0 0
    %2608 = vmatprep.subr.bf16.mxu0 0
    %2609 = vmatpush1.bf16.msra.mxu0 0
    %2610 = vmatprep.subr.bf16.mxu0 0
    %2611 = vmatpush1.bf16.msra.mxu0 0
    %2612 = vmatprep.subr.bf16.mxu0 0
    %2613 = vmatpush1.bf16.msra.mxu0 %v2594
    %2614 = vmatprep.subr.bf16.mxu0 0
    %2615 = vmatpush1.bf16.msra.mxu0 %v2593
    %2616 = vmatprep.subr.bf16.mxu0 0
    %2617 = vmatpush2.bf16.msra.mxu0 0
    %2618 = vmatprep.subr.bf16.mxu0 0
    %2619 = vmatpush2.bf16.msra.mxu0 0
    %2620 = vmatprep.subr.bf16.mxu0 0
    %2621 = vmatpush2.bf16.msra.mxu0 0
    %2622 = vmatprep.subr.bf16.mxu0 0
    %2623 = vmatpush2.bf16.msra.mxu0 0
    %2624 = vmatprep.subr.bf16.mxu0 0
    %2625 = vmatpush2.bf16.msra.mxu0 0
    %2626 = vmatprep.subr.bf16.mxu0 0
    %2627 = vmatpush2.bf16.msra.mxu0 0
    %2628 = vmatprep.subr.bf16.mxu0 0
    %2629 = vmatpush2.bf16.msra.mxu0 0
    %2630 = vmatprep.subr.bf16.mxu0 0
    %2631 = vmatpush2.bf16.msra.mxu0 0
    %2632 = vmatprep.mubr.bf16.mxu0 0
    %2633 = vmatmul.mubr.bf16.gmra.mxu0 %v2598
    %v2634 = vpop.f32.mrf.mxu0
    %v2635 = vadd.f32 0.0, %v2634
    %v2636 = vpop.f32.mrf.mxu0
    %v2637 = vpop.f32.mrf.mxu0
    %v2638 = vadd.f32 0.0, %v2637
    %v2639 = vpop.f32.mrf.mxu0
    %2640 = vdwg.mxu0
    %v2645 = vunpack.c.l.b16 %v2555
    %v2646 = vunpack.c.l.b16 %v2556
    %v2647 = vunpack.c.l.b16 %v2557
    %v2648 = vunpack.c.l.b16 %v2558
    %v2649 = vpack.c.b16 %v2646, %v2645
    %v2650 = vpack.c.b16 %v2648, %v2647
    %v2654 = vsel %vm173, %v2559, 0
    %2656 = vmatprep.subr.bf16.mxu0 0
    %2657 = vmatpush1.bf16.msra.mxu0 0
    %2658 = vmatprep.subr.bf16.mxu0 0
    %2659 = vmatpush1.bf16.msra.mxu0 0
    %2660 = vmatprep.subr.bf16.mxu0 0
    %2661 = vmatpush1.bf16.msra.mxu0 0
    %2662 = vmatprep.subr.bf16.mxu0 0
    %2663 = vmatpush1.bf16.msra.mxu0 0
    %2664 = vmatprep.subr.bf16.mxu0 0
    %2665 = vmatpush1.bf16.msra.mxu0 0
    %2666 = vmatprep.subr.bf16.mxu0 0
    %2667 = vmatpush1.bf16.msra.mxu0 0
    %2668 = vmatprep.subr.bf16.mxu0 0
    %2669 = vmatpush1.bf16.msra.mxu0 %v2650
    %2670 = vmatprep.subr.bf16.mxu0 0
    %2671 = vmatpush1.bf16.msra.mxu0 %v2649
    %2672 = vmatprep.subr.bf16.mxu0 0
    %2673 = vmatpush2.bf16.msra.mxu0 0
    %2674 = vmatprep.subr.bf16.mxu0 0
    %2675 = vmatpush2.bf16.msra.mxu0 0
    %2676 = vmatprep.subr.bf16.mxu0 0
    %2677 = vmatpush2.bf16.msra.mxu0 0
    %2678 = vmatprep.subr.bf16.mxu0 0
    %2679 = vmatpush2.bf16.msra.mxu0 0
    %2680 = vmatprep.subr.bf16.mxu0 0
    %2681 = vmatpush2.bf16.msra.mxu0 0
    %2682 = vmatprep.subr.bf16.mxu0 0
    %2683 = vmatpush2.bf16.msra.mxu0 0
    %2684 = vmatprep.subr.bf16.mxu0 0
    %2685 = vmatpush2.bf16.msra.mxu0 0
    %2686 = vmatprep.subr.bf16.mxu0 0
    %2687 = vmatpush2.bf16.msra.mxu0 0
    %2688 = vmatprep.mubr.bf16.mxu0 0
    %2689 = vmatmul.mubr.bf16.gmra.mxu0 %v2654
    %v2690 = vpop.f32.mrf.mxu0
    %v2691 = vadd.f32 %v2635, %v2690
    %v2692 = vpop.f32.mrf.mxu0
    %v2693 = vpop.f32.mrf.mxu0
    %v2694 = vadd.f32 %v2638, %v2693
    %v2695 = vpop.f32.mrf.mxu0
    %2696 = vdwg.mxu0
    %s2697 = scalar_lea.vmem %s20, 32
    %v2698 = vld [vmem:[%s2697] sm:$0xf]
    %v2699 = vld [vmem:[%s2697 + $0x4] sm:$0xf]
    %v2700 = vld [vmem:[%s2697 + $0x8] sm:$0xf]
    %v2701 = vld [vmem:[%s2697 + $0xc] sm:$0xf]
    %v2702 = vpack.c.bf16 %v2508, %v2507
    %v2707 = vunpack.c.l.b16 %v2698
    %v2708 = vunpack.c.l.b16 %v2699
    %v2709 = vunpack.c.l.b16 %v2700
    %v2710 = vunpack.c.l.b16 %v2701
    %v2711 = vpack.c.b16 %v2708, %v2707
    %v2712 = vpack.c.b16 %v2710, %v2709
    %v2716 = vsel %vm173, %v2702, 0
    %2718 = vmatprep.subr.bf16.mxu0 0
    %2719 = vmatpush1.bf16.msra.mxu0 0
    %2720 = vmatprep.subr.bf16.mxu0 0
    %2721 = vmatpush1.bf16.msra.mxu0 0
    %2722 = vmatprep.subr.bf16.mxu0 0
    %2723 = vmatpush1.bf16.msra.mxu0 0
    %2724 = vmatprep.subr.bf16.mxu0 0
    %2725 = vmatpush1.bf16.msra.mxu0 0
    %2726 = vmatprep.subr.bf16.mxu0 0
    %2727 = vmatpush1.bf16.msra.mxu0 0
    %2728 = vmatprep.subr.bf16.mxu0 0
    %2729 = vmatpush1.bf16.msra.mxu0 0
    %2730 = vmatprep.subr.bf16.mxu0 0
    %2731 = vmatpush1.bf16.msra.mxu0 %v2712
    %2732 = vmatprep.subr.bf16.mxu0 0
    %2733 = vmatpush1.bf16.msra.mxu0 %v2711
    %2734 = vmatprep.subr.bf16.mxu0 0
    %2735 = vmatpush2.bf16.msra.mxu0 0
    %2736 = vmatprep.subr.bf16.mxu0 0
    %2737 = vmatpush2.bf16.msra.mxu0 0
    %2738 = vmatprep.subr.bf16.mxu0 0
    %2739 = vmatpush2.bf16.msra.mxu0 0
    %2740 = vmatprep.subr.bf16.mxu0 0
    %2741 = vmatpush2.bf16.msra.mxu0 0
    %2742 = vmatprep.subr.bf16.mxu0 0
    %2743 = vmatpush2.bf16.msra.mxu0 0
    %2744 = vmatprep.subr.bf16.mxu0 0
    %2745 = vmatpush2.bf16.msra.mxu0 0
    %2746 = vmatprep.subr.bf16.mxu0 0
    %2747 = vmatpush2.bf16.msra.mxu0 0
    %2748 = vmatprep.subr.bf16.mxu0 0
    %2749 = vmatpush2.bf16.msra.mxu0 0
    %2750 = vmatprep.mubr.bf16.mxu0 0
    %2751 = vmatmul.mubr.bf16.gmra.mxu0 %v2716
    %v2752 = vpop.f32.mrf.mxu0
    %v2753 = vadd.f32 0.0, %v2752
    %v2754 = vpop.f32.mrf.mxu0
    %v2755 = vpop.f32.mrf.mxu0
    %v2756 = vadd.f32 0.0, %v2755
    %v2757 = vpop.f32.mrf.mxu0
    %2758 = vdwg.mxu0
    %v2759 = vadd.f32 %v2691, %v2753
    %v2760 = vadd.f32 %v2694, %v2756
    %v2761 = vrot.slane %v2507, 1
    %v2762 = vrot.slane %v2508, 1
    %vm2763 = vcmp.lt.s32.totalorder %v2510, 7
    %v2764 = vsel %vm2763, %v2761, %v2762
    %v2765 = vsel %vm2763, %v2762, %v2761
    %v2766 = vadd.s32 %v2534, 1
    %v2767 = vadd.s32 %v2535, 1
    %vm2768 = vcmp.ge.s32.totalorder %v2766, 0
    %vm2769 = vcmp.ge.s32.totalorder %v2767, 0
    %vm2770 = vcmp.lt.s32.totalorder %v2766, 8
    %vm2771 = vcmp.lt.s32.totalorder %v2767, 8
    %vm2772 = vmand %vm2768, %vm2770
    %vm2773 = vmand %vm2769, %vm2771
    %v2774 = vsel %vm2772, 1, 0
    %v2775 = vsel %vm2773, 1, 0
    %vm2776 = vcmp.eq.s32.totalorder %v2774, 1
    %vm2777 = vcmp.eq.s32.totalorder %v2775, 1
    %v2778 = vsel %vm2776, %v2764, 0.0
    %v2779 = vsel %vm2777, %v2765, 0.0
    %s2780 = scalar_lea.vmem %s20, 48
    %v2781 = vld [vmem:[%s2780] sm:$0xf]
    %v2782 = vld [vmem:[%s2780 + $0x4] sm:$0xf]
    %v2783 = vld [vmem:[%s2780 + $0x8] sm:$0xf]
    %v2784 = vld [vmem:[%s2780 + $0xc] sm:$0xf]
    %v2785 = vpack.c.bf16 %v2779, %v2778
    %v2790 = vunpack.c.l.b16 %v2781
    %v2791 = vunpack.c.l.b16 %v2782
    %v2792 = vunpack.c.l.b16 %v2783
    %v2793 = vunpack.c.l.b16 %v2784
    %v2794 = vpack.c.b16 %v2791, %v2790
    %v2795 = vpack.c.b16 %v2793, %v2792
    %v2799 = vsel %vm173, %v2785, 0
    %2801 = vmatprep.subr.bf16.mxu0 0
    %2802 = vmatpush1.bf16.msra.mxu0 0
    %2803 = vmatprep.subr.bf16.mxu0 0
    %2804 = vmatpush1.bf16.msra.mxu0 0
    %2805 = vmatprep.subr.bf16.mxu0 0
    %2806 = vmatpush1.bf16.msra.mxu0 0
    %2807 = vmatprep.subr.bf16.mxu0 0
    %2808 = vmatpush1.bf16.msra.mxu0 0
    %2809 = vmatprep.subr.bf16.mxu0 0
    %2810 = vmatpush1.bf16.msra.mxu0 0
    %2811 = vmatprep.subr.bf16.mxu0 0
    %2812 = vmatpush1.bf16.msra.mxu0 0
    %2813 = vmatprep.subr.bf16.mxu0 0
    %2814 = vmatpush1.bf16.msra.mxu0 %v2795
    %2815 = vmatprep.subr.bf16.mxu0 0
    %2816 = vmatpush1.bf16.msra.mxu0 %v2794
    %2817 = vmatprep.subr.bf16.mxu0 0
    %2818 = vmatpush2.bf16.msra.mxu0 0
    %2819 = vmatprep.subr.bf16.mxu0 0
    %2820 = vmatpush2.bf16.msra.mxu0 0
    %2821 = vmatprep.subr.bf16.mxu0 0
    %2822 = vmatpush2.bf16.msra.mxu0 0
    %2823 = vmatprep.subr.bf16.mxu0 0
    %2824 = vmatpush2.bf16.msra.mxu0 0
    %2825 = vmatprep.subr.bf16.mxu0 0
    %2826 = vmatpush2.bf16.msra.mxu0 0
    %2827 = vmatprep.subr.bf16.mxu0 0
    %2828 = vmatpush2.bf16.msra.mxu0 0
    %2829 = vmatprep.subr.bf16.mxu0 0
    %2830 = vmatpush2.bf16.msra.mxu0 0
    %2831 = vmatprep.subr.bf16.mxu0 0
    %2832 = vmatpush2.bf16.msra.mxu0 0
    %2833 = vmatprep.mubr.bf16.mxu0 0
    %2834 = vmatmul.mubr.bf16.gmra.mxu0 %v2799
    %v2835 = vpop.f32.mrf.mxu0
    %v2836 = vadd.f32 0.0, %v2835
    %v2837 = vpop.f32.mrf.mxu0
    %v2838 = vpop.f32.mrf.mxu0
    %v2839 = vadd.f32 0.0, %v2838
    %v2840 = vpop.f32.mrf.mxu0
    %2841 = vdwg.mxu0
    %v2842 = vadd.f32 %v2759, %v2836
    %v2843 = vadd.f32 %v2760, %v2839
    %v2844 = vrot.slane %v2507, 2
    %v2845 = vrot.slane %v2508, 2
    %vm2846 = vcmp.lt.s32.totalorder %v2510, 6
    %v2847 = vsel %vm2846, %v2844, %v2845
    %v2848 = vsel %vm2846, %v2845, %v2844
    %v2849 = vadd.s32 %v2534, 2
    %v2850 = vadd.s32 %v2535, 2
    %vm2851 = vcmp.ge.s32.totalorder %v2849, 0
    %vm2852 = vcmp.ge.s32.totalorder %v2850, 0
    %vm2853 = vcmp.lt.s32.totalorder %v2849, 8
    %vm2854 = vcmp.lt.s32.totalorder %v2850, 8
    %vm2855 = vmand %vm2851, %vm2853
    %vm2856 = vmand %vm2852, %vm2854
    %v2857 = vsel %vm2855, 1, 0
    %v2858 = vsel %vm2856, 1, 0
    %vm2859 = vcmp.eq.s32.totalorder %v2857, 1
    %vm2860 = vcmp.eq.s32.totalorder %v2858, 1
    %v2861 = vsel %vm2859, %v2847, 0.0
    %v2862 = vsel %vm2860, %v2848, 0.0
    %s2863 = scalar_lea.vmem %s20, 64
    %v2864 = vld [vmem:[%s2863] sm:$0xf]
    %v2865 = vld [vmem:[%s2863 + $0x4] sm:$0xf]
    %v2866 = vld [vmem:[%s2863 + $0x8] sm:$0xf]
    %v2867 = vld [vmem:[%s2863 + $0xc] sm:$0xf]
    %v2868 = vpack.c.bf16 %v2862, %v2861
    %v2873 = vunpack.c.l.b16 %v2864
    %v2874 = vunpack.c.l.b16 %v2865
    %v2875 = vunpack.c.l.b16 %v2866
    %v2876 = vunpack.c.l.b16 %v2867
    %v2877 = vpack.c.b16 %v2874, %v2873
    %v2878 = vpack.c.b16 %v2876, %v2875
    %v2882 = vsel %vm173, %v2868, 0
    %2884 = vmatprep.subr.bf16.mxu0 0
    %2885 = vmatpush1.bf16.msra.mxu0 0
    %2886 = vmatprep.subr.bf16.mxu0 0
    %2887 = vmatpush1.bf16.msra.mxu0 0
    %2888 = vmatprep.subr.bf16.mxu0 0
    %2889 = vmatpush1.bf16.msra.mxu0 0
    %2890 = vmatprep.subr.bf16.mxu0 0
    %2891 = vmatpush1.bf16.msra.mxu0 0
    %2892 = vmatprep.subr.bf16.mxu0 0
    %2893 = vmatpush1.bf16.msra.mxu0 0
    %2894 = vmatprep.subr.bf16.mxu0 0
    %2895 = vmatpush1.bf16.msra.mxu0 0
    %2896 = vmatprep.subr.bf16.mxu0 0
    %2897 = vmatpush1.bf16.msra.mxu0 %v2878
    %2898 = vmatprep.subr.bf16.mxu0 0
    %2899 = vmatpush1.bf16.msra.mxu0 %v2877
    %2900 = vmatprep.subr.bf16.mxu0 0
    %2901 = vmatpush2.bf16.msra.mxu0 0
    %2902 = vmatprep.subr.bf16.mxu0 0
    %2903 = vmatpush2.bf16.msra.mxu0 0
    %2904 = vmatprep.subr.bf16.mxu0 0
    %2905 = vmatpush2.bf16.msra.mxu0 0
    %2906 = vmatprep.subr.bf16.mxu0 0
    %2907 = vmatpush2.bf16.msra.mxu0 0
    %2908 = vmatprep.subr.bf16.mxu0 0
    %2909 = vmatpush2.bf16.msra.mxu0 0
    %2910 = vmatprep.subr.bf16.mxu0 0
    %2911 = vmatpush2.bf16.msra.mxu0 0
    %2912 = vmatprep.subr.bf16.mxu0 0
    %2913 = vmatpush2.bf16.msra.mxu0 0
    %2914 = vmatprep.subr.bf16.mxu0 0
    %2915 = vmatpush2.bf16.msra.mxu0 0
    %2916 = vmatprep.mubr.bf16.mxu0 0
    %2917 = vmatmul.mubr.bf16.gmra.mxu0 %v2882
    %v2918 = vpop.f32.mrf.mxu0
    %v2919 = vadd.f32 0.0, %v2918
    %v2920 = vpop.f32.mrf.mxu0
    %v2921 = vpop.f32.mrf.mxu0
    %v2922 = vadd.f32 0.0, %v2921
    %v2923 = vpop.f32.mrf.mxu0
    %2924 = vdwg.mxu0
    %v2925 = vadd.f32 %v2842, %v2919
    %v2926 = vadd.f32 %v2843, %v2922
    %v2927 = vld [vmem:[#allocation12] sm:$0x1]
    %v2929 = vlaneseq
    %v2930 = vshrl.u32 %v2929, 7
    %v2931 = vsub.s32 0, %v2930
    %v2932 = vrot.slane %v2927, %v2931
    %v2934 = vadd.f32 %v2925, %v2932
    %v2935 = vadd.f32 %v2926, %v2932
    %v2936 = vmax.f32 %v2934, 0.0
    %v2937 = vmax.f32 %v2935, 0.0
    %v2938 = vld [vmem:[%s22] sm:$0xf]
    %v2939 = vld [vmem:[%s22 + $0x4] sm:$0xf]
    %v2940 = vld [vmem:[%s22 + $0x8] sm:$0xf]
    %v2941 = vld [vmem:[%s22 + $0xc] sm:$0xf]
    %v2942 = vld [vmem:[%s22 + $0x10] sm:$0xf]
    %v2943 = vld [vmem:[%s22 + $0x14] sm:$0xf]
    %v2944 = vld [vmem:[%s22 + $0x18] sm:$0xf]
    %v2945 = vld [vmem:[%s22 + $0x1c] sm:$0xf]
    %v2946 = vpack.c.bf16 %v2937, %v2936
    %v2947 = vld [vmem:[#allocation14] sm:$0x1]
    %v2949 = vlaneseq
    %v2950 = vshrl.u32 %v2949, 7
    %v2951 = vsub.s32 0, %v2950
    %v2952 = vrot.slane %v2947, %v2951
    %v2962 = vunpack.c.l.b16 %v2938
    %v2963 = vunpack.c.l.b16 %v2939
    %v2964 = vunpack.c.l.b16 %v2940
    %v2965 = vunpack.c.l.b16 %v2941
    %v2966 = vunpack.c.l.b16 %v2942
    %v2967 = vunpack.c.l.b16 %v2943
    %v2968 = vunpack.c.l.b16 %v2944
    %v2969 = vunpack.c.l.b16 %v2945
    %v2970 = vpack.c.b16 %v2963, %v2962
    %v2971 = vpack.c.b16 %v2965, %v2964
    %v2972 = vpack.c.b16 %v2967, %v2966
    %v2973 = vpack.c.b16 %v2969, %v2968
    %vm2978 = vcmask 523264
    %v2980 = vsel %vm2978, %v2946, 0
    %2982 = vmatprep.subr.bf16.mxu0 0
    %2983 = vmatpush1.bf16.msra.mxu0 0
    %2984 = vmatprep.subr.bf16.mxu0 0
    %2985 = vmatpush1.bf16.msra.mxu0 0
    %2986 = vmatprep.subr.bf16.mxu0 0
    %2987 = vmatpush1.bf16.msra.mxu0 0
    %2988 = vmatprep.subr.bf16.mxu0 0
    %2989 = vmatpush1.bf16.msra.mxu0 0
    %2990 = vmatprep.subr.bf16.mxu0 0
    %2991 = vmatpush1.bf16.msra.mxu0 %v2973
    %2992 = vmatprep.subr.bf16.mxu0 0
    %2993 = vmatpush1.bf16.msra.mxu0 %v2972
    %2994 = vmatprep.subr.bf16.mxu0 0
    %2995 = vmatpush1.bf16.msra.mxu0 %v2971
    %2996 = vmatprep.subr.bf16.mxu0 0
    %2997 = vmatpush1.bf16.msra.mxu0 %v2970
    %2998 = vmatprep.subr.bf16.mxu0 0
    %2999 = vmatpush2.bf16.msra.mxu0 0
    %3000 = vmatprep.subr.bf16.mxu0 0
    %3001 = vmatpush2.bf16.msra.mxu0 0
    %3002 = vmatprep.subr.bf16.mxu0 0
    %3003 = vmatpush2.bf16.msra.mxu0 0
    %3004 = vmatprep.subr.bf16.mxu0 0
    %3005 = vmatpush2.bf16.msra.mxu0 0
    %3006 = vmatprep.subr.bf16.mxu0 0
    %3007 = vmatpush2.bf16.msra.mxu0 0
    %3008 = vmatprep.subr.bf16.mxu0 0
    %3009 = vmatpush2.bf16.msra.mxu0 0
    %3010 = vmatprep.subr.bf16.mxu0 0
    %3011 = vmatpush2.bf16.msra.mxu0 0
    %3012 = vmatprep.subr.bf16.mxu0 0
    %3013 = vmatpush2.bf16.msra.mxu0 0
    %3014 = vmatprep.mubr.bf16.mxu0 0
    %3015 = vmatmul.mubr.bf16.gmra.mxu0 %v2980
    %v3016 = vpop.f32.mrf.mxu0
    %v3017 = vadd.f32 %v2952, %v3016
    %v3018 = vpop.f32.mrf.mxu0
    %v3019 = vpop.f32.mrf.mxu0
    %v3020 = vadd.f32 %v2952, %v3019
    %v3021 = vpop.f32.mrf.mxu0
    %3022 = vdwg.mxu0
    %v3023 = vadd.f32 %v2463, %v3017
    %v3024 = vadd.f32 %v2464, %v3020
    %v3025 = vpack.c.bf16 %v3023, %v3023
    %v3026 = vpack.c.bf16 %v3024, %v3024
    %vm3027 = vcmask 257024
    %3028 = vst.msk [vmem:[%s24] sm:$0xf] %vm3027, %v3025
    %3029 = vst.msk [vmem:[%s24 + $0x4] sm:$0xf] %vm3027, %v3026
    // Predicated region
    $region126: #{decoder_forward.2} parent=1 // pred_check
      _
    $region127: #{decoder_forward.2} parent=1 // pred_check_branch
      %3031 = sbr.rel (0) target = $region129
    $region128: #{decoder_forward.2} parent=1 // pred_region
      _
    $region129: #{decoder_forward.2} parent=1 // pred_fallthru
      _
    // Predicated region
    $region130: #{decoder_forward.2} parent=1 // pred_check
      _
    $region131: #{decoder_forward.2} parent=1 // pred_check_branch
      %3033 = sbr.rel (0) target = $region133
    $region132: #{decoder_forward.2} parent=1 // pred_region
      %s3035 = ssub.s32 512, 512
      %3036 = vsyncadd [#allocation5], %s3035
      %s3037 = sshll.u32 [#allocation15], 4
      %s3038 = int_to_ptr.vmem [resolvable:$true] %s3037
      %3043 = dma.vmem_to_hbm [thread:$0]  %s3038, 512, %s25, [#allocation5], 64, 64, 4
    $region133: #{decoder_forward.2} parent=1 // pred_fallthru
      _
    // Predicated region
    $region134: #{decoder_forward.2} parent=1 // pred_check
      _
    $region135: #{decoder_forward.2} parent=1 // pred_check_branch
      %3045 = sbr.rel (0) target = $region137
    $region136: #{decoder_forward.2} parent=1 // pred_region
      _
    $region137: #{decoder_forward.2} parent=1 // pred_fallthru
      _
    // Predicated region
    $region138: #{decoder_forward.2} parent=1 // pred_check
      _
    $region139: #{decoder_forward.2} parent=1 // pred_check_branch
      %3047 = sbr.rel (0) target = $region141
    $region140: #{decoder_forward.2} parent=1 // pred_region
      _
    $region141: #{decoder_forward.2} parent=1 // pred_fallthru
      _
    // Predicated region
    $region142: #{decoder_forward.2} parent=1 // pred_check
      _
    $region143: #{decoder_forward.2} parent=1 // pred_check_branch
      %3049 = sbr.rel (0) target = $region145
    $region144: #{decoder_forward.2} parent=1 // pred_region
      %3050 = dma.done [#allocation5], 512
    $region145: #{decoder_forward.2} parent=1 // pred_fallthru
      _
    // Predicated region
    $region146: #{decoder_forward.2} parent=1 // pred_check
      _
    $region147: #{decoder_forward.2} parent=1 // pred_check_branch
      %3052 = sbr.rel (0) target = $region149
    $region148: #{decoder_forward.2} parent=1 // pred_region
      _
    $region149: #{decoder_forward.2} parent=1 // pred_fallthru
      _
    %3053 = vsyncpa [#allocation4], 1
    %3054 = vsyncpa [#allocation7], 1
    %3055 = vsyncpa [#allocation10], 1
    %3056 = vsyncpa [#allocation13], 1
    %3057 = vsyncpa [#allocation5], 1

// kernel: decoder_forward.3
$region0: #{decoder_forward.3}
  #allocation0 [shape = 'u32[]', space=smem, size = 0x4, offset = 0x4, fixed_abs, tag = 'smem constant byte address 0x4 - core index']
  #allocation1 [shape = 'u32[144,128]{1,0:T(1,128)}', space=vmem, size = 0x12000, scoped, tag = 'internal scratch']
  #allocation2 [shape = 'f32[16,32]{1,0:T(8,128)}', space=vmem, size = 0x2000, scoped, tag = 'scratch operand']
  %s0 = inlined_call_operand.vmem [shape: bf16[2,8,32], index: 0, kind: input, shape index: {}]
  %s1 = inlined_call_operand.vmem [shape: f32[2,16,32], index: 1, kind: input, shape index: {}]
  %s2 = inlined_call_operand.vmem [shape: f32[2,1,8,8], index: 2, kind: input, shape index: {}]
  %s3 = inlined_call_operand.vmem [shape: f32[2,1,8,16], index: 3, kind: input, shape index: {}]
  %s4 = inlined_call_operand.vmem [shape: f32[1,32], index: 4, kind: input, shape index: {}]
  %s5 = inlined_call_operand.vmem [shape: f32[1,32], index: 5, kind: input, shape index: {}]
  %s6 = inlined_call_operand.vmem [shape: bf16[32,96], index: 6, kind: input, shape index: {}]
  %s7 = inlined_call_operand.vmem [shape: f32[1,96], index: 7, kind: input, shape index: {}]
  %s8 = inlined_call_operand.vmem [shape: bf16[32,32], index: 8, kind: input, shape index: {}]
  %s9 = inlined_call_operand.vmem [shape: f32[1,32], index: 9, kind: input, shape index: {}]
  %s10 = inlined_call_operand.vmem [shape: f32[1,32], index: 10, kind: input, shape index: {}]
  %s11 = inlined_call_operand.vmem [shape: f32[1,32], index: 11, kind: input, shape index: {}]
  %s12 = inlined_call_operand.vmem [shape: bf16[32,32], index: 12, kind: input, shape index: {}]
  %s13 = inlined_call_operand.vmem [shape: f32[1,32], index: 13, kind: input, shape index: {}]
  %s14 = inlined_call_operand.vmem [shape: bf16[32,64], index: 14, kind: input, shape index: {}]
  %s15 = inlined_call_operand.vmem [shape: f32[1,64], index: 15, kind: input, shape index: {}]
  %s16 = inlined_call_operand.vmem [shape: bf16[32,32], index: 16, kind: input, shape index: {}]
  %s17 = inlined_call_operand.vmem [shape: f32[1,32], index: 17, kind: input, shape index: {}]
  %s18 = inlined_call_operand.vmem [shape: f32[1,32], index: 18, kind: input, shape index: {}]
  %s19 = inlined_call_operand.vmem [shape: f32[1,32], index: 19, kind: input, shape index: {}]
  %s20 = inlined_call_operand.vmem [shape: bf16[5,32,64], index: 20, kind: input, shape index: {}]
  %s21 = inlined_call_operand.vmem [shape: f32[1,64], index: 21, kind: input, shape index: {}]
  %s22 = inlined_call_operand.vmem [shape: bf16[64,32], index: 22, kind: input, shape index: {}]
  %s23 = inlined_call_operand.vmem [shape: f32[1,32], index: 23, kind: input, shape index: {}]
  %s24 = inlined_call_operand.hbm [shape: f32[2,8,32], index: 24, kind: output, shape index: {0}]
  %s25 = inlined_call_operand.hbm [shape: bf16[2,4,8,8], index: 25, kind: output, shape index: {1}]
  %s26 = inlined_call_operand.hbm [shape: bf16[2,4,8,16], index: 26, kind: output, shape index: {2}]
  %27 = xla_tuple %s24, %s25, %s26
  %s28 = sld [smem:[#allocation0]]
  $region122: #{decoder_forward.3} parent=0
    _
  %s30 = ssub.s32 1, %s28
  %s31 = scalar_select 0, %s30, %s28
  $region1: #{decoder_forward.3} parent=0
    #allocation3 [shape = 'u8[8192]{0}', space=vmem, size = 0x2000, scoped, tag = 'output window, operand 0, single buffered']
    #allocation4 [shape = 's32[1]{0}', space=sflag, size = 0x4, scoped, tag = 'scoped memory for decoder_forward.3']
    #allocation5 [shape = 'u8[16384]{0}', space=vmem, size = 0x4000, scoped, tag = 'output window, operand 1, single buffered']
    #allocation6 [shape = 's32[1]{0}', space=sflag, size = 0x4, scoped, tag = 'scoped memory for decoder_forward.3']
    #allocation7 [shape = 'u8[16384]{0}', space=vmem, size = 0x4000, scoped, tag = 'output window, operand 2, single buffered']
    %32 = vsyncpa [#allocation4], 0
    %33 = vsyncpa [#allocation6], 0
    // Predicated region
    $region2: #{decoder_forward.3} parent=1 // pred_check
      _
    $region3: #{decoder_forward.3} parent=1 // pred_check_branch
      %35 = sbr.rel (0) target = $region5
    $region4: #{decoder_forward.3} parent=1 // pred_region
      _
    $region5: #{decoder_forward.3} parent=1 // pred_fallthru
      _
    // Predicated region
    $region6: #{decoder_forward.3} parent=1 // pred_check
      _
    $region7: #{decoder_forward.3} parent=1 // pred_check_branch
      %37 = sbr.rel (0) target = $region9
    $region8: #{decoder_forward.3} parent=1 // pred_region
      _
    $region9: #{decoder_forward.3} parent=1 // pred_fallthru
      _
    // Predicated region
    $region10: #{decoder_forward.3} parent=1 // pred_check
      _
    $region11: #{decoder_forward.3} parent=1 // pred_check_branch
      %39 = sbr.rel (0) target = $region13
    $region12: #{decoder_forward.3} parent=1 // pred_region
      _
    $region13: #{decoder_forward.3} parent=1 // pred_fallthru
      _
    // Predicated region
    $region14: #{decoder_forward.3} parent=1 // pred_check
      _
    $region15: #{decoder_forward.3} parent=1 // pred_check_branch
      %41 = sbr.rel (0) target = $region17
    $region16: #{decoder_forward.3} parent=1 // pred_region
      _
    $region17: #{decoder_forward.3} parent=1 // pred_fallthru
      _
    // Predicated region
    $region18: #{decoder_forward.3} parent=1 // pred_check
      _
    $region19: #{decoder_forward.3} parent=1 // pred_check_branch
      %43 = sbr.rel (0) target = $region21
    $region20: #{decoder_forward.3} parent=1 // pred_region
      _
    $region21: #{decoder_forward.3} parent=1 // pred_fallthru
      _
    // Predicated region
    $region22: #{decoder_forward.3} parent=1 // pred_check
      _
    $region23: #{decoder_forward.3} parent=1 // pred_check_branch
      %45 = sbr.rel (0) target = $region25
    $region24: #{decoder_forward.3} parent=1 // pred_region
      _
    $region25: #{decoder_forward.3} parent=1 // pred_fallthru
      _
    // Predicated region
    $region26: #{decoder_forward.3} parent=1 // pred_check
      _
    $region27: #{decoder_forward.3} parent=1 // pred_check_branch
      %47 = sbr.rel (0) target = $region29
    $region28: #{decoder_forward.3} parent=1 // pred_region
      _
    $region29: #{decoder_forward.3} parent=1 // pred_fallthru
      _
    // Predicated region
    $region30: #{decoder_forward.3} parent=1 // pred_check
      _
    $region31: #{decoder_forward.3} parent=1 // pred_check_branch
      %49 = sbr.rel (0) target = $region33
    $region32: #{decoder_forward.3} parent=1 // pred_region
      _
    $region33: #{decoder_forward.3} parent=1 // pred_fallthru
      _
    // Predicated region
    $region34: #{decoder_forward.3} parent=1 // pred_check
      _
    $region35: #{decoder_forward.3} parent=1 // pred_check_branch
      %51 = sbr.rel (0) target = $region37
    $region36: #{decoder_forward.3} parent=1 // pred_region
      _
    $region37: #{decoder_forward.3} parent=1 // pred_fallthru
      _
    // Predicated region
    $region38: #{decoder_forward.3} parent=1 // pred_check
      _
    $region39: #{decoder_forward.3} parent=1 // pred_check_branch
      %53 = sbr.rel (0) target = $region41
    $region40: #{decoder_forward.3} parent=1 // pred_region
      _
    $region41: #{decoder_forward.3} parent=1 // pred_fallthru
      _
    // Predicated region
    $region42: #{decoder_forward.3} parent=1 // pred_check
      _
    $region43: #{decoder_forward.3} parent=1 // pred_check_branch
      %55 = sbr.rel (0) target = $region45
    $region44: #{decoder_forward.3} parent=1 // pred_region
      _
    $region45: #{decoder_forward.3} parent=1 // pred_fallthru
      _
    // Predicated region
    $region46: #{decoder_forward.3} parent=1 // pred_check
      _
    $region47: #{decoder_forward.3} parent=1 // pred_check_branch
      %57 = sbr.rel (0) target = $region49
    $region48: #{decoder_forward.3} parent=1 // pred_region
      _
    $region49: #{decoder_forward.3} parent=1 // pred_fallthru
      _
    // Predicated region
    $region50: #{decoder_forward.3} parent=1 // pred_check
      _
    $region51: #{decoder_forward.3} parent=1 // pred_check_branch
      %59 = sbr.rel (0) target = $region53
    $region52: #{decoder_forward.3} parent=1 // pred_region
      _
    $region53: #{decoder_forward.3} parent=1 // pred_fallthru
      _
    // Predicated region
    $region54: #{decoder_forward.3} parent=1 // pred_check
      _
    $region55: #{decoder_forward.3} parent=1 // pred_check_branch
      %61 = sbr.rel (0) target = $region57
    $region56: #{decoder_forward.3} parent=1 // pred_region
      _
    $region57: #{decoder_forward.3} parent=1 // pred_fallthru
      _
    // Predicated region
    $region58: #{decoder_forward.3} parent=1 // pred_check
      _
    $region59: #{decoder_forward.3} parent=1 // pred_check_branch
      %63 = sbr.rel (0) target = $region61
    $region60: #{decoder_forward.3} parent=1 // pred_region
      _
    $region61: #{decoder_forward.3} parent=1 // pred_fallthru
      _
    // Predicated region
    $region62: #{decoder_forward.3} parent=1 // pred_check
      _
    $region63: #{decoder_forward.3} parent=1 // pred_check_branch
      %65 = sbr.rel (0) target = $region65
    $region64: #{decoder_forward.3} parent=1 // pred_region
      _
    $region65: #{decoder_forward.3} parent=1 // pred_fallthru
      _
    // Predicated region
    $region66: #{decoder_forward.3} parent=1 // pred_check
      _
    $region67: #{decoder_forward.3} parent=1 // pred_check_branch
      %67 = sbr.rel (0) target = $region69
    $region68: #{decoder_forward.3} parent=1 // pred_region
      _
    $region69: #{decoder_forward.3} parent=1 // pred_fallthru
      _
    // Predicated region
    $region70: #{decoder_forward.3} parent=1 // pred_check
      _
    $region71: #{decoder_forward.3} parent=1 // pred_check_branch
      %69 = sbr.rel (0) target = $region73
    $region72: #{decoder_forward.3} parent=1 // pred_region
      _
    $region73: #{decoder_forward.3} parent=1 // pred_fallthru
      _
    // Predicated region
    $region74: #{decoder_forward.3} parent=1 // pred_check
      _
    $region75: #{decoder_forward.3} parent=1 // pred_check_branch
      %71 = sbr.rel (0) target = $region77
    $region76: #{decoder_forward.3} parent=1 // pred_region
      _
    $region77: #{decoder_forward.3} parent=1 // pred_fallthru
      _
    // Predicated region
    $region78: #{decoder_forward.3} parent=1 // pred_check
      _
    $region79: #{decoder_forward.3} parent=1 // pred_check_branch
      %73 = sbr.rel (0) target = $region81
    $region80: #{decoder_forward.3} parent=1 // pred_region
      _
    $region81: #{decoder_forward.3} parent=1 // pred_fallthru
      _
    // Predicated region
    $region82: #{decoder_forward.3} parent=1 // pred_check
      _
    $region83: #{decoder_forward.3} parent=1 // pred_check_branch
      %75 = sbr.rel (0) target = $region85
    $region84: #{decoder_forward.3} parent=1 // pred_region
      _
    $region85: #{decoder_forward.3} parent=1 // pred_fallthru
      _
    // Predicated region
    $region86: #{decoder_forward.3} parent=1 // pred_check
      _
    $region87: #{decoder_forward.3} parent=1 // pred_check_branch
      %77 = sbr.rel (0) target = $region89
    $region88: #{decoder_forward.3} parent=1 // pred_region
      _
    $region89: #{decoder_forward.3} parent=1 // pred_fallthru
      _
    // Predicated region
    $region90: #{decoder_forward.3} parent=1 // pred_check
      _
    $region91: #{decoder_forward.3} parent=1 // pred_check_branch
      %79 = sbr.rel (0) target = $region93
    $region92: #{decoder_forward.3} parent=1 // pred_region
      _
    $region93: #{decoder_forward.3} parent=1 // pred_fallthru
      _
    // Predicated region
    $region94: #{decoder_forward.3} parent=1 // pred_check
      _
    $region95: #{decoder_forward.3} parent=1 // pred_check_branch
      %81 = sbr.rel (0) target = $region97
    $region96: #{decoder_forward.3} parent=1 // pred_region
      _
    $region97: #{decoder_forward.3} parent=1 // pred_fallthru
      _
    %v83 = vld [vmem:[%s0] sm:$0xf]
    %v84 = vld [vmem:[%s0 + $0x4] sm:$0xf]
    %v85 = vunpack.c.l.bf16 %v83
    %v86 = vunpack.c.l.bf16 %v84
    %v87 = vld [vmem:[%s4] sm:$0x1]
    %v88 = vld [vmem:[%s5] sm:$0x1]
    %vm89 = vcmask 261120
    %v90 = vsel %vm89, %v85, 0.0
    %91 = vadd.xlane.f32.xlu0 %v90
    %v92 = vpop.xlane.xlu0 %91
    %v93 = vsel %vm89, %v86, 0.0
    %94 = vadd.xlane.f32.xlu0 %v93
    %v95 = vpop.xlane.xlu0 %94
    %v96 = vrcp.pop 32.0
    %v97 = vmul.f32 %v92, %v96
    %v98 = vmul.f32 %v95, %v96
    %v99 = vsub.f32 %v85, %v97
    %v100 = vsub.f32 %v86, %v98
    %v101 = vmul.f32 %v99, %v99
    %v102 = vmul.f32 %v100, %v100
    %v103 = vsel %vm89, %v101, 0.0
    %104 = vadd.xlane.f32.xlu0 %v103
    %v105 = vpop.xlane.xlu0 %104
    %v106 = vsel %vm89, %v102, 0.0
    %107 = vadd.xlane.f32.xlu0 %v106
    %v108 = vpop.xlane.xlu0 %107
    %v109 = vmul.f32 %v105, %v96
    %v110 = vmul.f32 %v108, %v96
    %v111 = vadd.f32 %v109, 1e-05
    %v112 = vadd.f32 %v110, 1e-05
    %v113 = vrsqrt.pop %v111
    %v114 = vrsqrt.pop %v112
    %v115 = vmul.f32 %v99, %v113
    %v116 = vmul.f32 %v100, %v114
    %v118 = vlaneseq
    %v119 = vshrl.u32 %v118, 7
    %v120 = vsub.s32 0, %v119
    %v121 = vrot.slane %v87, %v120
    %v123 = vmul.f32 %v115, %v121
    %v124 = vmul.f32 %v116, %v121
    %v126 = vlaneseq
    %v127 = vshrl.u32 %v126, 7
    %v128 = vsub.s32 0, %v127
    %v129 = vrot.slane %v88, %v128
    %v131 = vadd.f32 %v123, %v129
    %v132 = vadd.f32 %v124, %v129
    %v133 = vld [vmem:[%s6] sm:$0xf]
    %v134 = vld [vmem:[%s6 + $0x4] sm:$0xf]
    %v135 = vld [vmem:[%s6 + $0x8] sm:$0xf]
    %v136 = vld [vmem:[%s6 + $0xc] sm:$0xf]
    %v137 = vpack.c.bf16 %v132, %v131
    %v138 = vld [vmem:[%s7] sm:$0x1]
    %v140 = vlaneseq
    %v141 = vshrl.u32 %v140, 7
    %v142 = vsub.s32 0, %v141
    %v143 = vrot.slane %v138, %v142
    %v149 = vunpack.c.l.b16 %v133
    %v150 = vunpack.c.l.b16 %v134
    %v151 = vunpack.c.l.b16 %v135
    %v152 = vunpack.c.l.b16 %v136
    %v153 = vpack.c.b16 %v150, %v149
    %v154 = vpack.c.b16 %v152, %v151
    %v158 = vsel %vm89, %v137, 0
    %160 = vmatprep.subr.bf16.mxu0 0
    %161 = vmatpush1.bf16.msra.mxu0 0
    %162 = vmatprep.subr.bf16.mxu0 0
    %163 = vmatpush1.bf16.msra.mxu0 0
    %164 = vmatprep.subr.bf16.mxu0 0
    %165 = vmatpush1.bf16.msra.mxu0 0
    %166 = vmatprep.subr.bf16.mxu0 0
    %167 = vmatpush1.bf16.msra.mxu0 0
    %168 = vmatprep.subr.bf16.mxu0 0
    %169 = vmatpush1.bf16.msra.mxu0 0
    %170 = vmatprep.subr.bf16.mxu0 0
    %171 = vmatpush1.bf16.msra.mxu0 0
    %172 = vmatprep.subr.bf16.mxu0 0
    %173 = vmatpush1.bf16.msra.mxu0 %v154
    %174 = vmatprep.subr.bf16.mxu0 0
    %175 = vmatpush1.bf16.msra.mxu0 %v153
    %176 = vmatprep.subr.bf16.mxu0 0
    %177 = vmatpush2.bf16.msra.mxu0 0
    %178 = vmatprep.subr.bf16.mxu0 0
    %179 = vmatpush2.bf16.msra.mxu0 0
    %180 = vmatprep.subr.bf16.mxu0 0
    %181 = vmatpush2.bf16.msra.mxu0 0
    %182 = vmatprep.subr.bf16.mxu0 0
    %183 = vmatpush2.bf16.msra.mxu0 0
    %184 = vmatprep.subr.bf16.mxu0 0
    %185 = vmatpush2.bf16.msra.mxu0 0
    %186 = vmatprep.subr.bf16.mxu0 0
    %187 = vmatpush2.bf16.msra.mxu0 0
    %188 = vmatprep.subr.bf16.mxu0 0
    %189 = vmatpush2.bf16.msra.mxu0 0
    %190 = vmatprep.subr.bf16.mxu0 0
    %191 = vmatpush2.bf16.msra.mxu0 0
    %192 = vmatprep.mubr.bf16.mxu0 0
    %193 = vmatmul.mubr.bf16.gmra.mxu0 %v158
    %v194 = vpop.f32.mrf.mxu0
    %v195 = vadd.f32 %v143, %v194
    %v196 = vpop.f32.mrf.mxu0
    %v197 = vpop.f32.mrf.mxu0
    %v198 = vadd.f32 %v143, %v197
    %v199 = vpop.f32.mrf.mxu0
    %200 = vdwg.mxu0
    %v201 = vld [vmem:[%s2] sm:$0xff]
    %v202 = vld [vmem:[%s2 + $0x8] sm:$0xff]
    %v203 = vpack.c.bf16 %v195, %v195
    %v204 = vpack.c.bf16 %v198, %v198
    %206 = vrot.lane.b32.xlu0 %v203, 96
    %v207 = vpop.permute.xlu0 %206
    %vm208 = vcmask 64512
    %v210 = vsel %vm208, %v203, 0
    %v213 = vsel %vm208, %v207, 0
    %215 = vmatprep.subr.bf16.mxu0 0
    %216 = vmatpush1.bf16.xpose.msra.mxu0 0
    %217 = vmatprep.subr.bf16.mxu0 0
    %218 = vmatpush1.bf16.xpose.msra.mxu0 0
    %219 = vmatprep.subr.bf16.mxu0 0
    %220 = vmatpush1.bf16.xpose.msra.mxu0 0
    %221 = vmatprep.subr.bf16.mxu0 0
    %222 = vmatpush1.bf16.xpose.msra.mxu0 0
    %223 = vmatprep.subr.bf16.mxu0 0
    %224 = vmatpush1.bf16.xpose.msra.mxu0 0
    %225 = vmatprep.subr.bf16.mxu0 0
    %226 = vmatpush1.bf16.xpose.msra.mxu0 0
    %227 = vmatprep.subr.bf16.mxu0 0
    %228 = vmatpush1.bf16.xpose.msra.mxu0 0
    %229 = vmatprep.subr.bf16.mxu0 0
    %230 = vmatpush1.bf16.xpose.msra.mxu0 %v213
    %231 = vmatprep.subr.bf16.mxu0 0
    %232 = vmatpush2.bf16.xpose.msra.mxu0 0
    %233 = vmatprep.subr.bf16.mxu0 0
    %234 = vmatpush2.bf16.xpose.msra.mxu0 0
    %235 = vmatprep.subr.bf16.mxu0 0
    %236 = vmatpush2.bf16.xpose.msra.mxu0 0
    %237 = vmatprep.subr.bf16.mxu0 0
    %238 = vmatpush2.bf16.xpose.msra.mxu0 0
    %239 = vmatprep.subr.bf16.mxu0 0
    %240 = vmatpush2.bf16.xpose.msra.mxu0 0
    %241 = vmatprep.subr.bf16.mxu0 0
    %242 = vmatpush2.bf16.xpose.msra.mxu0 0
    %243 = vmatprep.subr.bf16.mxu0 0
    %244 = vmatpush2.bf16.xpose.msra.mxu0 0
    %245 = vmatprep.subr.bf16.mxu0 0
    %246 = vmatpush2.bf16.xpose.msra.mxu0 0
    %247 = vmatprep.mubr.bf16.mxu0 0
    %248 = vmatmul.mubr.bf16.gmra.mxu0 %v210
    %v249 = vpop.f32.mrf.mxu0
    %v250 = vadd.f32 %v201, %v249
    %v251 = vpop.f32.mrf.mxu0
    %v252 = vpop.f32.mrf.mxu0
    %v253 = vpop.f32.mrf.mxu0
    %254 = vdwg.mxu0
    %256 = vrot.lane.b32.xlu0 %v204, 96
    %v257 = vpop.permute.xlu0 %256
    %v259 = vsel %vm208, %v204, 0
    %v262 = vsel %vm208, %v257, 0
    %264 = vmatprep.subr.bf16.mxu0 0
    %265 = vmatpush1.bf16.xpose.msra.mxu0 0
    %266 = vmatprep.subr.bf16.mxu0 0
    %267 = vmatpush1.bf16.xpose.msra.mxu0 0
    %268 = vmatprep.subr.bf16.mxu0 0
    %269 = vmatpush1.bf16.xpose.msra.mxu0 0
    %270 = vmatprep.subr.bf16.mxu0 0
    %271 = vmatpush1.bf16.xpose.msra.mxu0 0
    %272 = vmatprep.subr.bf16.mxu0 0
    %273 = vmatpush1.bf16.xpose.msra.mxu0 0
    %274 = vmatprep.subr.bf16.mxu0 0
    %275 = vmatpush1.bf16.xpose.msra.mxu0 0
    %276 = vmatprep.subr.bf16.mxu0 0
    %277 = vmatpush1.bf16.xpose.msra.mxu0 0
    %278 = vmatprep.subr.bf16.mxu0 0
    %279 = vmatpush1.bf16.xpose.msra.mxu0 %v262
    %280 = vmatprep.subr.bf16.mxu0 0
    %281 = vmatpush2.bf16.xpose.msra.mxu0 0
    %282 = vmatprep.subr.bf16.mxu0 0
    %283 = vmatpush2.bf16.xpose.msra.mxu0 0
    %284 = vmatprep.subr.bf16.mxu0 0
    %285 = vmatpush2.bf16.xpose.msra.mxu0 0
    %286 = vmatprep.subr.bf16.mxu0 0
    %287 = vmatpush2.bf16.xpose.msra.mxu0 0
    %288 = vmatprep.subr.bf16.mxu0 0
    %289 = vmatpush2.bf16.xpose.msra.mxu0 0
    %290 = vmatprep.subr.bf16.mxu0 0
    %291 = vmatpush2.bf16.xpose.msra.mxu0 0
    %292 = vmatprep.subr.bf16.mxu0 0
    %293 = vmatpush2.bf16.xpose.msra.mxu0 0
    %294 = vmatprep.subr.bf16.mxu0 0
    %295 = vmatpush2.bf16.xpose.msra.mxu0 0
    %296 = vmatprep.mubr.bf16.mxu0 0
    %297 = vmatmul.mubr.bf16.gmra.mxu0 %v259
    %v298 = vpop.f32.mrf.mxu0
    %v299 = vadd.f32 %v202, %v298
    %v300 = vpop.f32.mrf.mxu0
    %v301 = vpop.f32.mrf.mxu0
    %v302 = vpop.f32.mrf.mxu0
    %303 = vdwg.mxu0
    %v304 = vsel %vm208, %v250, -inf
    %305 = vmax.xlane.f32.xlu0 %v304
    %v306 = vpop.xlane.xlu0 %305
    %v307 = vsel %vm208, %v299, -inf
    %308 = vmax.xlane.f32.xlu0 %v307
    %v309 = vpop.xlane.xlu0 %308
    %v310 = vsub.f32 %v250, %v306
    %v311 = vsub.f32 %v299, %v309
    %v312 = vmul.f32 %v310, 1.442695
    %v313 = vpow.pop %v312
    %v314 = vmul.f32 %v311, 1.442695
    %v315 = vpow.pop %v314
    %v316 = vsel %vm208, %v313, 0.0
    %317 = vadd.xlane.f32.xlu0 %v316
    %v318 = vpop.xlane.xlu0 %317
    %v319 = vsel %vm208, %v315, 0.0
    %320 = vadd.xlane.f32.xlu0 %v319
    %v321 = vpop.xlane.xlu0 %320
    %v322 = vrcp.pop %v318
    %v323 = vrcp.pop %v321
    %v324 = vmul.f32 %v313, %v322
    %v325 = vmul.f32 %v315, %v323
    %v326 = vpack.c.bf16 %v324, %v324
    %v327 = vpack.c.bf16 %v325, %v325
    %328 = vrot.lane.b32.xlu0 %v203, 64
    %v329 = vpop.permute.xlu0 %328
    %v331 = vsel %vm208, %v326, 0
    %vm333 = vcmask 1043456
    %v335 = vsel %vm333, %v329, 0
    %337 = vmatprep.subr.bf16.mxu0 0
    %338 = vmatpush1.bf16.msra.mxu0 0
    %339 = vmatprep.subr.bf16.mxu0 0
    %340 = vmatpush1.bf16.msra.mxu0 0
    %341 = vmatprep.subr.bf16.mxu0 0
    %342 = vmatpush1.bf16.msra.mxu0 0
    %343 = vmatprep.subr.bf16.mxu0 0
    %344 = vmatpush1.bf16.msra.mxu0 0
    %345 = vmatprep.subr.bf16.mxu0 0
    %346 = vmatpush1.bf16.msra.mxu0 0
    %347 = vmatprep.subr.bf16.mxu0 0
    %348 = vmatpush1.bf16.msra.mxu0 0
    %349 = vmatprep.subr.bf16.mxu0 0
    %350 = vmatpush1.bf16.msra.mxu0 0
    %351 = vmatprep.subr.bf16.mxu0 0
    %352 = vmatpush1.bf16.msra.mxu0 %v335
    %353 = vmatprep.subr.bf16.mxu0 0
    %354 = vmatpush2.bf16.msra.mxu0 0
    %355 = vmatprep.subr.bf16.mxu0 0
    %356 = vmatpush2.bf16.msra.mxu0 0
    %357 = vmatprep.subr.bf16.mxu0 0
    %358 = vmatpush2.bf16.msra.mxu0 0
    %359 = vmatprep.subr.bf16.mxu0 0
    %360 = vmatpush2.bf16.msra.mxu0 0
    %361 = vmatprep.subr.bf16.mxu0 0
    %362 = vmatpush2.bf16.msra.mxu0 0
    %363 = vmatprep.subr.bf16.mxu0 0
    %364 = vmatpush2.bf16.msra.mxu0 0
    %365 = vmatprep.subr.bf16.mxu0 0
    %366 = vmatpush2.bf16.msra.mxu0 0
    %367 = vmatprep.subr.bf16.mxu0 0
    %368 = vmatpush2.bf16.msra.mxu0 0
    %369 = vmatprep.mubr.bf16.mxu0 0
    %370 = vmatmul.mubr.bf16.gmra.mxu0 %v331
    %v371 = vpop.f32.mrf.mxu0
    %v372 = vadd.f32 0.0, %v371
    %v373 = vpop.f32.mrf.mxu0
    %v374 = vpop.f32.mrf.mxu0
    %v375 = vpop.f32.mrf.mxu0
    %376 = vdwg.mxu0
    %377 = vrot.lane.b32.xlu0 %v204, 64
    %v378 = vpop.permute.xlu0 %377
    %v380 = vsel %vm208, %v327, 0
    %v383 = vsel %vm333, %v378, 0
    %385 = vmatprep.subr.bf16.mxu0 0
    %386 = vmatpush1.bf16.msra.mxu0 0
    %387 = vmatprep.subr.bf16.mxu0 0
    %388 = vmatpush1.bf16.msra.mxu0 0
    %389 = vmatprep.subr.bf16.mxu0 0
    %390 = vmatpush1.bf16.msra.mxu0 0
    %391 = vmatprep.subr.bf16.mxu0 0
    %392 = vmatpush1.bf16.msra.mxu0 0
    %393 = vmatprep.subr.bf16.mxu0 0
    %394 = vmatpush1.bf16.msra.mxu0 0
    %395 = vmatprep.subr.bf16.mxu0 0
    %396 = vmatpush1.bf16.msra.mxu0 0
    %397 = vmatprep.subr.bf16.mxu0 0
    %398 = vmatpush1.bf16.msra.mxu0 0
    %399 = vmatprep.subr.bf16.mxu0 0
    %400 = vmatpush1.bf16.msra.mxu0 %v383
    %401 = vmatprep.subr.bf16.mxu0 0
    %402 = vmatpush2.bf16.msra.mxu0 0
    %403 = vmatprep.subr.bf16.mxu0 0
    %404 = vmatpush2.bf16.msra.mxu0 0
    %405 = vmatprep.subr.bf16.mxu0 0
    %406 = vmatpush2.bf16.msra.mxu0 0
    %407 = vmatprep.subr.bf16.mxu0 0
    %408 = vmatpush2.bf16.msra.mxu0 0
    %409 = vmatprep.subr.bf16.mxu0 0
    %410 = vmatpush2.bf16.msra.mxu0 0
    %411 = vmatprep.subr.bf16.mxu0 0
    %412 = vmatpush2.bf16.msra.mxu0 0
    %413 = vmatprep.subr.bf16.mxu0 0
    %414 = vmatpush2.bf16.msra.mxu0 0
    %415 = vmatprep.subr.bf16.mxu0 0
    %416 = vmatpush2.bf16.msra.mxu0 0
    %417 = vmatprep.mubr.bf16.mxu0 0
    %418 = vmatmul.mubr.bf16.gmra.mxu0 %v380
    %v419 = vpop.f32.mrf.mxu0
    %v420 = vadd.f32 0.0, %v419
    %v421 = vpop.f32.mrf.mxu0
    %v422 = vpop.f32.mrf.mxu0
    %v423 = vpop.f32.mrf.mxu0
    %424 = vdwg.mxu0
    %425 = vst.msk [vmem:[#allocation2] sm:$0xff] %vm208, %v372
    %426 = vst.msk [vmem:[#allocation2 + $0x8] sm:$0xff] %vm208, %v420
    %427 = vrot.lane.b32.xlu0 %v203, 120
    %v428 = vpop.permute.xlu0 %427
    %429 = vrot.lane.b32.xlu0 %v203, 88
    %v430 = vpop.permute.xlu0 %429
    %v432 = vsel %vm208, %v428, 0
    %v435 = vsel %vm208, %v430, 0
    %437 = vmatprep.subr.bf16.mxu0 0
    %438 = vmatpush1.bf16.xpose.msra.mxu0 0
    %439 = vmatprep.subr.bf16.mxu0 0
    %440 = vmatpush1.bf16.xpose.msra.mxu0 0
    %441 = vmatprep.subr.bf16.mxu0 0
    %442 = vmatpush1.bf16.xpose.msra.mxu0 0
    %443 = vmatprep.subr.bf16.mxu0 0
    %444 = vmatpush1.bf16.xpose.msra.mxu0 0
    %445 = vmatprep.subr.bf16.mxu0 0
    %446 = vmatpush1.bf16.xpose.msra.mxu0 0
    %447 = vmatprep.subr.bf16.mxu0 0
    %448 = vmatpush1.bf16.xpose.msra.mxu0 0
    %449 = vmatprep.subr.bf16.mxu0 0
    %450 = vmatpush1.bf16.xpose.msra.mxu0 0
    %451 = vmatprep.subr.bf16.mxu0 0
    %452 = vmatpush1.bf16.xpose.msra.mxu0 %v435
    %453 = vmatprep.subr.bf16.mxu0 0
    %454 = vmatpush2.bf16.xpose.msra.mxu0 0
    %455 = vmatprep.subr.bf16.mxu0 0
    %456 = vmatpush2.bf16.xpose.msra.mxu0 0
    %457 = vmatprep.subr.bf16.mxu0 0
    %458 = vmatpush2.bf16.xpose.msra.mxu0 0
    %459 = vmatprep.subr.bf16.mxu0 0
    %460 = vmatpush2.bf16.xpose.msra.mxu0 0
    %461 = vmatprep.subr.bf16.mxu0 0
    %462 = vmatpush2.bf16.xpose.msra.mxu0 0
    %463 = vmatprep.subr.bf16.mxu0 0
    %464 = vmatpush2.bf16.xpose.msra.mxu0 0
    %465 = vmatprep.subr.bf16.mxu0 0
    %466 = vmatpush2.bf16.xpose.msra.mxu0 0
    %467 = vmatprep.subr.bf16.mxu0 0
    %468 = vmatpush2.bf16.xpose.msra.mxu0 0
    %469 = vmatprep.mubr.bf16.mxu0 0
    %470 = vmatmul.mubr.bf16.gmra.mxu0 %v432
    %v471 = vpop.f32.mrf.mxu0
    %v472 = vadd.f32 %v201, %v471
    %v473 = vpop.f32.mrf.mxu0
    %v474 = vpop.f32.mrf.mxu0
    %v475 = vpop.f32.mrf.mxu0
    %476 = vdwg.mxu0
    %477 = vrot.lane.b32.xlu0 %v204, 120
    %v478 = vpop.permute.xlu0 %477
    %479 = vrot.lane.b32.xlu0 %v204, 88
    %v480 = vpop.permute.xlu0 %479
    %v482 = vsel %vm208, %v478, 0
    %v485 = vsel %vm208, %v480, 0
    %487 = vmatprep.subr.bf16.mxu0 0
    %488 = vmatpush1.bf16.xpose.msra.mxu0 0
    %489 = vmatprep.subr.bf16.mxu0 0
    %490 = vmatpush1.bf16.xpose.msra.mxu0 0
    %491 = vmatprep.subr.bf16.mxu0 0
    %492 = vmatpush1.bf16.xpose.msra.mxu0 0
    %493 = vmatprep.subr.bf16.mxu0 0
    %494 = vmatpush1.bf16.xpose.msra.mxu0 0
    %495 = vmatprep.subr.bf16.mxu0 0
    %496 = vmatpush1.bf16.xpose.msra.mxu0 0
    %497 = vmatprep.subr.bf16.mxu0 0
    %498 = vmatpush1.bf16.xpose.msra.mxu0 0
    %499 = vmatprep.subr.bf16.mxu0 0
    %500 = vmatpush1.bf16.xpose.msra.mxu0 0
    %501 = vmatprep.subr.bf16.mxu0 0
    %502 = vmatpush1.bf16.xpose.msra.mxu0 %v485
    %503 = vmatprep.subr.bf16.mxu0 0
    %504 = vmatpush2.bf16.xpose.msra.mxu0 0
    %505 = vmatprep.subr.bf16.mxu0 0
    %506 = vmatpush2.bf16.xpose.msra.mxu0 0
    %507 = vmatprep.subr.bf16.mxu0 0
    %508 = vmatpush2.bf16.xpose.msra.mxu0 0
    %509 = vmatprep.subr.bf16.mxu0 0
    %510 = vmatpush2.bf16.xpose.msra.mxu0 0
    %511 = vmatprep.subr.bf16.mxu0 0
    %512 = vmatpush2.bf16.xpose.msra.mxu0 0
    %513 = vmatprep.subr.bf16.mxu0 0
    %514 = vmatpush2.bf16.xpose.msra.mxu0 0
    %515 = vmatprep.subr.bf16.mxu0 0
    %516 = vmatpush2.bf16.xpose.msra.mxu0 0
    %517 = vmatprep.subr.bf16.mxu0 0
    %518 = vmatpush2.bf16.xpose.msra.mxu0 0
    %519 = vmatprep.mubr.bf16.mxu0 0
    %520 = vmatmul.mubr.bf16.gmra.mxu0 %v482
    %v521 = vpop.f32.mrf.mxu0
    %v522 = vadd.f32 %v202, %v521
    %v523 = vpop.f32.mrf.mxu0
    %v524 = vpop.f32.mrf.mxu0
    %v525 = vpop.f32.mrf.mxu0
    %526 = vdwg.mxu0
    %v527 = vsel %vm208, %v472, -inf
    %528 = vmax.xlane.f32.xlu0 %v527
    %v529 = vpop.xlane.xlu0 %528
    %v530 = vsel %vm208, %v522, -inf
    %531 = vmax.xlane.f32.xlu0 %v530
    %v532 = vpop.xlane.xlu0 %531
    %v533 = vsub.f32 %v472, %v529
    %v534 = vsub.f32 %v522, %v532
    %v535 = vmul.f32 %v533, 1.442695
    %v536 = vpow.pop %v535
    %v537 = vmul.f32 %v534, 1.442695
    %v538 = vpow.pop %v537
    %v539 = vsel %vm208, %v536, 0.0
    %540 = vadd.xlane.f32.xlu0 %v539
    %v541 = vpop.xlane.xlu0 %540
    %v542 = vsel %vm208, %v538, 0.0
    %543 = vadd.xlane.f32.xlu0 %v542
    %v544 = vpop.xlane.xlu0 %543
    %v545 = vrcp.pop %v541
    %v546 = vrcp.pop %v544
    %v547 = vmul.f32 %v536, %v545
    %v548 = vmul.f32 %v538, %v546
    %v549 = vpack.c.bf16 %v547, %v547
    %v550 = vpack.c.bf16 %v548, %v548
    %551 = vrot.lane.b32.xlu0 %v203, 56
    %v552 = vpop.permute.xlu0 %551
    %v554 = vsel %vm208, %v549, 0
    %v557 = vsel %vm333, %v552, 0
    %559 = vmatprep.subr.bf16.mxu0 0
    %560 = vmatpush1.bf16.msra.mxu0 0
    %561 = vmatprep.subr.bf16.mxu0 0
    %562 = vmatpush1.bf16.msra.mxu0 0
    %563 = vmatprep.subr.bf16.mxu0 0
    %564 = vmatpush1.bf16.msra.mxu0 0
    %565 = vmatprep.subr.bf16.mxu0 0
    %566 = vmatpush1.bf16.msra.mxu0 0
    %567 = vmatprep.subr.bf16.mxu0 0
    %568 = vmatpush1.bf16.msra.mxu0 0
    %569 = vmatprep.subr.bf16.mxu0 0
    %570 = vmatpush1.bf16.msra.mxu0 0
    %571 = vmatprep.subr.bf16.mxu0 0
    %572 = vmatpush1.bf16.msra.mxu0 0
    %573 = vmatprep.subr.bf16.mxu0 0
    %574 = vmatpush1.bf16.msra.mxu0 %v557
    %575 = vmatprep.subr.bf16.mxu0 0
    %576 = vmatpush2.bf16.msra.mxu0 0
    %577 = vmatprep.subr.bf16.mxu0 0
    %578 = vmatpush2.bf16.msra.mxu0 0
    %579 = vmatprep.subr.bf16.mxu0 0
    %580 = vmatpush2.bf16.msra.mxu0 0
    %581 = vmatprep.subr.bf16.mxu0 0
    %582 = vmatpush2.bf16.msra.mxu0 0
    %583 = vmatprep.subr.bf16.mxu0 0
    %584 = vmatpush2.bf16.msra.mxu0 0
    %585 = vmatprep.subr.bf16.mxu0 0
    %586 = vmatpush2.bf16.msra.mxu0 0
    %587 = vmatprep.subr.bf16.mxu0 0
    %588 = vmatpush2.bf16.msra.mxu0 0
    %589 = vmatprep.subr.bf16.mxu0 0
    %590 = vmatpush2.bf16.msra.mxu0 0
    %591 = vmatprep.mubr.bf16.mxu0 0
    %592 = vmatmul.mubr.bf16.gmra.mxu0 %v554
    %v593 = vpop.f32.mrf.mxu0
    %v594 = vadd.f32 0.0, %v593
    %v595 = vpop.f32.mrf.mxu0
    %v596 = vpop.f32.mrf.mxu0
    %v597 = vpop.f32.mrf.mxu0
    %598 = vdwg.mxu0
    %599 = vrot.lane.b32.xlu0 %v204, 56
    %v600 = vpop.permute.xlu0 %599
    %v602 = vsel %vm208, %v550, 0
    %v605 = vsel %vm333, %v600, 0
    %607 = vmatprep.subr.bf16.mxu0 0
    %608 = vmatpush1.bf16.msra.mxu0 0
    %609 = vmatprep.subr.bf16.mxu0 0
    %610 = vmatpush1.bf16.msra.mxu0 0
    %611 = vmatprep.subr.bf16.mxu0 0
    %612 = vmatpush1.bf16.msra.mxu0 0
    %613 = vmatprep.subr.bf16.mxu0 0
    %614 = vmatpush1.bf16.msra.mxu0 0
    %615 = vmatprep.subr.bf16.mxu0 0
    %616 = vmatpush1.bf16.msra.mxu0 0
    %617 = vmatprep.subr.bf16.mxu0 0
    %618 = vmatpush1.bf16.msra.mxu0 0
    %619 = vmatprep.subr.bf16.mxu0 0
    %620 = vmatpush1.bf16.msra.mxu0 0
    %621 = vmatprep.subr.bf16.mxu0 0
    %622 = vmatpush1.bf16.msra.mxu0 %v605
    %623 = vmatprep.subr.bf16.mxu0 0
    %624 = vmatpush2.bf16.msra.mxu0 0
    %625 = vmatprep.subr.bf16.mxu0 0
    %626 = vmatpush2.bf16.msra.mxu0 0
    %627 = vmatprep.subr.bf16.mxu0 0
    %628 = vmatpush2.bf16.msra.mxu0 0
    %629 = vmatprep.subr.bf16.mxu0 0
    %630 = vmatpush2.bf16.msra.mxu0 0
    %631 = vmatprep.subr.bf16.mxu0 0
    %632 = vmatpush2.bf16.msra.mxu0 0
    %633 = vmatprep.subr.bf16.mxu0 0
    %634 = vmatpush2.bf16.msra.mxu0 0
    %635 = vmatprep.subr.bf16.mxu0 0
    %636 = vmatpush2.bf16.msra.mxu0 0
    %637 = vmatprep.subr.bf16.mxu0 0
    %638 = vmatpush2.bf16.msra.mxu0 0
    %639 = vmatprep.mubr.bf16.mxu0 0
    %640 = vmatmul.mubr.bf16.gmra.mxu0 %v602
    %v641 = vpop.f32.mrf.mxu0
    %v642 = vadd.f32 0.0, %v641
    %v643 = vpop.f32.mrf.mxu0
    %v644 = vpop.f32.mrf.mxu0
    %v645 = vpop.f32.mrf.mxu0
    %646 = vdwg.mxu0
    %649 = vrot.lane.b32.xlu0 %v594, 8
    %v650 = vpop.permute.xlu0 %649
    %651 = vrot.lane.b32.xlu0 %v642, 8
    %v652 = vpop.permute.xlu0 %651
    %vm655 = vcmask 130112
    %656 = vst.msk [vmem:[#allocation2] sm:$0xff] %vm655, %v650
    %657 = vst.msk [vmem:[#allocation2 + $0x8] sm:$0xff] %vm655, %v652
    %658 = vrot.lane.b32.xlu0 %v203, 112
    %v659 = vpop.permute.xlu0 %658
    %660 = vrot.lane.b32.xlu0 %v203, 80
    %v661 = vpop.permute.xlu0 %660
    %v663 = vsel %vm208, %v659, 0
    %v666 = vsel %vm208, %v661, 0
    %668 = vmatprep.subr.bf16.mxu0 0
    %669 = vmatpush1.bf16.xpose.msra.mxu0 0
    %670 = vmatprep.subr.bf16.mxu0 0
    %671 = vmatpush1.bf16.xpose.msra.mxu0 0
    %672 = vmatprep.subr.bf16.mxu0 0
    %673 = vmatpush1.bf16.xpose.msra.mxu0 0
    %674 = vmatprep.subr.bf16.mxu0 0
    %675 = vmatpush1.bf16.xpose.msra.mxu0 0
    %676 = vmatprep.subr.bf16.mxu0 0
    %677 = vmatpush1.bf16.xpose.msra.mxu0 0
    %678 = vmatprep.subr.bf16.mxu0 0
    %679 = vmatpush1.bf16.xpose.msra.mxu0 0
    %680 = vmatprep.subr.bf16.mxu0 0
    %681 = vmatpush1.bf16.xpose.msra.mxu0 0
    %682 = vmatprep.subr.bf16.mxu0 0
    %683 = vmatpush1.bf16.xpose.msra.mxu0 %v666
    %684 = vmatprep.subr.bf16.mxu0 0
    %685 = vmatpush2.bf16.xpose.msra.mxu0 0
    %686 = vmatprep.subr.bf16.mxu0 0
    %687 = vmatpush2.bf16.xpose.msra.mxu0 0
    %688 = vmatprep.subr.bf16.mxu0 0
    %689 = vmatpush2.bf16.xpose.msra.mxu0 0
    %690 = vmatprep.subr.bf16.mxu0 0
    %691 = vmatpush2.bf16.xpose.msra.mxu0 0
    %692 = vmatprep.subr.bf16.mxu0 0
    %693 = vmatpush2.bf16.xpose.msra.mxu0 0
    %694 = vmatprep.subr.bf16.mxu0 0
    %695 = vmatpush2.bf16.xpose.msra.mxu0 0
    %696 = vmatprep.subr.bf16.mxu0 0
    %697 = vmatpush2.bf16.xpose.msra.mxu0 0
    %698 = vmatprep.subr.bf16.mxu0 0
    %699 = vmatpush2.bf16.xpose.msra.mxu0 0
    %700 = vmatprep.mubr.bf16.mxu0 0
    %701 = vmatmul.mubr.bf16.gmra.mxu0 %v663
    %v702 = vpop.f32.mrf.mxu0
    %v703 = vadd.f32 %v201, %v702
    %v704 = vpop.f32.mrf.mxu0
    %v705 = vpop.f32.mrf.mxu0
    %v706 = vpop.f32.mrf.mxu0
    %707 = vdwg.mxu0
    %708 = vrot.lane.b32.xlu0 %v204, 112
    %v709 = vpop.permute.xlu0 %708
    %710 = vrot.lane.b32.xlu0 %v204, 80
    %v711 = vpop.permute.xlu0 %710
    %v713 = vsel %vm208, %v709, 0
    %v716 = vsel %vm208, %v711, 0
    %718 = vmatprep.subr.bf16.mxu0 0
    %719 = vmatpush1.bf16.xpose.msra.mxu0 0
    %720 = vmatprep.subr.bf16.mxu0 0
    %721 = vmatpush1.bf16.xpose.msra.mxu0 0
    %722 = vmatprep.subr.bf16.mxu0 0
    %723 = vmatpush1.bf16.xpose.msra.mxu0 0
    %724 = vmatprep.subr.bf16.mxu0 0
    %725 = vmatpush1.bf16.xpose.msra.mxu0 0
    %726 = vmatprep.subr.bf16.mxu0 0
    %727 = vmatpush1.bf16.xpose.msra.mxu0 0
    %728 = vmatprep.subr.bf16.mxu0 0
    %729 = vmatpush1.bf16.xpose.msra.mxu0 0
    %730 = vmatprep.subr.bf16.mxu0 0
    %731 = vmatpush1.bf16.xpose.msra.mxu0 0
    %732 = vmatprep.subr.bf16.mxu0 0
    %733 = vmatpush1.bf16.xpose.msra.mxu0 %v716
    %734 = vmatprep.subr.bf16.mxu0 0
    %735 = vmatpush2.bf16.xpose.msra.mxu0 0
    %736 = vmatprep.subr.bf16.mxu0 0
    %737 = vmatpush2.bf16.xpose.msra.mxu0 0
    %738 = vmatprep.subr.bf16.mxu0 0
    %739 = vmatpush2.bf16.xpose.msra.mxu0 0
    %740 = vmatprep.subr.bf16.mxu0 0
    %741 = vmatpush2.bf16.xpose.msra.mxu0 0
    %742 = vmatprep.subr.bf16.mxu0 0
    %743 = vmatpush2.bf16.xpose.msra.mxu0 0
    %744 = vmatprep.subr.bf16.mxu0 0
    %745 = vmatpush2.bf16.xpose.msra.mxu0 0
    %746 = vmatprep.subr.bf16.mxu0 0
    %747 = vmatpush2.bf16.xpose.msra.mxu0 0
    %748 = vmatprep.subr.bf16.mxu0 0
    %749 = vmatpush2.bf16.xpose.msra.mxu0 0
    %750 = vmatprep.mubr.bf16.mxu0 0
    %751 = vmatmul.mubr.bf16.gmra.mxu0 %v713
    %v752 = vpop.f32.mrf.mxu0
    %v753 = vadd.f32 %v202, %v752
    %v754 = vpop.f32.mrf.mxu0
    %v755 = vpop.f32.mrf.mxu0
    %v756 = vpop.f32.mrf.mxu0
    %757 = vdwg.mxu0
    %v758 = vsel %vm208, %v703, -inf
    %759 = vmax.xlane.f32.xlu0 %v758
    %v760 = vpop.xlane.xlu0 %759
    %v761 = vsel %vm208, %v753, -inf
    %762 = vmax.xlane.f32.xlu0 %v761
    %v763 = vpop.xlane.xlu0 %762
    %v764 = vsub.f32 %v703, %v760
    %v765 = vsub.f32 %v753, %v763
    %v766 = vmul.f32 %v764, 1.442695
    %v767 = vpow.pop %v766
    %v768 = vmul.f32 %v765, 1.442695
    %v769 = vpow.pop %v768
    %v770 = vsel %vm208, %v767, 0.0
    %771 = vadd.xlane.f32.xlu0 %v770
    %v772 = vpop.xlane.xlu0 %771
    %v773 = vsel %vm208, %v769, 0.0
    %774 = vadd.xlane.f32.xlu0 %v773
    %v775 = vpop.xlane.xlu0 %774
    %v776 = vrcp.pop %v772
    %v777 = vrcp.pop %v775
    %v778 = vmul.f32 %v767, %v776
    %v779 = vmul.f32 %v769, %v777
    %v780 = vpack.c.bf16 %v778, %v778
    %v781 = vpack.c.bf16 %v779, %v779
    %782 = vrot.lane.b32.xlu0 %v203, 48
    %v783 = vpop.permute.xlu0 %782
    %v785 = vsel %vm208, %v780, 0
    %v788 = vsel %vm333, %v783, 0
    %790 = vmatprep.subr.bf16.mxu0 0
    %791 = vmatpush1.bf16.msra.mxu0 0
    %792 = vmatprep.subr.bf16.mxu0 0
    %793 = vmatpush1.bf16.msra.mxu0 0
    %794 = vmatprep.subr.bf16.mxu0 0
    %795 = vmatpush1.bf16.msra.mxu0 0
    %796 = vmatprep.subr.bf16.mxu0 0
    %797 = vmatpush1.bf16.msra.mxu0 0
    %798 = vmatprep.subr.bf16.mxu0 0
    %799 = vmatpush1.bf16.msra.mxu0 0
    %800 = vmatprep.subr.bf16.mxu0 0
    %801 = vmatpush1.bf16.msra.mxu0 0
    %802 = vmatprep.subr.bf16.mxu0 0
    %803 = vmatpush1.bf16.msra.mxu0 0
    %804 = vmatprep.subr.bf16.mxu0 0
    %805 = vmatpush1.bf16.msra.mxu0 %v788
    %806 = vmatprep.subr.bf16.mxu0 0
    %807 = vmatpush2.bf16.msra.mxu0 0
    %808 = vmatprep.subr.bf16.mxu0 0
    %809 = vmatpush2.bf16.msra.mxu0 0
    %810 = vmatprep.subr.bf16.mxu0 0
    %811 = vmatpush2.bf16.msra.mxu0 0
    %812 = vmatprep.subr.bf16.mxu0 0
    %813 = vmatpush2.bf16.msra.mxu0 0
    %814 = vmatprep.subr.bf16.mxu0 0
    %815 = vmatpush2.bf16.msra.mxu0 0
    %816 = vmatprep.subr.bf16.mxu0 0
    %817 = vmatpush2.bf16.msra.mxu0 0
    %818 = vmatprep.subr.bf16.mxu0 0
    %819 = vmatpush2.bf16.msra.mxu0 0
    %820 = vmatprep.subr.bf16.mxu0 0
    %821 = vmatpush2.bf16.msra.mxu0 0
    %822 = vmatprep.mubr.bf16.mxu0 0
    %823 = vmatmul.mubr.bf16.gmra.mxu0 %v785
    %v824 = vpop.f32.mrf.mxu0
    %v825 = vadd.f32 0.0, %v824
    %v826 = vpop.f32.mrf.mxu0
    %v827 = vpop.f32.mrf.mxu0
    %v828 = vpop.f32.mrf.mxu0
    %829 = vdwg.mxu0
    %830 = vrot.lane.b32.xlu0 %v204, 48
    %v831 = vpop.permute.xlu0 %830
    %v833 = vsel %vm208, %v781, 0
    %v836 = vsel %vm333, %v831, 0
    %838 = vmatprep.subr.bf16.mxu0 0
    %839 = vmatpush1.bf16.msra.mxu0 0
    %840 = vmatprep.subr.bf16.mxu0 0
    %841 = vmatpush1.bf16.msra.mxu0 0
    %842 = vmatprep.subr.bf16.mxu0 0
    %843 = vmatpush1.bf16.msra.mxu0 0
    %844 = vmatprep.subr.bf16.mxu0 0
    %845 = vmatpush1.bf16.msra.mxu0 0
    %846 = vmatprep.subr.bf16.mxu0 0
    %847 = vmatpush1.bf16.msra.mxu0 0
    %848 = vmatprep.subr.bf16.mxu0 0
    %849 = vmatpush1.bf16.msra.mxu0 0
    %850 = vmatprep.subr.bf16.mxu0 0
    %851 = vmatpush1.bf16.msra.mxu0 0
    %852 = vmatprep.subr.bf16.mxu0 0
    %853 = vmatpush1.bf16.msra.mxu0 %v836
    %854 = vmatprep.subr.bf16.mxu0 0
    %855 = vmatpush2.bf16.msra.mxu0 0
    %856 = vmatprep.subr.bf16.mxu0 0
    %857 = vmatpush2.bf16.msra.mxu0 0
    %858 = vmatprep.subr.bf16.mxu0 0
    %859 = vmatpush2.bf16.msra.mxu0 0
    %860 = vmatprep.subr.bf16.mxu0 0
    %861 = vmatpush2.bf16.msra.mxu0 0
    %862 = vmatprep.subr.bf16.mxu0 0
    %863 = vmatpush2.bf16.msra.mxu0 0
    %864 = vmatprep.subr.bf16.mxu0 0
    %865 = vmatpush2.bf16.msra.mxu0 0
    %866 = vmatprep.subr.bf16.mxu0 0
    %867 = vmatpush2.bf16.msra.mxu0 0
    %868 = vmatprep.subr.bf16.mxu0 0
    %869 = vmatpush2.bf16.msra.mxu0 0
    %870 = vmatprep.mubr.bf16.mxu0 0
    %871 = vmatmul.mubr.bf16.gmra.mxu0 %v833
    %v872 = vpop.f32.mrf.mxu0
    %v873 = vadd.f32 0.0, %v872
    %v874 = vpop.f32.mrf.mxu0
    %v875 = vpop.f32.mrf.mxu0
    %v876 = vpop.f32.mrf.mxu0
    %877 = vdwg.mxu0
    %880 = vrot.lane.b32.xlu0 %v825, 16
    %v881 = vpop.permute.xlu0 %880
    %882 = vrot.lane.b32.xlu0 %v873, 16
    %v883 = vpop.permute.xlu0 %882
    %vm886 = vcmask 195712
    %887 = vst.msk [vmem:[#allocation2] sm:$0xff] %vm886, %v881
    %888 = vst.msk [vmem:[#allocation2 + $0x8] sm:$0xff] %vm886, %v883
    %889 = vrot.lane.b32.xlu0 %v203, 104
    %v890 = vpop.permute.xlu0 %889
    %891 = vrot.lane.b32.xlu0 %v203, 72
    %v892 = vpop.permute.xlu0 %891
    %v894 = vsel %vm208, %v890, 0
    %v897 = vsel %vm208, %v892, 0
    %899 = vmatprep.subr.bf16.mxu0 0
    %900 = vmatpush1.bf16.xpose.msra.mxu0 0
    %901 = vmatprep.subr.bf16.mxu0 0
    %902 = vmatpush1.bf16.xpose.msra.mxu0 0
    %903 = vmatprep.subr.bf16.mxu0 0
    %904 = vmatpush1.bf16.xpose.msra.mxu0 0
    %905 = vmatprep.subr.bf16.mxu0 0
    %906 = vmatpush1.bf16.xpose.msra.mxu0 0
    %907 = vmatprep.subr.bf16.mxu0 0
    %908 = vmatpush1.bf16.xpose.msra.mxu0 0
    %909 = vmatprep.subr.bf16.mxu0 0
    %910 = vmatpush1.bf16.xpose.msra.mxu0 0
    %911 = vmatprep.subr.bf16.mxu0 0
    %912 = vmatpush1.bf16.xpose.msra.mxu0 0
    %913 = vmatprep.subr.bf16.mxu0 0
    %914 = vmatpush1.bf16.xpose.msra.mxu0 %v897
    %915 = vmatprep.subr.bf16.mxu0 0
    %916 = vmatpush2.bf16.xpose.msra.mxu0 0
    %917 = vmatprep.subr.bf16.mxu0 0
    %918 = vmatpush2.bf16.xpose.msra.mxu0 0
    %919 = vmatprep.subr.bf16.mxu0 0
    %920 = vmatpush2.bf16.xpose.msra.mxu0 0
    %921 = vmatprep.subr.bf16.mxu0 0
    %922 = vmatpush2.bf16.xpose.msra.mxu0 0
    %923 = vmatprep.subr.bf16.mxu0 0
    %924 = vmatpush2.bf16.xpose.msra.mxu0 0
    %925 = vmatprep.subr.bf16.mxu0 0
    %926 = vmatpush2.bf16.xpose.msra.mxu0 0
    %927 = vmatprep.subr.bf16.mxu0 0
    %928 = vmatpush2.bf16.xpose.msra.mxu0 0
    %929 = vmatprep.subr.bf16.mxu0 0
    %930 = vmatpush2.bf16.xpose.msra.mxu0 0
    %931 = vmatprep.mubr.bf16.mxu0 0
    %932 = vmatmul.mubr.bf16.gmra.mxu0 %v894
    %v933 = vpop.f32.mrf.mxu0
    %v934 = vadd.f32 %v201, %v933
    %v935 = vpop.f32.mrf.mxu0
    %v936 = vpop.f32.mrf.mxu0
    %v937 = vpop.f32.mrf.mxu0
    %938 = vdwg.mxu0
    %939 = vrot.lane.b32.xlu0 %v204, 104
    %v940 = vpop.permute.xlu0 %939
    %941 = vrot.lane.b32.xlu0 %v204, 72
    %v942 = vpop.permute.xlu0 %941
    %v944 = vsel %vm208, %v940, 0
    %v947 = vsel %vm208, %v942, 0
    %949 = vmatprep.subr.bf16.mxu0 0
    %950 = vmatpush1.bf16.xpose.msra.mxu0 0
    %951 = vmatprep.subr.bf16.mxu0 0
    %952 = vmatpush1.bf16.xpose.msra.mxu0 0
    %953 = vmatprep.subr.bf16.mxu0 0
    %954 = vmatpush1.bf16.xpose.msra.mxu0 0
    %955 = vmatprep.subr.bf16.mxu0 0
    %956 = vmatpush1.bf16.xpose.msra.mxu0 0
    %957 = vmatprep.subr.bf16.mxu0 0
    %958 = vmatpush1.bf16.xpose.msra.mxu0 0
    %959 = vmatprep.subr.bf16.mxu0 0
    %960 = vmatpush1.bf16.xpose.msra.mxu0 0
    %961 = vmatprep.subr.bf16.mxu0 0
    %962 = vmatpush1.bf16.xpose.msra.mxu0 0
    %963 = vmatprep.subr.bf16.mxu0 0
    %964 = vmatpush1.bf16.xpose.msra.mxu0 %v947
    %965 = vmatprep.subr.bf16.mxu0 0
    %966 = vmatpush2.bf16.xpose.msra.mxu0 0
    %967 = vmatprep.subr.bf16.mxu0 0
    %968 = vmatpush2.bf16.xpose.msra.mxu0 0
    %969 = vmatprep.subr.bf16.mxu0 0
    %970 = vmatpush2.bf16.xpose.msra.mxu0 0
    %971 = vmatprep.subr.bf16.mxu0 0
    %972 = vmatpush2.bf16.xpose.msra.mxu0 0
    %973 = vmatprep.subr.bf16.mxu0 0
    %974 = vmatpush2.bf16.xpose.msra.mxu0 0
    %975 = vmatprep.subr.bf16.mxu0 0
    %976 = vmatpush2.bf16.xpose.msra.mxu0 0
    %977 = vmatprep.subr.bf16.mxu0 0
    %978 = vmatpush2.bf16.xpose.msra.mxu0 0
    %979 = vmatprep.subr.bf16.mxu0 0
    %980 = vmatpush2.bf16.xpose.msra.mxu0 0
    %981 = vmatprep.mubr.bf16.mxu0 0
    %982 = vmatmul.mubr.bf16.gmra.mxu0 %v944
    %v983 = vpop.f32.mrf.mxu0
    %v984 = vadd.f32 %v202, %v983
    %v985 = vpop.f32.mrf.mxu0
    %v986 = vpop.f32.mrf.mxu0
    %v987 = vpop.f32.mrf.mxu0
    %988 = vdwg.mxu0
    %v989 = vsel %vm208, %v934, -inf
    %990 = vmax.xlane.f32.xlu0 %v989
    %v991 = vpop.xlane.xlu0 %990
    %v992 = vsel %vm208, %v984, -inf
    %993 = vmax.xlane.f32.xlu0 %v992
    %v994 = vpop.xlane.xlu0 %993
    %v995 = vsub.f32 %v934, %v991
    %v996 = vsub.f32 %v984, %v994
    %v997 = vmul.f32 %v995, 1.442695
    %v998 = vpow.pop %v997
    %v999 = vmul.f32 %v996, 1.442695
    %v1000 = vpow.pop %v999
    %v1001 = vsel %vm208, %v998, 0.0
    %1002 = vadd.xlane.f32.xlu0 %v1001
    %v1003 = vpop.xlane.xlu0 %1002
    %v1004 = vsel %vm208, %v1000, 0.0
    %1005 = vadd.xlane.f32.xlu0 %v1004
    %v1006 = vpop.xlane.xlu0 %1005
    %v1007 = vrcp.pop %v1003
    %v1008 = vrcp.pop %v1006
    %v1009 = vmul.f32 %v998, %v1007
    %v1010 = vmul.f32 %v1000, %v1008
    %v1011 = vpack.c.bf16 %v1009, %v1009
    %v1012 = vpack.c.bf16 %v1010, %v1010
    %1013 = vrot.lane.b32.xlu0 %v203, 40
    %v1014 = vpop.permute.xlu0 %1013
    %v1016 = vsel %vm208, %v1011, 0
    %v1019 = vsel %vm333, %v1014, 0
    %1021 = vmatprep.subr.bf16.mxu0 0
    %1022 = vmatpush1.bf16.msra.mxu0 0
    %1023 = vmatprep.subr.bf16.mxu0 0
    %1024 = vmatpush1.bf16.msra.mxu0 0
    %1025 = vmatprep.subr.bf16.mxu0 0
    %1026 = vmatpush1.bf16.msra.mxu0 0
    %1027 = vmatprep.subr.bf16.mxu0 0
    %1028 = vmatpush1.bf16.msra.mxu0 0
    %1029 = vmatprep.subr.bf16.mxu0 0
    %1030 = vmatpush1.bf16.msra.mxu0 0
    %1031 = vmatprep.subr.bf16.mxu0 0
    %1032 = vmatpush1.bf16.msra.mxu0 0
    %1033 = vmatprep.subr.bf16.mxu0 0
    %1034 = vmatpush1.bf16.msra.mxu0 0
    %1035 = vmatprep.subr.bf16.mxu0 0
    %1036 = vmatpush1.bf16.msra.mxu0 %v1019
    %1037 = vmatprep.subr.bf16.mxu0 0
    %1038 = vmatpush2.bf16.msra.mxu0 0
    %1039 = vmatprep.subr.bf16.mxu0 0
    %1040 = vmatpush2.bf16.msra.mxu0 0
    %1041 = vmatprep.subr.bf16.mxu0 0
    %1042 = vmatpush2.bf16.msra.mxu0 0
    %1043 = vmatprep.subr.bf16.mxu0 0
    %1044 = vmatpush2.bf16.msra.mxu0 0
    %1045 = vmatprep.subr.bf16.mxu0 0
    %1046 = vmatpush2.bf16.msra.mxu0 0
    %1047 = vmatprep.subr.bf16.mxu0 0
    %1048 = vmatpush2.bf16.msra.mxu0 0
    %1049 = vmatprep.subr.bf16.mxu0 0
    %1050 = vmatpush2.bf16.msra.mxu0 0
    %1051 = vmatprep.subr.bf16.mxu0 0
    %1052 = vmatpush2.bf16.msra.mxu0 0
    %1053 = vmatprep.mubr.bf16.mxu0 0
    %1054 = vmatmul.mubr.bf16.gmra.mxu0 %v1016
    %v1055 = vpop.f32.mrf.mxu0
    %v1056 = vadd.f32 0.0, %v1055
    %v1057 = vpop.f32.mrf.mxu0
    %v1058 = vpop.f32.mrf.mxu0
    %v1059 = vpop.f32.mrf.mxu0
    %1060 = vdwg.mxu0
    %1061 = vrot.lane.b32.xlu0 %v204, 40
    %v1062 = vpop.permute.xlu0 %1061
    %v1064 = vsel %vm208, %v1012, 0
    %v1067 = vsel %vm333, %v1062, 0
    %1069 = vmatprep.subr.bf16.mxu0 0
    %1070 = vmatpush1.bf16.msra.mxu0 0
    %1071 = vmatprep.subr.bf16.mxu0 0
    %1072 = vmatpush1.bf16.msra.mxu0 0
    %1073 = vmatprep.subr.bf16.mxu0 0
    %1074 = vmatpush1.bf16.msra.mxu0 0
    %1075 = vmatprep.subr.bf16.mxu0 0
    %1076 = vmatpush1.bf16.msra.mxu0 0
    %1077 = vmatprep.subr.bf16.mxu0 0
    %1078 = vmatpush1.bf16.msra.mxu0 0
    %1079 = vmatprep.subr.bf16.mxu0 0
    %1080 = vmatpush1.bf16.msra.mxu0 0
    %1081 = vmatprep.subr.bf16.mxu0 0
    %1082 = vmatpush1.bf16.msra.mxu0 0
    %1083 = vmatprep.subr.bf16.mxu0 0
    %1084 = vmatpush1.bf16.msra.mxu0 %v1067
    %1085 = vmatprep.subr.bf16.mxu0 0
    %1086 = vmatpush2.bf16.msra.mxu0 0
    %1087 = vmatprep.subr.bf16.mxu0 0
    %1088 = vmatpush2.bf16.msra.mxu0 0
    %1089 = vmatprep.subr.bf16.mxu0 0
    %1090 = vmatpush2.bf16.msra.mxu0 0
    %1091 = vmatprep.subr.bf16.mxu0 0
    %1092 = vmatpush2.bf16.msra.mxu0 0
    %1093 = vmatprep.subr.bf16.mxu0 0
    %1094 = vmatpush2.bf16.msra.mxu0 0
    %1095 = vmatprep.subr.bf16.mxu0 0
    %1096 = vmatpush2.bf16.msra.mxu0 0
    %1097 = vmatprep.subr.bf16.mxu0 0
    %1098 = vmatpush2.bf16.msra.mxu0 0
    %1099 = vmatprep.subr.bf16.mxu0 0
    %1100 = vmatpush2.bf16.msra.mxu0 0
    %1101 = vmatprep.mubr.bf16.mxu0 0
    %1102 = vmatmul.mubr.bf16.gmra.mxu0 %v1064
    %v1103 = vpop.f32.mrf.mxu0
    %v1104 = vadd.f32 0.0, %v1103
    %v1105 = vpop.f32.mrf.mxu0
    %v1106 = vpop.f32.mrf.mxu0
    %v1107 = vpop.f32.mrf.mxu0
    %1108 = vdwg.mxu0
    %1111 = vrot.lane.b32.xlu0 %v1056, 24
    %v1112 = vpop.permute.xlu0 %1111
    %1113 = vrot.lane.b32.xlu0 %v1104, 24
    %v1114 = vpop.permute.xlu0 %1113
    %vm1117 = vcmask 261312
    %1118 = vst.msk [vmem:[#allocation2] sm:$0xff] %vm1117, %v1112
    %1119 = vst.msk [vmem:[#allocation2 + $0x8] sm:$0xff] %vm1117, %v1114
    %vm1120 = vcmask 60416
    %1121 = vst.msk [vmem:[#allocation5] sm:$0xf] %vm1120, %v326
    %1122 = vst.msk [vmem:[#allocation5 + $0x4] sm:$0xf] %vm1120, %v549
    %1123 = vst.msk [vmem:[#allocation5 + $0x8] sm:$0xf] %vm1120, %v780
    %1124 = vst.msk [vmem:[#allocation5 + $0xc] sm:$0xf] %vm1120, %v1011
    %1125 = vst.msk [vmem:[#allocation5 + $0x10] sm:$0xf] %vm1120, %v327
    %1126 = vst.msk [vmem:[#allocation5 + $0x14] sm:$0xf] %vm1120, %v550
    %1127 = vst.msk [vmem:[#allocation5 + $0x18] sm:$0xf] %vm1120, %v781
    %1128 = vst.msk [vmem:[#allocation5 + $0x1c] sm:$0xf] %vm1120, %v1012
    %v1129 = vld [vmem:[#allocation2] sm:$0xff]
    %v1130 = vld [vmem:[#allocation2 + $0x8] sm:$0xff]
    %v1131 = vld [vmem:[%s8] sm:$0xf]
    %v1132 = vld [vmem:[%s8 + $0x4] sm:$0xf]
    %v1133 = vld [vmem:[%s8 + $0x8] sm:$0xf]
    %v1134 = vld [vmem:[%s8 + $0xc] sm:$0xf]
    %v1135 = vpack.c.bf16 %v1130, %v1129
    %v1140 = vunpack.c.l.b16 %v1131
    %v1141 = vunpack.c.l.b16 %v1132
    %v1142 = vunpack.c.l.b16 %v1133
    %v1143 = vunpack.c.l.b16 %v1134
    %v1144 = vpack.c.b16 %v1141, %v1140
    %v1145 = vpack.c.b16 %v1143, %v1142
    %v1149 = vsel %vm89, %v1135, 0
    %1151 = vmatprep.subr.bf16.mxu0 0
    %1152 = vmatpush1.bf16.msra.mxu0 0
    %1153 = vmatprep.subr.bf16.mxu0 0
    %1154 = vmatpush1.bf16.msra.mxu0 0
    %1155 = vmatprep.subr.bf16.mxu0 0
    %1156 = vmatpush1.bf16.msra.mxu0 0
    %1157 = vmatprep.subr.bf16.mxu0 0
    %1158 = vmatpush1.bf16.msra.mxu0 0
    %1159 = vmatprep.subr.bf16.mxu0 0
    %1160 = vmatpush1.bf16.msra.mxu0 0
    %1161 = vmatprep.subr.bf16.mxu0 0
    %1162 = vmatpush1.bf16.msra.mxu0 0
    %1163 = vmatprep.subr.bf16.mxu0 0
    %1164 = vmatpush1.bf16.msra.mxu0 %v1145
    %1165 = vmatprep.subr.bf16.mxu0 0
    %1166 = vmatpush1.bf16.msra.mxu0 %v1144
    %1167 = vmatprep.subr.bf16.mxu0 0
    %1168 = vmatpush2.bf16.msra.mxu0 0
    %1169 = vmatprep.subr.bf16.mxu0 0
    %1170 = vmatpush2.bf16.msra.mxu0 0
    %1171 = vmatprep.subr.bf16.mxu0 0
    %1172 = vmatpush2.bf16.msra.mxu0 0
    %1173 = vmatprep.subr.bf16.mxu0 0
    %1174 = vmatpush2.bf16.msra.mxu0 0
    %1175 = vmatprep.subr.bf16.mxu0 0
    %1176 = vmatpush2.bf16.msra.mxu0 0
    %1177 = vmatprep.subr.bf16.mxu0 0
    %1178 = vmatpush2.bf16.msra.mxu0 0
    %1179 = vmatprep.subr.bf16.mxu0 0
    %1180 = vmatpush2.bf16.msra.mxu0 0
    %1181 = vmatprep.subr.bf16.mxu0 0
    %1182 = vmatpush2.bf16.msra.mxu0 0
    %1183 = vmatprep.mubr.bf16.mxu0 0
    %1184 = vmatmul.mubr.bf16.gmra.mxu0 %v1149
    %v1185 = vpop.f32.mrf.mxu0
    %v1186 = vadd.f32 0.0, %v1185
    %v1187 = vpop.f32.mrf.mxu0
    %v1188 = vpop.f32.mrf.mxu0
    %v1189 = vadd.f32 0.0, %v1188
    %v1190 = vpop.f32.mrf.mxu0
    %1191 = vdwg.mxu0
    %v1192 = vadd.f32 %v85, %v1186
    %v1193 = vadd.f32 %v86, %v1189
    %v1194 = vld [vmem:[%s9] sm:$0x1]
    %v1196 = vlaneseq
    %v1197 = vshrl.u32 %v1196, 7
    %v1198 = vsub.s32 0, %v1197
    %v1199 = vrot.slane %v1194, %v1198
    %v1201 = vadd.f32 %v1192, %v1199
    %v1202 = vadd.f32 %v1193, %v1199
    %v1203 = vld [vmem:[%s1] sm:$0xff]
    %v1204 = vld [vmem:[%s1 + $0x8] sm:$0xff]
    %v1205 = vld [vmem:[%s1 + $0x10] sm:$0xff]
    %v1206 = vld [vmem:[%s1 + $0x18] sm:$0xff]
    %v1207 = vld [vmem:[%s10] sm:$0x1]
    %v1208 = vld [vmem:[%s11] sm:$0x1]
    %v1209 = vsel %vm89, %v1201, 0.0
    %1210 = vadd.xlane.f32.xlu0 %v1209
    %v1211 = vpop.xlane.xlu0 %1210
    %v1212 = vsel %vm89, %v1202, 0.0
    %1213 = vadd.xlane.f32.xlu0 %v1212
    %v1214 = vpop.xlane.xlu0 %1213
    %v1215 = vmul.f32 %v1211, %v96
    %v1216 = vmul.f32 %v1214, %v96
    %v1217 = vsub.f32 %v1201, %v1215
    %v1218 = vsub.f32 %v1202, %v1216
    %v1219 = vmul.f32 %v1217, %v1217
    %v1220 = vmul.f32 %v1218, %v1218
    %v1221 = vsel %vm89, %v1219, 0.0
    %1222 = vadd.xlane.f32.xlu0 %v1221
    %v1223 = vpop.xlane.xlu0 %1222
    %v1224 = vsel %vm89, %v1220, 0.0
    %1225 = vadd.xlane.f32.xlu0 %v1224
    %v1226 = vpop.xlane.xlu0 %1225
    %v1227 = vmul.f32 %v1223, %v96
    %v1228 = vmul.f32 %v1226, %v96
    %v1229 = vadd.f32 %v1227, 1e-05
    %v1230 = vadd.f32 %v1228, 1e-05
    %v1231 = vrsqrt.pop %v1229
    %v1232 = vrsqrt.pop %v1230
    %v1233 = vmul.f32 %v1217, %v1231
    %v1234 = vmul.f32 %v1218, %v1232
    %v1236 = vlaneseq
    %v1237 = vshrl.u32 %v1236, 7
    %v1238 = vsub.s32 0, %v1237
    %v1239 = vrot.slane %v1207, %v1238
    %v1241 = vmul.f32 %v1233, %v1239
    %v1242 = vmul.f32 %v1234, %v1239
    %v1244 = vlaneseq
    %v1245 = vshrl.u32 %v1244, 7
    %v1246 = vsub.s32 0, %v1245
    %v1247 = vrot.slane %v1208, %v1246
    %v1249 = vadd.f32 %v1241, %v1247
    %v1250 = vadd.f32 %v1242, %v1247
    %v1251 = vld [vmem:[%s12] sm:$0xf]
    %v1252 = vld [vmem:[%s12 + $0x4] sm:$0xf]
    %v1253 = vld [vmem:[%s12 + $0x8] sm:$0xf]
    %v1254 = vld [vmem:[%s12 + $0xc] sm:$0xf]
    %v1255 = vpack.c.bf16 %v1250, %v1249
    %v1256 = vld [vmem:[%s13] sm:$0x1]
    %v1258 = vlaneseq
    %v1259 = vshrl.u32 %v1258, 7
    %v1260 = vsub.s32 0, %v1259
    %v1261 = vrot.slane %v1256, %v1260
    %v1267 = vunpack.c.l.b16 %v1251
    %v1268 = vunpack.c.l.b16 %v1252
    %v1269 = vunpack.c.l.b16 %v1253
    %v1270 = vunpack.c.l.b16 %v1254
    %v1271 = vpack.c.b16 %v1268, %v1267
    %v1272 = vpack.c.b16 %v1270, %v1269
    %v1276 = vsel %vm89, %v1255, 0
    %1278 = vmatprep.subr.bf16.mxu0 0
    %1279 = vmatpush1.bf16.msra.mxu0 0
    %1280 = vmatprep.subr.bf16.mxu0 0
    %1281 = vmatpush1.bf16.msra.mxu0 0
    %1282 = vmatprep.subr.bf16.mxu0 0
    %1283 = vmatpush1.bf16.msra.mxu0 0
    %1284 = vmatprep.subr.bf16.mxu0 0
    %1285 = vmatpush1.bf16.msra.mxu0 0
    %1286 = vmatprep.subr.bf16.mxu0 0
    %1287 = vmatpush1.bf16.msra.mxu0 0
    %1288 = vmatprep.subr.bf16.mxu0 0
    %1289 = vmatpush1.bf16.msra.mxu0 0
    %1290 = vmatprep.subr.bf16.mxu0 0
    %1291 = vmatpush1.bf16.msra.mxu0 %v1272
    %1292 = vmatprep.subr.bf16.mxu0 0
    %1293 = vmatpush1.bf16.msra.mxu0 %v1271
    %1294 = vmatprep.subr.bf16.mxu0 0
    %1295 = vmatpush2.bf16.msra.mxu0 0
    %1296 = vmatprep.subr.bf16.mxu0 0
    %1297 = vmatpush2.bf16.msra.mxu0 0
    %1298 = vmatprep.subr.bf16.mxu0 0
    %1299 = vmatpush2.bf16.msra.mxu0 0
    %1300 = vmatprep.subr.bf16.mxu0 0
    %1301 = vmatpush2.bf16.msra.mxu0 0
    %1302 = vmatprep.subr.bf16.mxu0 0
    %1303 = vmatpush2.bf16.msra.mxu0 0
    %1304 = vmatprep.subr.bf16.mxu0 0
    %1305 = vmatpush2.bf16.msra.mxu0 0
    %1306 = vmatprep.subr.bf16.mxu0 0
    %1307 = vmatpush2.bf16.msra.mxu0 0
    %1308 = vmatprep.subr.bf16.mxu0 0
    %1309 = vmatpush2.bf16.msra.mxu0 0
    %1310 = vmatprep.mubr.bf16.mxu0 0
    %1311 = vmatmul.mubr.bf16.gmra.mxu0 %v1276
    %v1312 = vpop.f32.mrf.mxu0
    %v1313 = vadd.f32 %v1261, %v1312
    %v1314 = vpop.f32.mrf.mxu0
    %v1315 = vpop.f32.mrf.mxu0
    %v1316 = vadd.f32 %v1261, %v1315
    %v1317 = vpop.f32.mrf.mxu0
    %1318 = vdwg.mxu0
    %v1319 = vld [vmem:[%s14] sm:$0xf]
    %v1320 = vld [vmem:[%s14 + $0x4] sm:$0xf]
    %v1321 = vld [vmem:[%s14 + $0x8] sm:$0xf]
    %v1322 = vld [vmem:[%s14 + $0xc] sm:$0xf]
    %v1323 = vpack.c.bf16 %v1204, %v1203
    %v1324 = vpack.c.bf16 %v1206, %v1205
    %v1325 = vld [vmem:[%s15] sm:$0x1]
    %v1327 = vlaneseq
    %v1328 = vshrl.u32 %v1327, 7
    %v1329 = vsub.s32 0, %v1328
    %v1330 = vrot.slane %v1325, %v1329
    %v1336 = vunpack.c.l.b16 %v1319
    %v1337 = vunpack.c.l.b16 %v1320
    %v1338 = vunpack.c.l.b16 %v1321
    %v1339 = vunpack.c.l.b16 %v1322
    %v1340 = vpack.c.b16 %v1337, %v1336
    %v1341 = vpack.c.b16 %v1339, %v1338
    %v1345 = vsel %vm89, %v1323, 0
    %v1348 = vsel %vm89, %v1324, 0
    %1350 = vmatprep.subr.bf16.mxu0 0
    %1351 = vmatpush1.bf16.msra.mxu0 0
    %1352 = vmatprep.subr.bf16.mxu0 0
    %1353 = vmatpush1.bf16.msra.mxu0 0
    %1354 = vmatprep.subr.bf16.mxu0 0
    %1355 = vmatpush1.bf16.msra.mxu0 0
    %1356 = vmatprep.subr.bf16.mxu0 0
    %1357 = vmatpush1.bf16.msra.mxu0 0
    %1358 = vmatprep.subr.bf16.mxu0 0
    %1359 = vmatpush1.bf16.msra.mxu0 0
    %1360 = vmatprep.subr.bf16.mxu0 0
    %1361 = vmatpush1.bf16.msra.mxu0 0
    %1362 = vmatprep.subr.bf16.mxu0 0
    %1363 = vmatpush1.bf16.msra.mxu0 %v1341
    %1364 = vmatprep.subr.bf16.mxu0 0
    %1365 = vmatpush1.bf16.msra.mxu0 %v1340
    %1366 = vmatprep.subr.bf16.mxu0 0
    %1367 = vmatpush2.bf16.msra.mxu0 0
    %1368 = vmatprep.subr.bf16.mxu0 0
    %1369 = vmatpush2.bf16.msra.mxu0 0
    %1370 = vmatprep.subr.bf16.mxu0 0
    %1371 = vmatpush2.bf16.msra.mxu0 0
    %1372 = vmatprep.subr.bf16.mxu0 0
    %1373 = vmatpush2.bf16.msra.mxu0 0
    %1374 = vmatprep.subr.bf16.mxu0 0
    %1375 = vmatpush2.bf16.msra.mxu0 0
    %1376 = vmatprep.subr.bf16.mxu0 0
    %1377 = vmatpush2.bf16.msra.mxu0 0
    %1378 = vmatprep.subr.bf16.mxu0 0
    %1379 = vmatpush2.bf16.msra.mxu0 0
    %1380 = vmatprep.subr.bf16.mxu0 0
    %1381 = vmatpush2.bf16.msra.mxu0 0
    %1382 = vmatprep.mubr.bf16.mxu0 0
    %1383 = vmatmul.mubr.bf16.gmra.mxu0 %v1345
    %v1384 = vpop.f32.mrf.mxu0
    %v1385 = vadd.f32 %v1330, %v1384
    %v1386 = vpop.f32.mrf.mxu0
    %v1387 = vpop.f32.mrf.mxu0
    %v1388 = vadd.f32 %v1330, %v1387
    %v1389 = vpop.f32.mrf.mxu0
    %1390 = vmatprep.mubr.bf16.mxu0 0
    %1391 = vmatmul.mubr.bf16.gmra.mxu0 %v1348
    %v1392 = vpop.f32.mrf.mxu0
    %v1393 = vadd.f32 %v1330, %v1392
    %v1394 = vpop.f32.mrf.mxu0
    %v1395 = vpop.f32.mrf.mxu0
    %v1396 = vadd.f32 %v1330, %v1395
    %v1397 = vpop.f32.mrf.mxu0
    %1398 = vdwg.mxu0
    %v1399 = vld [vmem:[%s3] sm:$0xff]
    %v1400 = vld [vmem:[%s3 + $0x8] sm:$0xff]
    %v1401 = vpack.c.bf16 %v1313, %v1313
    %v1402 = vpack.c.bf16 %v1316, %v1316
    %v1403 = vpack.c.bf16 %v1388, %v1385
    %v1404 = vpack.c.bf16 %v1396, %v1393
    %v1406 = vsel %vm208, %v1401, 0
    %v1409 = vsel %vm208, %v1403, 0
    %1411 = vmatprep.subr.bf16.mxu0 0
    %1412 = vmatpush1.bf16.xpose.msra.mxu0 0
    %1413 = vmatprep.subr.bf16.mxu0 0
    %1414 = vmatpush1.bf16.xpose.msra.mxu0 0
    %1415 = vmatprep.subr.bf16.mxu0 0
    %1416 = vmatpush1.bf16.xpose.msra.mxu0 0
    %1417 = vmatprep.subr.bf16.mxu0 0
    %1418 = vmatpush1.bf16.xpose.msra.mxu0 0
    %1419 = vmatprep.subr.bf16.mxu0 0
    %1420 = vmatpush1.bf16.xpose.msra.mxu0 0
    %1421 = vmatprep.subr.bf16.mxu0 0
    %1422 = vmatpush1.bf16.xpose.msra.mxu0 0
    %1423 = vmatprep.subr.bf16.mxu0 0
    %1424 = vmatpush1.bf16.xpose.msra.mxu0 0
    %1425 = vmatprep.subr.bf16.mxu0 0
    %1426 = vmatpush1.bf16.xpose.msra.mxu0 %v1409
    %1427 = vmatprep.subr.bf16.mxu0 0
    %1428 = vmatpush2.bf16.xpose.msra.mxu0 0
    %1429 = vmatprep.subr.bf16.mxu0 0
    %1430 = vmatpush2.bf16.xpose.msra.mxu0 0
    %1431 = vmatprep.subr.bf16.mxu0 0
    %1432 = vmatpush2.bf16.xpose.msra.mxu0 0
    %1433 = vmatprep.subr.bf16.mxu0 0
    %1434 = vmatpush2.bf16.xpose.msra.mxu0 0
    %1435 = vmatprep.subr.bf16.mxu0 0
    %1436 = vmatpush2.bf16.xpose.msra.mxu0 0
    %1437 = vmatprep.subr.bf16.mxu0 0
    %1438 = vmatpush2.bf16.xpose.msra.mxu0 0
    %1439 = vmatprep.subr.bf16.mxu0 0
    %1440 = vmatpush2.bf16.xpose.msra.mxu0 0
    %1441 = vmatprep.subr.bf16.mxu0 0
    %1442 = vmatpush2.bf16.xpose.msra.mxu0 0
    %1443 = vmatprep.mubr.bf16.mxu0 0
    %1444 = vmatmul.mubr.bf16.gmra.mxu0 %v1406
    %v1445 = vpop.f32.mrf.mxu0
    %v1446 = vadd.f32 %v1399, %v1445
    %v1447 = vpop.f32.mrf.mxu0
    %v1448 = vpop.f32.mrf.mxu0
    %v1449 = vpop.f32.mrf.mxu0
    %1450 = vdwg.mxu0
    %v1452 = vsel %vm208, %v1402, 0
    %v1455 = vsel %vm208, %v1404, 0
    %1457 = vmatprep.subr.bf16.mxu0 0
    %1458 = vmatpush1.bf16.xpose.msra.mxu0 0
    %1459 = vmatprep.subr.bf16.mxu0 0
    %1460 = vmatpush1.bf16.xpose.msra.mxu0 0
    %1461 = vmatprep.subr.bf16.mxu0 0
    %1462 = vmatpush1.bf16.xpose.msra.mxu0 0
    %1463 = vmatprep.subr.bf16.mxu0 0
    %1464 = vmatpush1.bf16.xpose.msra.mxu0 0
    %1465 = vmatprep.subr.bf16.mxu0 0
    %1466 = vmatpush1.bf16.xpose.msra.mxu0 0
    %1467 = vmatprep.subr.bf16.mxu0 0
    %1468 = vmatpush1.bf16.xpose.msra.mxu0 0
    %1469 = vmatprep.subr.bf16.mxu0 0
    %1470 = vmatpush1.bf16.xpose.msra.mxu0 0
    %1471 = vmatprep.subr.bf16.mxu0 0
    %1472 = vmatpush1.bf16.xpose.msra.mxu0 %v1455
    %1473 = vmatprep.subr.bf16.mxu0 0
    %1474 = vmatpush2.bf16.xpose.msra.mxu0 0
    %1475 = vmatprep.subr.bf16.mxu0 0
    %1476 = vmatpush2.bf16.xpose.msra.mxu0 0
    %1477 = vmatprep.subr.bf16.mxu0 0
    %1478 = vmatpush2.bf16.xpose.msra.mxu0 0
    %1479 = vmatprep.subr.bf16.mxu0 0
    %1480 = vmatpush2.bf16.xpose.msra.mxu0 0
    %1481 = vmatprep.subr.bf16.mxu0 0
    %1482 = vmatpush2.bf16.xpose.msra.mxu0 0
    %1483 = vmatprep.subr.bf16.mxu0 0
    %1484 = vmatpush2.bf16.xpose.msra.mxu0 0
    %1485 = vmatprep.subr.bf16.mxu0 0
    %1486 = vmatpush2.bf16.xpose.msra.mxu0 0
    %1487 = vmatprep.subr.bf16.mxu0 0
    %1488 = vmatpush2.bf16.xpose.msra.mxu0 0
    %1489 = vmatprep.mubr.bf16.mxu0 0
    %1490 = vmatmul.mubr.bf16.gmra.mxu0 %v1452
    %v1491 = vpop.f32.mrf.mxu0
    %v1492 = vadd.f32 %v1400, %v1491
    %v1493 = vpop.f32.mrf.mxu0
    %v1494 = vpop.f32.mrf.mxu0
    %v1495 = vpop.f32.mrf.mxu0
    %1496 = vdwg.mxu0
    %vm1497 = vcmask 130048
    %v1498 = vsel %vm1497, %v1446, -inf
    %1499 = vmax.xlane.f32.xlu0 %v1498
    %v1500 = vpop.xlane.xlu0 %1499
    %v1501 = vsel %vm1497, %v1492, -inf
    %1502 = vmax.xlane.f32.xlu0 %v1501
    %v1503 = vpop.xlane.xlu0 %1502
    %v1504 = vsub.f32 %v1446, %v1500
    %v1505 = vsub.f32 %v1492, %v1503
    %v1506 = vmul.f32 %v1504, 1.442695
    %v1507 = vpow.pop %v1506
    %v1508 = vmul.f32 %v1505, 1.442695
    %v1509 = vpow.pop %v1508
    %v1510 = vsel %vm1497, %v1507, 0.0
    %1511 = vadd.xlane.f32.xlu0 %v1510
    %v1512 = vpop.xlane.xlu0 %1511
    %v1513 = vsel %vm1497, %v1509, 0.0
    %1514 = vadd.xlane.f32.xlu0 %v1513
    %v1515 = vpop.xlane.xlu0 %1514
    %v1516 = vrcp.pop %v1512
    %v1517 = vrcp.pop %v1515
    %v1518 = vmul.f32 %v1507, %v1516
    %v1519 = vmul.f32 %v1509, %v1517
    %v1520 = vpack.c.bf16 %v1518, %v1518
    %v1521 = vpack.c.bf16 %v1519, %v1519
    %1523 = vrot.lane.b32.xlu0 %v1403, 96
    %v1524 = vpop.permute.xlu0 %1523
    %v1527 = vsel %vm1497, %v1520, 0
    %1529 = vmatprep.subr.bf16.mxu0 0
    %1530 = vmatpush1.bf16.msra.mxu0 0
    %1531 = vmatprep.subr.bf16.mxu0 0
    %1532 = vmatpush1.bf16.msra.mxu0 0
    %1533 = vmatprep.subr.bf16.mxu0 0
    %1534 = vmatpush1.bf16.msra.mxu0 0
    %1535 = vmatprep.subr.bf16.mxu0 0
    %1536 = vmatpush1.bf16.msra.mxu0 0
    %1537 = vmatprep.subr.bf16.mxu0 0
    %1538 = vmatpush1.bf16.msra.mxu0 0
    %1539 = vmatprep.subr.bf16.mxu0 0
    %1540 = vmatpush1.bf16.msra.mxu0 0
    %1541 = vmatprep.subr.bf16.mxu0 0
    %1542 = vmatpush1.bf16.msra.mxu0 0
    %1543 = vmatprep.subr.bf16.mxu0 0
    %1544 = vmatpush1.bf16.msra.mxu0 %v1524
    %1545 = vmatprep.subr.bf16.mxu0 0
    %1546 = vmatpush2.bf16.msra.mxu0 0
    %1547 = vmatprep.subr.bf16.mxu0 0
    %1548 = vmatpush2.bf16.msra.mxu0 0
    %1549 = vmatprep.subr.bf16.mxu0 0
    %1550 = vmatpush2.bf16.msra.mxu0 0
    %1551 = vmatprep.subr.bf16.mxu0 0
    %1552 = vmatpush2.bf16.msra.mxu0 0
    %1553 = vmatprep.subr.bf16.mxu0 0
    %1554 = vmatpush2.bf16.msra.mxu0 0
    %1555 = vmatprep.subr.bf16.mxu0 0
    %1556 = vmatpush2.bf16.msra.mxu0 0
    %1557 = vmatprep.subr.bf16.mxu0 0
    %1558 = vmatpush2.bf16.msra.mxu0 0
    %1559 = vmatprep.subr.bf16.mxu0 0
    %1560 = vmatpush2.bf16.msra.mxu0 0
    %1561 = vmatprep.mubr.bf16.mxu0 0
    %1562 = vmatmul.mubr.bf16.gmra.mxu0 %v1527
    %v1563 = vpop.f32.mrf.mxu0
    %v1564 = vadd.f32 0.0, %v1563
    %v1565 = vpop.f32.mrf.mxu0
    %v1566 = vpop.f32.mrf.mxu0
    %v1567 = vpop.f32.mrf.mxu0
    %1568 = vdwg.mxu0
    %1570 = vrot.lane.b32.xlu0 %v1404, 96
    %v1571 = vpop.permute.xlu0 %1570
    %v1574 = vsel %vm1497, %v1521, 0
    %1576 = vmatprep.subr.bf16.mxu0 0
    %1577 = vmatpush1.bf16.msra.mxu0 0
    %1578 = vmatprep.subr.bf16.mxu0 0
    %1579 = vmatpush1.bf16.msra.mxu0 0
    %1580 = vmatprep.subr.bf16.mxu0 0
    %1581 = vmatpush1.bf16.msra.mxu0 0
    %1582 = vmatprep.subr.bf16.mxu0 0
    %1583 = vmatpush1.bf16.msra.mxu0 0
    %1584 = vmatprep.subr.bf16.mxu0 0
    %1585 = vmatpush1.bf16.msra.mxu0 0
    %1586 = vmatprep.subr.bf16.mxu0 0
    %1587 = vmatpush1.bf16.msra.mxu0 0
    %1588 = vmatprep.subr.bf16.mxu0 0
    %1589 = vmatpush1.bf16.msra.mxu0 0
    %1590 = vmatprep.subr.bf16.mxu0 0
    %1591 = vmatpush1.bf16.msra.mxu0 %v1571
    %1592 = vmatprep.subr.bf16.mxu0 0
    %1593 = vmatpush2.bf16.msra.mxu0 0
    %1594 = vmatprep.subr.bf16.mxu0 0
    %1595 = vmatpush2.bf16.msra.mxu0 0
    %1596 = vmatprep.subr.bf16.mxu0 0
    %1597 = vmatpush2.bf16.msra.mxu0 0
    %1598 = vmatprep.subr.bf16.mxu0 0
    %1599 = vmatpush2.bf16.msra.mxu0 0
    %1600 = vmatprep.subr.bf16.mxu0 0
    %1601 = vmatpush2.bf16.msra.mxu0 0
    %1602 = vmatprep.subr.bf16.mxu0 0
    %1603 = vmatpush2.bf16.msra.mxu0 0
    %1604 = vmatprep.subr.bf16.mxu0 0
    %1605 = vmatpush2.bf16.msra.mxu0 0
    %1606 = vmatprep.subr.bf16.mxu0 0
    %1607 = vmatpush2.bf16.msra.mxu0 0
    %1608 = vmatprep.mubr.bf16.mxu0 0
    %1609 = vmatmul.mubr.bf16.gmra.mxu0 %v1574
    %v1610 = vpop.f32.mrf.mxu0
    %v1611 = vadd.f32 0.0, %v1610
    %v1612 = vpop.f32.mrf.mxu0
    %v1613 = vpop.f32.mrf.mxu0
    %v1614 = vpop.f32.mrf.mxu0
    %1615 = vdwg.mxu0
    %1616 = vst.msk [vmem:[#allocation2] sm:$0xff] %vm208, %v1564
    %1617 = vst.msk [vmem:[#allocation2 + $0x8] sm:$0xff] %vm208, %v1611
    %1619 = vrot.lane.b32.xlu0 %v1401, 120
    %v1620 = vpop.permute.xlu0 %1619
    %1621 = vrot.lane.b32.xlu0 %v1403, 120
    %v1622 = vpop.permute.xlu0 %1621
    %v1624 = vsel %vm208, %v1620, 0
    %v1627 = vsel %vm208, %v1622, 0
    %1629 = vmatprep.subr.bf16.mxu0 0
    %1630 = vmatpush1.bf16.xpose.msra.mxu0 0
    %1631 = vmatprep.subr.bf16.mxu0 0
    %1632 = vmatpush1.bf16.xpose.msra.mxu0 0
    %1633 = vmatprep.subr.bf16.mxu0 0
    %1634 = vmatpush1.bf16.xpose.msra.mxu0 0
    %1635 = vmatprep.subr.bf16.mxu0 0
    %1636 = vmatpush1.bf16.xpose.msra.mxu0 0
    %1637 = vmatprep.subr.bf16.mxu0 0
    %1638 = vmatpush1.bf16.xpose.msra.mxu0 0
    %1639 = vmatprep.subr.bf16.mxu0 0
    %1640 = vmatpush1.bf16.xpose.msra.mxu0 0
    %1641 = vmatprep.subr.bf16.mxu0 0
    %1642 = vmatpush1.bf16.xpose.msra.mxu0 0
    %1643 = vmatprep.subr.bf16.mxu0 0
    %1644 = vmatpush1.bf16.xpose.msra.mxu0 %v1627
    %1645 = vmatprep.subr.bf16.mxu0 0
    %1646 = vmatpush2.bf16.xpose.msra.mxu0 0
    %1647 = vmatprep.subr.bf16.mxu0 0
    %1648 = vmatpush2.bf16.xpose.msra.mxu0 0
    %1649 = vmatprep.subr.bf16.mxu0 0
    %1650 = vmatpush2.bf16.xpose.msra.mxu0 0
    %1651 = vmatprep.subr.bf16.mxu0 0
    %1652 = vmatpush2.bf16.xpose.msra.mxu0 0
    %1653 = vmatprep.subr.bf16.mxu0 0
    %1654 = vmatpush2.bf16.xpose.msra.mxu0 0
    %1655 = vmatprep.subr.bf16.mxu0 0
    %1656 = vmatpush2.bf16.xpose.msra.mxu0 0
    %1657 = vmatprep.subr.bf16.mxu0 0
    %1658 = vmatpush2.bf16.xpose.msra.mxu0 0
    %1659 = vmatprep.subr.bf16.mxu0 0
    %1660 = vmatpush2.bf16.xpose.msra.mxu0 0
    %1661 = vmatprep.mubr.bf16.mxu0 0
    %1662 = vmatmul.mubr.bf16.gmra.mxu0 %v1624
    %v1663 = vpop.f32.mrf.mxu0
    %v1664 = vadd.f32 %v1399, %v1663
    %v1665 = vpop.f32.mrf.mxu0
    %v1666 = vpop.f32.mrf.mxu0
    %v1667 = vpop.f32.mrf.mxu0
    %1668 = vdwg.mxu0
    %1670 = vrot.lane.b32.xlu0 %v1402, 120
    %v1671 = vpop.permute.xlu0 %1670
    %1672 = vrot.lane.b32.xlu0 %v1404, 120
    %v1673 = vpop.permute.xlu0 %1672
    %v1675 = vsel %vm208, %v1671, 0
    %v1678 = vsel %vm208, %v1673, 0
    %1680 = vmatprep.subr.bf16.mxu0 0
    %1681 = vmatpush1.bf16.xpose.msra.mxu0 0
    %1682 = vmatprep.subr.bf16.mxu0 0
    %1683 = vmatpush1.bf16.xpose.msra.mxu0 0
    %1684 = vmatprep.subr.bf16.mxu0 0
    %1685 = vmatpush1.bf16.xpose.msra.mxu0 0
    %1686 = vmatprep.subr.bf16.mxu0 0
    %1687 = vmatpush1.bf16.xpose.msra.mxu0 0
    %1688 = vmatprep.subr.bf16.mxu0 0
    %1689 = vmatpush1.bf16.xpose.msra.mxu0 0
    %1690 = vmatprep.subr.bf16.mxu0 0
    %1691 = vmatpush1.bf16.xpose.msra.mxu0 0
    %1692 = vmatprep.subr.bf16.mxu0 0
    %1693 = vmatpush1.bf16.xpose.msra.mxu0 0
    %1694 = vmatprep.subr.bf16.mxu0 0
    %1695 = vmatpush1.bf16.xpose.msra.mxu0 %v1678
    %1696 = vmatprep.subr.bf16.mxu0 0
    %1697 = vmatpush2.bf16.xpose.msra.mxu0 0
    %1698 = vmatprep.subr.bf16.mxu0 0
    %1699 = vmatpush2.bf16.xpose.msra.mxu0 0
    %1700 = vmatprep.subr.bf16.mxu0 0
    %1701 = vmatpush2.bf16.xpose.msra.mxu0 0
    %1702 = vmatprep.subr.bf16.mxu0 0
    %1703 = vmatpush2.bf16.xpose.msra.mxu0 0
    %1704 = vmatprep.subr.bf16.mxu0 0
    %1705 = vmatpush2.bf16.xpose.msra.mxu0 0
    %1706 = vmatprep.subr.bf16.mxu0 0
    %1707 = vmatpush2.bf16.xpose.msra.mxu0 0
    %1708 = vmatprep.subr.bf16.mxu0 0
    %1709 = vmatpush2.bf16.xpose.msra.mxu0 0
    %1710 = vmatprep.subr.bf16.mxu0 0
    %1711 = vmatpush2.bf16.xpose.msra.mxu0 0
    %1712 = vmatprep.mubr.bf16.mxu0 0
    %1713 = vmatmul.mubr.bf16.gmra.mxu0 %v1675
    %v1714 = vpop.f32.mrf.mxu0
    %v1715 = vadd.f32 %v1400, %v1714
    %v1716 = vpop.f32.mrf.mxu0
    %v1717 = vpop.f32.mrf.mxu0
    %v1718 = vpop.f32.mrf.mxu0
    %1719 = vdwg.mxu0
    %v1720 = vsel %vm1497, %v1664, -inf
    %1721 = vmax.xlane.f32.xlu0 %v1720
    %v1722 = vpop.xlane.xlu0 %1721
    %v1723 = vsel %vm1497, %v1715, -inf
    %1724 = vmax.xlane.f32.xlu0 %v1723
    %v1725 = vpop.xlane.xlu0 %1724
    %v1726 = vsub.f32 %v1664, %v1722
    %v1727 = vsub.f32 %v1715, %v1725
    %v1728 = vmul.f32 %v1726, 1.442695
    %v1729 = vpow.pop %v1728
    %v1730 = vmul.f32 %v1727, 1.442695
    %v1731 = vpow.pop %v1730
    %v1732 = vsel %vm1497, %v1729, 0.0
    %1733 = vadd.xlane.f32.xlu0 %v1732
    %v1734 = vpop.xlane.xlu0 %1733
    %v1735 = vsel %vm1497, %v1731, 0.0
    %1736 = vadd.xlane.f32.xlu0 %v1735
    %v1737 = vpop.xlane.xlu0 %1736
    %v1738 = vrcp.pop %v1734
    %v1739 = vrcp.pop %v1737
    %v1740 = vmul.f32 %v1729, %v1738
    %v1741 = vmul.f32 %v1731, %v1739
    %v1742 = vpack.c.bf16 %v1740, %v1740
    %v1743 = vpack.c.bf16 %v1741, %v1741
    %1744 = vrot.lane.b32.xlu0 %v1403, 88
    %v1745 = vpop.permute.xlu0 %1744
    %v1748 = vsel %vm1497, %v1742, 0
    %1750 = vmatprep.subr.bf16.mxu0 0
    %1751 = vmatpush1.bf16.msra.mxu0 0
    %1752 = vmatprep.subr.bf16.mxu0 0
    %1753 = vmatpush1.bf16.msra.mxu0 0
    %1754 = vmatprep.subr.bf16.mxu0 0
    %1755 = vmatpush1.bf16.msra.mxu0 0
    %1756 = vmatprep.subr.bf16.mxu0 0
    %1757 = vmatpush1.bf16.msra.mxu0 0
    %1758 = vmatprep.subr.bf16.mxu0 0
    %1759 = vmatpush1.bf16.msra.mxu0 0
    %1760 = vmatprep.subr.bf16.mxu0 0
    %1761 = vmatpush1.bf16.msra.mxu0 0
    %1762 = vmatprep.subr.bf16.mxu0 0
    %1763 = vmatpush1.bf16.msra.mxu0 0
    %1764 = vmatprep.subr.bf16.mxu0 0
    %1765 = vmatpush1.bf16.msra.mxu0 %v1745
    %1766 = vmatprep.subr.bf16.mxu0 0
    %1767 = vmatpush2.bf16.msra.mxu0 0
    %1768 = vmatprep.subr.bf16.mxu0 0
    %1769 = vmatpush2.bf16.msra.mxu0 0
    %1770 = vmatprep.subr.bf16.mxu0 0
    %1771 = vmatpush2.bf16.msra.mxu0 0
    %1772 = vmatprep.subr.bf16.mxu0 0
    %1773 = vmatpush2.bf16.msra.mxu0 0
    %1774 = vmatprep.subr.bf16.mxu0 0
    %1775 = vmatpush2.bf16.msra.mxu0 0
    %1776 = vmatprep.subr.bf16.mxu0 0
    %1777 = vmatpush2.bf16.msra.mxu0 0
    %1778 = vmatprep.subr.bf16.mxu0 0
    %1779 = vmatpush2.bf16.msra.mxu0 0
    %1780 = vmatprep.subr.bf16.mxu0 0
    %1781 = vmatpush2.bf16.msra.mxu0 0
    %1782 = vmatprep.mubr.bf16.mxu0 0
    %1783 = vmatmul.mubr.bf16.gmra.mxu0 %v1748
    %v1784 = vpop.f32.mrf.mxu0
    %v1785 = vadd.f32 0.0, %v1784
    %v1786 = vpop.f32.mrf.mxu0
    %v1787 = vpop.f32.mrf.mxu0
    %v1788 = vpop.f32.mrf.mxu0
    %1789 = vdwg.mxu0
    %1790 = vrot.lane.b32.xlu0 %v1404, 88
    %v1791 = vpop.permute.xlu0 %1790
    %v1794 = vsel %vm1497, %v1743, 0
    %1796 = vmatprep.subr.bf16.mxu0 0
    %1797 = vmatpush1.bf16.msra.mxu0 0
    %1798 = vmatprep.subr.bf16.mxu0 0
    %1799 = vmatpush1.bf16.msra.mxu0 0
    %1800 = vmatprep.subr.bf16.mxu0 0
    %1801 = vmatpush1.bf16.msra.mxu0 0
    %1802 = vmatprep.subr.bf16.mxu0 0
    %1803 = vmatpush1.bf16.msra.mxu0 0
    %1804 = vmatprep.subr.bf16.mxu0 0
    %1805 = vmatpush1.bf16.msra.mxu0 0
    %1806 = vmatprep.subr.bf16.mxu0 0
    %1807 = vmatpush1.bf16.msra.mxu0 0
    %1808 = vmatprep.subr.bf16.mxu0 0
    %1809 = vmatpush1.bf16.msra.mxu0 0
    %1810 = vmatprep.subr.bf16.mxu0 0
    %1811 = vmatpush1.bf16.msra.mxu0 %v1791
    %1812 = vmatprep.subr.bf16.mxu0 0
    %1813 = vmatpush2.bf16.msra.mxu0 0
    %1814 = vmatprep.subr.bf16.mxu0 0
    %1815 = vmatpush2.bf16.msra.mxu0 0
    %1816 = vmatprep.subr.bf16.mxu0 0
    %1817 = vmatpush2.bf16.msra.mxu0 0
    %1818 = vmatprep.subr.bf16.mxu0 0
    %1819 = vmatpush2.bf16.msra.mxu0 0
    %1820 = vmatprep.subr.bf16.mxu0 0
    %1821 = vmatpush2.bf16.msra.mxu0 0
    %1822 = vmatprep.subr.bf16.mxu0 0
    %1823 = vmatpush2.bf16.msra.mxu0 0
    %1824 = vmatprep.subr.bf16.mxu0 0
    %1825 = vmatpush2.bf16.msra.mxu0 0
    %1826 = vmatprep.subr.bf16.mxu0 0
    %1827 = vmatpush2.bf16.msra.mxu0 0
    %1828 = vmatprep.mubr.bf16.mxu0 0
    %1829 = vmatmul.mubr.bf16.gmra.mxu0 %v1794
    %v1830 = vpop.f32.mrf.mxu0
    %v1831 = vadd.f32 0.0, %v1830
    %v1832 = vpop.f32.mrf.mxu0
    %v1833 = vpop.f32.mrf.mxu0
    %v1834 = vpop.f32.mrf.mxu0
    %1835 = vdwg.mxu0
    %1838 = vrot.lane.b32.xlu0 %v1785, 8
    %v1839 = vpop.permute.xlu0 %1838
    %1840 = vrot.lane.b32.xlu0 %v1831, 8
    %v1841 = vpop.permute.xlu0 %1840
    %1844 = vst.msk [vmem:[#allocation2] sm:$0xff] %vm655, %v1839
    %1845 = vst.msk [vmem:[#allocation2 + $0x8] sm:$0xff] %vm655, %v1841
    %1846 = vrot.lane.b32.xlu0 %v1401, 112
    %v1847 = vpop.permute.xlu0 %1846
    %1848 = vrot.lane.b32.xlu0 %v1403, 112
    %v1849 = vpop.permute.xlu0 %1848
    %v1851 = vsel %vm208, %v1847, 0
    %v1854 = vsel %vm208, %v1849, 0
    %1856 = vmatprep.subr.bf16.mxu0 0
    %1857 = vmatpush1.bf16.xpose.msra.mxu0 0
    %1858 = vmatprep.subr.bf16.mxu0 0
    %1859 = vmatpush1.bf16.xpose.msra.mxu0 0
    %1860 = vmatprep.subr.bf16.mxu0 0
    %1861 = vmatpush1.bf16.xpose.msra.mxu0 0
    %1862 = vmatprep.subr.bf16.mxu0 0
    %1863 = vmatpush1.bf16.xpose.msra.mxu0 0
    %1864 = vmatprep.subr.bf16.mxu0 0
    %1865 = vmatpush1.bf16.xpose.msra.mxu0 0
    %1866 = vmatprep.subr.bf16.mxu0 0
    %1867 = vmatpush1.bf16.xpose.msra.mxu0 0
    %1868 = vmatprep.subr.bf16.mxu0 0
    %1869 = vmatpush1.bf16.xpose.msra.mxu0 0
    %1870 = vmatprep.subr.bf16.mxu0 0
    %1871 = vmatpush1.bf16.xpose.msra.mxu0 %v1854
    %1872 = vmatprep.subr.bf16.mxu0 0
    %1873 = vmatpush2.bf16.xpose.msra.mxu0 0
    %1874 = vmatprep.subr.bf16.mxu0 0
    %1875 = vmatpush2.bf16.xpose.msra.mxu0 0
    %1876 = vmatprep.subr.bf16.mxu0 0
    %1877 = vmatpush2.bf16.xpose.msra.mxu0 0
    %1878 = vmatprep.subr.bf16.mxu0 0
    %1879 = vmatpush2.bf16.xpose.msra.mxu0 0
    %1880 = vmatprep.subr.bf16.mxu0 0
    %1881 = vmatpush2.bf16.xpose.msra.mxu0 0
    %1882 = vmatprep.subr.bf16.mxu0 0
    %1883 = vmatpush2.bf16.xpose.msra.mxu0 0
    %1884 = vmatprep.subr.bf16.mxu0 0
    %1885 = vmatpush2.bf16.xpose.msra.mxu0 0
    %1886 = vmatprep.subr.bf16.mxu0 0
    %1887 = vmatpush2.bf16.xpose.msra.mxu0 0
    %1888 = vmatprep.mubr.bf16.mxu0 0
    %1889 = vmatmul.mubr.bf16.gmra.mxu0 %v1851
    %v1890 = vpop.f32.mrf.mxu0
    %v1891 = vadd.f32 %v1399, %v1890
    %v1892 = vpop.f32.mrf.mxu0
    %v1893 = vpop.f32.mrf.mxu0
    %v1894 = vpop.f32.mrf.mxu0
    %1895 = vdwg.mxu0
    %1896 = vrot.lane.b32.xlu0 %v1402, 112
    %v1897 = vpop.permute.xlu0 %1896
    %1898 = vrot.lane.b32.xlu0 %v1404, 112
    %v1899 = vpop.permute.xlu0 %1898
    %v1901 = vsel %vm208, %v1897, 0
    %v1904 = vsel %vm208, %v1899, 0
    %1906 = vmatprep.subr.bf16.mxu0 0
    %1907 = vmatpush1.bf16.xpose.msra.mxu0 0
    %1908 = vmatprep.subr.bf16.mxu0 0
    %1909 = vmatpush1.bf16.xpose.msra.mxu0 0
    %1910 = vmatprep.subr.bf16.mxu0 0
    %1911 = vmatpush1.bf16.xpose.msra.mxu0 0
    %1912 = vmatprep.subr.bf16.mxu0 0
    %1913 = vmatpush1.bf16.xpose.msra.mxu0 0
    %1914 = vmatprep.subr.bf16.mxu0 0
    %1915 = vmatpush1.bf16.xpose.msra.mxu0 0
    %1916 = vmatprep.subr.bf16.mxu0 0
    %1917 = vmatpush1.bf16.xpose.msra.mxu0 0
    %1918 = vmatprep.subr.bf16.mxu0 0
    %1919 = vmatpush1.bf16.xpose.msra.mxu0 0
    %1920 = vmatprep.subr.bf16.mxu0 0
    %1921 = vmatpush1.bf16.xpose.msra.mxu0 %v1904
    %1922 = vmatprep.subr.bf16.mxu0 0
    %1923 = vmatpush2.bf16.xpose.msra.mxu0 0
    %1924 = vmatprep.subr.bf16.mxu0 0
    %1925 = vmatpush2.bf16.xpose.msra.mxu0 0
    %1926 = vmatprep.subr.bf16.mxu0 0
    %1927 = vmatpush2.bf16.xpose.msra.mxu0 0
    %1928 = vmatprep.subr.bf16.mxu0 0
    %1929 = vmatpush2.bf16.xpose.msra.mxu0 0
    %1930 = vmatprep.subr.bf16.mxu0 0
    %1931 = vmatpush2.bf16.xpose.msra.mxu0 0
    %1932 = vmatprep.subr.bf16.mxu0 0
    %1933 = vmatpush2.bf16.xpose.msra.mxu0 0
    %1934 = vmatprep.subr.bf16.mxu0 0
    %1935 = vmatpush2.bf16.xpose.msra.mxu0 0
    %1936 = vmatprep.subr.bf16.mxu0 0
    %1937 = vmatpush2.bf16.xpose.msra.mxu0 0
    %1938 = vmatprep.mubr.bf16.mxu0 0
    %1939 = vmatmul.mubr.bf16.gmra.mxu0 %v1901
    %v1940 = vpop.f32.mrf.mxu0
    %v1941 = vadd.f32 %v1400, %v1940
    %v1942 = vpop.f32.mrf.mxu0
    %v1943 = vpop.f32.mrf.mxu0
    %v1944 = vpop.f32.mrf.mxu0
    %1945 = vdwg.mxu0
    %v1946 = vsel %vm1497, %v1891, -inf
    %1947 = vmax.xlane.f32.xlu0 %v1946
    %v1948 = vpop.xlane.xlu0 %1947
    %v1949 = vsel %vm1497, %v1941, -inf
    %1950 = vmax.xlane.f32.xlu0 %v1949
    %v1951 = vpop.xlane.xlu0 %1950
    %v1952 = vsub.f32 %v1891, %v1948
    %v1953 = vsub.f32 %v1941, %v1951
    %v1954 = vmul.f32 %v1952, 1.442695
    %v1955 = vpow.pop %v1954
    %v1956 = vmul.f32 %v1953, 1.442695
    %v1957 = vpow.pop %v1956
    %v1958 = vsel %vm1497, %v1955, 0.0
    %1959 = vadd.xlane.f32.xlu0 %v1958
    %v1960 = vpop.xlane.xlu0 %1959
    %v1961 = vsel %vm1497, %v1957, 0.0
    %1962 = vadd.xlane.f32.xlu0 %v1961
    %v1963 = vpop.xlane.xlu0 %1962
    %v1964 = vrcp.pop %v1960
    %v1965 = vrcp.pop %v1963
    %v1966 = vmul.f32 %v1955, %v1964
    %v1967 = vmul.f32 %v1957, %v1965
    %v1968 = vpack.c.bf16 %v1966, %v1966
    %v1969 = vpack.c.bf16 %v1967, %v1967
    %1970 = vrot.lane.b32.xlu0 %v1403, 80
    %v1971 = vpop.permute.xlu0 %1970
    %v1974 = vsel %vm1497, %v1968, 0
    %1976 = vmatprep.subr.bf16.mxu0 0
    %1977 = vmatpush1.bf16.msra.mxu0 0
    %1978 = vmatprep.subr.bf16.mxu0 0
    %1979 = vmatpush1.bf16.msra.mxu0 0
    %1980 = vmatprep.subr.bf16.mxu0 0
    %1981 = vmatpush1.bf16.msra.mxu0 0
    %1982 = vmatprep.subr.bf16.mxu0 0
    %1983 = vmatpush1.bf16.msra.mxu0 0
    %1984 = vmatprep.subr.bf16.mxu0 0
    %1985 = vmatpush1.bf16.msra.mxu0 0
    %1986 = vmatprep.subr.bf16.mxu0 0
    %1987 = vmatpush1.bf16.msra.mxu0 0
    %1988 = vmatprep.subr.bf16.mxu0 0
    %1989 = vmatpush1.bf16.msra.mxu0 0
    %1990 = vmatprep.subr.bf16.mxu0 0
    %1991 = vmatpush1.bf16.msra.mxu0 %v1971
    %1992 = vmatprep.subr.bf16.mxu0 0
    %1993 = vmatpush2.bf16.msra.mxu0 0
    %1994 = vmatprep.subr.bf16.mxu0 0
    %1995 = vmatpush2.bf16.msra.mxu0 0
    %1996 = vmatprep.subr.bf16.mxu0 0
    %1997 = vmatpush2.bf16.msra.mxu0 0
    %1998 = vmatprep.subr.bf16.mxu0 0
    %1999 = vmatpush2.bf16.msra.mxu0 0
    %2000 = vmatprep.subr.bf16.mxu0 0
    %2001 = vmatpush2.bf16.msra.mxu0 0
    %2002 = vmatprep.subr.bf16.mxu0 0
    %2003 = vmatpush2.bf16.msra.mxu0 0
    %2004 = vmatprep.subr.bf16.mxu0 0
    %2005 = vmatpush2.bf16.msra.mxu0 0
    %2006 = vmatprep.subr.bf16.mxu0 0
    %2007 = vmatpush2.bf16.msra.mxu0 0
    %2008 = vmatprep.mubr.bf16.mxu0 0
    %2009 = vmatmul.mubr.bf16.gmra.mxu0 %v1974
    %v2010 = vpop.f32.mrf.mxu0
    %v2011 = vadd.f32 0.0, %v2010
    %v2012 = vpop.f32.mrf.mxu0
    %v2013 = vpop.f32.mrf.mxu0
    %v2014 = vpop.f32.mrf.mxu0
    %2015 = vdwg.mxu0
    %2016 = vrot.lane.b32.xlu0 %v1404, 80
    %v2017 = vpop.permute.xlu0 %2016
    %v2020 = vsel %vm1497, %v1969, 0
    %2022 = vmatprep.subr.bf16.mxu0 0
    %2023 = vmatpush1.bf16.msra.mxu0 0
    %2024 = vmatprep.subr.bf16.mxu0 0
    %2025 = vmatpush1.bf16.msra.mxu0 0
    %2026 = vmatprep.subr.bf16.mxu0 0
    %2027 = vmatpush1.bf16.msra.mxu0 0
    %2028 = vmatprep.subr.bf16.mxu0 0
    %2029 = vmatpush1.bf16.msra.mxu0 0
    %2030 = vmatprep.subr.bf16.mxu0 0
    %2031 = vmatpush1.bf16.msra.mxu0 0
    %2032 = vmatprep.subr.bf16.mxu0 0
    %2033 = vmatpush1.bf16.msra.mxu0 0
    %2034 = vmatprep.subr.bf16.mxu0 0
    %2035 = vmatpush1.bf16.msra.mxu0 0
    %2036 = vmatprep.subr.bf16.mxu0 0
    %2037 = vmatpush1.bf16.msra.mxu0 %v2017
    %2038 = vmatprep.subr.bf16.mxu0 0
    %2039 = vmatpush2.bf16.msra.mxu0 0
    %2040 = vmatprep.subr.bf16.mxu0 0
    %2041 = vmatpush2.bf16.msra.mxu0 0
    %2042 = vmatprep.subr.bf16.mxu0 0
    %2043 = vmatpush2.bf16.msra.mxu0 0
    %2044 = vmatprep.subr.bf16.mxu0 0
    %2045 = vmatpush2.bf16.msra.mxu0 0
    %2046 = vmatprep.subr.bf16.mxu0 0
    %2047 = vmatpush2.bf16.msra.mxu0 0
    %2048 = vmatprep.subr.bf16.mxu0 0
    %2049 = vmatpush2.bf16.msra.mxu0 0
    %2050 = vmatprep.subr.bf16.mxu0 0
    %2051 = vmatpush2.bf16.msra.mxu0 0
    %2052 = vmatprep.subr.bf16.mxu0 0
    %2053 = vmatpush2.bf16.msra.mxu0 0
    %2054 = vmatprep.mubr.bf16.mxu0 0
    %2055 = vmatmul.mubr.bf16.gmra.mxu0 %v2020
    %v2056 = vpop.f32.mrf.mxu0
    %v2057 = vadd.f32 0.0, %v2056
    %v2058 = vpop.f32.mrf.mxu0
    %v2059 = vpop.f32.mrf.mxu0
    %v2060 = vpop.f32.mrf.mxu0
    %2061 = vdwg.mxu0
    %2064 = vrot.lane.b32.xlu0 %v2011, 16
    %v2065 = vpop.permute.xlu0 %2064
    %2066 = vrot.lane.b32.xlu0 %v2057, 16
    %v2067 = vpop.permute.xlu0 %2066
    %2070 = vst.msk [vmem:[#allocation2] sm:$0xff] %vm886, %v2065
    %2071 = vst.msk [vmem:[#allocation2 + $0x8] sm:$0xff] %vm886, %v2067
    %2072 = vrot.lane.b32.xlu0 %v1401, 104
    %v2073 = vpop.permute.xlu0 %2072
    %2074 = vrot.lane.b32.xlu0 %v1403, 104
    %v2075 = vpop.permute.xlu0 %2074
    %v2077 = vsel %vm208, %v2073, 0
    %v2080 = vsel %vm208, %v2075, 0
    %2082 = vmatprep.subr.bf16.mxu0 0
    %2083 = vmatpush1.bf16.xpose.msra.mxu0 0
    %2084 = vmatprep.subr.bf16.mxu0 0
    %2085 = vmatpush1.bf16.xpose.msra.mxu0 0
    %2086 = vmatprep.subr.bf16.mxu0 0
    %2087 = vmatpush1.bf16.xpose.msra.mxu0 0
    %2088 = vmatprep.subr.bf16.mxu0 0
    %2089 = vmatpush1.bf16.xpose.msra.mxu0 0
    %2090 = vmatprep.subr.bf16.mxu0 0
    %2091 = vmatpush1.bf16.xpose.msra.mxu0 0
    %2092 = vmatprep.subr.bf16.mxu0 0
    %2093 = vmatpush1.bf16.xpose.msra.mxu0 0
    %2094 = vmatprep.subr.bf16.mxu0 0
    %2095 = vmatpush1.bf16.xpose.msra.mxu0 0
    %2096 = vmatprep.subr.bf16.mxu0 0
    %2097 = vmatpush1.bf16.xpose.msra.mxu0 %v2080
    %2098 = vmatprep.subr.bf16.mxu0 0
    %2099 = vmatpush2.bf16.xpose.msra.mxu0 0
    %2100 = vmatprep.subr.bf16.mxu0 0
    %2101 = vmatpush2.bf16.xpose.msra.mxu0 0
    %2102 = vmatprep.subr.bf16.mxu0 0
    %2103 = vmatpush2.bf16.xpose.msra.mxu0 0
    %2104 = vmatprep.subr.bf16.mxu0 0
    %2105 = vmatpush2.bf16.xpose.msra.mxu0 0
    %2106 = vmatprep.subr.bf16.mxu0 0
    %2107 = vmatpush2.bf16.xpose.msra.mxu0 0
    %2108 = vmatprep.subr.bf16.mxu0 0
    %2109 = vmatpush2.bf16.xpose.msra.mxu0 0
    %2110 = vmatprep.subr.bf16.mxu0 0
    %2111 = vmatpush2.bf16.xpose.msra.mxu0 0
    %2112 = vmatprep.subr.bf16.mxu0 0
    %2113 = vmatpush2.bf16.xpose.msra.mxu0 0
    %2114 = vmatprep.mubr.bf16.mxu0 0
    %2115 = vmatmul.mubr.bf16.gmra.mxu0 %v2077
    %v2116 = vpop.f32.mrf.mxu0
    %v2117 = vadd.f32 %v1399, %v2116
    %v2118 = vpop.f32.mrf.mxu0
    %v2119 = vpop.f32.mrf.mxu0
    %v2120 = vpop.f32.mrf.mxu0
    %2121 = vdwg.mxu0
    %2122 = vrot.lane.b32.xlu0 %v1402, 104
    %v2123 = vpop.permute.xlu0 %2122
    %2124 = vrot.lane.b32.xlu0 %v1404, 104
    %v2125 = vpop.permute.xlu0 %2124
    %v2127 = vsel %vm208, %v2123, 0
    %v2130 = vsel %vm208, %v2125, 0
    %2132 = vmatprep.subr.bf16.mxu0 0
    %2133 = vmatpush1.bf16.xpose.msra.mxu0 0
    %2134 = vmatprep.subr.bf16.mxu0 0
    %2135 = vmatpush1.bf16.xpose.msra.mxu0 0
    %2136 = vmatprep.subr.bf16.mxu0 0
    %2137 = vmatpush1.bf16.xpose.msra.mxu0 0
    %2138 = vmatprep.subr.bf16.mxu0 0
    %2139 = vmatpush1.bf16.xpose.msra.mxu0 0
    %2140 = vmatprep.subr.bf16.mxu0 0
    %2141 = vmatpush1.bf16.xpose.msra.mxu0 0
    %2142 = vmatprep.subr.bf16.mxu0 0
    %2143 = vmatpush1.bf16.xpose.msra.mxu0 0
    %2144 = vmatprep.subr.bf16.mxu0 0
    %2145 = vmatpush1.bf16.xpose.msra.mxu0 0
    %2146 = vmatprep.subr.bf16.mxu0 0
    %2147 = vmatpush1.bf16.xpose.msra.mxu0 %v2130
    %2148 = vmatprep.subr.bf16.mxu0 0
    %2149 = vmatpush2.bf16.xpose.msra.mxu0 0
    %2150 = vmatprep.subr.bf16.mxu0 0
    %2151 = vmatpush2.bf16.xpose.msra.mxu0 0
    %2152 = vmatprep.subr.bf16.mxu0 0
    %2153 = vmatpush2.bf16.xpose.msra.mxu0 0
    %2154 = vmatprep.subr.bf16.mxu0 0
    %2155 = vmatpush2.bf16.xpose.msra.mxu0 0
    %2156 = vmatprep.subr.bf16.mxu0 0
    %2157 = vmatpush2.bf16.xpose.msra.mxu0 0
    %2158 = vmatprep.subr.bf16.mxu0 0
    %2159 = vmatpush2.bf16.xpose.msra.mxu0 0
    %2160 = vmatprep.subr.bf16.mxu0 0
    %2161 = vmatpush2.bf16.xpose.msra.mxu0 0
    %2162 = vmatprep.subr.bf16.mxu0 0
    %2163 = vmatpush2.bf16.xpose.msra.mxu0 0
    %2164 = vmatprep.mubr.bf16.mxu0 0
    %2165 = vmatmul.mubr.bf16.gmra.mxu0 %v2127
    %v2166 = vpop.f32.mrf.mxu0
    %v2167 = vadd.f32 %v1400, %v2166
    %v2168 = vpop.f32.mrf.mxu0
    %v2169 = vpop.f32.mrf.mxu0
    %v2170 = vpop.f32.mrf.mxu0
    %2171 = vdwg.mxu0
    %v2172 = vsel %vm1497, %v2117, -inf
    %2173 = vmax.xlane.f32.xlu0 %v2172
    %v2174 = vpop.xlane.xlu0 %2173
    %v2175 = vsel %vm1497, %v2167, -inf
    %2176 = vmax.xlane.f32.xlu0 %v2175
    %v2177 = vpop.xlane.xlu0 %2176
    %v2178 = vsub.f32 %v2117, %v2174
    %v2179 = vsub.f32 %v2167, %v2177
    %v2180 = vmul.f32 %v2178, 1.442695
    %v2181 = vpow.pop %v2180
    %v2182 = vmul.f32 %v2179, 1.442695
    %v2183 = vpow.pop %v2182
    %v2184 = vsel %vm1497, %v2181, 0.0
    %2185 = vadd.xlane.f32.xlu0 %v2184
    %v2186 = vpop.xlane.xlu0 %2185
    %v2187 = vsel %vm1497, %v2183, 0.0
    %2188 = vadd.xlane.f32.xlu0 %v2187
    %v2189 = vpop.xlane.xlu0 %2188
    %v2190 = vrcp.pop %v2186
    %v2191 = vrcp.pop %v2189
    %v2192 = vmul.f32 %v2181, %v2190
    %v2193 = vmul.f32 %v2183, %v2191
    %v2194 = vpack.c.bf16 %v2192, %v2192
    %v2195 = vpack.c.bf16 %v2193, %v2193
    %2196 = vrot.lane.b32.xlu0 %v1403, 72
    %v2197 = vpop.permute.xlu0 %2196
    %v2200 = vsel %vm1497, %v2194, 0
    %2202 = vmatprep.subr.bf16.mxu0 0
    %2203 = vmatpush1.bf16.msra.mxu0 0
    %2204 = vmatprep.subr.bf16.mxu0 0
    %2205 = vmatpush1.bf16.msra.mxu0 0
    %2206 = vmatprep.subr.bf16.mxu0 0
    %2207 = vmatpush1.bf16.msra.mxu0 0
    %2208 = vmatprep.subr.bf16.mxu0 0
    %2209 = vmatpush1.bf16.msra.mxu0 0
    %2210 = vmatprep.subr.bf16.mxu0 0
    %2211 = vmatpush1.bf16.msra.mxu0 0
    %2212 = vmatprep.subr.bf16.mxu0 0
    %2213 = vmatpush1.bf16.msra.mxu0 0
    %2214 = vmatprep.subr.bf16.mxu0 0
    %2215 = vmatpush1.bf16.msra.mxu0 0
    %2216 = vmatprep.subr.bf16.mxu0 0
    %2217 = vmatpush1.bf16.msra.mxu0 %v2197
    %2218 = vmatprep.subr.bf16.mxu0 0
    %2219 = vmatpush2.bf16.msra.mxu0 0
    %2220 = vmatprep.subr.bf16.mxu0 0
    %2221 = vmatpush2.bf16.msra.mxu0 0
    %2222 = vmatprep.subr.bf16.mxu0 0
    %2223 = vmatpush2.bf16.msra.mxu0 0
    %2224 = vmatprep.subr.bf16.mxu0 0
    %2225 = vmatpush2.bf16.msra.mxu0 0
    %2226 = vmatprep.subr.bf16.mxu0 0
    %2227 = vmatpush2.bf16.msra.mxu0 0
    %2228 = vmatprep.subr.bf16.mxu0 0
    %2229 = vmatpush2.bf16.msra.mxu0 0
    %2230 = vmatprep.subr.bf16.mxu0 0
    %2231 = vmatpush2.bf16.msra.mxu0 0
    %2232 = vmatprep.subr.bf16.mxu0 0
    %2233 = vmatpush2.bf16.msra.mxu0 0
    %2234 = vmatprep.mubr.bf16.mxu0 0
    %2235 = vmatmul.mubr.bf16.gmra.mxu0 %v2200
    %v2236 = vpop.f32.mrf.mxu0
    %v2237 = vadd.f32 0.0, %v2236
    %v2238 = vpop.f32.mrf.mxu0
    %v2239 = vpop.f32.mrf.mxu0
    %v2240 = vpop.f32.mrf.mxu0
    %2241 = vdwg.mxu0
    %2242 = vrot.lane.b32.xlu0 %v1404, 72
    %v2243 = vpop.permute.xlu0 %2242
    %v2246 = vsel %vm1497, %v2195, 0
    %2248 = vmatprep.subr.bf16.mxu0 0
    %2249 = vmatpush1.bf16.msra.mxu0 0
    %2250 = vmatprep.subr.bf16.mxu0 0
    %2251 = vmatpush1.bf16.msra.mxu0 0
    %2252 = vmatprep.subr.bf16.mxu0 0
    %2253 = vmatpush1.bf16.msra.mxu0 0
    %2254 = vmatprep.subr.bf16.mxu0 0
    %2255 = vmatpush1.bf16.msra.mxu0 0
    %2256 = vmatprep.subr.bf16.mxu0 0
    %2257 = vmatpush1.bf16.msra.mxu0 0
    %2258 = vmatprep.subr.bf16.mxu0 0
    %2259 = vmatpush1.bf16.msra.mxu0 0
    %2260 = vmatprep.subr.bf16.mxu0 0
    %2261 = vmatpush1.bf16.msra.mxu0 0
    %2262 = vmatprep.subr.bf16.mxu0 0
    %2263 = vmatpush1.bf16.msra.mxu0 %v2243
    %2264 = vmatprep.subr.bf16.mxu0 0
    %2265 = vmatpush2.bf16.msra.mxu0 0
    %2266 = vmatprep.subr.bf16.mxu0 0
    %2267 = vmatpush2.bf16.msra.mxu0 0
    %2268 = vmatprep.subr.bf16.mxu0 0
    %2269 = vmatpush2.bf16.msra.mxu0 0
    %2270 = vmatprep.subr.bf16.mxu0 0
    %2271 = vmatpush2.bf16.msra.mxu0 0
    %2272 = vmatprep.subr.bf16.mxu0 0
    %2273 = vmatpush2.bf16.msra.mxu0 0
    %2274 = vmatprep.subr.bf16.mxu0 0
    %2275 = vmatpush2.bf16.msra.mxu0 0
    %2276 = vmatprep.subr.bf16.mxu0 0
    %2277 = vmatpush2.bf16.msra.mxu0 0
    %2278 = vmatprep.subr.bf16.mxu0 0
    %2279 = vmatpush2.bf16.msra.mxu0 0
    %2280 = vmatprep.mubr.bf16.mxu0 0
    %2281 = vmatmul.mubr.bf16.gmra.mxu0 %v2246
    %v2282 = vpop.f32.mrf.mxu0
    %v2283 = vadd.f32 0.0, %v2282
    %v2284 = vpop.f32.mrf.mxu0
    %v2285 = vpop.f32.mrf.mxu0
    %v2286 = vpop.f32.mrf.mxu0
    %2287 = vdwg.mxu0
    %2290 = vrot.lane.b32.xlu0 %v2237, 24
    %v2291 = vpop.permute.xlu0 %2290
    %2292 = vrot.lane.b32.xlu0 %v2283, 24
    %v2293 = vpop.permute.xlu0 %2292
    %2296 = vst.msk [vmem:[#allocation2] sm:$0xff] %vm1117, %v2291
    %2297 = vst.msk [vmem:[#allocation2 + $0x8] sm:$0xff] %vm1117, %v2293
    %vm2298 = vcmask 125952
    %2299 = vst.msk [vmem:[#allocation7] sm:$0xf] %vm2298, %v1520
    %2300 = vst.msk [vmem:[#allocation7 + $0x4] sm:$0xf] %vm2298, %v1742
    %2301 = vst.msk [vmem:[#allocation7 + $0x8] sm:$0xf] %vm2298, %v1968
    %2302 = vst.msk [vmem:[#allocation7 + $0xc] sm:$0xf] %vm2298, %v2194
    %2303 = vst.msk [vmem:[#allocation7 + $0x10] sm:$0xf] %vm2298, %v1521
    %2304 = vst.msk [vmem:[#allocation7 + $0x14] sm:$0xf] %vm2298, %v1743
    %2305 = vst.msk [vmem:[#allocation7 + $0x18] sm:$0xf] %vm2298, %v1969
    %2306 = vst.msk [vmem:[#allocation7 + $0x1c] sm:$0xf] %vm2298, %v2195
    %v2307 = vld [vmem:[#allocation2] sm:$0xff]
    %v2308 = vld [vmem:[#allocation2 + $0x8] sm:$0xff]
    %v2309 = vld [vmem:[%s16] sm:$0xf]
    %v2310 = vld [vmem:[%s16 + $0x4] sm:$0xf]
    %v2311 = vld [vmem:[%s16 + $0x8] sm:$0xf]
    %v2312 = vld [vmem:[%s16 + $0xc] sm:$0xf]
    %v2313 = vpack.c.bf16 %v2308, %v2307
    %v2318 = vunpack.c.l.b16 %v2309
    %v2319 = vunpack.c.l.b16 %v2310
    %v2320 = vunpack.c.l.b16 %v2311
    %v2321 = vunpack.c.l.b16 %v2312
    %v2322 = vpack.c.b16 %v2319, %v2318
    %v2323 = vpack.c.b16 %v2321, %v2320
    %v2327 = vsel %vm89, %v2313, 0
    %2329 = vmatprep.subr.bf16.mxu0 0
    %2330 = vmatpush1.bf16.msra.mxu0 0
    %2331 = vmatprep.subr.bf16.mxu0 0
    %2332 = vmatpush1.bf16.msra.mxu0 0
    %2333 = vmatprep.subr.bf16.mxu0 0
    %2334 = vmatpush1.bf16.msra.mxu0 0
    %2335 = vmatprep.subr.bf16.mxu0 0
    %2336 = vmatpush1.bf16.msra.mxu0 0
    %2337 = vmatprep.subr.bf16.mxu0 0
    %2338 = vmatpush1.bf16.msra.mxu0 0
    %2339 = vmatprep.subr.bf16.mxu0 0
    %2340 = vmatpush1.bf16.msra.mxu0 0
    %2341 = vmatprep.subr.bf16.mxu0 0
    %2342 = vmatpush1.bf16.msra.mxu0 %v2323
    %2343 = vmatprep.subr.bf16.mxu0 0
    %2344 = vmatpush1.bf16.msra.mxu0 %v2322
    %2345 = vmatprep.subr.bf16.mxu0 0
    %2346 = vmatpush2.bf16.msra.mxu0 0
    %2347 = vmatprep.subr.bf16.mxu0 0
    %2348 = vmatpush2.bf16.msra.mxu0 0
    %2349 = vmatprep.subr.bf16.mxu0 0
    %2350 = vmatpush2.bf16.msra.mxu0 0
    %2351 = vmatprep.subr.bf16.mxu0 0
    %2352 = vmatpush2.bf16.msra.mxu0 0
    %2353 = vmatprep.subr.bf16.mxu0 0
    %2354 = vmatpush2.bf16.msra.mxu0 0
    %2355 = vmatprep.subr.bf16.mxu0 0
    %2356 = vmatpush2.bf16.msra.mxu0 0
    %2357 = vmatprep.subr.bf16.mxu0 0
    %2358 = vmatpush2.bf16.msra.mxu0 0
    %2359 = vmatprep.subr.bf16.mxu0 0
    %2360 = vmatpush2.bf16.msra.mxu0 0
    %2361 = vmatprep.mubr.bf16.mxu0 0
    %2362 = vmatmul.mubr.bf16.gmra.mxu0 %v2327
    %v2363 = vpop.f32.mrf.mxu0
    %v2364 = vadd.f32 0.0, %v2363
    %v2365 = vpop.f32.mrf.mxu0
    %v2366 = vpop.f32.mrf.mxu0
    %v2367 = vadd.f32 0.0, %v2366
    %v2368 = vpop.f32.mrf.mxu0
    %2369 = vdwg.mxu0
    %v2370 = vadd.f32 %v1201, %v2364
    %v2371 = vadd.f32 %v1202, %v2367
    %v2372 = vld [vmem:[%s17] sm:$0x1]
    %v2374 = vlaneseq
    %v2375 = vshrl.u32 %v2374, 7
    %v2376 = vsub.s32 0, %v2375
    %v2377 = vrot.slane %v2372, %v2376
    %v2379 = vadd.f32 %v2370, %v2377
    %v2380 = vadd.f32 %v2371, %v2377
    %v2381 = vld [vmem:[%s18] sm:$0x1]
    %v2382 = vld [vmem:[%s19] sm:$0x1]
    %v2383 = vsel %vm89, %v2379, 0.0
    %2384 = vadd.xlane.f32.xlu0 %v2383
    %v2385 = vpop.xlane.xlu0 %2384
    %v2386 = vsel %vm89, %v2380, 0.0
    %2387 = vadd.xlane.f32.xlu0 %v2386
    %v2388 = vpop.xlane.xlu0 %2387
    %v2389 = vmul.f32 %v2385, %v96
    %v2390 = vmul.f32 %v2388, %v96
    %v2391 = vsub.f32 %v2379, %v2389
    %v2392 = vsub.f32 %v2380, %v2390
    %v2393 = vmul.f32 %v2391, %v2391
    %v2394 = vmul.f32 %v2392, %v2392
    %v2395 = vsel %vm89, %v2393, 0.0
    %2396 = vadd.xlane.f32.xlu0 %v2395
    %v2397 = vpop.xlane.xlu0 %2396
    %v2398 = vsel %vm89, %v2394, 0.0
    %2399 = vadd.xlane.f32.xlu0 %v2398
    %v2400 = vpop.xlane.xlu0 %2399
    %v2401 = vmul.f32 %v2397, %v96
    %v2402 = vmul.f32 %v2400, %v96
    %v2403 = vadd.f32 %v2401, 1e-05
    %v2404 = vadd.f32 %v2402, 1e-05
    %v2405 = vrsqrt.pop %v2403
    %v2406 = vrsqrt.pop %v2404
    %v2407 = vmul.f32 %v2391, %v2405
    %v2408 = vmul.f32 %v2392, %v2406
    %v2410 = vlaneseq
    %v2411 = vshrl.u32 %v2410, 7
    %v2412 = vsub.s32 0, %v2411
    %v2413 = vrot.slane %v2381, %v2412
    %v2415 = vmul.f32 %v2407, %v2413
    %v2416 = vmul.f32 %v2408, %v2413
    %v2418 = vlaneseq
    %v2419 = vshrl.u32 %v2418, 7
    %v2420 = vsub.s32 0, %v2419
    %v2421 = vrot.slane %v2382, %v2420
    %v2423 = vadd.f32 %v2415, %v2421
    %v2424 = vadd.f32 %v2416, %v2421
    %v2425 = vlaneseq
    %v2426 = vshrl.u32 %v2425, 7
    %v2427 = vadd.s32 %v2426, 8
    %vm2428 = vcmp.lt.s32.totalorder %v2426, 0
    %v2429 = vsub.s32 0, %v2426
    %v2430 = vsel %vm2428, %v2429, %v2426
    %v2431 = vshrl.u32 %v2430, 3
    %v2432 = vand.u32 %v2430, 7
    %v2433 = vsub.s32 0, %v2432
    %v2434 = vsel %vm2428, %v2433, %v2432
    %vm2435 = vcmp.lt.s32.totalorder %v2427, 0
    %v2436 = vsub.s32 0, %v2427
    %v2437 = vsel %vm2435, %v2436, %v2427
    %v2438 = vshrl.u32 %v2437, 3
    %v2439 = vand.u32 %v2437, 7
    %v2440 = vsub.s32 0, %v2439
    %v2441 = vsel %vm2435, %v2440, %v2439
    %vm2442 = vcmp.ne.s32.totalorder %v2434, 0
    %vm2443 = vcmp.ne.s32.totalorder %v2441, 0
    %vm2444 = vcmp.lt.s32.totalorder %v2434, 0
    %vm2445 = vcmp.lt.s32.totalorder %v2441, 0
    %vm2446 = vmand %vm2444, %vm2442
    %vm2447 = vmand %vm2445, %vm2443
    %v2448 = vadd.s32 %v2434, 8
    %v2449 = vadd.s32 %v2441, 8
    %v2450 = vsel %vm2446, %v2448, %v2434
    %v2451 = vsel %vm2447, %v2449, %v2441
    %v2452 = vrot.slane %v2423, 6
    %v2453 = vrot.slane %v2424, 6
    %vm2454 = vcmp.lt.s32.totalorder %v2426, 2
    %v2455 = vsel %vm2454, %v2452, %v2453
    %v2456 = vsel %vm2454, %v2453, %v2452
    %v2457 = vadd.s32 %v2450, 4294967294
    %v2458 = vadd.s32 %v2451, 4294967294
    %vm2459 = vcmp.ge.s32.totalorder %v2457, 0
    %vm2460 = vcmp.ge.s32.totalorder %v2458, 0
    %vm2461 = vcmp.lt.s32.totalorder %v2457, 8
    %vm2462 = vcmp.lt.s32.totalorder %v2458, 8
    %vm2463 = vmand %vm2459, %vm2461
    %vm2464 = vmand %vm2460, %vm2462
    %v2465 = vsel %vm2463, 1, 0
    %v2466 = vsel %vm2464, 1, 0
    %vm2467 = vcmp.eq.s32.totalorder %v2465, 1
    %vm2468 = vcmp.eq.s32.totalorder %v2466, 1
    %v2469 = vsel %vm2467, %v2456, 0.0
    %v2470 = vsel %vm2468, %v2455, 0.0
    %v2471 = vld [vmem:[%s20] sm:$0xf]
    %v2472 = vld [vmem:[%s20 + $0x4] sm:$0xf]
    %v2473 = vld [vmem:[%s20 + $0x8] sm:$0xf]
    %v2474 = vld [vmem:[%s20 + $0xc] sm:$0xf]
    %v2475 = vpack.c.bf16 %v2470, %v2469
    %v2476 = vrot.slane %v2423, 7
    %v2477 = vrot.slane %v2424, 7
    %vm2478 = vcmp.lt.s32.totalorder %v2426, 1
    %v2479 = vsel %vm2478, %v2476, %v2477
    %v2480 = vsel %vm2478, %v2477, %v2476
    %v2481 = vadd.s32 %v2450, 4294967295
    %v2482 = vadd.s32 %v2451, 4294967295
    %vm2483 = vcmp.ge.s32.totalorder %v2481, 0
    %vm2484 = vcmp.ge.s32.totalorder %v2482, 0
    %vm2485 = vcmp.lt.s32.totalorder %v2481, 8
    %vm2486 = vcmp.lt.s32.totalorder %v2482, 8
    %vm2487 = vmand %vm2483, %vm2485
    %vm2488 = vmand %vm2484, %vm2486
    %v2489 = vsel %vm2487, 1, 0
    %v2490 = vsel %vm2488, 1, 0
    %vm2491 = vcmp.eq.s32.totalorder %v2489, 1
    %vm2492 = vcmp.eq.s32.totalorder %v2490, 1
    %v2493 = vsel %vm2491, %v2480, 0.0
    %v2494 = vsel %vm2492, %v2479, 0.0
    %s2495 = scalar_lea.vmem %s20, 16
    %v2496 = vld [vmem:[%s2495] sm:$0xf]
    %v2497 = vld [vmem:[%s2495 + $0x4] sm:$0xf]
    %v2498 = vld [vmem:[%s2495 + $0x8] sm:$0xf]
    %v2499 = vld [vmem:[%s2495 + $0xc] sm:$0xf]
    %v2500 = vpack.c.bf16 %v2494, %v2493
    %v2505 = vunpack.c.l.b16 %v2496
    %v2506 = vunpack.c.l.b16 %v2497
    %v2507 = vunpack.c.l.b16 %v2498
    %v2508 = vunpack.c.l.b16 %v2499
    %v2509 = vpack.c.b16 %v2506, %v2505
    %v2510 = vpack.c.b16 %v2508, %v2507
    %v2514 = vsel %vm89, %v2500, 0
    %2516 = vmatprep.subr.bf16.mxu0 0
    %2517 = vmatpush1.bf16.msra.mxu0 0
    %2518 = vmatprep.subr.bf16.mxu0 0
    %2519 = vmatpush1.bf16.msra.mxu0 0
    %2520 = vmatprep.subr.bf16.mxu0 0
    %2521 = vmatpush1.bf16.msra.mxu0 0
    %2522 = vmatprep.subr.bf16.mxu0 0
    %2523 = vmatpush1.bf16.msra.mxu0 0
    %2524 = vmatprep.subr.bf16.mxu0 0
    %2525 = vmatpush1.bf16.msra.mxu0 0
    %2526 = vmatprep.subr.bf16.mxu0 0
    %2527 = vmatpush1.bf16.msra.mxu0 0
    %2528 = vmatprep.subr.bf16.mxu0 0
    %2529 = vmatpush1.bf16.msra.mxu0 %v2510
    %2530 = vmatprep.subr.bf16.mxu0 0
    %2531 = vmatpush1.bf16.msra.mxu0 %v2509
    %2532 = vmatprep.subr.bf16.mxu0 0
    %2533 = vmatpush2.bf16.msra.mxu0 0
    %2534 = vmatprep.subr.bf16.mxu0 0
    %2535 = vmatpush2.bf16.msra.mxu0 0
    %2536 = vmatprep.subr.bf16.mxu0 0
    %2537 = vmatpush2.bf16.msra.mxu0 0
    %2538 = vmatprep.subr.bf16.mxu0 0
    %2539 = vmatpush2.bf16.msra.mxu0 0
    %2540 = vmatprep.subr.bf16.mxu0 0
    %2541 = vmatpush2.bf16.msra.mxu0 0
    %2542 = vmatprep.subr.bf16.mxu0 0
    %2543 = vmatpush2.bf16.msra.mxu0 0
    %2544 = vmatprep.subr.bf16.mxu0 0
    %2545 = vmatpush2.bf16.msra.mxu0 0
    %2546 = vmatprep.subr.bf16.mxu0 0
    %2547 = vmatpush2.bf16.msra.mxu0 0
    %2548 = vmatprep.mubr.bf16.mxu0 0
    %2549 = vmatmul.mubr.bf16.gmra.mxu0 %v2514
    %v2550 = vpop.f32.mrf.mxu0
    %v2551 = vadd.f32 0.0, %v2550
    %v2552 = vpop.f32.mrf.mxu0
    %v2553 = vpop.f32.mrf.mxu0
    %v2554 = vadd.f32 0.0, %v2553
    %v2555 = vpop.f32.mrf.mxu0
    %2556 = vdwg.mxu0
    %v2561 = vunpack.c.l.b16 %v2471
    %v2562 = vunpack.c.l.b16 %v2472
    %v2563 = vunpack.c.l.b16 %v2473
    %v2564 = vunpack.c.l.b16 %v2474
    %v2565 = vpack.c.b16 %v2562, %v2561
    %v2566 = vpack.c.b16 %v2564, %v2563
    %v2570 = vsel %vm89, %v2475, 0
    %2572 = vmatprep.subr.bf16.mxu0 0
    %2573 = vmatpush1.bf16.msra.mxu0 0
    %2574 = vmatprep.subr.bf16.mxu0 0
    %2575 = vmatpush1.bf16.msra.mxu0 0
    %2576 = vmatprep.subr.bf16.mxu0 0
    %2577 = vmatpush1.bf16.msra.mxu0 0
    %2578 = vmatprep.subr.bf16.mxu0 0
    %2579 = vmatpush1.bf16.msra.mxu0 0
    %2580 = vmatprep.subr.bf16.mxu0 0
    %2581 = vmatpush1.bf16.msra.mxu0 0
    %2582 = vmatprep.subr.bf16.mxu0 0
    %2583 = vmatpush1.bf16.msra.mxu0 0
    %2584 = vmatprep.subr.bf16.mxu0 0
    %2585 = vmatpush1.bf16.msra.mxu0 %v2566
    %2586 = vmatprep.subr.bf16.mxu0 0
    %2587 = vmatpush1.bf16.msra.mxu0 %v2565
    %2588 = vmatprep.subr.bf16.mxu0 0
    %2589 = vmatpush2.bf16.msra.mxu0 0
    %2590 = vmatprep.subr.bf16.mxu0 0
    %2591 = vmatpush2.bf16.msra.mxu0 0
    %2592 = vmatprep.subr.bf16.mxu0 0
    %2593 = vmatpush2.bf16.msra.mxu0 0
    %2594 = vmatprep.subr.bf16.mxu0 0
    %2595 = vmatpush2.bf16.msra.mxu0 0
    %2596 = vmatprep.subr.bf16.mxu0 0
    %2597 = vmatpush2.bf16.msra.mxu0 0
    %2598 = vmatprep.subr.bf16.mxu0 0
    %2599 = vmatpush2.bf16.msra.mxu0 0
    %2600 = vmatprep.subr.bf16.mxu0 0
    %2601 = vmatpush2.bf16.msra.mxu0 0
    %2602 = vmatprep.subr.bf16.mxu0 0
    %2603 = vmatpush2.bf16.msra.mxu0 0
    %2604 = vmatprep.mubr.bf16.mxu0 0
    %2605 = vmatmul.mubr.bf16.gmra.mxu0 %v2570
    %v2606 = vpop.f32.mrf.mxu0
    %v2607 = vadd.f32 %v2551, %v2606
    %v2608 = vpop.f32.mrf.mxu0
    %v2609 = vpop.f32.mrf.mxu0
    %v2610 = vadd.f32 %v2554, %v2609
    %v2611 = vpop.f32.mrf.mxu0
    %2612 = vdwg.mxu0
    %s2613 = scalar_lea.vmem %s20, 32
    %v2614 = vld [vmem:[%s2613] sm:$0xf]
    %v2615 = vld [vmem:[%s2613 + $0x4] sm:$0xf]
    %v2616 = vld [vmem:[%s2613 + $0x8] sm:$0xf]
    %v2617 = vld [vmem:[%s2613 + $0xc] sm:$0xf]
    %v2618 = vpack.c.bf16 %v2424, %v2423
    %v2623 = vunpack.c.l.b16 %v2614
    %v2624 = vunpack.c.l.b16 %v2615
    %v2625 = vunpack.c.l.b16 %v2616
    %v2626 = vunpack.c.l.b16 %v2617
    %v2627 = vpack.c.b16 %v2624, %v2623
    %v2628 = vpack.c.b16 %v2626, %v2625
    %v2632 = vsel %vm89, %v2618, 0
    %2634 = vmatprep.subr.bf16.mxu0 0
    %2635 = vmatpush1.bf16.msra.mxu0 0
    %2636 = vmatprep.subr.bf16.mxu0 0
    %2637 = vmatpush1.bf16.msra.mxu0 0
    %2638 = vmatprep.subr.bf16.mxu0 0
    %2639 = vmatpush1.bf16.msra.mxu0 0
    %2640 = vmatprep.subr.bf16.mxu0 0
    %2641 = vmatpush1.bf16.msra.mxu0 0
    %2642 = vmatprep.subr.bf16.mxu0 0
    %2643 = vmatpush1.bf16.msra.mxu0 0
    %2644 = vmatprep.subr.bf16.mxu0 0
    %2645 = vmatpush1.bf16.msra.mxu0 0
    %2646 = vmatprep.subr.bf16.mxu0 0
    %2647 = vmatpush1.bf16.msra.mxu0 %v2628
    %2648 = vmatprep.subr.bf16.mxu0 0
    %2649 = vmatpush1.bf16.msra.mxu0 %v2627
    %2650 = vmatprep.subr.bf16.mxu0 0
    %2651 = vmatpush2.bf16.msra.mxu0 0
    %2652 = vmatprep.subr.bf16.mxu0 0
    %2653 = vmatpush2.bf16.msra.mxu0 0
    %2654 = vmatprep.subr.bf16.mxu0 0
    %2655 = vmatpush2.bf16.msra.mxu0 0
    %2656 = vmatprep.subr.bf16.mxu0 0
    %2657 = vmatpush2.bf16.msra.mxu0 0
    %2658 = vmatprep.subr.bf16.mxu0 0
    %2659 = vmatpush2.bf16.msra.mxu0 0
    %2660 = vmatprep.subr.bf16.mxu0 0
    %2661 = vmatpush2.bf16.msra.mxu0 0
    %2662 = vmatprep.subr.bf16.mxu0 0
    %2663 = vmatpush2.bf16.msra.mxu0 0
    %2664 = vmatprep.subr.bf16.mxu0 0
    %2665 = vmatpush2.bf16.msra.mxu0 0
    %2666 = vmatprep.mubr.bf16.mxu0 0
    %2667 = vmatmul.mubr.bf16.gmra.mxu0 %v2632
    %v2668 = vpop.f32.mrf.mxu0
    %v2669 = vadd.f32 0.0, %v2668
    %v2670 = vpop.f32.mrf.mxu0
    %v2671 = vpop.f32.mrf.mxu0
    %v2672 = vadd.f32 0.0, %v2671
    %v2673 = vpop.f32.mrf.mxu0
    %2674 = vdwg.mxu0
    %v2675 = vadd.f32 %v2607, %v2669
    %v2676 = vadd.f32 %v2610, %v2672
    %v2677 = vrot.slane %v2423, 1
    %v2678 = vrot.slane %v2424, 1
    %vm2679 = vcmp.lt.s32.totalorder %v2426, 7
    %v2680 = vsel %vm2679, %v2677, %v2678
    %v2681 = vsel %vm2679, %v2678, %v2677
    %v2682 = vadd.s32 %v2450, 1
    %v2683 = vadd.s32 %v2451, 1
    %vm2684 = vcmp.ge.s32.totalorder %v2682, 0
    %vm2685 = vcmp.ge.s32.totalorder %v2683, 0
    %vm2686 = vcmp.lt.s32.totalorder %v2682, 8
    %vm2687 = vcmp.lt.s32.totalorder %v2683, 8
    %vm2688 = vmand %vm2684, %vm2686
    %vm2689 = vmand %vm2685, %vm2687
    %v2690 = vsel %vm2688, 1, 0
    %v2691 = vsel %vm2689, 1, 0
    %vm2692 = vcmp.eq.s32.totalorder %v2690, 1
    %vm2693 = vcmp.eq.s32.totalorder %v2691, 1
    %v2694 = vsel %vm2692, %v2680, 0.0
    %v2695 = vsel %vm2693, %v2681, 0.0
    %s2696 = scalar_lea.vmem %s20, 48
    %v2697 = vld [vmem:[%s2696] sm:$0xf]
    %v2698 = vld [vmem:[%s2696 + $0x4] sm:$0xf]
    %v2699 = vld [vmem:[%s2696 + $0x8] sm:$0xf]
    %v2700 = vld [vmem:[%s2696 + $0xc] sm:$0xf]
    %v2701 = vpack.c.bf16 %v2695, %v2694
    %v2706 = vunpack.c.l.b16 %v2697
    %v2707 = vunpack.c.l.b16 %v2698
    %v2708 = vunpack.c.l.b16 %v2699
    %v2709 = vunpack.c.l.b16 %v2700
    %v2710 = vpack.c.b16 %v2707, %v2706
    %v2711 = vpack.c.b16 %v2709, %v2708
    %v2715 = vsel %vm89, %v2701, 0
    %2717 = vmatprep.subr.bf16.mxu0 0
    %2718 = vmatpush1.bf16.msra.mxu0 0
    %2719 = vmatprep.subr.bf16.mxu0 0
    %2720 = vmatpush1.bf16.msra.mxu0 0
    %2721 = vmatprep.subr.bf16.mxu0 0
    %2722 = vmatpush1.bf16.msra.mxu0 0
    %2723 = vmatprep.subr.bf16.mxu0 0
    %2724 = vmatpush1.bf16.msra.mxu0 0
    %2725 = vmatprep.subr.bf16.mxu0 0
    %2726 = vmatpush1.bf16.msra.mxu0 0
    %2727 = vmatprep.subr.bf16.mxu0 0
    %2728 = vmatpush1.bf16.msra.mxu0 0
    %2729 = vmatprep.subr.bf16.mxu0 0
    %2730 = vmatpush1.bf16.msra.mxu0 %v2711
    %2731 = vmatprep.subr.bf16.mxu0 0
    %2732 = vmatpush1.bf16.msra.mxu0 %v2710
    %2733 = vmatprep.subr.bf16.mxu0 0
    %2734 = vmatpush2.bf16.msra.mxu0 0
    %2735 = vmatprep.subr.bf16.mxu0 0
    %2736 = vmatpush2.bf16.msra.mxu0 0
    %2737 = vmatprep.subr.bf16.mxu0 0
    %2738 = vmatpush2.bf16.msra.mxu0 0
    %2739 = vmatprep.subr.bf16.mxu0 0
    %2740 = vmatpush2.bf16.msra.mxu0 0
    %2741 = vmatprep.subr.bf16.mxu0 0
    %2742 = vmatpush2.bf16.msra.mxu0 0
    %2743 = vmatprep.subr.bf16.mxu0 0
    %2744 = vmatpush2.bf16.msra.mxu0 0
    %2745 = vmatprep.subr.bf16.mxu0 0
    %2746 = vmatpush2.bf16.msra.mxu0 0
    %2747 = vmatprep.subr.bf16.mxu0 0
    %2748 = vmatpush2.bf16.msra.mxu0 0
    %2749 = vmatprep.mubr.bf16.mxu0 0
    %2750 = vmatmul.mubr.bf16.gmra.mxu0 %v2715
    %v2751 = vpop.f32.mrf.mxu0
    %v2752 = vadd.f32 0.0, %v2751
    %v2753 = vpop.f32.mrf.mxu0
    %v2754 = vpop.f32.mrf.mxu0
    %v2755 = vadd.f32 0.0, %v2754
    %v2756 = vpop.f32.mrf.mxu0
    %2757 = vdwg.mxu0
    %v2758 = vadd.f32 %v2675, %v2752
    %v2759 = vadd.f32 %v2676, %v2755
    %v2760 = vrot.slane %v2423, 2
    %v2761 = vrot.slane %v2424, 2
    %vm2762 = vcmp.lt.s32.totalorder %v2426, 6
    %v2763 = vsel %vm2762, %v2760, %v2761
    %v2764 = vsel %vm2762, %v2761, %v2760
    %v2765 = vadd.s32 %v2450, 2
    %v2766 = vadd.s32 %v2451, 2
    %vm2767 = vcmp.ge.s32.totalorder %v2765, 0
    %vm2768 = vcmp.ge.s32.totalorder %v2766, 0
    %vm2769 = vcmp.lt.s32.totalorder %v2765, 8
    %vm2770 = vcmp.lt.s32.totalorder %v2766, 8
    %vm2771 = vmand %vm2767, %vm2769
    %vm2772 = vmand %vm2768, %vm2770
    %v2773 = vsel %vm2771, 1, 0
    %v2774 = vsel %vm2772, 1, 0
    %vm2775 = vcmp.eq.s32.totalorder %v2773, 1
    %vm2776 = vcmp.eq.s32.totalorder %v2774, 1
    %v2777 = vsel %vm2775, %v2763, 0.0
    %v2778 = vsel %vm2776, %v2764, 0.0
    %s2779 = scalar_lea.vmem %s20, 64
    %v2780 = vld [vmem:[%s2779] sm:$0xf]
    %v2781 = vld [vmem:[%s2779 + $0x4] sm:$0xf]
    %v2782 = vld [vmem:[%s2779 + $0x8] sm:$0xf]
    %v2783 = vld [vmem:[%s2779 + $0xc] sm:$0xf]
    %v2784 = vpack.c.bf16 %v2778, %v2777
    %v2789 = vunpack.c.l.b16 %v2780
    %v2790 = vunpack.c.l.b16 %v2781
    %v2791 = vunpack.c.l.b16 %v2782
    %v2792 = vunpack.c.l.b16 %v2783
    %v2793 = vpack.c.b16 %v2790, %v2789
    %v2794 = vpack.c.b16 %v2792, %v2791
    %v2798 = vsel %vm89, %v2784, 0
    %2800 = vmatprep.subr.bf16.mxu0 0
    %2801 = vmatpush1.bf16.msra.mxu0 0
    %2802 = vmatprep.subr.bf16.mxu0 0
    %2803 = vmatpush1.bf16.msra.mxu0 0
    %2804 = vmatprep.subr.bf16.mxu0 0
    %2805 = vmatpush1.bf16.msra.mxu0 0
    %2806 = vmatprep.subr.bf16.mxu0 0
    %2807 = vmatpush1.bf16.msra.mxu0 0
    %2808 = vmatprep.subr.bf16.mxu0 0
    %2809 = vmatpush1.bf16.msra.mxu0 0
    %2810 = vmatprep.subr.bf16.mxu0 0
    %2811 = vmatpush1.bf16.msra.mxu0 0
    %2812 = vmatprep.subr.bf16.mxu0 0
    %2813 = vmatpush1.bf16.msra.mxu0 %v2794
    %2814 = vmatprep.subr.bf16.mxu0 0
    %2815 = vmatpush1.bf16.msra.mxu0 %v2793
    %2816 = vmatprep.subr.bf16.mxu0 0
    %2817 = vmatpush2.bf16.msra.mxu0 0
    %2818 = vmatprep.subr.bf16.mxu0 0
    %2819 = vmatpush2.bf16.msra.mxu0 0
    %2820 = vmatprep.subr.bf16.mxu0 0
    %2821 = vmatpush2.bf16.msra.mxu0 0
    %2822 = vmatprep.subr.bf16.mxu0 0
    %2823 = vmatpush2.bf16.msra.mxu0 0
    %2824 = vmatprep.subr.bf16.mxu0 0
    %2825 = vmatpush2.bf16.msra.mxu0 0
    %2826 = vmatprep.subr.bf16.mxu0 0
    %2827 = vmatpush2.bf16.msra.mxu0 0
    %2828 = vmatprep.subr.bf16.mxu0 0
    %2829 = vmatpush2.bf16.msra.mxu0 0
    %2830 = vmatprep.subr.bf16.mxu0 0
    %2831 = vmatpush2.bf16.msra.mxu0 0
    %2832 = vmatprep.mubr.bf16.mxu0 0
    %2833 = vmatmul.mubr.bf16.gmra.mxu0 %v2798
    %v2834 = vpop.f32.mrf.mxu0
    %v2835 = vadd.f32 0.0, %v2834
    %v2836 = vpop.f32.mrf.mxu0
    %v2837 = vpop.f32.mrf.mxu0
    %v2838 = vadd.f32 0.0, %v2837
    %v2839 = vpop.f32.mrf.mxu0
    %2840 = vdwg.mxu0
    %v2841 = vadd.f32 %v2758, %v2835
    %v2842 = vadd.f32 %v2759, %v2838
    %v2843 = vld [vmem:[%s21] sm:$0x1]
    %v2845 = vlaneseq
    %v2846 = vshrl.u32 %v2845, 7
    %v2847 = vsub.s32 0, %v2846
    %v2848 = vrot.slane %v2843, %v2847
    %v2850 = vadd.f32 %v2841, %v2848
    %v2851 = vadd.f32 %v2842, %v2848
    %v2852 = vmax.f32 %v2850, 0.0
    %v2853 = vmax.f32 %v2851, 0.0
    %v2854 = vld [vmem:[%s22] sm:$0xf]
    %v2855 = vld [vmem:[%s22 + $0x4] sm:$0xf]
    %v2856 = vld [vmem:[%s22 + $0x8] sm:$0xf]
    %v2857 = vld [vmem:[%s22 + $0xc] sm:$0xf]
    %v2858 = vld [vmem:[%s22 + $0x10] sm:$0xf]
    %v2859 = vld [vmem:[%s22 + $0x14] sm:$0xf]
    %v2860 = vld [vmem:[%s22 + $0x18] sm:$0xf]
    %v2861 = vld [vmem:[%s22 + $0x1c] sm:$0xf]
    %v2862 = vpack.c.bf16 %v2853, %v2852
    %v2863 = vld [vmem:[%s23] sm:$0x1]
    %v2865 = vlaneseq
    %v2866 = vshrl.u32 %v2865, 7
    %v2867 = vsub.s32 0, %v2866
    %v2868 = vrot.slane %v2863, %v2867
    %v2878 = vunpack.c.l.b16 %v2854
    %v2879 = vunpack.c.l.b16 %v2855
    %v2880 = vunpack.c.l.b16 %v2856
    %v2881 = vunpack.c.l.b16 %v2857
    %v2882 = vunpack.c.l.b16 %v2858
    %v2883 = vunpack.c.l.b16 %v2859
    %v2884 = vunpack.c.l.b16 %v2860
    %v2885 = vunpack.c.l.b16 %v2861
    %v2886 = vpack.c.b16 %v2879, %v2878
    %v2887 = vpack.c.b16 %v2881, %v2880
    %v2888 = vpack.c.b16 %v2883, %v2882
    %v2889 = vpack.c.b16 %v2885, %v2884
    %vm2894 = vcmask 523264
    %v2896 = vsel %vm2894, %v2862, 0
    %2898 = vmatprep.subr.bf16.mxu0 0
    %2899 = vmatpush1.bf16.msra.mxu0 0
    %2900 = vmatprep.subr.bf16.mxu0 0
    %2901 = vmatpush1.bf16.msra.mxu0 0
    %2902 = vmatprep.subr.bf16.mxu0 0
    %2903 = vmatpush1.bf16.msra.mxu0 0
    %2904 = vmatprep.subr.bf16.mxu0 0
    %2905 = vmatpush1.bf16.msra.mxu0 0
    %2906 = vmatprep.subr.bf16.mxu0 0
    %2907 = vmatpush1.bf16.msra.mxu0 %v2889
    %2908 = vmatprep.subr.bf16.mxu0 0
    %2909 = vmatpush1.bf16.msra.mxu0 %v2888
    %2910 = vmatprep.subr.bf16.mxu0 0
    %2911 = vmatpush1.bf16.msra.mxu0 %v2887
    %2912 = vmatprep.subr.bf16.mxu0 0
    %2913 = vmatpush1.bf16.msra.mxu0 %v2886
    %2914 = vmatprep.subr.bf16.mxu0 0
    %2915 = vmatpush2.bf16.msra.mxu0 0
    %2916 = vmatprep.subr.bf16.mxu0 0
    %2917 = vmatpush2.bf16.msra.mxu0 0
    %2918 = vmatprep.subr.bf16.mxu0 0
    %2919 = vmatpush2.bf16.msra.mxu0 0
    %2920 = vmatprep.subr.bf16.mxu0 0
    %2921 = vmatpush2.bf16.msra.mxu0 0
    %2922 = vmatprep.subr.bf16.mxu0 0
    %2923 = vmatpush2.bf16.msra.mxu0 0
    %2924 = vmatprep.subr.bf16.mxu0 0
    %2925 = vmatpush2.bf16.msra.mxu0 0
    %2926 = vmatprep.subr.bf16.mxu0 0
    %2927 = vmatpush2.bf16.msra.mxu0 0
    %2928 = vmatprep.subr.bf16.mxu0 0
    %2929 = vmatpush2.bf16.msra.mxu0 0
    %2930 = vmatprep.mubr.bf16.mxu0 0
    %2931 = vmatmul.mubr.bf16.gmra.mxu0 %v2896
    %v2932 = vpop.f32.mrf.mxu0
    %v2933 = vadd.f32 %v2868, %v2932
    %v2934 = vpop.f32.mrf.mxu0
    %v2935 = vpop.f32.mrf.mxu0
    %v2936 = vadd.f32 %v2868, %v2935
    %v2937 = vpop.f32.mrf.mxu0
    %2938 = vdwg.mxu0
    %v2939 = vadd.f32 %v2379, %v2933
    %v2940 = vadd.f32 %v2380, %v2936
    %2941 = vst.msk [vmem:[#allocation3] sm:$0xff] %vm89, %v2939
    %2942 = vst.msk [vmem:[#allocation3 + $0x8] sm:$0xff] %vm89, %v2940
    // Predicated region
    $region98: #{decoder_forward.3} parent=1 // pred_check
      _
    $region99: #{decoder_forward.3} parent=1 // pred_check_branch
      %2944 = sbr.rel (0) target = $region101
    $region100: #{decoder_forward.3} parent=1 // pred_region
      %s2946 = ssub.s32 256, 256
      %2947 = vsyncadd [#allocation4], %s2946
      %s2948 = sshll.u32 [#allocation3], 4
      %s2949 = int_to_ptr.vmem [resolvable:$true] %s2948
      %2954 = dma.vmem_to_hbm [thread:$0]  %s2949, 256, %s24, [#allocation4], 128, 128, 8
    $region101: #{decoder_forward.3} parent=1 // pred_fallthru
      _
    // Predicated region
    $region102: #{decoder_forward.3} parent=1 // pred_check
      _
    $region103: #{decoder_forward.3} parent=1 // pred_check_branch
      %2956 = sbr.rel (0) target = $region105
    $region104: #{decoder_forward.3} parent=1 // pred_region
      %s2958 = ssub.s32 512, 512
      %2959 = vsyncadd [#allocation6], %s2958
      %s2960 = sshll.u32 [#allocation5], 4
      %s2961 = int_to_ptr.vmem [resolvable:$true] %s2960
      %2966 = dma.vmem_to_hbm [thread:$0]  %s2961, 512, %s25, [#allocation6], 64, 64, 4
    $region105: #{decoder_forward.3} parent=1 // pred_fallthru
      _
    // Predicated region
    $region106: #{decoder_forward.3} parent=1 // pred_check
      _
    $region107: #{decoder_forward.3} parent=1 // pred_check_branch
      %2968 = sbr.rel (0) target = $region109
    $region108: #{decoder_forward.3} parent=1 // pred_region
      %s2970 = ssub.s32 512, 512
      %2971 = vsyncadd [#allocation6], %s2970
      %s2972 = sshll.u32 [#allocation7], 4
      %s2973 = int_to_ptr.vmem [resolvable:$true] %s2972
      %2978 = dma.vmem_to_hbm [thread:$0]  %s2973, 512, %s26, [#allocation6], 64, 64, 4
    $region109: #{decoder_forward.3} parent=1 // pred_fallthru
      _
    // Predicated region
    $region110: #{decoder_forward.3} parent=1 // pred_check
      _
    $region111: #{decoder_forward.3} parent=1 // pred_check_branch
      %2980 = sbr.rel (0) target = $region113
    $region112: #{decoder_forward.3} parent=1 // pred_region
      %2981 = dma.done [#allocation4], 256
    $region113: #{decoder_forward.3} parent=1 // pred_fallthru
      _
    // Predicated region
    $region114: #{decoder_forward.3} parent=1 // pred_check
      _
    $region115: #{decoder_forward.3} parent=1 // pred_check_branch
      %2983 = sbr.rel (0) target = $region117
    $region116: #{decoder_forward.3} parent=1 // pred_region
      %2984 = dma.done [#allocation6], 512
    $region117: #{decoder_forward.3} parent=1 // pred_fallthru
      _
    // Predicated region
    $region118: #{decoder_forward.3} parent=1 // pred_check
      _
    $region119: #{decoder_forward.3} parent=1 // pred_check_branch
      %2986 = sbr.rel (0) target = $region121
    $region120: #{decoder_forward.3} parent=1 // pred_region
      %2987 = dma.done [#allocation6], 512
    $region121: #{decoder_forward.3} parent=1 // pred_fallthru
      _
    %2988 = vsyncpa [#allocation4], 1
    %2989 = vsyncpa [#allocation6], 1

</llo_original>
